<compile_context>
chip_gen: v7x
topology: tpu7x:2x2x1
jax: 0.10.0
libtpu: 0.0.40
codegen_flags: <defaults>
</compile_context>

<pallas_src>
import functools
import math

import jax
import jax.numpy as jnp
from jax.experimental import pallas as pl
from jax.experimental.pallas import tpu as pltpu


_SQRT_2_OVER_PI = 0.7978845608028654
_LN_EPS = 1e-5  # PyTorch nn.LayerNorm default


def _gelu_tanh(x):
    # TODO(synk): PyTorch nn.GELU() defaults to the exact erf form; the tanh
    # approximation (max abs deviation ~1e-3) is used so the op maps onto the EUP.
    return 0.5 * x * (1.0 + jnp.tanh(_SQRT_2_OVER_PI * (x + 0.044715 * x * x * x)))


def _layernorm(x, gamma, beta):
    mu = jnp.mean(x, axis=-1, keepdims=True)
    var = jnp.mean(jnp.square(x - mu), axis=-1, keepdims=True)
    return (x - mu) * jax.lax.rsqrt(var + _LN_EPS) * gamma + beta


def _local_attn_kernel(
    x_ref,                    # (Wt, L, C)  tile of windows (blocked, pipelined)
    pos_ref,                  # (L, C)      positional embedding (resident VMEM)
    g1_ref, b1_ref,           # (1, C)      LayerNorm 1
    wq_ref, bq_ref,           # (C, C), (1, C)
    wk_ref, bk_ref,
    wv_ref, bv_ref,
    wo_ref, bo_ref,           # (C, C), (1, C)  attention output projection
    g2_ref, b2_ref,           # (1, C)      LayerNorm 2
    w1_ref, c1_ref,           # (C, Hdn), (1, Hdn)  FFN linear 1
    w2_ref, c2_ref,           # (Hdn, C), (1, C)    FFN linear 2
    o_ref,                    # (Wt, L, C)
    *, num_heads, head_dim, ffn_chunk,
):
    f32 = jnp.float32
    Wt, L, C = x_ref.shape
    hidden = w1_ref.shape[1]
    mdt = wq_ref.dtype        # matmul-operand dtype (weights' native dtype)

    # Positional embedding broadcast over the window-tile axis; tokens collapsed
    # to a 2-D (Wt*L, C) slab (leading-dim collapse is layout-free).
    x = x_ref[...].astype(f32) + pos_ref[...][None, :, :].astype(f32)
    x2 = x.reshape(Wt * L, C)

    # ---------------- attention block ----------------
    resid1 = x2
    xn = _layernorm(x2, g1_ref[...].astype(f32), b1_ref[...].astype(f32))
    xn_m = xn.astype(mdt)

    scale = 1.0 / math.sqrt(head_dim)
    head_outs = []
    for h in range(num_heads):
        sl = slice(h * head_dim, (h + 1) * head_dim)
        # Per-head Q/K/V by slicing the resident WEIGHTS (full-K = C contraction on
        # the MXU); avoids per-head lane relayouts of the activations.
        qh = jnp.dot(xn_m, wq_ref[:, sl],
                     preferred_element_type=f32) + bq_ref[:, sl].astype(f32)
        kh = jnp.dot(xn_m, wk_ref[:, sl],
                     preferred_element_type=f32) + bk_ref[:, sl].astype(f32)
        vh = jnp.dot(xn_m, wv_ref[:, sl],
                     preferred_element_type=f32) + bv_ref[:, sl].astype(f32)
        qh = (qh * scale).reshape(Wt, L, head_dim).astype(mdt)
        kh = kh.reshape(Wt, L, head_dim).astype(mdt)
        vh = vh.reshape(Wt, L, head_dim).astype(mdt)

        # Scores / softmax / PV, batched over the window-tile axis.
        s = jnp.einsum('bld,bmd->blm', qh, kh, preferred_element_type=f32)
        # TODO(synk): additive attn_mask (padded / shifted windows) not wired in;
        # the default path (H,W multiples of patch_size, attn_mask=None) needs none.
        s = s - jnp.max(s, axis=-1, keepdims=True)
        e = jnp.exp(s)
        p = e * pl.reciprocal(jnp.sum(e, axis=-1, keepdims=True), approx=True)
        oh = jnp.einsum('blm,bmd->bld', p.astype(mdt), vh,
                        preferred_element_type=f32)
        head_outs.append(oh.reshape(Wt * L, head_dim).astype(mdt))

    # Reassemble heads once, then a single full-K (C x C) output projection.
    oh_all = jnp.concatenate(head_outs, axis=-1)                   # (Wt*L, C)
    attn = jnp.dot(oh_all, wo_ref[...],
                   preferred_element_type=f32) + bo_ref[...].astype(f32)

    y2 = attn + resid1

    # ---------------- FFN block (chunked over the hidden dim) ----------------
    yn = _layernorm(y2, g2_ref[...].astype(f32), b2_ref[...].astype(f32))
    yn_m = yn.astype(mdt)
    h2 = jnp.zeros((Wt * L, C), f32)
    for lo in range(0, hidden, ffn_chunk):
        hi = min(lo + ffn_chunk, hidden)
        h1 = jnp.dot(yn_m, w1_ref[:, lo:hi],
                     preferred_element_type=f32) + c1_ref[:, lo:hi].astype(f32)
        h1 = _gelu_tanh(h1)
        h2 = h2 + jnp.dot(h1.astype(mdt), w2_ref[lo:hi, :],
                          preferred_element_type=f32)
    h2 = _gelu_tanh(h2 + c2_ref[...].astype(f32))

    out2 = y2 + h2
    o_ref[...] = out2.reshape(Wt, L, C).astype(o_ref.dtype)


def _vmem_capacity_bytes():
    """Per-generation VMEM capacity (falls back to the v7x 64 MiB if unknown)."""
    try:
        info = pltpu.get_tpu_info()
        cap = getattr(info, "vmem_capacity_bytes", None)
        if cap:
            return int(cap)
    except Exception:
        pass
    return 64 << 20


def _pick_win_tile(n_win, L, C, hidden, num_heads, param_bytes, io_bytes,
                   ffn_chunk, vmem_cap):
    """Largest window tile that fits the per-generation VMEM budget, keeping
    enough grid steps for megacore split + pipelining."""
    # Weights & biases are resident single-buffered full-array VMEM operands.
    budget = max(int(vmem_cap * 0.70) - param_bytes, 2 << 20)
    per_win = (2 * 2 * L * C * io_bytes           # in + out tiles, double-buffered
               + 8 * L * C * 4                    # x/resid/xn/qkv/attn/y temporaries
               + 2 * num_heads * L * L * 4        # scores + probabilities (f32)
               + 2 * L * ffn_chunk * 4            # FFN hidden chunk (+ GELU)
               + 2 * L * C * 4)                   # FFN accumulator + output slab
    t = budget // max(per_win, 1)
    n_pad8 = -(-n_win // 8) * 8
    # Keep >= ~8 grid steps when the window count allows (2 TCs on v7x need >=2
    # steps each just to split; extra steps hide the input-tile DMA).
    max_t = max(8, ((n_pad8 // 8) // 8) * 8)
    t = max(8, min(int(t), max_t, n_pad8))
    return int((t // 8) * 8)


def local_attn_forward(x, params, *, patch_size, num_heads, shift_size=0,
                       win_tile=None, attn_mask=None):
    """Forward pass of LocalAttnLayer. x: (B, C, H, W) NCHW."""
    assert x.ndim == 4, "Input tensor should be in 4 dims!"
    # TODO(synk): in-kernel additive attention mask (padding / shifted windows).
    assert attn_mask is None, "attn_mask path not implemented"
    B, C, H, W = x.shape
    P = patch_size
    assert C % num_heads == 0 and C % 2 == 0
    head_dim = C // num_heads
    hidden = params["ffn_w1"].shape[1]

    if shift_size > 0:
        x = jnp.roll(x, shift=(shift_size, shift_size), axis=(2, 3))
    pad_h = (P - H % P) % P
    pad_w = (P - W % P) % P
    if pad_h or pad_w:
        x = jnp.pad(x, ((0, 0), (0, 0), (0, pad_h), (0, pad_w)))
    Hp, Wp = H + pad_h, W + pad_w
    hp, wp = Hp // P, Wp // P
    L = P * P
    n_win = B * hp * wp

    # to_patches (window-major layout; mathematically identical to the PyTorch
    # '(p1 p2) (b hp wp) c' layout since attention is independent per window).
    xw = x.reshape(B, C, hp, P, wp, P)
    xw = jnp.transpose(xw, (0, 2, 4, 3, 5, 1))       # (B, hp, wp, p1, p2, C)
    xw = xw.reshape(n_win, L, C)

    # Learnable positional embedding: pos[p1*P + p2] = [row_embed[p1], col_embed[p2]]
    pos = jnp.concatenate(
        [jnp.repeat(params["row_embed"][:, None, :], P, axis=1),
         jnp.repeat(params["col_embed"][None, :, :], P, axis=0)],
        axis=-1).reshape(L, C)

    def _b2(v):   # 1-D param -> (1, D) so it sits as a clean 2-D VMEM slab
        return v.reshape(1, -1)

    weight_args = (
        pos,
        _b2(params["ln1_g"]), _b2(params["ln1_b"]),
        params["wq"], _b2(params["bq"]),
        params["wk"], _b2(params["bk"]),
        params["wv"], _b2(params["bv"]),
        params["wo"], _b2(params["bo"]),
        _b2(params["ln2_g"]), _b2(params["ln2_b"]),
        params["ffn_w1"], _b2(params["ffn_b1"]),
        params["ffn_w2"], _b2(params["ffn_b2"]),
    )
    param_bytes = sum(int(v.size) * v.dtype.itemsize for v in weight_args)

    ffn_chunk = min(hidden, 1024)
    vmem_cap = _vmem_capacity_bytes()
    if win_tile is None:
        win_tile = _pick_win_tile(n_win, L, C, hidden, num_heads, param_bytes,
                                  x.dtype.itemsize, ffn_chunk, vmem_cap)
    n_pad = (-n_win) % win_tile                      # ragged tail -> pad, no assert
    if n_pad:
        xw = jnp.pad(xw, ((0, n_pad), (0, 0), (0, 0)))
    n_total = n_win + n_pad
    grid = (n_total // win_tile,)

    kernel = functools.partial(_local_attn_kernel, num_heads=num_heads,
                               head_dim=head_dim, ffn_chunk=ffn_chunk)

    # Advisory cost estimate for the XLA scheduler.
    n_tok = n_total * L
    flops = (4 * 2 * n_tok * C * C                           # qkv + out projections
             + 4 * n_total * num_heads * L * L * head_dim    # scores + p@v
             + 2 * 2 * n_tok * C * hidden)                   # FFN
    transcendentals = (n_total * num_heads * L * L           # exp
                       + n_tok * (hidden + C)                # tanh (GELU)
                       + 2 * n_tok)                          # rsqrt (LayerNorm)
    bytes_accessed = 2 * xw.size * xw.dtype.itemsize + param_bytes

    # Weights/biases/pos: resident full-array VMEM operands (single-buffered).
    vmem_full = pl.BlockSpec(memory_space=pltpu.MemorySpace.VMEM)
    win_in = pl.BlockSpec((win_tile, L, C), lambda i: (i, 0, 0))
    win_out = pl.BlockSpec((win_tile, L, C), lambda i: (i, 0, 0))

    out = pl.pallas_call(
        kernel,
        out_shape=jax.ShapeDtypeStruct((n_total, L, C), x.dtype),
        grid_spec=pltpu.PrefetchScalarGridSpec(
            num_scalar_prefetch=0,
            grid=grid,
            in_specs=[win_in] + [vmem_full] * len(weight_args),
            out_specs=win_out,
        ),
        compiler_params=pltpu.CompilerParams(
            dimension_semantics=("parallel",),   # 2 TCs (v7x) split the window tiles
            vmem_limit_bytes=int(vmem_cap * 0.9),
        ),
        cost_estimate=pl.CostEstimate(
            flops=int(flops),
            transcendentals=int(transcendentals),
            bytes_accessed=int(bytes_accessed),
        ),
    )(xw, *weight_args)

    # Inverse rearrange: '(b hp wp) (p1 p2) c -> b c (hp p1) (wp p2)'
    y = out[:n_win].reshape(B, hp, wp, P, P, C)
    y = jnp.transpose(y, (0, 5, 1, 3, 2, 4))          # (B, C, hp, p1, wp, p2)
    y = y.reshape(B, C, Hp, Wp)
    y = y[..., :H, :W]
    if shift_size > 0:
        y = jnp.roll(y, shift=(-shift_size, -shift_size), axis=(2, 3))
    return y


# --------------------------- pure-JAX reference ---------------------------

def _reference_forward(x, params, *, patch_size, num_heads, shift_size=0):
    B, C, H, W = x.shape
    P = patch_size
    head_dim = C // num_heads

    if shift_size > 0:
        x = jnp.roll(x, shift=(shift_size, shift_size), axis=(2, 3))
    pad_h = (P - H % P) % P
    pad_w = (P - W % P) % P
    if pad_h or pad_w:
        x = jnp.pad(x, ((0, 0), (0, 0), (0, pad_h), (0, pad_w)))
    Hp, Wp = x.shape[-2:]
    hp, wp = Hp // P, Wp // P
    L = P * P

    xw = x.reshape(B, C, hp, P, wp, P)
    xw = jnp.transpose(xw, (0, 2, 4, 3, 5, 1)).reshape(B * hp * wp, L, C)

    pos = jnp.concatenate(
        [jnp.repeat(params["row_embed"][:, None, :], P, axis=1),
         jnp.repeat(params["col_embed"][None, :, :], P, axis=0)],
        axis=-1).reshape(L, C)

    h0 = xw + pos[None]
    resid = h0
    hn = _layernorm(h0, params["ln1_g"], params["ln1_b"])

    q = jnp.einsum('nlc,cd->nld', hn, params["wq"]) + params["bq"]
    k = jnp.einsum('nlc,cd->nld', hn, params["wk"]) + params["bk"]
    v = jnp.einsum('nlc,cd->nld', hn, params["wv"]) + params["bv"]
    N = q.shape[0]
    q = q.reshape(N, L, num_heads, head_dim)
    k = k.reshape(N, L, num_heads, head_dim)
    v = v.reshape(N, L, num_heads, head_dim)
    s = jnp.einsum('nlhd,nmhd->nhlm', q, k) / math.sqrt(head_dim)
    p = jax.nn.softmax(s, axis=-1)
    o = jnp.einsum('nhlm,nmhd->nlhd', p, v).reshape(N, L, C)
    attn = jnp.einsum('nlc,cd->nld', o, params["wo"]) + params["bo"]

    h1 = attn + resid
    hn2 = _layernorm(h1, params["ln2_g"], params["ln2_b"])
    f1 = _gelu_tanh(jnp.einsum('nlc,ch->nlh', hn2, params["ffn_w1"])
                    + params["ffn_b1"])
    f2 = _gelu_tanh(jnp.einsum('nlh,hc->nlc', f1, params["ffn_w2"])
                    + params["ffn_b2"])
    h2 = h1 + f2

    y = h2.reshape(B, hp, wp, P, P, C)
    y = jnp.transpose(y, (0, 5, 1, 3, 2, 4)).reshape(B, C, Hp, Wp)
    y = y[..., :H, :W]
    if shift_size > 0:
        y = jnp.roll(y, shift=(-shift_size, -shift_size), axis=(2, 3))
    return y


def init_params(key, C, num_heads, patch_size, hidden):
    ks = jax.random.split(key, 12)
    s = 0.1
    P = patch_size
    f32 = jnp.float32
    return {
        "row_embed": jax.random.uniform(ks[0], (P, C // 2), f32),
        "col_embed": jax.random.uniform(ks[1], (P, C // 2), f32),
        "ln1_g": jnp.ones((C,), f32), "ln1_b": jnp.zeros((C,), f32),
        "wq": jax.random.normal(ks[2], (C, C), f32) * s,
        "bq": jax.random.normal(ks[3], (C,), f32) * s,
        "wk": jax.random.normal(ks[4], (C, C), f32) * s,
        "bk": jax.random.normal(ks[5], (C,), f32) * s,
        "wv": jax.random.normal(ks[6], (C, C), f32) * s,
        "bv": jax.random.normal(ks[7], (C,), f32) * s,
        "wo": jax.random.normal(ks[8], (C, C), f32) * s,
        "bo": jax.random.normal(ks[9], (C,), f32) * s,
        "ln2_g": jnp.ones((C,), f32), "ln2_b": jnp.zeros((C,), f32),
        "ffn_w1": jax.random.normal(ks[10], (C, hidden), f32) * s,
        "ffn_b1": jnp.zeros((hidden,), f32),
        "ffn_w2": jax.random.normal(ks[11], (hidden, C), f32) * s,
        "ffn_b2": jnp.zeros((C,), f32),
    }


if __name__ == "__main__":
    # Small deterministic config: B=2, embedding_dim=64, 16x16 feature map,
    # patch_size=4 (windows of 16 tokens), 4 heads (head_dim=16), FFN hidden 256.
    B, C, H, W = 2, 64, 16, 16
    patch_size, num_heads = 4, 4
    hidden = 4 * C

    key = jax.random.PRNGKey(0)
    kx, kp = jax.random.split(key)
    x = jax.random.normal(kx, (B, C, H, W), dtype=jnp.float32)
    params = init_params(kp, C, num_heads, patch_size, hidden)

    out = local_attn_forward(x, params, patch_size=patch_size, num_heads=num_heads)
    out = jax.block_until_ready(out)

    ref = _reference_forward(x, params, patch_size=patch_size, num_heads=num_heads)
    assert out.shape == (B, C, H, W)
    max_err = float(jnp.max(jnp.abs(out - ref)))
    # Tolerance accounts for single-pass (bf16-operand) MXU matmuls and the
    # approximate softmax reciprocal in the kernel.
    assert jnp.allclose(out, ref, atol=2e-2, rtol=2e-2), f"max abs err = {max_err}"

    print("KERNEL_OK")
</pallas_src>

<mosaic_0001>
module attributes {stable_mosaic.version = 11 : i64} {
  func.func @_local_attn_kernel(%arg0: i32, %arg1: memref<8x16x64xf32, #tpu.memory_space<vmem>>, %arg2: memref<16x64xf32, #tpu.memory_space<vmem>>, %arg3: memref<1x64xf32, #tpu.memory_space<vmem>>, %arg4: memref<1x64xf32, #tpu.memory_space<vmem>>, %arg5: memref<64x64xf32, #tpu.memory_space<vmem>>, %arg6: memref<1x64xf32, #tpu.memory_space<vmem>>, %arg7: memref<64x64xf32, #tpu.memory_space<vmem>>, %arg8: memref<1x64xf32, #tpu.memory_space<vmem>>, %arg9: memref<64x64xf32, #tpu.memory_space<vmem>>, %arg10: memref<1x64xf32, #tpu.memory_space<vmem>>, %arg11: memref<64x64xf32, #tpu.memory_space<vmem>>, %arg12: memref<1x64xf32, #tpu.memory_space<vmem>>, %arg13: memref<1x64xf32, #tpu.memory_space<vmem>>, %arg14: memref<1x64xf32, #tpu.memory_space<vmem>>, %arg15: memref<64x256xf32, #tpu.memory_space<vmem>>, %arg16: memref<1x256xf32, #tpu.memory_space<vmem>>, %arg17: memref<256x64xf32, #tpu.memory_space<vmem>>, %arg18: memref<1x64xf32, #tpu.memory_space<vmem>>, %arg19: memref<8x16x64xf32, #tpu.memory_space<vmem>>) attributes {dimension_semantics = [#tpu.dimension_semantics<parallel>], iteration_bounds = array<i64: 4>, scalar_prefetch = 0 : i64, scratch_operands = 0 : i64, tpu.core_type = #tpu.core_type<tc>, window_params = [{transform_indices = @transform_0, window_bounds = array<i64: 8, 16, 64>}, {pipeline_mode = #tpu.pipeline_mode<synchronous>, transform_indices = @transform_1, window_bounds = array<i64: 16, 64>}, {pipeline_mode = #tpu.pipeline_mode<synchronous>, transform_indices = @transform_2, window_bounds = array<i64: 1, 64>}, {pipeline_mode = #tpu.pipeline_mode<synchronous>, transform_indices = @transform_3, window_bounds = array<i64: 1, 64>}, {pipeline_mode = #tpu.pipeline_mode<synchronous>, transform_indices = @transform_4, window_bounds = array<i64: 64, 64>}, {pipeline_mode = #tpu.pipeline_mode<synchronous>, transform_indices = @transform_5, window_bounds = array<i64: 1, 64>}, {pipeline_mode = #tpu.pipeline_mode<synchronous>, transform_indices = @transform_6, window_bounds = array<i64: 64, 64>}, {pipeline_mode = #tpu.pipeline_mode<synchronous>, transform_indices = @transform_7, window_bounds = array<i64: 1, 64>}, {pipeline_mode = #tpu.pipeline_mode<synchronous>, transform_indices = @transform_8, window_bounds = array<i64: 64, 64>}, {pipeline_mode = #tpu.pipeline_mode<synchronous>, transform_indices = @transform_9, window_bounds = array<i64: 1, 64>}, {pipeline_mode = #tpu.pipeline_mode<synchronous>, transform_indices = @transform_10, window_bounds = array<i64: 64, 64>}, {pipeline_mode = #tpu.pipeline_mode<synchronous>, transform_indices = @transform_11, window_bounds = array<i64: 1, 64>}, {pipeline_mode = #tpu.pipeline_mode<synchronous>, transform_indices = @transform_12, window_bounds = array<i64: 1, 64>}, {pipeline_mode = #tpu.pipeline_mode<synchronous>, transform_indices = @transform_13, window_bounds = array<i64: 1, 64>}, {pipeline_mode = #tpu.pipeline_mode<synchronous>, transform_indices = @transform_14, window_bounds = array<i64: 64, 256>}, {pipeline_mode = #tpu.pipeline_mode<synchronous>, transform_indices = @transform_15, window_bounds = array<i64: 1, 256>}, {pipeline_mode = #tpu.pipeline_mode<synchronous>, transform_indices = @transform_16, window_bounds = array<i64: 256, 64>}, {pipeline_mode = #tpu.pipeline_mode<synchronous>, transform_indices = @transform_17, window_bounds = array<i64: 1, 64>}, {transform_indices = @transform_18, window_bounds = array<i64: 8, 16, 64>}]} {
    %c0 = arith.constant 0 : index
    %c0_0 = arith.constant 0 : index
    %c0_1 = arith.constant 0 : index
    %0 = vector.load %arg1[%c0, %c0_0, %c0_1] : memref<8x16x64xf32, #tpu.memory_space<vmem>>, vector<8x16x64xf32>
    %c0_2 = arith.constant 0 : index
    %c0_3 = arith.constant 0 : index
    %1 = vector.load %arg2[%c0_2, %c0_3] : memref<16x64xf32, #tpu.memory_space<vmem>>, vector<16x64xf32>
    %2 = vector.shape_cast %1 : vector<16x64xf32> to vector<1x16x64xf32>
    %3 = vector.broadcast %2 : vector<1x16x64xf32> to vector<8x16x64xf32>
    %4 = arith.addf %0, %3 : vector<8x16x64xf32>
    %5 = vector.shape_cast %4 : vector<8x16x64xf32> to vector<128x64xf32>
    %c0_4 = arith.constant 0 : index
    %c0_5 = arith.constant 0 : index
    %6 = vector.load %arg3[%c0_4, %c0_5] : memref<1x64xf32, #tpu.memory_space<vmem>>, vector<1x64xf32>
    %c0_6 = arith.constant 0 : index
    %c0_7 = arith.constant 0 : index
    %7 = vector.load %arg4[%c0_6, %c0_7] : memref<1x64xf32, #tpu.memory_space<vmem>>, vector<1x64xf32>
    %cst = arith.constant dense<0.000000e+00> : vector<128xf32>
    %8 = vector.multi_reduction <add>, %5, %cst [1] : vector<128x64xf32> to vector<128xf32>
    %9 = vector.shape_cast %8 : vector<128xf32> to vector<128x1xf32>
    %cst_8 = arith.constant 6.400000e+01 : f32
    %10 = vector.broadcast %cst_8 : f32 to vector<128x1xf32>
    %11 = arith.divf %9, %10 : vector<128x1xf32>
    %12 = vector.broadcast %11 : vector<128x1xf32> to vector<128x64xf32>
    %13 = arith.subf %5, %12 : vector<128x64xf32>
    %14 = arith.mulf %13, %13 : vector<128x64xf32>
    %cst_9 = arith.constant dense<0.000000e+00> : vector<128xf32>
    %15 = vector.multi_reduction <add>, %14, %cst_9 [1] : vector<128x64xf32> to vector<128xf32>
    %16 = vector.shape_cast %15 : vector<128xf32> to vector<128x1xf32>
    %cst_10 = arith.constant 6.400000e+01 : f32
    %17 = vector.broadcast %cst_10 : f32 to vector<128x1xf32>
    %18 = arith.divf %16, %17 : vector<128x1xf32>
    %19 = vector.broadcast %11 : vector<128x1xf32> to vector<128x64xf32>
    %20 = arith.subf %5, %19 : vector<128x64xf32>
    %cst_11 = arith.constant 9.99999974E-6 : f32
    %21 = vector.broadcast %cst_11 : f32 to vector<128x1xf32>
    %22 = arith.addf %18, %21 : vector<128x1xf32>
    %23 = math.rsqrt %22 : vector<128x1xf32>
    %24 = vector.broadcast %23 : vector<128x1xf32> to vector<128x64xf32>
    %25 = arith.mulf %20, %24 : vector<128x64xf32>
    %26 = vector.broadcast %6 : vector<1x64xf32> to vector<128x64xf32>
    %27 = arith.mulf %25, %26 : vector<128x64xf32>
    %28 = vector.broadcast %7 : vector<1x64xf32> to vector<128x64xf32>
    %29 = arith.addf %27, %28 : vector<128x64xf32>
    %c0_12 = arith.constant 0 : index
    %c0_13 = arith.constant 0 : index
    %30 = vector.load %arg5[%c0_12, %c0_13] : memref<64x64xf32, #tpu.memory_space<vmem>>, vector<64x16xf32>
    %cst_14 = arith.constant dense<0.000000e+00> : vector<128x16xf32>
    %31 = tpu.matmul %29, %30, %cst_14 {dimension_numbers = #tpu.dot_dimension_numbers<[1], [0], [0], [1], [0, 0, 1, 1], [], []>} : vector<128x64xf32>, vector<64x16xf32>, vector<128x16xf32> -> vector<128x16xf32>
    %c0_15 = arith.constant 0 : index
    %c0_16 = arith.constant 0 : index
    %32 = vector.load %arg6[%c0_15, %c0_16] : memref<1x64xf32, #tpu.memory_space<vmem>>, vector<1x16xf32>
    %33 = vector.broadcast %32 : vector<1x16xf32> to vector<128x16xf32>
    %34 = arith.addf %31, %33 : vector<128x16xf32>
    %c0_17 = arith.constant 0 : index
    %c0_18 = arith.constant 0 : index
    %35 = vector.load %arg7[%c0_17, %c0_18] : memref<64x64xf32, #tpu.memory_space<vmem>>, vector<64x16xf32>
    %cst_19 = arith.constant dense<0.000000e+00> : vector<128x16xf32>
    %36 = tpu.matmul %29, %35, %cst_19 {dimension_numbers = #tpu.dot_dimension_numbers<[1], [0], [0], [1], [0, 0, 1, 1], [], []>} : vector<128x64xf32>, vector<64x16xf32>, vector<128x16xf32> -> vector<128x16xf32>
    %c0_20 = arith.constant 0 : index
    %c0_21 = arith.constant 0 : index
    %37 = vector.load %arg8[%c0_20, %c0_21] : memref<1x64xf32, #tpu.memory_space<vmem>>, vector<1x16xf32>
    %38 = vector.broadcast %37 : vector<1x16xf32> to vector<128x16xf32>
    %39 = arith.addf %36, %38 : vector<128x16xf32>
    %c0_22 = arith.constant 0 : index
    %c0_23 = arith.constant 0 : index
    %40 = vector.load %arg9[%c0_22, %c0_23] : memref<64x64xf32, #tpu.memory_space<vmem>>, vector<64x16xf32>
    %cst_24 = arith.constant dense<0.000000e+00> : vector<128x16xf32>
    %41 = tpu.matmul %29, %40, %cst_24 {dimension_numbers = #tpu.dot_dimension_numbers<[1], [0], [0], [1], [0, 0, 1, 1], [], []>} : vector<128x64xf32>, vector<64x16xf32>, vector<128x16xf32> -> vector<128x16xf32>
    %c0_25 = arith.constant 0 : index
    %c0_26 = arith.constant 0 : index
    %42 = vector.load %arg10[%c0_25, %c0_26] : memref<1x64xf32, #tpu.memory_space<vmem>>, vector<1x16xf32>
    %43 = vector.broadcast %42 : vector<1x16xf32> to vector<128x16xf32>
    %44 = arith.addf %41, %43 : vector<128x16xf32>
    %cst_27 = arith.constant 2.500000e-01 : f32
    %45 = vector.broadcast %cst_27 : f32 to vector<128x16xf32>
    %46 = arith.mulf %34, %45 : vector<128x16xf32>
    %47 = vector.shape_cast %46 : vector<128x16xf32> to vector<8x16x16xf32>
    %48 = vector.shape_cast %39 : vector<128x16xf32> to vector<8x16x16xf32>
    %49 = vector.shape_cast %44 : vector<128x16xf32> to vector<8x16x16xf32>
    "tpu.trace_start"() <{level = 10 : i32, message = "bld,bmd->blm"}> : () -> ()
    %cst_28 = arith.constant dense<0.000000e+00> : vector<8x16x16xf32>
    %50 = tpu.matmul %47, %48, %cst_28 {dimension_numbers = #tpu.dot_dimension_numbers<[2], [2], [1], [1], [0, 0, 0, 1, 1, 1], [0], [0]>} : vector<8x16x16xf32>, vector<8x16x16xf32>, vector<8x16x16xf32> -> vector<8x16x16xf32>
    "tpu.trace_stop"() : () -> ()
    %cst_29 = arith.constant dense<0xFF800000> : vector<8x16xf32>
    %51 = vector.multi_reduction <maximumf>, %50, %cst_29 [2] : vector<8x16x16xf32> to vector<8x16xf32>
    %52 = vector.shape_cast %51 : vector<8x16xf32> to vector<8x16x1xf32>
    %53 = vector.broadcast %52 : vector<8x16x1xf32> to vector<8x16x16xf32>
    %54 = arith.subf %50, %53 : vector<8x16x16xf32>
    %55 = math.exp %54 : vector<8x16x16xf32>
    %cst_30 = arith.constant dense<0.000000e+00> : vector<8x16xf32>
    %56 = vector.multi_reduction <add>, %55, %cst_30 [2] : vector<8x16x16xf32> to vector<8x16xf32>
    %57 = vector.shape_cast %56 : vector<8x16xf32> to vector<8x16x1xf32>
    %58 = tpu.reciprocal %57 {approx = true} : vector<8x16x1xf32> -> vector<8x16x1xf32>
    %59 = vector.broadcast %58 : vector<8x16x1xf32> to vector<8x16x16xf32>
    %60 = arith.mulf %55, %59 : vector<8x16x16xf32>
    "tpu.trace_start"() <{level = 10 : i32, message = "blm,bmd->bld"}> : () -> ()
    %cst_31 = arith.constant dense<0.000000e+00> : vector<8x16x16xf32>
    %61 = tpu.matmul %60, %49, %cst_31 {dimension_numbers = #tpu.dot_dimension_numbers<[2], [1], [1], [2], [0, 0, 0, 1, 1, 2], [0], [0]>} : vector<8x16x16xf32>, vector<8x16x16xf32>, vector<8x16x16xf32> -> vector<8x16x16xf32>
    "tpu.trace_stop"() : () -> ()
    %62 = vector.shape_cast %61 : vector<8x16x16xf32> to vector<128x16xf32>
    %c0_32 = arith.constant 0 : index
    %c16 = arith.constant 16 : index
    %63 = vector.load %arg5[%c0_32, %c16] : memref<64x64xf32, #tpu.memory_space<vmem>>, vector<64x16xf32>
    %cst_33 = arith.constant dense<0.000000e+00> : vector<128x16xf32>
    %64 = tpu.matmul %29, %63, %cst_33 {dimension_numbers = #tpu.dot_dimension_numbers<[1], [0], [0], [1], [0, 0, 1, 1], [], []>} : vector<128x64xf32>, vector<64x16xf32>, vector<128x16xf32> -> vector<128x16xf32>
    %c0_34 = arith.constant 0 : index
    %c16_35 = arith.constant 16 : index
    %65 = vector.load %arg6[%c0_34, %c16_35] : memref<1x64xf32, #tpu.memory_space<vmem>>, vector<1x16xf32>
    %66 = vector.broadcast %65 : vector<1x16xf32> to vector<128x16xf32>
    %67 = arith.addf %64, %66 : vector<128x16xf32>
    %c0_36 = arith.constant 0 : index
    %c16_37 = arith.constant 16 : index
    %68 = vector.load %arg7[%c0_36, %c16_37] : memref<64x64xf32, #tpu.memory_space<vmem>>, vector<64x16xf32>
    %cst_38 = arith.constant dense<0.000000e+00> : vector<128x16xf32>
    %69 = tpu.matmul %29, %68, %cst_38 {dimension_numbers = #tpu.dot_dimension_numbers<[1], [0], [0], [1], [0, 0, 1, 1], [], []>} : vector<128x64xf32>, vector<64x16xf32>, vector<128x16xf32> -> vector<128x16xf32>
    %c0_39 = arith.constant 0 : index
    %c16_40 = arith.constant 16 : index
    %70 = vector.load %arg8[%c0_39, %c16_40] : memref<1x64xf32, #tpu.memory_space<vmem>>, vector<1x16xf32>
    %71 = vector.broadcast %70 : vector<1x16xf32> to vector<128x16xf32>
    %72 = arith.addf %69, %71 : vector<128x16xf32>
    %c0_41 = arith.constant 0 : index
    %c16_42 = arith.constant 16 : index
    %73 = vector.load %arg9[%c0_41, %c16_42] : memref<64x64xf32, #tpu.memory_space<vmem>>, vector<64x16xf32>
    %cst_43 = arith.constant dense<0.000000e+00> : vector<128x16xf32>
    %74 = tpu.matmul %29, %73, %cst_43 {dimension_numbers = #tpu.dot_dimension_numbers<[1], [0], [0], [1], [0, 0, 1, 1], [], []>} : vector<128x64xf32>, vector<64x16xf32>, vector<128x16xf32> -> vector<128x16xf32>
    %c0_44 = arith.constant 0 : index
    %c16_45 = arith.constant 16 : index
    %75 = vector.load %arg10[%c0_44, %c16_45] : memref<1x64xf32, #tpu.memory_space<vmem>>, vector<1x16xf32>
    %76 = vector.broadcast %75 : vector<1x16xf32> to vector<128x16xf32>
    %77 = arith.addf %74, %76 : vector<128x16xf32>
    %cst_46 = arith.constant 2.500000e-01 : f32
    %78 = vector.broadcast %cst_46 : f32 to vector<128x16xf32>
    %79 = arith.mulf %67, %78 : vector<128x16xf32>
    %80 = vector.shape_cast %79 : vector<128x16xf32> to vector<8x16x16xf32>
    %81 = vector.shape_cast %72 : vector<128x16xf32> to vector<8x16x16xf32>
    %82 = vector.shape_cast %77 : vector<128x16xf32> to vector<8x16x16xf32>
    "tpu.trace_start"() <{level = 10 : i32, message = "bld,bmd->blm"}> : () -> ()
    %cst_47 = arith.constant dense<0.000000e+00> : vector<8x16x16xf32>
    %83 = tpu.matmul %80, %81, %cst_47 {dimension_numbers = #tpu.dot_dimension_numbers<[2], [2], [1], [1], [0, 0, 0, 1, 1, 1], [0], [0]>} : vector<8x16x16xf32>, vector<8x16x16xf32>, vector<8x16x16xf32> -> vector<8x16x16xf32>
    "tpu.trace_stop"() : () -> ()
    %cst_48 = arith.constant dense<0xFF800000> : vector<8x16xf32>
    %84 = vector.multi_reduction <maximumf>, %83, %cst_48 [2] : vector<8x16x16xf32> to vector<8x16xf32>
    %85 = vector.shape_cast %84 : vector<8x16xf32> to vector<8x16x1xf32>
    %86 = vector.broadcast %85 : vector<8x16x1xf32> to vector<8x16x16xf32>
    %87 = arith.subf %83, %86 : vector<8x16x16xf32>
    %88 = math.exp %87 : vector<8x16x16xf32>
    %cst_49 = arith.constant dense<0.000000e+00> : vector<8x16xf32>
    %89 = vector.multi_reduction <add>, %88, %cst_49 [2] : vector<8x16x16xf32> to vector<8x16xf32>
    %90 = vector.shape_cast %89 : vector<8x16xf32> to vector<8x16x1xf32>
    %91 = tpu.reciprocal %90 {approx = true} : vector<8x16x1xf32> -> vector<8x16x1xf32>
    %92 = vector.broadcast %91 : vector<8x16x1xf32> to vector<8x16x16xf32>
    %93 = arith.mulf %88, %92 : vector<8x16x16xf32>
    "tpu.trace_start"() <{level = 10 : i32, message = "blm,bmd->bld"}> : () -> ()
    %cst_50 = arith.constant dense<0.000000e+00> : vector<8x16x16xf32>
    %94 = tpu.matmul %93, %82, %cst_50 {dimension_numbers = #tpu.dot_dimension_numbers<[2], [1], [1], [2], [0, 0, 0, 1, 1, 2], [0], [0]>} : vector<8x16x16xf32>, vector<8x16x16xf32>, vector<8x16x16xf32> -> vector<8x16x16xf32>
    "tpu.trace_stop"() : () -> ()
    %95 = vector.shape_cast %94 : vector<8x16x16xf32> to vector<128x16xf32>
    %c0_51 = arith.constant 0 : index
    %c32 = arith.constant 32 : index
    %96 = vector.load %arg5[%c0_51, %c32] : memref<64x64xf32, #tpu.memory_space<vmem>>, vector<64x16xf32>
    %cst_52 = arith.constant dense<0.000000e+00> : vector<128x16xf32>
    %97 = tpu.matmul %29, %96, %cst_52 {dimension_numbers = #tpu.dot_dimension_numbers<[1], [0], [0], [1], [0, 0, 1, 1], [], []>} : vector<128x64xf32>, vector<64x16xf32>, vector<128x16xf32> -> vector<128x16xf32>
    %c0_53 = arith.constant 0 : index
    %c32_54 = arith.constant 32 : index
    %98 = vector.load %arg6[%c0_53, %c32_54] : memref<1x64xf32, #tpu.memory_space<vmem>>, vector<1x16xf32>
    %99 = vector.broadcast %98 : vector<1x16xf32> to vector<128x16xf32>
    %100 = arith.addf %97, %99 : vector<128x16xf32>
    %c0_55 = arith.constant 0 : index
    %c32_56 = arith.constant 32 : index
    %101 = vector.load %arg7[%c0_55, %c32_56] : memref<64x64xf32, #tpu.memory_space<vmem>>, vector<64x16xf32>
    %cst_57 = arith.constant dense<0.000000e+00> : vector<128x16xf32>
    %102 = tpu.matmul %29, %101, %cst_57 {dimension_numbers = #tpu.dot_dimension_numbers<[1], [0], [0], [1], [0, 0, 1, 1], [], []>} : vector<128x64xf32>, vector<64x16xf32>, vector<128x16xf32> -> vector<128x16xf32>
    %c0_58 = arith.constant 0 : index
    %c32_59 = arith.constant 32 : index
    %103 = vector.load %arg8[%c0_58, %c32_59] : memref<1x64xf32, #tpu.memory_space<vmem>>, vector<1x16xf32>
    %104 = vector.broadcast %103 : vector<1x16xf32> to vector<128x16xf32>
    %105 = arith.addf %102, %104 : vector<128x16xf32>
    %c0_60 = arith.constant 0 : index
    %c32_61 = arith.constant 32 : index
    %106 = vector.load %arg9[%c0_60, %c32_61] : memref<64x64xf32, #tpu.memory_space<vmem>>, vector<64x16xf32>
    %cst_62 = arith.constant dense<0.000000e+00> : vector<128x16xf32>
    %107 = tpu.matmul %29, %106, %cst_62 {dimension_numbers = #tpu.dot_dimension_numbers<[1], [0], [0], [1], [0, 0, 1, 1], [], []>} : vector<128x64xf32>, vector<64x16xf32>, vector<128x16xf32> -> vector<128x16xf32>
    %c0_63 = arith.constant 0 : index
    %c32_64 = arith.constant 32 : index
    %108 = vector.load %arg10[%c0_63, %c32_64] : memref<1x64xf32, #tpu.memory_space<vmem>>, vector<1x16xf32>
    %109 = vector.broadcast %108 : vector<1x16xf32> to vector<128x16xf32>
    %110 = arith.addf %107, %109 : vector<128x16xf32>
    %cst_65 = arith.constant 2.500000e-01 : f32
    %111 = vector.broadcast %cst_65 : f32 to vector<128x16xf32>
    %112 = arith.mulf %100, %111 : vector<128x16xf32>
    %113 = vector.shape_cast %112 : vector<128x16xf32> to vector<8x16x16xf32>
    %114 = vector.shape_cast %105 : vector<128x16xf32> to vector<8x16x16xf32>
    %115 = vector.shape_cast %110 : vector<128x16xf32> to vector<8x16x16xf32>
    "tpu.trace_start"() <{level = 10 : i32, message = "bld,bmd->blm"}> : () -> ()
    %cst_66 = arith.constant dense<0.000000e+00> : vector<8x16x16xf32>
    %116 = tpu.matmul %113, %114, %cst_66 {dimension_numbers = #tpu.dot_dimension_numbers<[2], [2], [1], [1], [0, 0, 0, 1, 1, 1], [0], [0]>} : vector<8x16x16xf32>, vector<8x16x16xf32>, vector<8x16x16xf32> -> vector<8x16x16xf32>
    "tpu.trace_stop"() : () -> ()
    %cst_67 = arith.constant dense<0xFF800000> : vector<8x16xf32>
    %117 = vector.multi_reduction <maximumf>, %116, %cst_67 [2] : vector<8x16x16xf32> to vector<8x16xf32>
    %118 = vector.shape_cast %117 : vector<8x16xf32> to vector<8x16x1xf32>
    %119 = vector.broadcast %118 : vector<8x16x1xf32> to vector<8x16x16xf32>
    %120 = arith.subf %116, %119 : vector<8x16x16xf32>
    %121 = math.exp %120 : vector<8x16x16xf32>
    %cst_68 = arith.constant dense<0.000000e+00> : vector<8x16xf32>
    %122 = vector.multi_reduction <add>, %121, %cst_68 [2] : vector<8x16x16xf32> to vector<8x16xf32>
    %123 = vector.shape_cast %122 : vector<8x16xf32> to vector<8x16x1xf32>
    %124 = tpu.reciprocal %123 {approx = true} : vector<8x16x1xf32> -> vector<8x16x1xf32>
    %125 = vector.broadcast %124 : vector<8x16x1xf32> to vector<8x16x16xf32>
    %126 = arith.mulf %121, %125 : vector<8x16x16xf32>
    "tpu.trace_start"() <{level = 10 : i32, message = "blm,bmd->bld"}> : () -> ()
    %cst_69 = arith.constant dense<0.000000e+00> : vector<8x16x16xf32>
    %127 = tpu.matmul %126, %115, %cst_69 {dimension_numbers = #tpu.dot_dimension_numbers<[2], [1], [1], [2], [0, 0, 0, 1, 1, 2], [0], [0]>} : vector<8x16x16xf32>, vector<8x16x16xf32>, vector<8x16x16xf32> -> vector<8x16x16xf32>
    "tpu.trace_stop"() : () -> ()
    %128 = vector.shape_cast %127 : vector<8x16x16xf32> to vector<128x16xf32>
    %c0_70 = arith.constant 0 : index
    %c48 = arith.constant 48 : index
    %129 = vector.load %arg5[%c0_70, %c48] : memref<64x64xf32, #tpu.memory_space<vmem>>, vector<64x16xf32>
    %cst_71 = arith.constant dense<0.000000e+00> : vector<128x16xf32>
    %130 = tpu.matmul %29, %129, %cst_71 {dimension_numbers = #tpu.dot_dimension_numbers<[1], [0], [0], [1], [0, 0, 1, 1], [], []>} : vector<128x64xf32>, vector<64x16xf32>, vector<128x16xf32> -> vector<128x16xf32>
    %c0_72 = arith.constant 0 : index
    %c48_73 = arith.constant 48 : index
    %131 = vector.load %arg6[%c0_72, %c48_73] : memref<1x64xf32, #tpu.memory_space<vmem>>, vector<1x16xf32>
    %132 = vector.broadcast %131 : vector<1x16xf32> to vector<128x16xf32>
    %133 = arith.addf %130, %132 : vector<128x16xf32>
    %c0_74 = arith.constant 0 : index
    %c48_75 = arith.constant 48 : index
    %134 = vector.load %arg7[%c0_74, %c48_75] : memref<64x64xf32, #tpu.memory_space<vmem>>, vector<64x16xf32>
    %cst_76 = arith.constant dense<0.000000e+00> : vector<128x16xf32>
    %135 = tpu.matmul %29, %134, %cst_76 {dimension_numbers = #tpu.dot_dimension_numbers<[1], [0], [0], [1], [0, 0, 1, 1], [], []>} : vector<128x64xf32>, vector<64x16xf32>, vector<128x16xf32> -> vector<128x16xf32>
    %c0_77 = arith.constant 0 : index
    %c48_78 = arith.constant 48 : index
    %136 = vector.load %arg8[%c0_77, %c48_78] : memref<1x64xf32, #tpu.memory_space<vmem>>, vector<1x16xf32>
    %137 = vector.broadcast %136 : vector<1x16xf32> to vector<128x16xf32>
    %138 = arith.addf %135, %137 : vector<128x16xf32>
    %c0_79 = arith.constant 0 : index
    %c48_80 = arith.constant 48 : index
    %139 = vector.load %arg9[%c0_79, %c48_80] : memref<64x64xf32, #tpu.memory_space<vmem>>, vector<64x16xf32>
    %cst_81 = arith.constant dense<0.000000e+00> : vector<128x16xf32>
    %140 = tpu.matmul %29, %139, %cst_81 {dimension_numbers = #tpu.dot_dimension_numbers<[1], [0], [0], [1], [0, 0, 1, 1], [], []>} : vector<128x64xf32>, vector<64x16xf32>, vector<128x16xf32> -> vector<128x16xf32>
    %c0_82 = arith.constant 0 : index
    %c48_83 = arith.constant 48 : index
    %141 = vector.load %arg10[%c0_82, %c48_83] : memref<1x64xf32, #tpu.memory_space<vmem>>, vector<1x16xf32>
    %142 = vector.broadcast %141 : vector<1x16xf32> to vector<128x16xf32>
    %143 = arith.addf %140, %142 : vector<128x16xf32>
    %cst_84 = arith.constant 2.500000e-01 : f32
    %144 = vector.broadcast %cst_84 : f32 to vector<128x16xf32>
    %145 = arith.mulf %133, %144 : vector<128x16xf32>
    %146 = vector.shape_cast %145 : vector<128x16xf32> to vector<8x16x16xf32>
    %147 = vector.shape_cast %138 : vector<128x16xf32> to vector<8x16x16xf32>
    %148 = vector.shape_cast %143 : vector<128x16xf32> to vector<8x16x16xf32>
    "tpu.trace_start"() <{level = 10 : i32, message = "bld,bmd->blm"}> : () -> ()
    %cst_85 = arith.constant dense<0.000000e+00> : vector<8x16x16xf32>
    %149 = tpu.matmul %146, %147, %cst_85 {dimension_numbers = #tpu.dot_dimension_numbers<[2], [2], [1], [1], [0, 0, 0, 1, 1, 1], [0], [0]>} : vector<8x16x16xf32>, vector<8x16x16xf32>, vector<8x16x16xf32> -> vector<8x16x16xf32>
    "tpu.trace_stop"() : () -> ()
    %cst_86 = arith.constant dense<0xFF800000> : vector<8x16xf32>
    %150 = vector.multi_reduction <maximumf>, %149, %cst_86 [2] : vector<8x16x16xf32> to vector<8x16xf32>
    %151 = vector.shape_cast %150 : vector<8x16xf32> to vector<8x16x1xf32>
    %152 = vector.broadcast %151 : vector<8x16x1xf32> to vector<8x16x16xf32>
    %153 = arith.subf %149, %152 : vector<8x16x16xf32>
    %154 = math.exp %153 : vector<8x16x16xf32>
    %cst_87 = arith.constant dense<0.000000e+00> : vector<8x16xf32>
    %155 = vector.multi_reduction <add>, %154, %cst_87 [2] : vector<8x16x16xf32> to vector<8x16xf32>
    %156 = vector.shape_cast %155 : vector<8x16xf32> to vector<8x16x1xf32>
    %157 = tpu.reciprocal %156 {approx = true} : vector<8x16x1xf32> -> vector<8x16x1xf32>
    %158 = vector.broadcast %157 : vector<8x16x1xf32> to vector<8x16x16xf32>
    %159 = arith.mulf %154, %158 : vector<8x16x16xf32>
    "tpu.trace_start"() <{level = 10 : i32, message = "blm,bmd->bld"}> : () -> ()
    %cst_88 = arith.constant dense<0.000000e+00> : vector<8x16x16xf32>
    %160 = tpu.matmul %159, %148, %cst_88 {dimension_numbers = #tpu.dot_dimension_numbers<[2], [1], [1], [2], [0, 0, 0, 1, 1, 2], [0], [0]>} : vector<8x16x16xf32>, vector<8x16x16xf32>, vector<8x16x16xf32> -> vector<8x16x16xf32>
    "tpu.trace_stop"() : () -> ()
    %161 = vector.shape_cast %160 : vector<8x16x16xf32> to vector<128x16xf32>
    %162 = tpu.concatenate %62, %95, %128, %161 in 1 : vector<128x16xf32>, vector<128x16xf32>, vector<128x16xf32>, vector<128x16xf32> -> vector<128x64xf32>
    %c0_89 = arith.constant 0 : index
    %c0_90 = arith.constant 0 : index
    %163 = vector.load %arg11[%c0_89, %c0_90] : memref<64x64xf32, #tpu.memory_space<vmem>>, vector<64x64xf32>
    %cst_91 = arith.constant dense<0.000000e+00> : vector<128x64xf32>
    %164 = tpu.matmul %162, %163, %cst_91 {dimension_numbers = #tpu.dot_dimension_numbers<[1], [0], [0], [1], [0, 0, 1, 1], [], []>} : vector<128x64xf32>, vector<64x64xf32>, vector<128x64xf32> -> vector<128x64xf32>
    %c0_92 = arith.constant 0 : index
    %c0_93 = arith.constant 0 : index
    %165 = vector.load %arg12[%c0_92, %c0_93] : memref<1x64xf32, #tpu.memory_space<vmem>>, vector<1x64xf32>
    %166 = vector.broadcast %165 : vector<1x64xf32> to vector<128x64xf32>
    %167 = arith.addf %164, %166 : vector<128x64xf32>
    %168 = arith.addf %167, %5 : vector<128x64xf32>
    %c0_94 = arith.constant 0 : index
    %c0_95 = arith.constant 0 : index
    %169 = vector.load %arg13[%c0_94, %c0_95] : memref<1x64xf32, #tpu.memory_space<vmem>>, vector<1x64xf32>
    %c0_96 = arith.constant 0 : index
    %c0_97 = arith.constant 0 : index
    %170 = vector.load %arg14[%c0_96, %c0_97] : memref<1x64xf32, #tpu.memory_space<vmem>>, vector<1x64xf32>
    %cst_98 = arith.constant dense<0.000000e+00> : vector<128xf32>
    %171 = vector.multi_reduction <add>, %168, %cst_98 [1] : vector<128x64xf32> to vector<128xf32>
    %172 = vector.shape_cast %171 : vector<128xf32> to vector<128x1xf32>
    %cst_99 = arith.constant 6.400000e+01 : f32
    %173 = vector.broadcast %cst_99 : f32 to vector<128x1xf32>
    %174 = arith.divf %172, %173 : vector<128x1xf32>
    %175 = vector.broadcast %174 : vector<128x1xf32> to vector<128x64xf32>
    %176 = arith.subf %168, %175 : vector<128x64xf32>
    %177 = arith.mulf %176, %176 : vector<128x64xf32>
    %cst_100 = arith.constant dense<0.000000e+00> : vector<128xf32>
    %178 = vector.multi_reduction <add>, %177, %cst_100 [1] : vector<128x64xf32> to vector<128xf32>
    %179 = vector.shape_cast %178 : vector<128xf32> to vector<128x1xf32>
    %cst_101 = arith.constant 6.400000e+01 : f32
    %180 = vector.broadcast %cst_101 : f32 to vector<128x1xf32>
    %181 = arith.divf %179, %180 : vector<128x1xf32>
    %182 = vector.broadcast %174 : vector<128x1xf32> to vector<128x64xf32>
    %183 = arith.subf %168, %182 : vector<128x64xf32>
    %cst_102 = arith.constant 9.99999974E-6 : f32
    %184 = vector.broadcast %cst_102 : f32 to vector<128x1xf32>
    %185 = arith.addf %181, %184 : vector<128x1xf32>
    %186 = math.rsqrt %185 : vector<128x1xf32>
    %187 = vector.broadcast %186 : vector<128x1xf32> to vector<128x64xf32>
    %188 = arith.mulf %183, %187 : vector<128x64xf32>
    %189 = vector.broadcast %169 : vector<1x64xf32> to vector<128x64xf32>
    %190 = arith.mulf %188, %189 : vector<128x64xf32>
    %191 = vector.broadcast %170 : vector<1x64xf32> to vector<128x64xf32>
    %192 = arith.addf %190, %191 : vector<128x64xf32>
    %cst_103 = arith.constant 0.000000e+00 : f32
    %193 = vector.broadcast %cst_103 : f32 to vector<128x64xf32>
    %c0_104 = arith.constant 0 : index
    %c0_105 = arith.constant 0 : index
    %194 = vector.load %arg15[%c0_104, %c0_105] : memref<64x256xf32, #tpu.memory_space<vmem>>, vector<64x256xf32>
    %cst_106 = arith.constant dense<0.000000e+00> : vector<128x256xf32>
    %195 = tpu.matmul %192, %194, %cst_106 {dimension_numbers = #tpu.dot_dimension_numbers<[1], [0], [0], [1], [0, 0, 1, 1], [], []>} : vector<128x64xf32>, vector<64x256xf32>, vector<128x256xf32> -> vector<128x256xf32>
    %c0_107 = arith.constant 0 : index
    %c0_108 = arith.constant 0 : index
    %196 = vector.load %arg16[%c0_107, %c0_108] : memref<1x256xf32, #tpu.memory_space<vmem>>, vector<1x256xf32>
    %197 = vector.broadcast %196 : vector<1x256xf32> to vector<128x256xf32>
    %198 = arith.addf %195, %197 : vector<128x256xf32>
    %cst_109 = arith.constant 5.000000e-01 : f32
    %199 = vector.broadcast %cst_109 : f32 to vector<128x256xf32>
    %200 = arith.mulf %199, %198 : vector<128x256xf32>
    %cst_110 = arith.constant 4.471500e-02 : f32
    %201 = vector.broadcast %cst_110 : f32 to vector<128x256xf32>
    %202 = arith.mulf %201, %198 : vector<128x256xf32>
    %203 = arith.mulf %202, %198 : vector<128x256xf32>
    %204 = arith.mulf %203, %198 : vector<128x256xf32>
    %205 = arith.addf %198, %204 : vector<128x256xf32>
    %cst_111 = arith.constant 0.797884583 : f32
    %206 = vector.broadcast %cst_111 : f32 to vector<128x256xf32>
    %207 = arith.mulf %206, %205 : vector<128x256xf32>
    %208 = math.tanh %207 : vector<128x256xf32>
    %cst_112 = arith.constant 1.000000e+00 : f32
    %209 = vector.broadcast %cst_112 : f32 to vector<128x256xf32>
    %210 = arith.addf %209, %208 : vector<128x256xf32>
    %211 = arith.mulf %200, %210 : vector<128x256xf32>
    %c0_113 = arith.constant 0 : index
    %c0_114 = arith.constant 0 : index
    %212 = vector.load %arg17[%c0_113, %c0_114] : memref<256x64xf32, #tpu.memory_space<vmem>>, vector<256x64xf32>
    %cst_115 = arith.constant dense<0.000000e+00> : vector<128x64xf32>
    %213 = tpu.matmul %211, %212, %cst_115 {dimension_numbers = #tpu.dot_dimension_numbers<[1], [0], [0], [1], [0, 0, 1, 1], [], []>} : vector<128x256xf32>, vector<256x64xf32>, vector<128x64xf32> -> vector<128x64xf32>
    %214 = arith.addf %193, %213 : vector<128x64xf32>
    %c0_116 = arith.constant 0 : index
    %c0_117 = arith.constant 0 : index
    %215 = vector.load %arg18[%c0_116, %c0_117] : memref<1x64xf32, #tpu.memory_space<vmem>>, vector<1x64xf32>
    %216 = vector.broadcast %215 : vector<1x64xf32> to vector<128x64xf32>
    %217 = arith.addf %214, %216 : vector<128x64xf32>
    %cst_118 = arith.constant 5.000000e-01 : f32
    %218 = vector.broadcast %cst_118 : f32 to vector<128x64xf32>
    %219 = arith.mulf %218, %217 : vector<128x64xf32>
    %cst_119 = arith.constant 4.471500e-02 : f32
    %220 = vector.broadcast %cst_119 : f32 to vector<128x64xf32>
    %221 = arith.mulf %220, %217 : vector<128x64xf32>
    %222 = arith.mulf %221, %217 : vector<128x64xf32>
    %223 = arith.mulf %222, %217 : vector<128x64xf32>
    %224 = arith.addf %217, %223 : vector<128x64xf32>
    %cst_120 = arith.constant 0.797884583 : f32
    %225 = vector.broadcast %cst_120 : f32 to vector<128x64xf32>
    %226 = arith.mulf %225, %224 : vector<128x64xf32>
    %227 = math.tanh %226 : vector<128x64xf32>
    %cst_121 = arith.constant 1.000000e+00 : f32
    %228 = vector.broadcast %cst_121 : f32 to vector<128x64xf32>
    %229 = arith.addf %228, %227 : vector<128x64xf32>
    %230 = arith.mulf %219, %229 : vector<128x64xf32>
    %231 = arith.addf %168, %230 : vector<128x64xf32>
    %232 = vector.shape_cast %231 : vector<128x64xf32> to vector<8x16x64xf32>
    %c0_122 = arith.constant 0 : index
    %c0_123 = arith.constant 0 : index
    %c0_124 = arith.constant 0 : index
    %233 = vector.load %arg19[%c0_122, %c0_123, %c0_124] : memref<8x16x64xf32, #tpu.memory_space<vmem>>, vector<8x16x64xf32>
    tpu.vector_store %arg19[%c0_122, %c0_123, %c0_124], %232 {strides = array<i32>} : memref<8x16x64xf32, #tpu.memory_space<vmem>>, vector<8x16x64xf32>,
    return
  }
  func.func @transform_0(%arg0: i32) -> (i32, i32, i32) {
    %c0_i32 = arith.constant 0 : i32
    %c0_i32_0 = arith.constant 0 : i32
    %c0_i32_1 = arith.constant 0 : i32
    return %arg0, %c0_i32, %c0_i32_0 : i32, i32, i32
  }
  func.func @transform_1(%arg0: i32) -> (i32, i32) {
    %c0_i32 = arith.constant 0 : i32
    %c0_i32_0 = arith.constant 0 : i32
    %c0_i32_1 = arith.constant 0 : i32
    return %c0_i32, %c0_i32_0 : i32, i32
  }
  func.func @transform_2(%arg0: i32) -> (i32, i32) {
    %c0_i32 = arith.constant 0 : i32
    %c0_i32_0 = arith.constant 0 : i32
    %c0_i32_1 = arith.constant 0 : i32
    return %c0_i32, %c0_i32_0 : i32, i32
  }
  func.func @transform_3(%arg0: i32) -> (i32, i32) {
    %c0_i32 = arith.constant 0 : i32
    %c0_i32_0 = arith.constant 0 : i32
    %c0_i32_1 = arith.constant 0 : i32
    return %c0_i32, %c0_i32_0 : i32, i32
  }
  func.func @transform_4(%arg0: i32) -> (i32, i32) {
    %c0_i32 = arith.constant 0 : i32
    %c0_i32_0 = arith.constant 0 : i32
    %c0_i32_1 = arith.constant 0 : i32
    return %c0_i32, %c0_i32_0 : i32, i32
  }
  func.func @transform_5(%arg0: i32) -> (i32, i32) {
    %c0_i32 = arith.constant 0 : i32
    %c0_i32_0 = arith.constant 0 : i32
    %c0_i32_1 = arith.constant 0 : i32
    return %c0_i32, %c0_i32_0 : i32, i32
  }
  func.func @transform_6(%arg0: i32) -> (i32, i32) {
    %c0_i32 = arith.constant 0 : i32
    %c0_i32_0 = arith.constant 0 : i32
    %c0_i32_1 = arith.constant 0 : i32
    return %c0_i32, %c0_i32_0 : i32, i32
  }
  func.func @transform_7(%arg0: i32) -> (i32, i32) {
    %c0_i32 = arith.constant 0 : i32
    %c0_i32_0 = arith.constant 0 : i32
    %c0_i32_1 = arith.constant 0 : i32
    return %c0_i32, %c0_i32_0 : i32, i32
  }
  func.func @transform_8(%arg0: i32) -> (i32, i32) {
    %c0_i32 = arith.constant 0 : i32
    %c0_i32_0 = arith.constant 0 : i32
    %c0_i32_1 = arith.constant 0 : i32
    return %c0_i32, %c0_i32_0 : i32, i32
  }
  func.func @transform_9(%arg0: i32) -> (i32, i32) {
    %c0_i32 = arith.constant 0 : i32
    %c0_i32_0 = arith.constant 0 : i32
    %c0_i32_1 = arith.constant 0 : i32
    return %c0_i32, %c0_i32_0 : i32, i32
  }
  func.func @transform_10(%arg0: i32) -> (i32, i32) {
    %c0_i32 = arith.constant 0 : i32
    %c0_i32_0 = arith.constant 0 : i32
    %c0_i32_1 = arith.constant 0 : i32
    return %c0_i32, %c0_i32_0 : i32, i32
  }
  func.func @transform_11(%arg0: i32) -> (i32, i32) {
    %c0_i32 = arith.constant 0 : i32
    %c0_i32_0 = arith.constant 0 : i32
    %c0_i32_1 = arith.constant 0 : i32
    return %c0_i32, %c0_i32_0 : i32, i32
  }
  func.func @transform_12(%arg0: i32) -> (i32, i32) {
    %c0_i32 = arith.constant 0 : i32
    %c0_i32_0 = arith.constant 0 : i32
    %c0_i32_1 = arith.constant 0 : i32
    return %c0_i32, %c0_i32_0 : i32, i32
  }
  func.func @transform_13(%arg0: i32) -> (i32, i32) {
    %c0_i32 = arith.constant 0 : i32
    %c0_i32_0 = arith.constant 0 : i32
    %c0_i32_1 = arith.constant 0 : i32
    return %c0_i32, %c0_i32_0 : i32, i32
  }
  func.func @transform_14(%arg0: i32) -> (i32, i32) {
    %c0_i32 = arith.constant 0 : i32
    %c0_i32_0 = arith.constant 0 : i32
    %c0_i32_1 = arith.constant 0 : i32
    return %c0_i32, %c0_i32_0 : i32, i32
  }
  func.func @transform_15(%arg0: i32) -> (i32, i32) {
    %c0_i32 = arith.constant 0 : i32
    %c0_i32_0 = arith.constant 0 : i32
    %c0_i32_1 = arith.constant 0 : i32
    return %c0_i32, %c0_i32_0 : i32, i32
  }
  func.func @transform_16(%arg0: i32) -> (i32, i32) {
    %c0_i32 = arith.constant 0 : i32
    %c0_i32_0 = arith.constant 0 : i32
    %c0_i32_1 = arith.constant 0 : i32
    return %c0_i32, %c0_i32_0 : i32, i32
  }
  func.func @transform_17(%arg0: i32) -> (i32, i32) {
    %c0_i32 = arith.constant 0 : i32
    %c0_i32_0 = arith.constant 0 : i32
    %c0_i32_1 = arith.constant 0 : i32
    return %c0_i32, %c0_i32_0 : i32, i32
  }
  func.func @transform_18(%arg0: i32) -> (i32, i32, i32) {
    %c0_i32 = arith.constant 0 : i32
    %c0_i32_0 = arith.constant 0 : i32
    %c0_i32_1 = arith.constant 0 : i32
    return %arg0, %c0_i32, %c0_i32_0 : i32, i32, i32
  }
}

</mosaic_0001>

<llo_original>
// kernel: tpu_custom_call.1
$region0: #{tpu_custom_call.1}
  #allocation0 [shape = 'u32[]', space=smem, size = 0x4, offset = 0x4, fixed_abs, tag = 'smem constant byte address 0x4 - core index']
  #allocation1 [shape = 'u32[144,128]{1,0:T(1,128)}', space=vmem, size = 0x12000, scoped, tag = 'internal scratch']
  %s0 = inlined_call_operand.hbm [shape: f32[32,16,64], index: 0, kind: input, shape index: {}]
  %s1 = inlined_call_operand.hbm [shape: f32[16,64], index: 1, kind: input, shape index: {}]
  %s2 = inlined_call_operand.vmem [shape: f32[1,64], index: 2, kind: input, shape index: {}]
  %s3 = inlined_call_operand.vmem [shape: f32[1,64], index: 3, kind: input, shape index: {}]
  %s4 = inlined_call_operand.vmem [shape: f32[64,64], index: 4, kind: input, shape index: {}]
  %s5 = inlined_call_operand.vmem [shape: f32[1,64], index: 5, kind: input, shape index: {}]
  %s6 = inlined_call_operand.vmem [shape: f32[64,64], index: 6, kind: input, shape index: {}]
  %s7 = inlined_call_operand.vmem [shape: f32[1,64], index: 7, kind: input, shape index: {}]
  %s8 = inlined_call_operand.vmem [shape: f32[64,64], index: 8, kind: input, shape index: {}]
  %s9 = inlined_call_operand.vmem [shape: f32[1,64], index: 9, kind: input, shape index: {}]
  %s10 = inlined_call_operand.vmem [shape: f32[64,64], index: 10, kind: input, shape index: {}]
  %s11 = inlined_call_operand.vmem [shape: f32[1,64], index: 11, kind: input, shape index: {}]
  %s12 = inlined_call_operand.vmem [shape: f32[1,64], index: 12, kind: input, shape index: {}]
  %s13 = inlined_call_operand.vmem [shape: f32[1,64], index: 13, kind: input, shape index: {}]
  %s14 = inlined_call_operand.vmem [shape: f32[64,256], index: 14, kind: input, shape index: {}]
  %s15 = inlined_call_operand.vmem [shape: f32[1,256], index: 15, kind: input, shape index: {}]
  %s16 = inlined_call_operand.vmem [shape: f32[256,64], index: 16, kind: input, shape index: {}]
  %s17 = inlined_call_operand.vmem [shape: f32[1,64], index: 17, kind: input, shape index: {}]
  %s18 = inlined_call_operand.hbm [shape: f32[32,16,64], index: 18, kind: output, shape index: {}]
  %s19 = sld [smem:[#allocation0]]
  $region113: #{tpu_custom_call.1} parent=0
    _
  %s21 = ssub.s32 1, %s19
  %s22 = scalar_select 0, %s21, %s19
  $region1: #{tpu_custom_call.1} parent=0
    #allocation2 [shape = 'u8[131072]{0}', space=vmem, size = 0x20000, scoped, tag = 'input window, operand 0']
    #allocation3 [shape = 's32[2]{0}', space=sflag, size = 0x8, scoped, tag = 'scoped memory for tpu_custom_call.1']
    #allocation4 [shape = 's32[2]{0}', space=sflag, size = 0x8, scoped, tag = 'scoped memory for tpu_custom_call.1']
    #allocation5 [shape = 'u8[8192]{0}', space=vmem, size = 0x2000, scoped, tag = 'input window, operand 1, single buffered']
    #allocation6 [shape = 's32[1]{0}', space=sflag, size = 0x4, scoped, tag = 'scoped memory for tpu_custom_call.1']
    #allocation7 [shape = 'u8[131072]{0}', space=vmem, size = 0x20000, scoped, tag = 'output window, operand 0']
    %23 = vsyncpa [#allocation3], 0
    %s24 = scalar_lea.sflag [#allocation3], 1
    %25 = vsyncpa %s24, 0
    %26 = vsyncpa [#allocation6], 0
    %27 = vsyncpa [#allocation4], 0
    %s28 = scalar_lea.sflag [#allocation4], 1
    %29 = vsyncpa %s28, 0
    loop: start=0, step=1, limit=6
    $region2: #{tpu_custom_call.1} parent=1 // loop_pre_header
      _
    $region3: #{tpu_custom_call.1} parent=1 // loop_header
      %s31 = sphi 0, %s35
      %p32 = scmp.ge.s32.totalorder %s31, 6
      %s41 = sphi 0, %s43
      %s44 = sphi 0, %s41
      %s45 = sphi 0, %s44
      %s61 = sphi 0, %s45
      %s65 = sphi 0, %s65
      %s67 = sphi 0, %s65
      %s68 = sphi 0, %s67
      %s82 = sphi 0, %s68
      %s86 = sphi 0, %s86
      %s88 = sphi 0, %s86
      %s89 = sphi 0, %s88
      %s103 = sphi 0, %s89
      %s107 = sphi 0, %s107
      %s109 = sphi 0, %s107
      %s110 = sphi 0, %s109
      %s124 = sphi 0, %s110
      %s128 = sphi 0, %s128
      %s130 = sphi 0, %s128
      %s131 = sphi 0, %s130
      %s145 = sphi 0, %s131
      %s149 = sphi 0, %s149
      %s151 = sphi 0, %s149
      %s152 = sphi 0, %s151
      %s166 = sphi 0, %s152
      %s170 = sphi 0, %s170
      %s172 = sphi 0, %s170
      %s173 = sphi 0, %s172
      %s187 = sphi 0, %s173
      %s191 = sphi 0, %s191
      %s193 = sphi 0, %s191
      %s194 = sphi 0, %s193
      %s208 = sphi 0, %s194
      %s212 = sphi 0, %s212
      %s214 = sphi 0, %s212
      %s215 = sphi 0, %s214
      %s229 = sphi 0, %s215
      %s233 = sphi 0, %s233
      %s235 = sphi 0, %s233
      %s236 = sphi 0, %s235
      %s250 = sphi 0, %s236
      %s254 = sphi 0, %s254
      %s256 = sphi 0, %s254
      %s257 = sphi 0, %s256
      %s271 = sphi 0, %s257
      %s275 = sphi 0, %s275
      %s277 = sphi 0, %s275
      %s278 = sphi 0, %s277
      %s292 = sphi 0, %s278
      %s296 = sphi 0, %s296
      %s298 = sphi 0, %s296
      %s299 = sphi 0, %s298
      %s313 = sphi 0, %s299
      %s317 = sphi 0, %s317
      %s319 = sphi 0, %s317
      %s320 = sphi 0, %s319
      %s334 = sphi 0, %s320
      %s338 = sphi 0, %s338
      %s340 = sphi 0, %s338
      %s341 = sphi 0, %s340
      %s355 = sphi 0, %s341
      %s359 = sphi 0, %s359
      %s361 = sphi 0, %s359
      %s362 = sphi 0, %s361
      %s376 = sphi 0, %s362
      %s380 = sphi 0, %s380
      %s382 = sphi 0, %s380
      %s383 = sphi 0, %s382
      %s397 = sphi 0, %s383
      %s401 = sphi 0, %s401
      %s403 = sphi 0, %s401
      %s404 = sphi 0, %s403
      %s418 = sphi 0, %s404
      %s424 = sphi 0, %s426
      %s427 = sphi 0, %s424
      %s428 = sphi 0, %s427
      %s444 = sphi 0, %s428
    $region4: #{tpu_custom_call.1} parent=1 // loop_header_branch
      %34 = sbr.rel (%p32) target = $region8
    $region5: #{tpu_custom_call.1} parent=1 // loop_body
      %s36 = ssub.s32 %s31, 1
      %s37 = ssub.s32 %s31, 2
      %s38 = sadd.s32 %s31, 1
      %s39 = ssub.s32 %s31, %s38
      %p40 = scmp.eq.s32.totalorder %s39, 0
      %s42 = sadd.s32 %s41, 1
      %s43 = scalar_select %p40, %s41, %s42
      %p46 = pneg %p40
      %p47 = scmp.eq.s32.totalorder %s31, 3
      %p48 = por %p46, %p47
      %p49 = scmp.ne.s32.totalorder %s41, %s44
      %p50 = scmp.eq.s32.totalorder %s31, 0
      %p51 = por %p49, %p50
      %p52 = scmp.ne.s32.totalorder %s41, %s44
      %p53 = scmp.eq.s32.totalorder %s36, 3
      %p54 = por %p52, %p53
      %p55 = scmp.ne.s32.totalorder %s44, %s45
      %p56 = scmp.eq.s32.totalorder %s36, 0
      %p57 = por %p55, %p56
      %p58 = scmp.ne.s32.totalorder %s44, %s45
      %p59 = scmp.eq.s32.totalorder %s37, 3
      %p60 = por %p58, %p59
      %p62 = scmp.ne.s32.totalorder %s45, %s61
      %p63 = scmp.eq.s32.totalorder %s37, 0
      %p64 = por %p62, %p63
      %s66 = sadd.s32 %s65, 1
      %p69 = scmp.eq.s32.totalorder %s31, 3
      %p70 = scmp.ne.s32.totalorder %s65, %s67
      %p71 = scmp.eq.s32.totalorder %s31, 0
      %p72 = por %p70, %p71
      %p73 = scmp.ne.s32.totalorder %s65, %s67
      %p74 = scmp.eq.s32.totalorder %s36, 3
      %p75 = por %p73, %p74
      %p76 = scmp.ne.s32.totalorder %s67, %s68
      %p77 = scmp.eq.s32.totalorder %s36, 0
      %p78 = por %p76, %p77
      %p79 = scmp.ne.s32.totalorder %s67, %s68
      %p80 = scmp.eq.s32.totalorder %s37, 3
      %p81 = por %p79, %p80
      %p83 = scmp.ne.s32.totalorder %s68, %s82
      %p84 = scmp.eq.s32.totalorder %s37, 0
      %p85 = por %p83, %p84
      %s87 = sadd.s32 %s86, 1
      %p90 = scmp.eq.s32.totalorder %s31, 3
      %p91 = scmp.ne.s32.totalorder %s86, %s88
      %p92 = scmp.eq.s32.totalorder %s31, 0
      %p93 = por %p91, %p92
      %p94 = scmp.ne.s32.totalorder %s86, %s88
      %p95 = scmp.eq.s32.totalorder %s36, 3
      %p96 = por %p94, %p95
      %p97 = scmp.ne.s32.totalorder %s88, %s89
      %p98 = scmp.eq.s32.totalorder %s36, 0
      %p99 = por %p97, %p98
      %p100 = scmp.ne.s32.totalorder %s88, %s89
      %p101 = scmp.eq.s32.totalorder %s37, 3
      %p102 = por %p100, %p101
      %p104 = scmp.ne.s32.totalorder %s89, %s103
      %p105 = scmp.eq.s32.totalorder %s37, 0
      %p106 = por %p104, %p105
      %s108 = sadd.s32 %s107, 1
      %p111 = scmp.eq.s32.totalorder %s31, 3
      %p112 = scmp.ne.s32.totalorder %s107, %s109
      %p113 = scmp.eq.s32.totalorder %s31, 0
      %p114 = por %p112, %p113
      %p115 = scmp.ne.s32.totalorder %s107, %s109
      %p116 = scmp.eq.s32.totalorder %s36, 3
      %p117 = por %p115, %p116
      %p118 = scmp.ne.s32.totalorder %s109, %s110
      %p119 = scmp.eq.s32.totalorder %s36, 0
      %p120 = por %p118, %p119
      %p121 = scmp.ne.s32.totalorder %s109, %s110
      %p122 = scmp.eq.s32.totalorder %s37, 3
      %p123 = por %p121, %p122
      %p125 = scmp.ne.s32.totalorder %s110, %s124
      %p126 = scmp.eq.s32.totalorder %s37, 0
      %p127 = por %p125, %p126
      %s129 = sadd.s32 %s128, 1
      %p132 = scmp.eq.s32.totalorder %s31, 3
      %p133 = scmp.ne.s32.totalorder %s128, %s130
      %p134 = scmp.eq.s32.totalorder %s31, 0
      %p135 = por %p133, %p134
      %p136 = scmp.ne.s32.totalorder %s128, %s130
      %p137 = scmp.eq.s32.totalorder %s36, 3
      %p138 = por %p136, %p137
      %p139 = scmp.ne.s32.totalorder %s130, %s131
      %p140 = scmp.eq.s32.totalorder %s36, 0
      %p141 = por %p139, %p140
      %p142 = scmp.ne.s32.totalorder %s130, %s131
      %p143 = scmp.eq.s32.totalorder %s37, 3
      %p144 = por %p142, %p143
      %p146 = scmp.ne.s32.totalorder %s131, %s145
      %p147 = scmp.eq.s32.totalorder %s37, 0
      %p148 = por %p146, %p147
      %s150 = sadd.s32 %s149, 1
      %p153 = scmp.eq.s32.totalorder %s31, 3
      %p154 = scmp.ne.s32.totalorder %s149, %s151
      %p155 = scmp.eq.s32.totalorder %s31, 0
      %p156 = por %p154, %p155
      %p157 = scmp.ne.s32.totalorder %s149, %s151
      %p158 = scmp.eq.s32.totalorder %s36, 3
      %p159 = por %p157, %p158
      %p160 = scmp.ne.s32.totalorder %s151, %s152
      %p161 = scmp.eq.s32.totalorder %s36, 0
      %p162 = por %p160, %p161
      %p163 = scmp.ne.s32.totalorder %s151, %s152
      %p164 = scmp.eq.s32.totalorder %s37, 3
      %p165 = por %p163, %p164
      %p167 = scmp.ne.s32.totalorder %s152, %s166
      %p168 = scmp.eq.s32.totalorder %s37, 0
      %p169 = por %p167, %p168
      %s171 = sadd.s32 %s170, 1
      %p174 = scmp.eq.s32.totalorder %s31, 3
      %p175 = scmp.ne.s32.totalorder %s170, %s172
      %p176 = scmp.eq.s32.totalorder %s31, 0
      %p177 = por %p175, %p176
      %p178 = scmp.ne.s32.totalorder %s170, %s172
      %p179 = scmp.eq.s32.totalorder %s36, 3
      %p180 = por %p178, %p179
      %p181 = scmp.ne.s32.totalorder %s172, %s173
      %p182 = scmp.eq.s32.totalorder %s36, 0
      %p183 = por %p181, %p182
      %p184 = scmp.ne.s32.totalorder %s172, %s173
      %p185 = scmp.eq.s32.totalorder %s37, 3
      %p186 = por %p184, %p185
      %p188 = scmp.ne.s32.totalorder %s173, %s187
      %p189 = scmp.eq.s32.totalorder %s37, 0
      %p190 = por %p188, %p189
      %s192 = sadd.s32 %s191, 1
      %p195 = scmp.eq.s32.totalorder %s31, 3
      %p196 = scmp.ne.s32.totalorder %s191, %s193
      %p197 = scmp.eq.s32.totalorder %s31, 0
      %p198 = por %p196, %p197
      %p199 = scmp.ne.s32.totalorder %s191, %s193
      %p200 = scmp.eq.s32.totalorder %s36, 3
      %p201 = por %p199, %p200
      %p202 = scmp.ne.s32.totalorder %s193, %s194
      %p203 = scmp.eq.s32.totalorder %s36, 0
      %p204 = por %p202, %p203
      %p205 = scmp.ne.s32.totalorder %s193, %s194
      %p206 = scmp.eq.s32.totalorder %s37, 3
      %p207 = por %p205, %p206
      %p209 = scmp.ne.s32.totalorder %s194, %s208
      %p210 = scmp.eq.s32.totalorder %s37, 0
      %p211 = por %p209, %p210
      %s213 = sadd.s32 %s212, 1
      %p216 = scmp.eq.s32.totalorder %s31, 3
      %p217 = scmp.ne.s32.totalorder %s212, %s214
      %p218 = scmp.eq.s32.totalorder %s31, 0
      %p219 = por %p217, %p218
      %p220 = scmp.ne.s32.totalorder %s212, %s214
      %p221 = scmp.eq.s32.totalorder %s36, 3
      %p222 = por %p220, %p221
      %p223 = scmp.ne.s32.totalorder %s214, %s215
      %p224 = scmp.eq.s32.totalorder %s36, 0
      %p225 = por %p223, %p224
      %p226 = scmp.ne.s32.totalorder %s214, %s215
      %p227 = scmp.eq.s32.totalorder %s37, 3
      %p228 = por %p226, %p227
      %p230 = scmp.ne.s32.totalorder %s215, %s229
      %p231 = scmp.eq.s32.totalorder %s37, 0
      %p232 = por %p230, %p231
      %s234 = sadd.s32 %s233, 1
      %p237 = scmp.eq.s32.totalorder %s31, 3
      %p238 = scmp.ne.s32.totalorder %s233, %s235
      %p239 = scmp.eq.s32.totalorder %s31, 0
      %p240 = por %p238, %p239
      %p241 = scmp.ne.s32.totalorder %s233, %s235
      %p242 = scmp.eq.s32.totalorder %s36, 3
      %p243 = por %p241, %p242
      %p244 = scmp.ne.s32.totalorder %s235, %s236
      %p245 = scmp.eq.s32.totalorder %s36, 0
      %p246 = por %p244, %p245
      %p247 = scmp.ne.s32.totalorder %s235, %s236
      %p248 = scmp.eq.s32.totalorder %s37, 3
      %p249 = por %p247, %p248
      %p251 = scmp.ne.s32.totalorder %s236, %s250
      %p252 = scmp.eq.s32.totalorder %s37, 0
      %p253 = por %p251, %p252
      %s255 = sadd.s32 %s254, 1
      %p258 = scmp.eq.s32.totalorder %s31, 3
      %p259 = scmp.ne.s32.totalorder %s254, %s256
      %p260 = scmp.eq.s32.totalorder %s31, 0
      %p261 = por %p259, %p260
      %p262 = scmp.ne.s32.totalorder %s254, %s256
      %p263 = scmp.eq.s32.totalorder %s36, 3
      %p264 = por %p262, %p263
      %p265 = scmp.ne.s32.totalorder %s256, %s257
      %p266 = scmp.eq.s32.totalorder %s36, 0
      %p267 = por %p265, %p266
      %p268 = scmp.ne.s32.totalorder %s256, %s257
      %p269 = scmp.eq.s32.totalorder %s37, 3
      %p270 = por %p268, %p269
      %p272 = scmp.ne.s32.totalorder %s257, %s271
      %p273 = scmp.eq.s32.totalorder %s37, 0
      %p274 = por %p272, %p273
      %s276 = sadd.s32 %s275, 1
      %p279 = scmp.eq.s32.totalorder %s31, 3
      %p280 = scmp.ne.s32.totalorder %s275, %s277
      %p281 = scmp.eq.s32.totalorder %s31, 0
      %p282 = por %p280, %p281
      %p283 = scmp.ne.s32.totalorder %s275, %s277
      %p284 = scmp.eq.s32.totalorder %s36, 3
      %p285 = por %p283, %p284
      %p286 = scmp.ne.s32.totalorder %s277, %s278
      %p287 = scmp.eq.s32.totalorder %s36, 0
      %p288 = por %p286, %p287
      %p289 = scmp.ne.s32.totalorder %s277, %s278
      %p290 = scmp.eq.s32.totalorder %s37, 3
      %p291 = por %p289, %p290
      %p293 = scmp.ne.s32.totalorder %s278, %s292
      %p294 = scmp.eq.s32.totalorder %s37, 0
      %p295 = por %p293, %p294
      %s297 = sadd.s32 %s296, 1
      %p300 = scmp.eq.s32.totalorder %s31, 3
      %p301 = scmp.ne.s32.totalorder %s296, %s298
      %p302 = scmp.eq.s32.totalorder %s31, 0
      %p303 = por %p301, %p302
      %p304 = scmp.ne.s32.totalorder %s296, %s298
      %p305 = scmp.eq.s32.totalorder %s36, 3
      %p306 = por %p304, %p305
      %p307 = scmp.ne.s32.totalorder %s298, %s299
      %p308 = scmp.eq.s32.totalorder %s36, 0
      %p309 = por %p307, %p308
      %p310 = scmp.ne.s32.totalorder %s298, %s299
      %p311 = scmp.eq.s32.totalorder %s37, 3
      %p312 = por %p310, %p311
      %p314 = scmp.ne.s32.totalorder %s299, %s313
      %p315 = scmp.eq.s32.totalorder %s37, 0
      %p316 = por %p314, %p315
      %s318 = sadd.s32 %s317, 1
      %p321 = scmp.eq.s32.totalorder %s31, 3
      %p322 = scmp.ne.s32.totalorder %s317, %s319
      %p323 = scmp.eq.s32.totalorder %s31, 0
      %p324 = por %p322, %p323
      %p325 = scmp.ne.s32.totalorder %s317, %s319
      %p326 = scmp.eq.s32.totalorder %s36, 3
      %p327 = por %p325, %p326
      %p328 = scmp.ne.s32.totalorder %s319, %s320
      %p329 = scmp.eq.s32.totalorder %s36, 0
      %p330 = por %p328, %p329
      %p331 = scmp.ne.s32.totalorder %s319, %s320
      %p332 = scmp.eq.s32.totalorder %s37, 3
      %p333 = por %p331, %p332
      %p335 = scmp.ne.s32.totalorder %s320, %s334
      %p336 = scmp.eq.s32.totalorder %s37, 0
      %p337 = por %p335, %p336
      %s339 = sadd.s32 %s338, 1
      %p342 = scmp.eq.s32.totalorder %s31, 3
      %p343 = scmp.ne.s32.totalorder %s338, %s340
      %p344 = scmp.eq.s32.totalorder %s31, 0
      %p345 = por %p343, %p344
      %p346 = scmp.ne.s32.totalorder %s338, %s340
      %p347 = scmp.eq.s32.totalorder %s36, 3
      %p348 = por %p346, %p347
      %p349 = scmp.ne.s32.totalorder %s340, %s341
      %p350 = scmp.eq.s32.totalorder %s36, 0
      %p351 = por %p349, %p350
      %p352 = scmp.ne.s32.totalorder %s340, %s341
      %p353 = scmp.eq.s32.totalorder %s37, 3
      %p354 = por %p352, %p353
      %p356 = scmp.ne.s32.totalorder %s341, %s355
      %p357 = scmp.eq.s32.totalorder %s37, 0
      %p358 = por %p356, %p357
      %s360 = sadd.s32 %s359, 1
      %p363 = scmp.eq.s32.totalorder %s31, 3
      %p364 = scmp.ne.s32.totalorder %s359, %s361
      %p365 = scmp.eq.s32.totalorder %s31, 0
      %p366 = por %p364, %p365
      %p367 = scmp.ne.s32.totalorder %s359, %s361
      %p368 = scmp.eq.s32.totalorder %s36, 3
      %p369 = por %p367, %p368
      %p370 = scmp.ne.s32.totalorder %s361, %s362
      %p371 = scmp.eq.s32.totalorder %s36, 0
      %p372 = por %p370, %p371
      %p373 = scmp.ne.s32.totalorder %s361, %s362
      %p374 = scmp.eq.s32.totalorder %s37, 3
      %p375 = por %p373, %p374
      %p377 = scmp.ne.s32.totalorder %s362, %s376
      %p378 = scmp.eq.s32.totalorder %s37, 0
      %p379 = por %p377, %p378
      %s381 = sadd.s32 %s380, 1
      %p384 = scmp.eq.s32.totalorder %s31, 3
      %p385 = scmp.ne.s32.totalorder %s380, %s382
      %p386 = scmp.eq.s32.totalorder %s31, 0
      %p387 = por %p385, %p386
      %p388 = scmp.ne.s32.totalorder %s380, %s382
      %p389 = scmp.eq.s32.totalorder %s36, 3
      %p390 = por %p388, %p389
      %p391 = scmp.ne.s32.totalorder %s382, %s383
      %p392 = scmp.eq.s32.totalorder %s36, 0
      %p393 = por %p391, %p392
      %p394 = scmp.ne.s32.totalorder %s382, %s383
      %p395 = scmp.eq.s32.totalorder %s37, 3
      %p396 = por %p394, %p395
      %p398 = scmp.ne.s32.totalorder %s383, %s397
      %p399 = scmp.eq.s32.totalorder %s37, 0
      %p400 = por %p398, %p399
      %s402 = sadd.s32 %s401, 1
      %p405 = scmp.eq.s32.totalorder %s31, 3
      %p406 = scmp.ne.s32.totalorder %s401, %s403
      %p407 = scmp.eq.s32.totalorder %s31, 0
      %p408 = por %p406, %p407
      %p409 = scmp.ne.s32.totalorder %s401, %s403
      %p410 = scmp.eq.s32.totalorder %s36, 3
      %p411 = por %p409, %p410
      %p412 = scmp.ne.s32.totalorder %s403, %s404
      %p413 = scmp.eq.s32.totalorder %s36, 0
      %p414 = por %p412, %p413
      %p415 = scmp.ne.s32.totalorder %s403, %s404
      %p416 = scmp.eq.s32.totalorder %s37, 3
      %p417 = por %p415, %p416
      %p419 = scmp.ne.s32.totalorder %s404, %s418
      %p420 = scmp.eq.s32.totalorder %s37, 0
      %p421 = por %p419, %p420
      %s422 = ssub.s32 %s31, %s38
      %p423 = scmp.eq.s32.totalorder %s422, 0
      %s425 = sadd.s32 %s424, 1
      %s426 = scalar_select %p423, %s424, %s425
      %p429 = pneg %p423
      %p430 = scmp.eq.s32.totalorder %s31, 3
      %p431 = por %p429, %p430
      %p432 = scmp.ne.s32.totalorder %s424, %s427
      %p433 = scmp.eq.s32.totalorder %s31, 0
      %p434 = por %p432, %p433
      %p435 = scmp.ne.s32.totalorder %s424, %s427
      %p436 = scmp.eq.s32.totalorder %s36, 3
      %p437 = por %p435, %p436
      %p438 = scmp.ne.s32.totalorder %s427, %s428
      %p439 = scmp.eq.s32.totalorder %s36, 0
      %p440 = por %p438, %p439
      %p441 = scmp.ne.s32.totalorder %s427, %s428
      %p442 = scmp.eq.s32.totalorder %s37, 3
      %p443 = por %p441, %p442
      %p445 = scmp.ne.s32.totalorder %s428, %s444
      %p446 = scmp.eq.s32.totalorder %s37, 0
      %p447 = por %p445, %p446
      %p448 = scmp.le.s32.totalorder 1, %s31
      %p449 = scmp.lt.s32.totalorder %s31, 5
      %p450 = pnand %p448, %p449
      %p451 = pneg %p450
      // Predicated region
      $region9: #{tpu_custom_call.1} parent=5 // pred_check
        _
      $region10: #{tpu_custom_call.1} parent=5 // pred_check_branch
        %453 = sbr.rel (%p450) target = $region12
      $region11: #{tpu_custom_call.1} parent=5 // pred_region
        %s454 = ssub.s32 %s31, 1
        // Predicated region
        $region13: #{tpu_custom_call.1} parent=11 // pred_check
          %p455 = pneg %p78
        $region14: #{tpu_custom_call.1} parent=11 // pred_check_branch
          %457 = sbr.rel (%p455) target = $region16
        $region15: #{tpu_custom_call.1} parent=11 // pred_region
          %s459 = ssub.s32 256, 256
          %460 = vsyncadd [#allocation6], %s459
          %s461 = sshll.u32 [#allocation5], 4
          %s462 = int_to_ptr.vmem [resolvable:$true] %s461
          %467 = dma.hbm_to_vmem [thread:$0]  %s1, 256, %s462, [#allocation6], 128, 128, 8
        $region16: #{tpu_custom_call.1} parent=11 // pred_fallthru
          _
        // Predicated region
        $region17: #{tpu_custom_call.1} parent=11 // pred_check
          %p468 = pneg %p99
        $region18: #{tpu_custom_call.1} parent=11 // pred_check_branch
          %470 = sbr.rel (%p468) target = $region20
        $region19: #{tpu_custom_call.1} parent=11 // pred_region
          _
        $region20: #{tpu_custom_call.1} parent=11 // pred_fallthru
          _
        // Predicated region
        $region21: #{tpu_custom_call.1} parent=11 // pred_check
          %p471 = pneg %p120
        $region22: #{tpu_custom_call.1} parent=11 // pred_check_branch
          %473 = sbr.rel (%p471) target = $region24
        $region23: #{tpu_custom_call.1} parent=11 // pred_region
          _
        $region24: #{tpu_custom_call.1} parent=11 // pred_fallthru
          _
        // Predicated region
        $region25: #{tpu_custom_call.1} parent=11 // pred_check
          %p474 = pneg %p141
        $region26: #{tpu_custom_call.1} parent=11 // pred_check_branch
          %476 = sbr.rel (%p474) target = $region28
        $region27: #{tpu_custom_call.1} parent=11 // pred_region
          _
        $region28: #{tpu_custom_call.1} parent=11 // pred_fallthru
          _
        // Predicated region
        $region29: #{tpu_custom_call.1} parent=11 // pred_check
          %p477 = pneg %p162
        $region30: #{tpu_custom_call.1} parent=11 // pred_check_branch
          %479 = sbr.rel (%p477) target = $region32
        $region31: #{tpu_custom_call.1} parent=11 // pred_region
          _
        $region32: #{tpu_custom_call.1} parent=11 // pred_fallthru
          _
        // Predicated region
        $region33: #{tpu_custom_call.1} parent=11 // pred_check
          %p480 = pneg %p183
        $region34: #{tpu_custom_call.1} parent=11 // pred_check_branch
          %482 = sbr.rel (%p480) target = $region36
        $region35: #{tpu_custom_call.1} parent=11 // pred_region
          _
        $region36: #{tpu_custom_call.1} parent=11 // pred_fallthru
          _
        // Predicated region
        $region37: #{tpu_custom_call.1} parent=11 // pred_check
          %p483 = pneg %p204
        $region38: #{tpu_custom_call.1} parent=11 // pred_check_branch
          %485 = sbr.rel (%p483) target = $region40
        $region39: #{tpu_custom_call.1} parent=11 // pred_region
          _
        $region40: #{tpu_custom_call.1} parent=11 // pred_fallthru
          _
        // Predicated region
        $region41: #{tpu_custom_call.1} parent=11 // pred_check
          %p486 = pneg %p225
        $region42: #{tpu_custom_call.1} parent=11 // pred_check_branch
          %488 = sbr.rel (%p486) target = $region44
        $region43: #{tpu_custom_call.1} parent=11 // pred_region
          _
        $region44: #{tpu_custom_call.1} parent=11 // pred_fallthru
          _
        // Predicated region
        $region45: #{tpu_custom_call.1} parent=11 // pred_check
          %p489 = pneg %p246
        $region46: #{tpu_custom_call.1} parent=11 // pred_check_branch
          %491 = sbr.rel (%p489) target = $region48
        $region47: #{tpu_custom_call.1} parent=11 // pred_region
          _
        $region48: #{tpu_custom_call.1} parent=11 // pred_fallthru
          _
        // Predicated region
        $region49: #{tpu_custom_call.1} parent=11 // pred_check
          %p492 = pneg %p267
        $region50: #{tpu_custom_call.1} parent=11 // pred_check_branch
          %494 = sbr.rel (%p492) target = $region52
        $region51: #{tpu_custom_call.1} parent=11 // pred_region
          _
        $region52: #{tpu_custom_call.1} parent=11 // pred_fallthru
          _
        // Predicated region
        $region53: #{tpu_custom_call.1} parent=11 // pred_check
          %p495 = pneg %p288
        $region54: #{tpu_custom_call.1} parent=11 // pred_check_branch
          %497 = sbr.rel (%p495) target = $region56
        $region55: #{tpu_custom_call.1} parent=11 // pred_region
          _
        $region56: #{tpu_custom_call.1} parent=11 // pred_fallthru
          _
        // Predicated region
        $region57: #{tpu_custom_call.1} parent=11 // pred_check
          %p498 = pneg %p309
        $region58: #{tpu_custom_call.1} parent=11 // pred_check_branch
          %500 = sbr.rel (%p498) target = $region60
        $region59: #{tpu_custom_call.1} parent=11 // pred_region
          _
        $region60: #{tpu_custom_call.1} parent=11 // pred_fallthru
          _
        // Predicated region
        $region61: #{tpu_custom_call.1} parent=11 // pred_check
          %p501 = pneg %p330
        $region62: #{tpu_custom_call.1} parent=11 // pred_check_branch
          %503 = sbr.rel (%p501) target = $region64
        $region63: #{tpu_custom_call.1} parent=11 // pred_region
          _
        $region64: #{tpu_custom_call.1} parent=11 // pred_fallthru
          _
        // Predicated region
        $region65: #{tpu_custom_call.1} parent=11 // pred_check
          %p504 = pneg %p351
        $region66: #{tpu_custom_call.1} parent=11 // pred_check_branch
          %506 = sbr.rel (%p504) target = $region68
        $region67: #{tpu_custom_call.1} parent=11 // pred_region
          _
        $region68: #{tpu_custom_call.1} parent=11 // pred_fallthru
          _
        // Predicated region
        $region69: #{tpu_custom_call.1} parent=11 // pred_check
          %p507 = pneg %p372
        $region70: #{tpu_custom_call.1} parent=11 // pred_check_branch
          %509 = sbr.rel (%p507) target = $region72
        $region71: #{tpu_custom_call.1} parent=11 // pred_region
          _
        $region72: #{tpu_custom_call.1} parent=11 // pred_fallthru
          _
        // Predicated region
        $region73: #{tpu_custom_call.1} parent=11 // pred_check
          %p510 = pneg %p393
        $region74: #{tpu_custom_call.1} parent=11 // pred_check_branch
          %512 = sbr.rel (%p510) target = $region76
        $region75: #{tpu_custom_call.1} parent=11 // pred_region
          _
        $region76: #{tpu_custom_call.1} parent=11 // pred_fallthru
          _
        // Predicated region
        $region77: #{tpu_custom_call.1} parent=11 // pred_check
          %p513 = pneg %p414
        $region78: #{tpu_custom_call.1} parent=11 // pred_check_branch
          %515 = sbr.rel (%p513) target = $region80
        $region79: #{tpu_custom_call.1} parent=11 // pred_region
          _
        $region80: #{tpu_custom_call.1} parent=11 // pred_fallthru
          _
      $region12: #{tpu_custom_call.1} parent=5 // pred_fallthru
        _
      %p516 = scmp.lt.s32.totalorder %s31, 4
      // Predicated region
      $region81: #{tpu_custom_call.1} parent=5 // pred_check
        %p517 = pneg %p516
      $region82: #{tpu_custom_call.1} parent=5 // pred_check_branch
        %519 = sbr.rel (%p517) target = $region84
      $region83: #{tpu_custom_call.1} parent=5 // pred_region
        // Predicated region
        $region85: #{tpu_custom_call.1} parent=83 // pred_check
          %p520 = pneg %p51
        $region86: #{tpu_custom_call.1} parent=83 // pred_check_branch
          %522 = sbr.rel (%p520) target = $region88
        $region87: #{tpu_custom_call.1} parent=83 // pred_region
          %s523 = sand.u32 %s41, 1
          %s524 = scalar_lea.sflag [#allocation3], %s523
          %s525 = sand.u32 %s41, 1
          %s526 = smul.addr %s525, 128
          %s527 = scalar_lea.vmem [#allocation2], %s526
          %s528 = smul.u32 8, %s31
          %s530 = ssub.s32 2048, 2048
          %531 = vsyncadd %s524, %s530
          %s532 = smul.addr %s528, 2
          %s533 = smul.addr %s532, 128
          %s534 = scalar_lea.hbm %s0, %s533
          %s535 = sshll.u32 %s527, 4
          %s536 = int_to_ptr.vmem [resolvable:$true] %s535
          %541 = dma.hbm_to_vmem [thread:$0]  %s534, 2048, %s536, %s524, 128, 128, 8
        $region88: #{tpu_custom_call.1} parent=83 // pred_fallthru
          _
      $region84: #{tpu_custom_call.1} parent=5 // pred_fallthru
        _
      %p542 = scmp.le.s32.totalorder 1, %s31
      %p543 = scmp.lt.s32.totalorder %s31, 5
      %p544 = pnand %p542, %p543
      %p545 = pneg %p544
      // Predicated region
      $region89: #{tpu_custom_call.1} parent=5 // pred_check
        _
      $region90: #{tpu_custom_call.1} parent=5 // pred_check_branch
        %547 = sbr.rel (%p544) target = $region92
      $region91: #{tpu_custom_call.1} parent=5 // pred_region
        %s548 = ssub.s32 %s31, 1
        %s549 = sand.u32 %s44, 1
        %s550 = scalar_lea.sflag [#allocation3], %s549
        %s551 = sand.u32 %s44, 1
        %s552 = smul.addr %s551, 128
        %s553 = scalar_lea.vmem [#allocation2], %s552
        // Predicated region
        $region93: #{tpu_custom_call.1} parent=91 // pred_check
          %p554 = pneg %p57
        $region94: #{tpu_custom_call.1} parent=91 // pred_check_branch
          %556 = sbr.rel (%p554) target = $region96
        $region95: #{tpu_custom_call.1} parent=91 // pred_region
          %557 = dma.done %s550, 2048
        $region96: #{tpu_custom_call.1} parent=91 // pred_fallthru
          _
        // Predicated region
        $region97: #{tpu_custom_call.1} parent=91 // pred_check
          %p558 = pneg %p78
        $region98: #{tpu_custom_call.1} parent=91 // pred_check_branch
          %560 = sbr.rel (%p558) target = $region100
        $region99: #{tpu_custom_call.1} parent=91 // pred_region
          %561 = dma.done [#allocation6], 256
        $region100: #{tpu_custom_call.1} parent=91 // pred_fallthru
          _
        %s562 = sand.u32 %s44, 1
        %s563 = scalar_lea.sflag [#allocation3], %s562
        %s564 = sand.u32 %s44, 1
        %s565 = smul.addr %s564, 128
        %s566 = scalar_lea.vmem [#allocation2], %s565
        %p567 = pneg %p57
        %p568 = pneg %p54
        %p569 = pneg %p78
        %p570 = pneg %p75
        %p571 = pneg %p99
        %p572 = pneg %p96
        %p573 = pneg %p120
        %p574 = pneg %p117
        %p575 = pneg %p141
        %p576 = pneg %p138
        %p577 = pneg %p162
        %p578 = pneg %p159
        %p579 = pneg %p183
        %p580 = pneg %p180
        %p581 = pneg %p204
        %p582 = pneg %p201
        %p583 = pneg %p225
        %p584 = pneg %p222
        %p585 = pneg %p246
        %p586 = pneg %p243
        %p587 = pneg %p267
        %p588 = pneg %p264
        %p589 = pneg %p288
        %p590 = pneg %p285
        %p591 = pneg %p309
        %p592 = pneg %p306
        %p593 = pneg %p330
        %p594 = pneg %p327
        %p595 = pneg %p351
        %p596 = pneg %p348
        %p597 = pneg %p372
        %p598 = pneg %p369
        %p599 = pneg %p393
        %p600 = pneg %p390
        %p601 = pneg %p414
        %p602 = pneg %p411
        %p603 = pneg %p440
        %p604 = pneg %p437
        %s605 = sand.u32 %s427, 1
        %s606 = scalar_lea.sflag [#allocation4], %s605
        %s607 = sand.u32 %s427, 1
        %s608 = smul.addr %s607, 128
        %s609 = scalar_lea.vmem [#allocation7], %s608
        %s610 = smul.u32 8, %s36
        %s611 = smul.u32 8, %s36
        %v612 = vld [vmem:[%s553] sm:$0xff]
        %v613 = vld [vmem:[%s553 + $0x8] sm:$0xff]
        %v614 = vld [vmem:[%s553 + $0x10] sm:$0xff]
        %v615 = vld [vmem:[%s553 + $0x18] sm:$0xff]
        %v616 = vld [vmem:[%s553 + $0x20] sm:$0xff]
        %v617 = vld [vmem:[%s553 + $0x28] sm:$0xff]
        %v618 = vld [vmem:[%s553 + $0x30] sm:$0xff]
        %v619 = vld [vmem:[%s553 + $0x38] sm:$0xff]
        %v620 = vld [vmem:[%s553 + $0x40] sm:$0xff]
        %v621 = vld [vmem:[%s553 + $0x48] sm:$0xff]
        %v622 = vld [vmem:[%s553 + $0x50] sm:$0xff]
        %v623 = vld [vmem:[%s553 + $0x58] sm:$0xff]
        %v624 = vld [vmem:[%s553 + $0x60] sm:$0xff]
        %v625 = vld [vmem:[%s553 + $0x68] sm:$0xff]
        %v626 = vld [vmem:[%s553 + $0x70] sm:$0xff]
        %v627 = vld [vmem:[%s553 + $0x78] sm:$0xff]
        %v628 = vld [vmem:[#allocation5] sm:$0xff]
        %v629 = vld [vmem:[#allocation5 + $0x8] sm:$0xff]
        %v630 = vadd.f32 %v612, %v628
        %v631 = vadd.f32 %v613, %v629
        %v632 = vadd.f32 %v614, %v628
        %v633 = vadd.f32 %v615, %v629
        %v634 = vadd.f32 %v616, %v628
        %v635 = vadd.f32 %v617, %v629
        %v636 = vadd.f32 %v618, %v628
        %v637 = vadd.f32 %v619, %v629
        %v638 = vadd.f32 %v620, %v628
        %v639 = vadd.f32 %v621, %v629
        %v640 = vadd.f32 %v622, %v628
        %v641 = vadd.f32 %v623, %v629
        %v642 = vadd.f32 %v624, %v628
        %v643 = vadd.f32 %v625, %v629
        %v644 = vadd.f32 %v626, %v628
        %v645 = vadd.f32 %v627, %v629
        %v646 = vld [vmem:[%s2] sm:$0x1]
        %v647 = vld [vmem:[%s3] sm:$0x1]
        %vm648 = vcmask 523264
        %v649 = vsel %vm648, %v630, 0.0
        %650 = vadd.xlane.f32.xlu0 %v649
        %v651 = vpop.xlane.xlu0 %650
        %v652 = vsel %vm648, %v631, 0.0
        %653 = vadd.xlane.f32.xlu0 %v652
        %v654 = vpop.xlane.xlu0 %653
        %v655 = vsel %vm648, %v632, 0.0
        %656 = vadd.xlane.f32.xlu0 %v655
        %v657 = vpop.xlane.xlu0 %656
        %v658 = vsel %vm648, %v633, 0.0
        %659 = vadd.xlane.f32.xlu0 %v658
        %v660 = vpop.xlane.xlu0 %659
        %v661 = vsel %vm648, %v634, 0.0
        %662 = vadd.xlane.f32.xlu0 %v661
        %v663 = vpop.xlane.xlu0 %662
        %v664 = vsel %vm648, %v635, 0.0
        %665 = vadd.xlane.f32.xlu0 %v664
        %v666 = vpop.xlane.xlu0 %665
        %v667 = vsel %vm648, %v636, 0.0
        %668 = vadd.xlane.f32.xlu0 %v667
        %v669 = vpop.xlane.xlu0 %668
        %v670 = vsel %vm648, %v637, 0.0
        %671 = vadd.xlane.f32.xlu0 %v670
        %v672 = vpop.xlane.xlu0 %671
        %v673 = vsel %vm648, %v638, 0.0
        %674 = vadd.xlane.f32.xlu0 %v673
        %v675 = vpop.xlane.xlu0 %674
        %v676 = vsel %vm648, %v639, 0.0
        %677 = vadd.xlane.f32.xlu0 %v676
        %v678 = vpop.xlane.xlu0 %677
        %v679 = vsel %vm648, %v640, 0.0
        %680 = vadd.xlane.f32.xlu0 %v679
        %v681 = vpop.xlane.xlu0 %680
        %v682 = vsel %vm648, %v641, 0.0
        %683 = vadd.xlane.f32.xlu0 %v682
        %v684 = vpop.xlane.xlu0 %683
        %v685 = vsel %vm648, %v642, 0.0
        %686 = vadd.xlane.f32.xlu0 %v685
        %v687 = vpop.xlane.xlu0 %686
        %v688 = vsel %vm648, %v643, 0.0
        %689 = vadd.xlane.f32.xlu0 %v688
        %v690 = vpop.xlane.xlu0 %689
        %v691 = vsel %vm648, %v644, 0.0
        %692 = vadd.xlane.f32.xlu0 %v691
        %v693 = vpop.xlane.xlu0 %692
        %v694 = vsel %vm648, %v645, 0.0
        %695 = vadd.xlane.f32.xlu0 %v694
        %v696 = vpop.xlane.xlu0 %695
        %v697 = vrcp.pop 64.0
        %v698 = vmul.f32 %v651, %v697
        %v699 = vmul.f32 %v654, %v697
        %v700 = vmul.f32 %v657, %v697
        %v701 = vmul.f32 %v660, %v697
        %v702 = vmul.f32 %v663, %v697
        %v703 = vmul.f32 %v666, %v697
        %v704 = vmul.f32 %v669, %v697
        %v705 = vmul.f32 %v672, %v697
        %v706 = vmul.f32 %v675, %v697
        %v707 = vmul.f32 %v678, %v697
        %v708 = vmul.f32 %v681, %v697
        %v709 = vmul.f32 %v684, %v697
        %v710 = vmul.f32 %v687, %v697
        %v711 = vmul.f32 %v690, %v697
        %v712 = vmul.f32 %v693, %v697
        %v713 = vmul.f32 %v696, %v697
        %v714 = vsub.f32 %v630, %v698
        %v715 = vsub.f32 %v631, %v699
        %v716 = vsub.f32 %v632, %v700
        %v717 = vsub.f32 %v633, %v701
        %v718 = vsub.f32 %v634, %v702
        %v719 = vsub.f32 %v635, %v703
        %v720 = vsub.f32 %v636, %v704
        %v721 = vsub.f32 %v637, %v705
        %v722 = vsub.f32 %v638, %v706
        %v723 = vsub.f32 %v639, %v707
        %v724 = vsub.f32 %v640, %v708
        %v725 = vsub.f32 %v641, %v709
        %v726 = vsub.f32 %v642, %v710
        %v727 = vsub.f32 %v643, %v711
        %v728 = vsub.f32 %v644, %v712
        %v729 = vsub.f32 %v645, %v713
        %v730 = vmul.f32 %v714, %v714
        %v731 = vmul.f32 %v715, %v715
        %v732 = vmul.f32 %v716, %v716
        %v733 = vmul.f32 %v717, %v717
        %v734 = vmul.f32 %v718, %v718
        %v735 = vmul.f32 %v719, %v719
        %v736 = vmul.f32 %v720, %v720
        %v737 = vmul.f32 %v721, %v721
        %v738 = vmul.f32 %v722, %v722
        %v739 = vmul.f32 %v723, %v723
        %v740 = vmul.f32 %v724, %v724
        %v741 = vmul.f32 %v725, %v725
        %v742 = vmul.f32 %v726, %v726
        %v743 = vmul.f32 %v727, %v727
        %v744 = vmul.f32 %v728, %v728
        %v745 = vmul.f32 %v729, %v729
        %v746 = vsel %vm648, %v730, 0.0
        %747 = vadd.xlane.f32.xlu0 %v746
        %v748 = vpop.xlane.xlu0 %747
        %v749 = vsel %vm648, %v731, 0.0
        %750 = vadd.xlane.f32.xlu0 %v749
        %v751 = vpop.xlane.xlu0 %750
        %v752 = vsel %vm648, %v732, 0.0
        %753 = vadd.xlane.f32.xlu0 %v752
        %v754 = vpop.xlane.xlu0 %753
        %v755 = vsel %vm648, %v733, 0.0
        %756 = vadd.xlane.f32.xlu0 %v755
        %v757 = vpop.xlane.xlu0 %756
        %v758 = vsel %vm648, %v734, 0.0
        %759 = vadd.xlane.f32.xlu0 %v758
        %v760 = vpop.xlane.xlu0 %759
        %v761 = vsel %vm648, %v735, 0.0
        %762 = vadd.xlane.f32.xlu0 %v761
        %v763 = vpop.xlane.xlu0 %762
        %v764 = vsel %vm648, %v736, 0.0
        %765 = vadd.xlane.f32.xlu0 %v764
        %v766 = vpop.xlane.xlu0 %765
        %v767 = vsel %vm648, %v737, 0.0
        %768 = vadd.xlane.f32.xlu0 %v767
        %v769 = vpop.xlane.xlu0 %768
        %v770 = vsel %vm648, %v738, 0.0
        %771 = vadd.xlane.f32.xlu0 %v770
        %v772 = vpop.xlane.xlu0 %771
        %v773 = vsel %vm648, %v739, 0.0
        %774 = vadd.xlane.f32.xlu0 %v773
        %v775 = vpop.xlane.xlu0 %774
        %v776 = vsel %vm648, %v740, 0.0
        %777 = vadd.xlane.f32.xlu0 %v776
        %v778 = vpop.xlane.xlu0 %777
        %v779 = vsel %vm648, %v741, 0.0
        %780 = vadd.xlane.f32.xlu0 %v779
        %v781 = vpop.xlane.xlu0 %780
        %v782 = vsel %vm648, %v742, 0.0
        %783 = vadd.xlane.f32.xlu0 %v782
        %v784 = vpop.xlane.xlu0 %783
        %v785 = vsel %vm648, %v743, 0.0
        %786 = vadd.xlane.f32.xlu0 %v785
        %v787 = vpop.xlane.xlu0 %786
        %v788 = vsel %vm648, %v744, 0.0
        %789 = vadd.xlane.f32.xlu0 %v788
        %v790 = vpop.xlane.xlu0 %789
        %v791 = vsel %vm648, %v745, 0.0
        %792 = vadd.xlane.f32.xlu0 %v791
        %v793 = vpop.xlane.xlu0 %792
        %v794 = vmul.f32 %v748, %v697
        %v795 = vmul.f32 %v751, %v697
        %v796 = vmul.f32 %v754, %v697
        %v797 = vmul.f32 %v757, %v697
        %v798 = vmul.f32 %v760, %v697
        %v799 = vmul.f32 %v763, %v697
        %v800 = vmul.f32 %v766, %v697
        %v801 = vmul.f32 %v769, %v697
        %v802 = vmul.f32 %v772, %v697
        %v803 = vmul.f32 %v775, %v697
        %v804 = vmul.f32 %v778, %v697
        %v805 = vmul.f32 %v781, %v697
        %v806 = vmul.f32 %v784, %v697
        %v807 = vmul.f32 %v787, %v697
        %v808 = vmul.f32 %v790, %v697
        %v809 = vmul.f32 %v793, %v697
        %v810 = vadd.f32 %v794, 1e-05
        %v811 = vadd.f32 %v795, 1e-05
        %v812 = vadd.f32 %v796, 1e-05
        %v813 = vadd.f32 %v797, 1e-05
        %v814 = vadd.f32 %v798, 1e-05
        %v815 = vadd.f32 %v799, 1e-05
        %v816 = vadd.f32 %v800, 1e-05
        %v817 = vadd.f32 %v801, 1e-05
        %v818 = vadd.f32 %v802, 1e-05
        %v819 = vadd.f32 %v803, 1e-05
        %v820 = vadd.f32 %v804, 1e-05
        %v821 = vadd.f32 %v805, 1e-05
        %v822 = vadd.f32 %v806, 1e-05
        %v823 = vadd.f32 %v807, 1e-05
        %v824 = vadd.f32 %v808, 1e-05
        %v825 = vadd.f32 %v809, 1e-05
        %v826 = vrsqrt.pop %v810
        %v827 = vrsqrt.pop %v811
        %v828 = vrsqrt.pop %v812
        %v829 = vrsqrt.pop %v813
        %v830 = vrsqrt.pop %v814
        %v831 = vrsqrt.pop %v815
        %v832 = vrsqrt.pop %v816
        %v833 = vrsqrt.pop %v817
        %v834 = vrsqrt.pop %v818
        %v835 = vrsqrt.pop %v819
        %v836 = vrsqrt.pop %v820
        %v837 = vrsqrt.pop %v821
        %v838 = vrsqrt.pop %v822
        %v839 = vrsqrt.pop %v823
        %v840 = vrsqrt.pop %v824
        %v841 = vrsqrt.pop %v825
        %v842 = vmul.f32 %v714, %v826
        %v843 = vmul.f32 %v715, %v827
        %v844 = vmul.f32 %v716, %v828
        %v845 = vmul.f32 %v717, %v829
        %v846 = vmul.f32 %v718, %v830
        %v847 = vmul.f32 %v719, %v831
        %v848 = vmul.f32 %v720, %v832
        %v849 = vmul.f32 %v721, %v833
        %v850 = vmul.f32 %v722, %v834
        %v851 = vmul.f32 %v723, %v835
        %v852 = vmul.f32 %v724, %v836
        %v853 = vmul.f32 %v725, %v837
        %v854 = vmul.f32 %v726, %v838
        %v855 = vmul.f32 %v727, %v839
        %v856 = vmul.f32 %v728, %v840
        %v857 = vmul.f32 %v729, %v841
        %v859 = vlaneseq
        %v860 = vshrl.u32 %v859, 7
        %v861 = vsub.s32 0, %v860
        %v862 = vrot.slane %v646, %v861
        %v864 = vmul.f32 %v842, %v862
        %v865 = vmul.f32 %v843, %v862
        %v866 = vmul.f32 %v844, %v862
        %v867 = vmul.f32 %v845, %v862
        %v868 = vmul.f32 %v846, %v862
        %v869 = vmul.f32 %v847, %v862
        %v870 = vmul.f32 %v848, %v862
        %v871 = vmul.f32 %v849, %v862
        %v872 = vmul.f32 %v850, %v862
        %v873 = vmul.f32 %v851, %v862
        %v874 = vmul.f32 %v852, %v862
        %v875 = vmul.f32 %v853, %v862
        %v876 = vmul.f32 %v854, %v862
        %v877 = vmul.f32 %v855, %v862
        %v878 = vmul.f32 %v856, %v862
        %v879 = vmul.f32 %v857, %v862
        %v881 = vlaneseq
        %v882 = vshrl.u32 %v881, 7
        %v883 = vsub.s32 0, %v882
        %v884 = vrot.slane %v647, %v883
        %v886 = vadd.f32 %v864, %v884
        %v887 = vadd.f32 %v865, %v884
        %v888 = vadd.f32 %v866, %v884
        %v889 = vadd.f32 %v867, %v884
        %v890 = vadd.f32 %v868, %v884
        %v891 = vadd.f32 %v869, %v884
        %v892 = vadd.f32 %v870, %v884
        %v893 = vadd.f32 %v871, %v884
        %v894 = vadd.f32 %v872, %v884
        %v895 = vadd.f32 %v873, %v884
        %v896 = vadd.f32 %v874, %v884
        %v897 = vadd.f32 %v875, %v884
        %v898 = vadd.f32 %v876, %v884
        %v899 = vadd.f32 %v877, %v884
        %v900 = vadd.f32 %v878, %v884
        %v901 = vadd.f32 %v879, %v884
        %v902 = vld [vmem:[%s4] sm:$0xff]
        %v903 = vld [vmem:[%s4 + $0x8] sm:$0xff]
        %v904 = vld [vmem:[%s4 + $0x10] sm:$0xff]
        %v905 = vld [vmem:[%s4 + $0x18] sm:$0xff]
        %v906 = vld [vmem:[%s4 + $0x20] sm:$0xff]
        %v907 = vld [vmem:[%s4 + $0x28] sm:$0xff]
        %v908 = vld [vmem:[%s4 + $0x30] sm:$0xff]
        %v909 = vld [vmem:[%s4 + $0x38] sm:$0xff]
        %v910 = vld [vmem:[%s5] sm:$0x1]
        %v912 = vlaneseq
        %v913 = vshrl.u32 %v912, 7
        %v914 = vsub.s32 0, %v913
        %v915 = vrot.slane %v910, %v914
        %v918 = vsel %vm648, %v886, 0
        %v921 = vsel %vm648, %v887, 0
        %v924 = vsel %vm648, %v888, 0
        %v927 = vsel %vm648, %v889, 0
        %v930 = vsel %vm648, %v890, 0
        %v933 = vsel %vm648, %v891, 0
        %v936 = vsel %vm648, %v892, 0
        %v939 = vsel %vm648, %v893, 0
        %v942 = vsel %vm648, %v894, 0
        %v945 = vsel %vm648, %v895, 0
        %v948 = vsel %vm648, %v896, 0
        %v951 = vsel %vm648, %v897, 0
        %v954 = vsel %vm648, %v898, 0
        %v957 = vsel %vm648, %v899, 0
        %v960 = vsel %vm648, %v900, 0
        %v963 = vsel %vm648, %v901, 0
        %965 = vmatprep.subr.mxu0 0.0
        %966 = vmatpush1.msra.mxu0 %v902
        %967 = vmatprep.subr.mxu0 0.0
        %968 = vmatpush1.msra.mxu0 %v903
        %969 = vmatprep.subr.mxu0 0.0
        %970 = vmatpush1.msra.mxu0 %v904
        %971 = vmatprep.subr.mxu0 0.0
        %972 = vmatpush1.msra.mxu0 %v905
        %973 = vmatprep.subr.mxu0 0.0
        %974 = vmatpush1.msra.mxu0 %v906
        %975 = vmatprep.subr.mxu0 0.0
        %976 = vmatpush1.msra.mxu0 %v907
        %977 = vmatprep.subr.mxu0 0.0
        %978 = vmatpush1.msra.mxu0 %v908
        %979 = vmatprep.subr.mxu0 0.0
        %980 = vmatpush1.msra.mxu0 %v909
        %981 = vmatprep.subr.mxu0 0.0
        %982 = vmatpush1.msra.mxu0 0.0
        %983 = vmatprep.subr.mxu0 0.0
        %984 = vmatpush1.msra.mxu0 0.0
        %985 = vmatprep.subr.mxu0 0.0
        %986 = vmatpush1.msra.mxu0 0.0
        %987 = vmatprep.subr.mxu0 0.0
        %988 = vmatpush1.msra.mxu0 0.0
        %989 = vmatprep.subr.mxu0 0.0
        %990 = vmatpush1.msra.mxu0 0.0
        %991 = vmatprep.subr.mxu0 0.0
        %992 = vmatpush1.msra.mxu0 0.0
        %993 = vmatprep.subr.mxu0 0.0
        %994 = vmatpush1.msra.mxu0 0.0
        %995 = vmatprep.subr.mxu0 0.0
        %996 = vmatpush1.msra.mxu0 0.0
        %997 = vmatprep.subr.mxu0 0.0
        %998 = vmatpush1.msra.mxu0 0.0
        %999 = vmatprep.subr.mxu0 0.0
        %1000 = vmatpush1.msra.mxu0 0.0
        %1001 = vmatprep.subr.mxu0 0.0
        %1002 = vmatpush1.msra.mxu0 0.0
        %1003 = vmatprep.subr.mxu0 0.0
        %1004 = vmatpush1.msra.mxu0 0.0
        %1005 = vmatprep.subr.mxu0 0.0
        %1006 = vmatpush1.msra.mxu0 0.0
        %1007 = vmatprep.subr.mxu0 0.0
        %1008 = vmatpush1.msra.mxu0 0.0
        %1009 = vmatprep.subr.mxu0 0.0
        %1010 = vmatpush1.msra.mxu0 0.0
        %1011 = vmatprep.subr.mxu0 0.0
        %1012 = vmatpush1.msra.mxu0 0.0
        %1013 = vmatprep.subr.mxu0 0.0
        %1014 = vmatpush1.msra.mxu0 0.0
        %1015 = vmatprep.subr.mxu0 0.0
        %1016 = vmatpush1.msra.mxu0 0.0
        %1017 = vmatprep.subr.mxu0 0.0
        %1018 = vmatpush1.msra.mxu0 0.0
        %1019 = vmatprep.subr.mxu0 0.0
        %1020 = vmatpush1.msra.mxu0 0.0
        %1021 = vmatprep.subr.mxu0 0.0
        %1022 = vmatpush1.msra.mxu0 0.0
        %1023 = vmatprep.subr.mxu0 0.0
        %1024 = vmatpush1.msra.mxu0 0.0
        %1025 = vmatprep.subr.mxu0 0.0
        %1026 = vmatpush1.msra.mxu0 0.0
        %1027 = vmatprep.subr.mxu0 0.0
        %1028 = vmatpush1.msra.mxu0 0.0
        %1029 = vmatprep.mubr.f32.mxu0 0.0
        %1030 = vmatmul.mubr.f32.gmra.mrb[0].mxu0 %v918
        %v1031 = vpop.f32.mrb[0].mxu0
        %v1032 = vadd.f32 %v915, %v1031
        %v1033 = vpop.f32.mrb[0].mxu0
        %1034 = vmatprep.mubr.f32.mxu0 0.0
        %1035 = vmatmul.mubr.f32.gmra.mrb[0].mxu0 %v921
        %v1036 = vpop.f32.mrb[0].mxu0
        %v1037 = vadd.f32 %v915, %v1036
        %v1038 = vpop.f32.mrb[0].mxu0
        %1039 = vmatprep.mubr.f32.mxu0 0.0
        %1040 = vmatmul.mubr.f32.gmra.mrb[0].mxu0 %v924
        %v1041 = vpop.f32.mrb[0].mxu0
        %v1042 = vadd.f32 %v915, %v1041
        %v1043 = vpop.f32.mrb[0].mxu0
        %1044 = vmatprep.mubr.f32.mxu0 0.0
        %1045 = vmatmul.mubr.f32.gmra.mrb[0].mxu0 %v927
        %v1046 = vpop.f32.mrb[0].mxu0
        %v1047 = vadd.f32 %v915, %v1046
        %v1048 = vpop.f32.mrb[0].mxu0
        %1049 = vmatprep.mubr.f32.mxu0 0.0
        %1050 = vmatmul.mubr.f32.gmra.mrb[0].mxu0 %v930
        %v1051 = vpop.f32.mrb[0].mxu0
        %v1052 = vadd.f32 %v915, %v1051
        %v1053 = vpop.f32.mrb[0].mxu0
        %1054 = vmatprep.mubr.f32.mxu0 0.0
        %1055 = vmatmul.mubr.f32.gmra.mrb[0].mxu0 %v933
        %v1056 = vpop.f32.mrb[0].mxu0
        %v1057 = vadd.f32 %v915, %v1056
        %v1058 = vpop.f32.mrb[0].mxu0
        %1059 = vmatprep.mubr.f32.mxu0 0.0
        %1060 = vmatmul.mubr.f32.gmra.mrb[0].mxu0 %v936
        %v1061 = vpop.f32.mrb[0].mxu0
        %v1062 = vadd.f32 %v915, %v1061
        %v1063 = vpop.f32.mrb[0].mxu0
        %1064 = vmatprep.mubr.f32.mxu0 0.0
        %1065 = vmatmul.mubr.f32.gmra.mrb[0].mxu0 %v939
        %v1066 = vpop.f32.mrb[0].mxu0
        %v1067 = vadd.f32 %v915, %v1066
        %v1068 = vpop.f32.mrb[0].mxu0
        %1069 = vmatprep.mubr.f32.mxu0 0.0
        %1070 = vmatmul.mubr.f32.gmra.mrb[0].mxu0 %v942
        %v1071 = vpop.f32.mrb[0].mxu0
        %v1072 = vadd.f32 %v915, %v1071
        %v1073 = vpop.f32.mrb[0].mxu0
        %1074 = vmatprep.mubr.f32.mxu0 0.0
        %1075 = vmatmul.mubr.f32.gmra.mrb[0].mxu0 %v945
        %v1076 = vpop.f32.mrb[0].mxu0
        %v1077 = vadd.f32 %v915, %v1076
        %v1078 = vpop.f32.mrb[0].mxu0
        %1079 = vmatprep.mubr.f32.mxu0 0.0
        %1080 = vmatmul.mubr.f32.gmra.mrb[0].mxu0 %v948
        %v1081 = vpop.f32.mrb[0].mxu0
        %v1082 = vadd.f32 %v915, %v1081
        %v1083 = vpop.f32.mrb[0].mxu0
        %1084 = vmatprep.mubr.f32.mxu0 0.0
        %1085 = vmatmul.mubr.f32.gmra.mrb[0].mxu0 %v951
        %v1086 = vpop.f32.mrb[0].mxu0
        %v1087 = vadd.f32 %v915, %v1086
        %v1088 = vpop.f32.mrb[0].mxu0
        %1089 = vmatprep.mubr.f32.mxu0 0.0
        %1090 = vmatmul.mubr.f32.gmra.mrb[0].mxu0 %v954
        %v1091 = vpop.f32.mrb[0].mxu0
        %v1092 = vadd.f32 %v915, %v1091
        %v1093 = vpop.f32.mrb[0].mxu0
        %1094 = vmatprep.mubr.f32.mxu0 0.0
        %1095 = vmatmul.mubr.f32.gmra.mrb[0].mxu0 %v957
        %v1096 = vpop.f32.mrb[0].mxu0
        %v1097 = vadd.f32 %v915, %v1096
        %v1098 = vpop.f32.mrb[0].mxu0
        %1099 = vmatprep.mubr.f32.mxu0 0.0
        %1100 = vmatmul.mubr.f32.gmra.mrb[0].mxu0 %v960
        %v1101 = vpop.f32.mrb[0].mxu0
        %v1102 = vadd.f32 %v915, %v1101
        %v1103 = vpop.f32.mrb[0].mxu0
        %1104 = vmatprep.mubr.f32.mxu0 0.0
        %1105 = vmatmul.mubr.f32.gmra.mrb[0].mxu0 %v963
        %v1106 = vpop.f32.mrb[0].mxu0
        %v1107 = vadd.f32 %v915, %v1106
        %v1108 = vpop.f32.mrb[0].mxu0
        %1109 = vdwg.mxu0
        %v1110 = vld [vmem:[%s6] sm:$0xff]
        %v1111 = vld [vmem:[%s6 + $0x8] sm:$0xff]
        %v1112 = vld [vmem:[%s6 + $0x10] sm:$0xff]
        %v1113 = vld [vmem:[%s6 + $0x18] sm:$0xff]
        %v1114 = vld [vmem:[%s6 + $0x20] sm:$0xff]
        %v1115 = vld [vmem:[%s6 + $0x28] sm:$0xff]
        %v1116 = vld [vmem:[%s6 + $0x30] sm:$0xff]
        %v1117 = vld [vmem:[%s6 + $0x38] sm:$0xff]
        %v1118 = vld [vmem:[%s7] sm:$0x1]
        %v1120 = vlaneseq
        %v1121 = vshrl.u32 %v1120, 7
        %v1122 = vsub.s32 0, %v1121
        %v1123 = vrot.slane %v1118, %v1122
        %1125 = vmatprep.subr.mxu0 0.0
        %1126 = vmatpush1.msra.mxu0 %v1110
        %1127 = vmatprep.subr.mxu0 0.0
        %1128 = vmatpush1.msra.mxu0 %v1111
        %1129 = vmatprep.subr.mxu0 0.0
        %1130 = vmatpush1.msra.mxu0 %v1112
        %1131 = vmatprep.subr.mxu0 0.0
        %1132 = vmatpush1.msra.mxu0 %v1113
        %1133 = vmatprep.subr.mxu0 0.0
        %1134 = vmatpush1.msra.mxu0 %v1114
        %1135 = vmatprep.subr.mxu0 0.0
        %1136 = vmatpush1.msra.mxu0 %v1115
        %1137 = vmatprep.subr.mxu0 0.0
        %1138 = vmatpush1.msra.mxu0 %v1116
        %1139 = vmatprep.subr.mxu0 0.0
        %1140 = vmatpush1.msra.mxu0 %v1117
        %1141 = vmatprep.subr.mxu0 0.0
        %1142 = vmatpush1.msra.mxu0 0.0
        %1143 = vmatprep.subr.mxu0 0.0
        %1144 = vmatpush1.msra.mxu0 0.0
        %1145 = vmatprep.subr.mxu0 0.0
        %1146 = vmatpush1.msra.mxu0 0.0
        %1147 = vmatprep.subr.mxu0 0.0
        %1148 = vmatpush1.msra.mxu0 0.0
        %1149 = vmatprep.subr.mxu0 0.0
        %1150 = vmatpush1.msra.mxu0 0.0
        %1151 = vmatprep.subr.mxu0 0.0
        %1152 = vmatpush1.msra.mxu0 0.0
        %1153 = vmatprep.subr.mxu0 0.0
        %1154 = vmatpush1.msra.mxu0 0.0
        %1155 = vmatprep.subr.mxu0 0.0
        %1156 = vmatpush1.msra.mxu0 0.0
        %1157 = vmatprep.subr.mxu0 0.0
        %1158 = vmatpush1.msra.mxu0 0.0
        %1159 = vmatprep.subr.mxu0 0.0
        %1160 = vmatpush1.msra.mxu0 0.0
        %1161 = vmatprep.subr.mxu0 0.0
        %1162 = vmatpush1.msra.mxu0 0.0
        %1163 = vmatprep.subr.mxu0 0.0
        %1164 = vmatpush1.msra.mxu0 0.0
        %1165 = vmatprep.subr.mxu0 0.0
        %1166 = vmatpush1.msra.mxu0 0.0
        %1167 = vmatprep.subr.mxu0 0.0
        %1168 = vmatpush1.msra.mxu0 0.0
        %1169 = vmatprep.subr.mxu0 0.0
        %1170 = vmatpush1.msra.mxu0 0.0
        %1171 = vmatprep.subr.mxu0 0.0
        %1172 = vmatpush1.msra.mxu0 0.0
        %1173 = vmatprep.subr.mxu0 0.0
        %1174 = vmatpush1.msra.mxu0 0.0
        %1175 = vmatprep.subr.mxu0 0.0
        %1176 = vmatpush1.msra.mxu0 0.0
        %1177 = vmatprep.subr.mxu0 0.0
        %1178 = vmatpush1.msra.mxu0 0.0
        %1179 = vmatprep.subr.mxu0 0.0
        %1180 = vmatpush1.msra.mxu0 0.0
        %1181 = vmatprep.subr.mxu0 0.0
        %1182 = vmatpush1.msra.mxu0 0.0
        %1183 = vmatprep.subr.mxu0 0.0
        %1184 = vmatpush1.msra.mxu0 0.0
        %1185 = vmatprep.subr.mxu0 0.0
        %1186 = vmatpush1.msra.mxu0 0.0
        %1187 = vmatprep.subr.mxu0 0.0
        %1188 = vmatpush1.msra.mxu0 0.0
        %1189 = vmatprep.mubr.f32.mxu0 0.0
        %1190 = vmatmul.mubr.f32.gmra.mrb[0].mxu0 %v918
        %v1191 = vpop.f32.mrb[0].mxu0
        %v1192 = vadd.f32 %v1123, %v1191
        %v1193 = vpop.f32.mrb[0].mxu0
        %1194 = vmatprep.mubr.f32.mxu0 0.0
        %1195 = vmatmul.mubr.f32.gmra.mrb[0].mxu0 %v921
        %v1196 = vpop.f32.mrb[0].mxu0
        %v1197 = vadd.f32 %v1123, %v1196
        %v1198 = vpop.f32.mrb[0].mxu0
        %1199 = vmatprep.mubr.f32.mxu0 0.0
        %1200 = vmatmul.mubr.f32.gmra.mrb[0].mxu0 %v924
        %v1201 = vpop.f32.mrb[0].mxu0
        %v1202 = vadd.f32 %v1123, %v1201
        %v1203 = vpop.f32.mrb[0].mxu0
        %1204 = vmatprep.mubr.f32.mxu0 0.0
        %1205 = vmatmul.mubr.f32.gmra.mrb[0].mxu0 %v927
        %v1206 = vpop.f32.mrb[0].mxu0
        %v1207 = vadd.f32 %v1123, %v1206
        %v1208 = vpop.f32.mrb[0].mxu0
        %1209 = vmatprep.mubr.f32.mxu0 0.0
        %1210 = vmatmul.mubr.f32.gmra.mrb[0].mxu0 %v930
        %v1211 = vpop.f32.mrb[0].mxu0
        %v1212 = vadd.f32 %v1123, %v1211
        %v1213 = vpop.f32.mrb[0].mxu0
        %1214 = vmatprep.mubr.f32.mxu0 0.0
        %1215 = vmatmul.mubr.f32.gmra.mrb[0].mxu0 %v933
        %v1216 = vpop.f32.mrb[0].mxu0
        %v1217 = vadd.f32 %v1123, %v1216
        %v1218 = vpop.f32.mrb[0].mxu0
        %1219 = vmatprep.mubr.f32.mxu0 0.0
        %1220 = vmatmul.mubr.f32.gmra.mrb[0].mxu0 %v936
        %v1221 = vpop.f32.mrb[0].mxu0
        %v1222 = vadd.f32 %v1123, %v1221
        %v1223 = vpop.f32.mrb[0].mxu0
        %1224 = vmatprep.mubr.f32.mxu0 0.0
        %1225 = vmatmul.mubr.f32.gmra.mrb[0].mxu0 %v939
        %v1226 = vpop.f32.mrb[0].mxu0
        %v1227 = vadd.f32 %v1123, %v1226
        %v1228 = vpop.f32.mrb[0].mxu0
        %1229 = vmatprep.mubr.f32.mxu0 0.0
        %1230 = vmatmul.mubr.f32.gmra.mrb[0].mxu0 %v942
        %v1231 = vpop.f32.mrb[0].mxu0
        %v1232 = vadd.f32 %v1123, %v1231
        %v1233 = vpop.f32.mrb[0].mxu0
        %1234 = vmatprep.mubr.f32.mxu0 0.0
        %1235 = vmatmul.mubr.f32.gmra.mrb[0].mxu0 %v945
        %v1236 = vpop.f32.mrb[0].mxu0
        %v1237 = vadd.f32 %v1123, %v1236
        %v1238 = vpop.f32.mrb[0].mxu0
        %1239 = vmatprep.mubr.f32.mxu0 0.0
        %1240 = vmatmul.mubr.f32.gmra.mrb[0].mxu0 %v948
        %v1241 = vpop.f32.mrb[0].mxu0
        %v1242 = vadd.f32 %v1123, %v1241
        %v1243 = vpop.f32.mrb[0].mxu0
        %1244 = vmatprep.mubr.f32.mxu0 0.0
        %1245 = vmatmul.mubr.f32.gmra.mrb[0].mxu0 %v951
        %v1246 = vpop.f32.mrb[0].mxu0
        %v1247 = vadd.f32 %v1123, %v1246
        %v1248 = vpop.f32.mrb[0].mxu0
        %1249 = vmatprep.mubr.f32.mxu0 0.0
        %1250 = vmatmul.mubr.f32.gmra.mrb[0].mxu0 %v954
        %v1251 = vpop.f32.mrb[0].mxu0
        %v1252 = vadd.f32 %v1123, %v1251
        %v1253 = vpop.f32.mrb[0].mxu0
        %1254 = vmatprep.mubr.f32.mxu0 0.0
        %1255 = vmatmul.mubr.f32.gmra.mrb[0].mxu0 %v957
        %v1256 = vpop.f32.mrb[0].mxu0
        %v1257 = vadd.f32 %v1123, %v1256
        %v1258 = vpop.f32.mrb[0].mxu0
        %1259 = vmatprep.mubr.f32.mxu0 0.0
        %1260 = vmatmul.mubr.f32.gmra.mrb[0].mxu0 %v960
        %v1261 = vpop.f32.mrb[0].mxu0
        %v1262 = vadd.f32 %v1123, %v1261
        %v1263 = vpop.f32.mrb[0].mxu0
        %1264 = vmatprep.mubr.f32.mxu0 0.0
        %1265 = vmatmul.mubr.f32.gmra.mrb[0].mxu0 %v963
        %v1266 = vpop.f32.mrb[0].mxu0
        %v1267 = vadd.f32 %v1123, %v1266
        %v1268 = vpop.f32.mrb[0].mxu0
        %1269 = vdwg.mxu0
        %v1270 = vld [vmem:[%s8] sm:$0xff]
        %v1271 = vld [vmem:[%s8 + $0x8] sm:$0xff]
        %v1272 = vld [vmem:[%s8 + $0x10] sm:$0xff]
        %v1273 = vld [vmem:[%s8 + $0x18] sm:$0xff]
        %v1274 = vld [vmem:[%s8 + $0x20] sm:$0xff]
        %v1275 = vld [vmem:[%s8 + $0x28] sm:$0xff]
        %v1276 = vld [vmem:[%s8 + $0x30] sm:$0xff]
        %v1277 = vld [vmem:[%s8 + $0x38] sm:$0xff]
        %v1278 = vld [vmem:[%s9] sm:$0x1]
        %v1280 = vlaneseq
        %v1281 = vshrl.u32 %v1280, 7
        %v1282 = vsub.s32 0, %v1281
        %v1283 = vrot.slane %v1278, %v1282
        %1285 = vmatprep.subr.mxu0 0.0
        %1286 = vmatpush1.msra.mxu0 %v1270
        %1287 = vmatprep.subr.mxu0 0.0
        %1288 = vmatpush1.msra.mxu0 %v1271
        %1289 = vmatprep.subr.mxu0 0.0
        %1290 = vmatpush1.msra.mxu0 %v1272
        %1291 = vmatprep.subr.mxu0 0.0
        %1292 = vmatpush1.msra.mxu0 %v1273
        %1293 = vmatprep.subr.mxu0 0.0
        %1294 = vmatpush1.msra.mxu0 %v1274
        %1295 = vmatprep.subr.mxu0 0.0
        %1296 = vmatpush1.msra.mxu0 %v1275
        %1297 = vmatprep.subr.mxu0 0.0
        %1298 = vmatpush1.msra.mxu0 %v1276
        %1299 = vmatprep.subr.mxu0 0.0
        %1300 = vmatpush1.msra.mxu0 %v1277
        %1301 = vmatprep.subr.mxu0 0.0
        %1302 = vmatpush1.msra.mxu0 0.0
        %1303 = vmatprep.subr.mxu0 0.0
        %1304 = vmatpush1.msra.mxu0 0.0
        %1305 = vmatprep.subr.mxu0 0.0
        %1306 = vmatpush1.msra.mxu0 0.0
        %1307 = vmatprep.subr.mxu0 0.0
        %1308 = vmatpush1.msra.mxu0 0.0
        %1309 = vmatprep.subr.mxu0 0.0
        %1310 = vmatpush1.msra.mxu0 0.0
        %1311 = vmatprep.subr.mxu0 0.0
        %1312 = vmatpush1.msra.mxu0 0.0
        %1313 = vmatprep.subr.mxu0 0.0
        %1314 = vmatpush1.msra.mxu0 0.0
        %1315 = vmatprep.subr.mxu0 0.0
        %1316 = vmatpush1.msra.mxu0 0.0
        %1317 = vmatprep.subr.mxu0 0.0
        %1318 = vmatpush1.msra.mxu0 0.0
        %1319 = vmatprep.subr.mxu0 0.0
        %1320 = vmatpush1.msra.mxu0 0.0
        %1321 = vmatprep.subr.mxu0 0.0
        %1322 = vmatpush1.msra.mxu0 0.0
        %1323 = vmatprep.subr.mxu0 0.0
        %1324 = vmatpush1.msra.mxu0 0.0
        %1325 = vmatprep.subr.mxu0 0.0
        %1326 = vmatpush1.msra.mxu0 0.0
        %1327 = vmatprep.subr.mxu0 0.0
        %1328 = vmatpush1.msra.mxu0 0.0
        %1329 = vmatprep.subr.mxu0 0.0
        %1330 = vmatpush1.msra.mxu0 0.0
        %1331 = vmatprep.subr.mxu0 0.0
        %1332 = vmatpush1.msra.mxu0 0.0
        %1333 = vmatprep.subr.mxu0 0.0
        %1334 = vmatpush1.msra.mxu0 0.0
        %1335 = vmatprep.subr.mxu0 0.0
        %1336 = vmatpush1.msra.mxu0 0.0
        %1337 = vmatprep.subr.mxu0 0.0
        %1338 = vmatpush1.msra.mxu0 0.0
        %1339 = vmatprep.subr.mxu0 0.0
        %1340 = vmatpush1.msra.mxu0 0.0
        %1341 = vmatprep.subr.mxu0 0.0
        %1342 = vmatpush1.msra.mxu0 0.0
        %1343 = vmatprep.subr.mxu0 0.0
        %1344 = vmatpush1.msra.mxu0 0.0
        %1345 = vmatprep.subr.mxu0 0.0
        %1346 = vmatpush1.msra.mxu0 0.0
        %1347 = vmatprep.subr.mxu0 0.0
        %1348 = vmatpush1.msra.mxu0 0.0
        %1349 = vmatprep.mubr.f32.mxu0 0.0
        %1350 = vmatmul.mubr.f32.gmra.mrb[0].mxu0 %v918
        %v1351 = vpop.f32.mrb[0].mxu0
        %v1352 = vadd.f32 %v1283, %v1351
        %v1353 = vpop.f32.mrb[0].mxu0
        %1354 = vmatprep.mubr.f32.mxu0 0.0
        %1355 = vmatmul.mubr.f32.gmra.mrb[0].mxu0 %v921
        %v1356 = vpop.f32.mrb[0].mxu0
        %v1357 = vadd.f32 %v1283, %v1356
        %v1358 = vpop.f32.mrb[0].mxu0
        %1359 = vmatprep.mubr.f32.mxu0 0.0
        %1360 = vmatmul.mubr.f32.gmra.mrb[0].mxu0 %v924
        %v1361 = vpop.f32.mrb[0].mxu0
        %v1362 = vadd.f32 %v1283, %v1361
        %v1363 = vpop.f32.mrb[0].mxu0
        %1364 = vmatprep.mubr.f32.mxu0 0.0
        %1365 = vmatmul.mubr.f32.gmra.mrb[0].mxu0 %v927
        %v1366 = vpop.f32.mrb[0].mxu0
        %v1367 = vadd.f32 %v1283, %v1366
        %v1368 = vpop.f32.mrb[0].mxu0
        %1369 = vmatprep.mubr.f32.mxu0 0.0
        %1370 = vmatmul.mubr.f32.gmra.mrb[0].mxu0 %v930
        %v1371 = vpop.f32.mrb[0].mxu0
        %v1372 = vadd.f32 %v1283, %v1371
        %v1373 = vpop.f32.mrb[0].mxu0
        %1374 = vmatprep.mubr.f32.mxu0 0.0
        %1375 = vmatmul.mubr.f32.gmra.mrb[0].mxu0 %v933
        %v1376 = vpop.f32.mrb[0].mxu0
        %v1377 = vadd.f32 %v1283, %v1376
        %v1378 = vpop.f32.mrb[0].mxu0
        %1379 = vmatprep.mubr.f32.mxu0 0.0
        %1380 = vmatmul.mubr.f32.gmra.mrb[0].mxu0 %v936
        %v1381 = vpop.f32.mrb[0].mxu0
        %v1382 = vadd.f32 %v1283, %v1381
        %v1383 = vpop.f32.mrb[0].mxu0
        %1384 = vmatprep.mubr.f32.mxu0 0.0
        %1385 = vmatmul.mubr.f32.gmra.mrb[0].mxu0 %v939
        %v1386 = vpop.f32.mrb[0].mxu0
        %v1387 = vadd.f32 %v1283, %v1386
        %v1388 = vpop.f32.mrb[0].mxu0
        %1389 = vmatprep.mubr.f32.mxu0 0.0
        %1390 = vmatmul.mubr.f32.gmra.mrb[0].mxu0 %v942
        %v1391 = vpop.f32.mrb[0].mxu0
        %v1392 = vadd.f32 %v1283, %v1391
        %v1393 = vpop.f32.mrb[0].mxu0
        %1394 = vmatprep.mubr.f32.mxu0 0.0
        %1395 = vmatmul.mubr.f32.gmra.mrb[0].mxu0 %v945
        %v1396 = vpop.f32.mrb[0].mxu0
        %v1397 = vadd.f32 %v1283, %v1396
        %v1398 = vpop.f32.mrb[0].mxu0
        %1399 = vmatprep.mubr.f32.mxu0 0.0
        %1400 = vmatmul.mubr.f32.gmra.mrb[0].mxu0 %v948
        %v1401 = vpop.f32.mrb[0].mxu0
        %v1402 = vadd.f32 %v1283, %v1401
        %v1403 = vpop.f32.mrb[0].mxu0
        %1404 = vmatprep.mubr.f32.mxu0 0.0
        %1405 = vmatmul.mubr.f32.gmra.mrb[0].mxu0 %v951
        %v1406 = vpop.f32.mrb[0].mxu0
        %v1407 = vadd.f32 %v1283, %v1406
        %v1408 = vpop.f32.mrb[0].mxu0
        %1409 = vmatprep.mubr.f32.mxu0 0.0
        %1410 = vmatmul.mubr.f32.gmra.mrb[0].mxu0 %v954
        %v1411 = vpop.f32.mrb[0].mxu0
        %v1412 = vadd.f32 %v1283, %v1411
        %v1413 = vpop.f32.mrb[0].mxu0
        %1414 = vmatprep.mubr.f32.mxu0 0.0
        %1415 = vmatmul.mubr.f32.gmra.mrb[0].mxu0 %v957
        %v1416 = vpop.f32.mrb[0].mxu0
        %v1417 = vadd.f32 %v1283, %v1416
        %v1418 = vpop.f32.mrb[0].mxu0
        %1419 = vmatprep.mubr.f32.mxu0 0.0
        %1420 = vmatmul.mubr.f32.gmra.mrb[0].mxu0 %v960
        %v1421 = vpop.f32.mrb[0].mxu0
        %v1422 = vadd.f32 %v1283, %v1421
        %v1423 = vpop.f32.mrb[0].mxu0
        %1424 = vmatprep.mubr.f32.mxu0 0.0
        %1425 = vmatmul.mubr.f32.gmra.mrb[0].mxu0 %v963
        %v1426 = vpop.f32.mrb[0].mxu0
        %v1427 = vadd.f32 %v1283, %v1426
        %v1428 = vpop.f32.mrb[0].mxu0
        %1429 = vdwg.mxu0
        %v1430 = vmul.f32 %v1032, 0.25
        %v1431 = vmul.f32 %v1037, 0.25
        %v1432 = vmul.f32 %v1042, 0.25
        %v1433 = vmul.f32 %v1047, 0.25
        %v1434 = vmul.f32 %v1052, 0.25
        %v1435 = vmul.f32 %v1057, 0.25
        %v1436 = vmul.f32 %v1062, 0.25
        %v1437 = vmul.f32 %v1067, 0.25
        %v1438 = vmul.f32 %v1072, 0.25
        %v1439 = vmul.f32 %v1077, 0.25
        %v1440 = vmul.f32 %v1082, 0.25
        %v1441 = vmul.f32 %v1087, 0.25
        %v1442 = vmul.f32 %v1092, 0.25
        %v1443 = vmul.f32 %v1097, 0.25
        %v1444 = vmul.f32 %v1102, 0.25
        %v1445 = vmul.f32 %v1107, 0.25
        %vm1446 = vcmask 130048
        %v1448 = vsel %vm1446, %v1430, 0
        %v1451 = vsel %vm1446, %v1431, 0
        %v1454 = vsel %vm1446, %v1192, 0
        %v1457 = vsel %vm1446, %v1197, 0
        %1459 = vmatprep.subr.mxu0 0.0
        %1460 = vmatpush1.xpose.msra.mxu0 %v1454
        %1461 = vmatprep.subr.mxu0 0.0
        %1462 = vmatpush1.xpose.msra.mxu0 %v1457
        %1463 = vmatprep.subr.mxu0 0.0
        %1464 = vmatpush1.xpose.msra.mxu0 0.0
        %1465 = vmatprep.subr.mxu0 0.0
        %1466 = vmatpush1.xpose.msra.mxu0 0.0
        %1467 = vmatprep.subr.mxu0 0.0
        %1468 = vmatpush1.xpose.msra.mxu0 0.0
        %1469 = vmatprep.subr.mxu0 0.0
        %1470 = vmatpush1.xpose.msra.mxu0 0.0
        %1471 = vmatprep.subr.mxu0 0.0
        %1472 = vmatpush1.xpose.msra.mxu0 0.0
        %1473 = vmatprep.subr.mxu0 0.0
        %1474 = vmatpush1.xpose.msra.mxu0 0.0
        %1475 = vmatprep.subr.mxu0 0.0
        %1476 = vmatpush1.xpose.msra.mxu0 0.0
        %1477 = vmatprep.subr.mxu0 0.0
        %1478 = vmatpush1.xpose.msra.mxu0 0.0
        %1479 = vmatprep.subr.mxu0 0.0
        %1480 = vmatpush1.xpose.msra.mxu0 0.0
        %1481 = vmatprep.subr.mxu0 0.0
        %1482 = vmatpush1.xpose.msra.mxu0 0.0
        %1483 = vmatprep.subr.mxu0 0.0
        %1484 = vmatpush1.xpose.msra.mxu0 0.0
        %1485 = vmatprep.subr.mxu0 0.0
        %1486 = vmatpush1.xpose.msra.mxu0 0.0
        %1487 = vmatprep.subr.mxu0 0.0
        %1488 = vmatpush1.xpose.msra.mxu0 0.0
        %1489 = vmatprep.subr.mxu0 0.0
        %1490 = vmatpush1.xpose.msra.mxu0 0.0
        %1491 = vmatprep.subr.mxu0 0.0
        %1492 = vmatpush1.xpose.msra.mxu0 0.0
        %1493 = vmatprep.subr.mxu0 0.0
        %1494 = vmatpush1.xpose.msra.mxu0 0.0
        %1495 = vmatprep.subr.mxu0 0.0
        %1496 = vmatpush1.xpose.msra.mxu0 0.0
        %1497 = vmatprep.subr.mxu0 0.0
        %1498 = vmatpush1.xpose.msra.mxu0 0.0
        %1499 = vmatprep.subr.mxu0 0.0
        %1500 = vmatpush1.xpose.msra.mxu0 0.0
        %1501 = vmatprep.subr.mxu0 0.0
        %1502 = vmatpush1.xpose.msra.mxu0 0.0
        %1503 = vmatprep.subr.mxu0 0.0
        %1504 = vmatpush1.xpose.msra.mxu0 0.0
        %1505 = vmatprep.subr.mxu0 0.0
        %1506 = vmatpush1.xpose.msra.mxu0 0.0
        %1507 = vmatprep.subr.mxu0 0.0
        %1508 = vmatpush1.xpose.msra.mxu0 0.0
        %1509 = vmatprep.subr.mxu0 0.0
        %1510 = vmatpush1.xpose.msra.mxu0 0.0
        %1511 = vmatprep.subr.mxu0 0.0
        %1512 = vmatpush1.xpose.msra.mxu0 0.0
        %1513 = vmatprep.subr.mxu0 0.0
        %1514 = vmatpush1.xpose.msra.mxu0 0.0
        %1515 = vmatprep.subr.mxu0 0.0
        %1516 = vmatpush1.xpose.msra.mxu0 0.0
        %1517 = vmatprep.subr.mxu0 0.0
        %1518 = vmatpush1.xpose.msra.mxu0 0.0
        %1519 = vmatprep.subr.mxu0 0.0
        %1520 = vmatpush1.xpose.msra.mxu0 0.0
        %1521 = vmatprep.subr.mxu0 0.0
        %1522 = vmatpush1.xpose.msra.mxu0 0.0
        %1523 = vmatprep.mubr.f32.mxu0 0.0
        %1524 = vmatmul.mubr.f32.gmra.mrb[0].mxu0 %v1448
        %v1525 = vpop.f32.mrb[0].mxu0
        %v1526 = vadd.f32 0.0, %v1525
        %v1527 = vpop.f32.mrb[0].mxu0
        %1528 = vmatprep.mubr.f32.mxu0 0.0
        %1529 = vmatmul.mubr.f32.gmra.mrb[0].mxu0 %v1451
        %v1530 = vpop.f32.mrb[0].mxu0
        %v1531 = vadd.f32 0.0, %v1530
        %v1532 = vpop.f32.mrb[0].mxu0
        %1533 = vdwg.mxu0
        %v1535 = vsel %vm1446, %v1432, 0
        %v1538 = vsel %vm1446, %v1433, 0
        %v1541 = vsel %vm1446, %v1202, 0
        %v1544 = vsel %vm1446, %v1207, 0
        %1546 = vmatprep.subr.mxu0 0.0
        %1547 = vmatpush1.xpose.msra.mxu0 %v1541
        %1548 = vmatprep.subr.mxu0 0.0
        %1549 = vmatpush1.xpose.msra.mxu0 %v1544
        %1550 = vmatprep.subr.mxu0 0.0
        %1551 = vmatpush1.xpose.msra.mxu0 0.0
        %1552 = vmatprep.subr.mxu0 0.0
        %1553 = vmatpush1.xpose.msra.mxu0 0.0
        %1554 = vmatprep.subr.mxu0 0.0
        %1555 = vmatpush1.xpose.msra.mxu0 0.0
        %1556 = vmatprep.subr.mxu0 0.0
        %1557 = vmatpush1.xpose.msra.mxu0 0.0
        %1558 = vmatprep.subr.mxu0 0.0
        %1559 = vmatpush1.xpose.msra.mxu0 0.0
        %1560 = vmatprep.subr.mxu0 0.0
        %1561 = vmatpush1.xpose.msra.mxu0 0.0
        %1562 = vmatprep.subr.mxu0 0.0
        %1563 = vmatpush1.xpose.msra.mxu0 0.0
        %1564 = vmatprep.subr.mxu0 0.0
        %1565 = vmatpush1.xpose.msra.mxu0 0.0
        %1566 = vmatprep.subr.mxu0 0.0
        %1567 = vmatpush1.xpose.msra.mxu0 0.0
        %1568 = vmatprep.subr.mxu0 0.0
        %1569 = vmatpush1.xpose.msra.mxu0 0.0
        %1570 = vmatprep.subr.mxu0 0.0
        %1571 = vmatpush1.xpose.msra.mxu0 0.0
        %1572 = vmatprep.subr.mxu0 0.0
        %1573 = vmatpush1.xpose.msra.mxu0 0.0
        %1574 = vmatprep.subr.mxu0 0.0
        %1575 = vmatpush1.xpose.msra.mxu0 0.0
        %1576 = vmatprep.subr.mxu0 0.0
        %1577 = vmatpush1.xpose.msra.mxu0 0.0
        %1578 = vmatprep.subr.mxu0 0.0
        %1579 = vmatpush1.xpose.msra.mxu0 0.0
        %1580 = vmatprep.subr.mxu0 0.0
        %1581 = vmatpush1.xpose.msra.mxu0 0.0
        %1582 = vmatprep.subr.mxu0 0.0
        %1583 = vmatpush1.xpose.msra.mxu0 0.0
        %1584 = vmatprep.subr.mxu0 0.0
        %1585 = vmatpush1.xpose.msra.mxu0 0.0
        %1586 = vmatprep.subr.mxu0 0.0
        %1587 = vmatpush1.xpose.msra.mxu0 0.0
        %1588 = vmatprep.subr.mxu0 0.0
        %1589 = vmatpush1.xpose.msra.mxu0 0.0
        %1590 = vmatprep.subr.mxu0 0.0
        %1591 = vmatpush1.xpose.msra.mxu0 0.0
        %1592 = vmatprep.subr.mxu0 0.0
        %1593 = vmatpush1.xpose.msra.mxu0 0.0
        %1594 = vmatprep.subr.mxu0 0.0
        %1595 = vmatpush1.xpose.msra.mxu0 0.0
        %1596 = vmatprep.subr.mxu0 0.0
        %1597 = vmatpush1.xpose.msra.mxu0 0.0
        %1598 = vmatprep.subr.mxu0 0.0
        %1599 = vmatpush1.xpose.msra.mxu0 0.0
        %1600 = vmatprep.subr.mxu0 0.0
        %1601 = vmatpush1.xpose.msra.mxu0 0.0
        %1602 = vmatprep.subr.mxu0 0.0
        %1603 = vmatpush1.xpose.msra.mxu0 0.0
        %1604 = vmatprep.subr.mxu0 0.0
        %1605 = vmatpush1.xpose.msra.mxu0 0.0
        %1606 = vmatprep.subr.mxu0 0.0
        %1607 = vmatpush1.xpose.msra.mxu0 0.0
        %1608 = vmatprep.subr.mxu0 0.0
        %1609 = vmatpush1.xpose.msra.mxu0 0.0
        %1610 = vmatprep.mubr.f32.mxu0 0.0
        %1611 = vmatmul.mubr.f32.gmra.mrb[0].mxu0 %v1535
        %v1612 = vpop.f32.mrb[0].mxu0
        %v1613 = vadd.f32 0.0, %v1612
        %v1614 = vpop.f32.mrb[0].mxu0
        %1615 = vmatprep.mubr.f32.mxu0 0.0
        %1616 = vmatmul.mubr.f32.gmra.mrb[0].mxu0 %v1538
        %v1617 = vpop.f32.mrb[0].mxu0
        %v1618 = vadd.f32 0.0, %v1617
        %v1619 = vpop.f32.mrb[0].mxu0
        %1620 = vdwg.mxu0
        %v1622 = vsel %vm1446, %v1434, 0
        %v1625 = vsel %vm1446, %v1435, 0
        %v1628 = vsel %vm1446, %v1212, 0
        %v1631 = vsel %vm1446, %v1217, 0
        %1633 = vmatprep.subr.mxu0 0.0
        %1634 = vmatpush1.xpose.msra.mxu0 %v1628
        %1635 = vmatprep.subr.mxu0 0.0
        %1636 = vmatpush1.xpose.msra.mxu0 %v1631
        %1637 = vmatprep.subr.mxu0 0.0
        %1638 = vmatpush1.xpose.msra.mxu0 0.0
        %1639 = vmatprep.subr.mxu0 0.0
        %1640 = vmatpush1.xpose.msra.mxu0 0.0
        %1641 = vmatprep.subr.mxu0 0.0
        %1642 = vmatpush1.xpose.msra.mxu0 0.0
        %1643 = vmatprep.subr.mxu0 0.0
        %1644 = vmatpush1.xpose.msra.mxu0 0.0
        %1645 = vmatprep.subr.mxu0 0.0
        %1646 = vmatpush1.xpose.msra.mxu0 0.0
        %1647 = vmatprep.subr.mxu0 0.0
        %1648 = vmatpush1.xpose.msra.mxu0 0.0
        %1649 = vmatprep.subr.mxu0 0.0
        %1650 = vmatpush1.xpose.msra.mxu0 0.0
        %1651 = vmatprep.subr.mxu0 0.0
        %1652 = vmatpush1.xpose.msra.mxu0 0.0
        %1653 = vmatprep.subr.mxu0 0.0
        %1654 = vmatpush1.xpose.msra.mxu0 0.0
        %1655 = vmatprep.subr.mxu0 0.0
        %1656 = vmatpush1.xpose.msra.mxu0 0.0
        %1657 = vmatprep.subr.mxu0 0.0
        %1658 = vmatpush1.xpose.msra.mxu0 0.0
        %1659 = vmatprep.subr.mxu0 0.0
        %1660 = vmatpush1.xpose.msra.mxu0 0.0
        %1661 = vmatprep.subr.mxu0 0.0
        %1662 = vmatpush1.xpose.msra.mxu0 0.0
        %1663 = vmatprep.subr.mxu0 0.0
        %1664 = vmatpush1.xpose.msra.mxu0 0.0
        %1665 = vmatprep.subr.mxu0 0.0
        %1666 = vmatpush1.xpose.msra.mxu0 0.0
        %1667 = vmatprep.subr.mxu0 0.0
        %1668 = vmatpush1.xpose.msra.mxu0 0.0
        %1669 = vmatprep.subr.mxu0 0.0
        %1670 = vmatpush1.xpose.msra.mxu0 0.0
        %1671 = vmatprep.subr.mxu0 0.0
        %1672 = vmatpush1.xpose.msra.mxu0 0.0
        %1673 = vmatprep.subr.mxu0 0.0
        %1674 = vmatpush1.xpose.msra.mxu0 0.0
        %1675 = vmatprep.subr.mxu0 0.0
        %1676 = vmatpush1.xpose.msra.mxu0 0.0
        %1677 = vmatprep.subr.mxu0 0.0
        %1678 = vmatpush1.xpose.msra.mxu0 0.0
        %1679 = vmatprep.subr.mxu0 0.0
        %1680 = vmatpush1.xpose.msra.mxu0 0.0
        %1681 = vmatprep.subr.mxu0 0.0
        %1682 = vmatpush1.xpose.msra.mxu0 0.0
        %1683 = vmatprep.subr.mxu0 0.0
        %1684 = vmatpush1.xpose.msra.mxu0 0.0
        %1685 = vmatprep.subr.mxu0 0.0
        %1686 = vmatpush1.xpose.msra.mxu0 0.0
        %1687 = vmatprep.subr.mxu0 0.0
        %1688 = vmatpush1.xpose.msra.mxu0 0.0
        %1689 = vmatprep.subr.mxu0 0.0
        %1690 = vmatpush1.xpose.msra.mxu0 0.0
        %1691 = vmatprep.subr.mxu0 0.0
        %1692 = vmatpush1.xpose.msra.mxu0 0.0
        %1693 = vmatprep.subr.mxu0 0.0
        %1694 = vmatpush1.xpose.msra.mxu0 0.0
        %1695 = vmatprep.subr.mxu0 0.0
        %1696 = vmatpush1.xpose.msra.mxu0 0.0
        %1697 = vmatprep.mubr.f32.mxu0 0.0
        %1698 = vmatmul.mubr.f32.gmra.mrb[0].mxu0 %v1622
        %v1699 = vpop.f32.mrb[0].mxu0
        %v1700 = vadd.f32 0.0, %v1699
        %v1701 = vpop.f32.mrb[0].mxu0
        %1702 = vmatprep.mubr.f32.mxu0 0.0
        %1703 = vmatmul.mubr.f32.gmra.mrb[0].mxu0 %v1625
        %v1704 = vpop.f32.mrb[0].mxu0
        %v1705 = vadd.f32 0.0, %v1704
        %v1706 = vpop.f32.mrb[0].mxu0
        %1707 = vdwg.mxu0
        %v1709 = vsel %vm1446, %v1436, 0
        %v1712 = vsel %vm1446, %v1437, 0
        %v1715 = vsel %vm1446, %v1222, 0
        %v1718 = vsel %vm1446, %v1227, 0
        %1720 = vmatprep.subr.mxu0 0.0
        %1721 = vmatpush1.xpose.msra.mxu0 %v1715
        %1722 = vmatprep.subr.mxu0 0.0
        %1723 = vmatpush1.xpose.msra.mxu0 %v1718
        %1724 = vmatprep.subr.mxu0 0.0
        %1725 = vmatpush1.xpose.msra.mxu0 0.0
        %1726 = vmatprep.subr.mxu0 0.0
        %1727 = vmatpush1.xpose.msra.mxu0 0.0
        %1728 = vmatprep.subr.mxu0 0.0
        %1729 = vmatpush1.xpose.msra.mxu0 0.0
        %1730 = vmatprep.subr.mxu0 0.0
        %1731 = vmatpush1.xpose.msra.mxu0 0.0
        %1732 = vmatprep.subr.mxu0 0.0
        %1733 = vmatpush1.xpose.msra.mxu0 0.0
        %1734 = vmatprep.subr.mxu0 0.0
        %1735 = vmatpush1.xpose.msra.mxu0 0.0
        %1736 = vmatprep.subr.mxu0 0.0
        %1737 = vmatpush1.xpose.msra.mxu0 0.0
        %1738 = vmatprep.subr.mxu0 0.0
        %1739 = vmatpush1.xpose.msra.mxu0 0.0
        %1740 = vmatprep.subr.mxu0 0.0
        %1741 = vmatpush1.xpose.msra.mxu0 0.0
        %1742 = vmatprep.subr.mxu0 0.0
        %1743 = vmatpush1.xpose.msra.mxu0 0.0
        %1744 = vmatprep.subr.mxu0 0.0
        %1745 = vmatpush1.xpose.msra.mxu0 0.0
        %1746 = vmatprep.subr.mxu0 0.0
        %1747 = vmatpush1.xpose.msra.mxu0 0.0
        %1748 = vmatprep.subr.mxu0 0.0
        %1749 = vmatpush1.xpose.msra.mxu0 0.0
        %1750 = vmatprep.subr.mxu0 0.0
        %1751 = vmatpush1.xpose.msra.mxu0 0.0
        %1752 = vmatprep.subr.mxu0 0.0
        %1753 = vmatpush1.xpose.msra.mxu0 0.0
        %1754 = vmatprep.subr.mxu0 0.0
        %1755 = vmatpush1.xpose.msra.mxu0 0.0
        %1756 = vmatprep.subr.mxu0 0.0
        %1757 = vmatpush1.xpose.msra.mxu0 0.0
        %1758 = vmatprep.subr.mxu0 0.0
        %1759 = vmatpush1.xpose.msra.mxu0 0.0
        %1760 = vmatprep.subr.mxu0 0.0
        %1761 = vmatpush1.xpose.msra.mxu0 0.0
        %1762 = vmatprep.subr.mxu0 0.0
        %1763 = vmatpush1.xpose.msra.mxu0 0.0
        %1764 = vmatprep.subr.mxu0 0.0
        %1765 = vmatpush1.xpose.msra.mxu0 0.0
        %1766 = vmatprep.subr.mxu0 0.0
        %1767 = vmatpush1.xpose.msra.mxu0 0.0
        %1768 = vmatprep.subr.mxu0 0.0
        %1769 = vmatpush1.xpose.msra.mxu0 0.0
        %1770 = vmatprep.subr.mxu0 0.0
        %1771 = vmatpush1.xpose.msra.mxu0 0.0
        %1772 = vmatprep.subr.mxu0 0.0
        %1773 = vmatpush1.xpose.msra.mxu0 0.0
        %1774 = vmatprep.subr.mxu0 0.0
        %1775 = vmatpush1.xpose.msra.mxu0 0.0
        %1776 = vmatprep.subr.mxu0 0.0
        %1777 = vmatpush1.xpose.msra.mxu0 0.0
        %1778 = vmatprep.subr.mxu0 0.0
        %1779 = vmatpush1.xpose.msra.mxu0 0.0
        %1780 = vmatprep.subr.mxu0 0.0
        %1781 = vmatpush1.xpose.msra.mxu0 0.0
        %1782 = vmatprep.subr.mxu0 0.0
        %1783 = vmatpush1.xpose.msra.mxu0 0.0
        %1784 = vmatprep.mubr.f32.mxu0 0.0
        %1785 = vmatmul.mubr.f32.gmra.mrb[0].mxu0 %v1709
        %v1786 = vpop.f32.mrb[0].mxu0
        %v1787 = vadd.f32 0.0, %v1786
        %v1788 = vpop.f32.mrb[0].mxu0
        %1789 = vmatprep.mubr.f32.mxu0 0.0
        %1790 = vmatmul.mubr.f32.gmra.mrb[0].mxu0 %v1712
        %v1791 = vpop.f32.mrb[0].mxu0
        %v1792 = vadd.f32 0.0, %v1791
        %v1793 = vpop.f32.mrb[0].mxu0
        %1794 = vdwg.mxu0
        %v1796 = vsel %vm1446, %v1438, 0
        %v1799 = vsel %vm1446, %v1439, 0
        %v1802 = vsel %vm1446, %v1232, 0
        %v1805 = vsel %vm1446, %v1237, 0
        %1807 = vmatprep.subr.mxu0 0.0
        %1808 = vmatpush1.xpose.msra.mxu0 %v1802
        %1809 = vmatprep.subr.mxu0 0.0
        %1810 = vmatpush1.xpose.msra.mxu0 %v1805
        %1811 = vmatprep.subr.mxu0 0.0
        %1812 = vmatpush1.xpose.msra.mxu0 0.0
        %1813 = vmatprep.subr.mxu0 0.0
        %1814 = vmatpush1.xpose.msra.mxu0 0.0
        %1815 = vmatprep.subr.mxu0 0.0
        %1816 = vmatpush1.xpose.msra.mxu0 0.0
        %1817 = vmatprep.subr.mxu0 0.0
        %1818 = vmatpush1.xpose.msra.mxu0 0.0
        %1819 = vmatprep.subr.mxu0 0.0
        %1820 = vmatpush1.xpose.msra.mxu0 0.0
        %1821 = vmatprep.subr.mxu0 0.0
        %1822 = vmatpush1.xpose.msra.mxu0 0.0
        %1823 = vmatprep.subr.mxu0 0.0
        %1824 = vmatpush1.xpose.msra.mxu0 0.0
        %1825 = vmatprep.subr.mxu0 0.0
        %1826 = vmatpush1.xpose.msra.mxu0 0.0
        %1827 = vmatprep.subr.mxu0 0.0
        %1828 = vmatpush1.xpose.msra.mxu0 0.0
        %1829 = vmatprep.subr.mxu0 0.0
        %1830 = vmatpush1.xpose.msra.mxu0 0.0
        %1831 = vmatprep.subr.mxu0 0.0
        %1832 = vmatpush1.xpose.msra.mxu0 0.0
        %1833 = vmatprep.subr.mxu0 0.0
        %1834 = vmatpush1.xpose.msra.mxu0 0.0
        %1835 = vmatprep.subr.mxu0 0.0
        %1836 = vmatpush1.xpose.msra.mxu0 0.0
        %1837 = vmatprep.subr.mxu0 0.0
        %1838 = vmatpush1.xpose.msra.mxu0 0.0
        %1839 = vmatprep.subr.mxu0 0.0
        %1840 = vmatpush1.xpose.msra.mxu0 0.0
        %1841 = vmatprep.subr.mxu0 0.0
        %1842 = vmatpush1.xpose.msra.mxu0 0.0
        %1843 = vmatprep.subr.mxu0 0.0
        %1844 = vmatpush1.xpose.msra.mxu0 0.0
        %1845 = vmatprep.subr.mxu0 0.0
        %1846 = vmatpush1.xpose.msra.mxu0 0.0
        %1847 = vmatprep.subr.mxu0 0.0
        %1848 = vmatpush1.xpose.msra.mxu0 0.0
        %1849 = vmatprep.subr.mxu0 0.0
        %1850 = vmatpush1.xpose.msra.mxu0 0.0
        %1851 = vmatprep.subr.mxu0 0.0
        %1852 = vmatpush1.xpose.msra.mxu0 0.0
        %1853 = vmatprep.subr.mxu0 0.0
        %1854 = vmatpush1.xpose.msra.mxu0 0.0
        %1855 = vmatprep.subr.mxu0 0.0
        %1856 = vmatpush1.xpose.msra.mxu0 0.0
        %1857 = vmatprep.subr.mxu0 0.0
        %1858 = vmatpush1.xpose.msra.mxu0 0.0
        %1859 = vmatprep.subr.mxu0 0.0
        %1860 = vmatpush1.xpose.msra.mxu0 0.0
        %1861 = vmatprep.subr.mxu0 0.0
        %1862 = vmatpush1.xpose.msra.mxu0 0.0
        %1863 = vmatprep.subr.mxu0 0.0
        %1864 = vmatpush1.xpose.msra.mxu0 0.0
        %1865 = vmatprep.subr.mxu0 0.0
        %1866 = vmatpush1.xpose.msra.mxu0 0.0
        %1867 = vmatprep.subr.mxu0 0.0
        %1868 = vmatpush1.xpose.msra.mxu0 0.0
        %1869 = vmatprep.subr.mxu0 0.0
        %1870 = vmatpush1.xpose.msra.mxu0 0.0
        %1871 = vmatprep.mubr.f32.mxu0 0.0
        %1872 = vmatmul.mubr.f32.gmra.mrb[0].mxu0 %v1796
        %v1873 = vpop.f32.mrb[0].mxu0
        %v1874 = vadd.f32 0.0, %v1873
        %v1875 = vpop.f32.mrb[0].mxu0
        %1876 = vmatprep.mubr.f32.mxu0 0.0
        %1877 = vmatmul.mubr.f32.gmra.mrb[0].mxu0 %v1799
        %v1878 = vpop.f32.mrb[0].mxu0
        %v1879 = vadd.f32 0.0, %v1878
        %v1880 = vpop.f32.mrb[0].mxu0
        %1881 = vdwg.mxu0
        %v1883 = vsel %vm1446, %v1440, 0
        %v1886 = vsel %vm1446, %v1441, 0
        %v1889 = vsel %vm1446, %v1242, 0
        %v1892 = vsel %vm1446, %v1247, 0
        %1894 = vmatprep.subr.mxu0 0.0
        %1895 = vmatpush1.xpose.msra.mxu0 %v1889
        %1896 = vmatprep.subr.mxu0 0.0
        %1897 = vmatpush1.xpose.msra.mxu0 %v1892
        %1898 = vmatprep.subr.mxu0 0.0
        %1899 = vmatpush1.xpose.msra.mxu0 0.0
        %1900 = vmatprep.subr.mxu0 0.0
        %1901 = vmatpush1.xpose.msra.mxu0 0.0
        %1902 = vmatprep.subr.mxu0 0.0
        %1903 = vmatpush1.xpose.msra.mxu0 0.0
        %1904 = vmatprep.subr.mxu0 0.0
        %1905 = vmatpush1.xpose.msra.mxu0 0.0
        %1906 = vmatprep.subr.mxu0 0.0
        %1907 = vmatpush1.xpose.msra.mxu0 0.0
        %1908 = vmatprep.subr.mxu0 0.0
        %1909 = vmatpush1.xpose.msra.mxu0 0.0
        %1910 = vmatprep.subr.mxu0 0.0
        %1911 = vmatpush1.xpose.msra.mxu0 0.0
        %1912 = vmatprep.subr.mxu0 0.0
        %1913 = vmatpush1.xpose.msra.mxu0 0.0
        %1914 = vmatprep.subr.mxu0 0.0
        %1915 = vmatpush1.xpose.msra.mxu0 0.0
        %1916 = vmatprep.subr.mxu0 0.0
        %1917 = vmatpush1.xpose.msra.mxu0 0.0
        %1918 = vmatprep.subr.mxu0 0.0
        %1919 = vmatpush1.xpose.msra.mxu0 0.0
        %1920 = vmatprep.subr.mxu0 0.0
        %1921 = vmatpush1.xpose.msra.mxu0 0.0
        %1922 = vmatprep.subr.mxu0 0.0
        %1923 = vmatpush1.xpose.msra.mxu0 0.0
        %1924 = vmatprep.subr.mxu0 0.0
        %1925 = vmatpush1.xpose.msra.mxu0 0.0
        %1926 = vmatprep.subr.mxu0 0.0
        %1927 = vmatpush1.xpose.msra.mxu0 0.0
        %1928 = vmatprep.subr.mxu0 0.0
        %1929 = vmatpush1.xpose.msra.mxu0 0.0
        %1930 = vmatprep.subr.mxu0 0.0
        %1931 = vmatpush1.xpose.msra.mxu0 0.0
        %1932 = vmatprep.subr.mxu0 0.0
        %1933 = vmatpush1.xpose.msra.mxu0 0.0
        %1934 = vmatprep.subr.mxu0 0.0
        %1935 = vmatpush1.xpose.msra.mxu0 0.0
        %1936 = vmatprep.subr.mxu0 0.0
        %1937 = vmatpush1.xpose.msra.mxu0 0.0
        %1938 = vmatprep.subr.mxu0 0.0
        %1939 = vmatpush1.xpose.msra.mxu0 0.0
        %1940 = vmatprep.subr.mxu0 0.0
        %1941 = vmatpush1.xpose.msra.mxu0 0.0
        %1942 = vmatprep.subr.mxu0 0.0
        %1943 = vmatpush1.xpose.msra.mxu0 0.0
        %1944 = vmatprep.subr.mxu0 0.0
        %1945 = vmatpush1.xpose.msra.mxu0 0.0
        %1946 = vmatprep.subr.mxu0 0.0
        %1947 = vmatpush1.xpose.msra.mxu0 0.0
        %1948 = vmatprep.subr.mxu0 0.0
        %1949 = vmatpush1.xpose.msra.mxu0 0.0
        %1950 = vmatprep.subr.mxu0 0.0
        %1951 = vmatpush1.xpose.msra.mxu0 0.0
        %1952 = vmatprep.subr.mxu0 0.0
        %1953 = vmatpush1.xpose.msra.mxu0 0.0
        %1954 = vmatprep.subr.mxu0 0.0
        %1955 = vmatpush1.xpose.msra.mxu0 0.0
        %1956 = vmatprep.subr.mxu0 0.0
        %1957 = vmatpush1.xpose.msra.mxu0 0.0
        %1958 = vmatprep.mubr.f32.mxu0 0.0
        %1959 = vmatmul.mubr.f32.gmra.mrb[0].mxu0 %v1883
        %v1960 = vpop.f32.mrb[0].mxu0
        %v1961 = vadd.f32 0.0, %v1960
        %v1962 = vpop.f32.mrb[0].mxu0
        %1963 = vmatprep.mubr.f32.mxu0 0.0
        %1964 = vmatmul.mubr.f32.gmra.mrb[0].mxu0 %v1886
        %v1965 = vpop.f32.mrb[0].mxu0
        %v1966 = vadd.f32 0.0, %v1965
        %v1967 = vpop.f32.mrb[0].mxu0
        %1968 = vdwg.mxu0
        %v1970 = vsel %vm1446, %v1442, 0
        %v1973 = vsel %vm1446, %v1443, 0
        %v1976 = vsel %vm1446, %v1252, 0
        %v1979 = vsel %vm1446, %v1257, 0
        %1981 = vmatprep.subr.mxu0 0.0
        %1982 = vmatpush1.xpose.msra.mxu0 %v1976
        %1983 = vmatprep.subr.mxu0 0.0
        %1984 = vmatpush1.xpose.msra.mxu0 %v1979
        %1985 = vmatprep.subr.mxu0 0.0
        %1986 = vmatpush1.xpose.msra.mxu0 0.0
        %1987 = vmatprep.subr.mxu0 0.0
        %1988 = vmatpush1.xpose.msra.mxu0 0.0
        %1989 = vmatprep.subr.mxu0 0.0
        %1990 = vmatpush1.xpose.msra.mxu0 0.0
        %1991 = vmatprep.subr.mxu0 0.0
        %1992 = vmatpush1.xpose.msra.mxu0 0.0
        %1993 = vmatprep.subr.mxu0 0.0
        %1994 = vmatpush1.xpose.msra.mxu0 0.0
        %1995 = vmatprep.subr.mxu0 0.0
        %1996 = vmatpush1.xpose.msra.mxu0 0.0
        %1997 = vmatprep.subr.mxu0 0.0
        %1998 = vmatpush1.xpose.msra.mxu0 0.0
        %1999 = vmatprep.subr.mxu0 0.0
        %2000 = vmatpush1.xpose.msra.mxu0 0.0
        %2001 = vmatprep.subr.mxu0 0.0
        %2002 = vmatpush1.xpose.msra.mxu0 0.0
        %2003 = vmatprep.subr.mxu0 0.0
        %2004 = vmatpush1.xpose.msra.mxu0 0.0
        %2005 = vmatprep.subr.mxu0 0.0
        %2006 = vmatpush1.xpose.msra.mxu0 0.0
        %2007 = vmatprep.subr.mxu0 0.0
        %2008 = vmatpush1.xpose.msra.mxu0 0.0
        %2009 = vmatprep.subr.mxu0 0.0
        %2010 = vmatpush1.xpose.msra.mxu0 0.0
        %2011 = vmatprep.subr.mxu0 0.0
        %2012 = vmatpush1.xpose.msra.mxu0 0.0
        %2013 = vmatprep.subr.mxu0 0.0
        %2014 = vmatpush1.xpose.msra.mxu0 0.0
        %2015 = vmatprep.subr.mxu0 0.0
        %2016 = vmatpush1.xpose.msra.mxu0 0.0
        %2017 = vmatprep.subr.mxu0 0.0
        %2018 = vmatpush1.xpose.msra.mxu0 0.0
        %2019 = vmatprep.subr.mxu0 0.0
        %2020 = vmatpush1.xpose.msra.mxu0 0.0
        %2021 = vmatprep.subr.mxu0 0.0
        %2022 = vmatpush1.xpose.msra.mxu0 0.0
        %2023 = vmatprep.subr.mxu0 0.0
        %2024 = vmatpush1.xpose.msra.mxu0 0.0
        %2025 = vmatprep.subr.mxu0 0.0
        %2026 = vmatpush1.xpose.msra.mxu0 0.0
        %2027 = vmatprep.subr.mxu0 0.0
        %2028 = vmatpush1.xpose.msra.mxu0 0.0
        %2029 = vmatprep.subr.mxu0 0.0
        %2030 = vmatpush1.xpose.msra.mxu0 0.0
        %2031 = vmatprep.subr.mxu0 0.0
        %2032 = vmatpush1.xpose.msra.mxu0 0.0
        %2033 = vmatprep.subr.mxu0 0.0
        %2034 = vmatpush1.xpose.msra.mxu0 0.0
        %2035 = vmatprep.subr.mxu0 0.0
        %2036 = vmatpush1.xpose.msra.mxu0 0.0
        %2037 = vmatprep.subr.mxu0 0.0
        %2038 = vmatpush1.xpose.msra.mxu0 0.0
        %2039 = vmatprep.subr.mxu0 0.0
        %2040 = vmatpush1.xpose.msra.mxu0 0.0
        %2041 = vmatprep.subr.mxu0 0.0
        %2042 = vmatpush1.xpose.msra.mxu0 0.0
        %2043 = vmatprep.subr.mxu0 0.0
        %2044 = vmatpush1.xpose.msra.mxu0 0.0
        %2045 = vmatprep.mubr.f32.mxu0 0.0
        %2046 = vmatmul.mubr.f32.gmra.mrb[0].mxu0 %v1970
        %v2047 = vpop.f32.mrb[0].mxu0
        %v2048 = vadd.f32 0.0, %v2047
        %v2049 = vpop.f32.mrb[0].mxu0
        %2050 = vmatprep.mubr.f32.mxu0 0.0
        %2051 = vmatmul.mubr.f32.gmra.mrb[0].mxu0 %v1973
        %v2052 = vpop.f32.mrb[0].mxu0
        %v2053 = vadd.f32 0.0, %v2052
        %v2054 = vpop.f32.mrb[0].mxu0
        %2055 = vdwg.mxu0
        %v2057 = vsel %vm1446, %v1444, 0
        %v2060 = vsel %vm1446, %v1445, 0
        %v2063 = vsel %vm1446, %v1262, 0
        %v2066 = vsel %vm1446, %v1267, 0
        %2068 = vmatprep.subr.mxu0 0.0
        %2069 = vmatpush1.xpose.msra.mxu0 %v2063
        %2070 = vmatprep.subr.mxu0 0.0
        %2071 = vmatpush1.xpose.msra.mxu0 %v2066
        %2072 = vmatprep.subr.mxu0 0.0
        %2073 = vmatpush1.xpose.msra.mxu0 0.0
        %2074 = vmatprep.subr.mxu0 0.0
        %2075 = vmatpush1.xpose.msra.mxu0 0.0
        %2076 = vmatprep.subr.mxu0 0.0
        %2077 = vmatpush1.xpose.msra.mxu0 0.0
        %2078 = vmatprep.subr.mxu0 0.0
        %2079 = vmatpush1.xpose.msra.mxu0 0.0
        %2080 = vmatprep.subr.mxu0 0.0
        %2081 = vmatpush1.xpose.msra.mxu0 0.0
        %2082 = vmatprep.subr.mxu0 0.0
        %2083 = vmatpush1.xpose.msra.mxu0 0.0
        %2084 = vmatprep.subr.mxu0 0.0
        %2085 = vmatpush1.xpose.msra.mxu0 0.0
        %2086 = vmatprep.subr.mxu0 0.0
        %2087 = vmatpush1.xpose.msra.mxu0 0.0
        %2088 = vmatprep.subr.mxu0 0.0
        %2089 = vmatpush1.xpose.msra.mxu0 0.0
        %2090 = vmatprep.subr.mxu0 0.0
        %2091 = vmatpush1.xpose.msra.mxu0 0.0
        %2092 = vmatprep.subr.mxu0 0.0
        %2093 = vmatpush1.xpose.msra.mxu0 0.0
        %2094 = vmatprep.subr.mxu0 0.0
        %2095 = vmatpush1.xpose.msra.mxu0 0.0
        %2096 = vmatprep.subr.mxu0 0.0
        %2097 = vmatpush1.xpose.msra.mxu0 0.0
        %2098 = vmatprep.subr.mxu0 0.0
        %2099 = vmatpush1.xpose.msra.mxu0 0.0
        %2100 = vmatprep.subr.mxu0 0.0
        %2101 = vmatpush1.xpose.msra.mxu0 0.0
        %2102 = vmatprep.subr.mxu0 0.0
        %2103 = vmatpush1.xpose.msra.mxu0 0.0
        %2104 = vmatprep.subr.mxu0 0.0
        %2105 = vmatpush1.xpose.msra.mxu0 0.0
        %2106 = vmatprep.subr.mxu0 0.0
        %2107 = vmatpush1.xpose.msra.mxu0 0.0
        %2108 = vmatprep.subr.mxu0 0.0
        %2109 = vmatpush1.xpose.msra.mxu0 0.0
        %2110 = vmatprep.subr.mxu0 0.0
        %2111 = vmatpush1.xpose.msra.mxu0 0.0
        %2112 = vmatprep.subr.mxu0 0.0
        %2113 = vmatpush1.xpose.msra.mxu0 0.0
        %2114 = vmatprep.subr.mxu0 0.0
        %2115 = vmatpush1.xpose.msra.mxu0 0.0
        %2116 = vmatprep.subr.mxu0 0.0
        %2117 = vmatpush1.xpose.msra.mxu0 0.0
        %2118 = vmatprep.subr.mxu0 0.0
        %2119 = vmatpush1.xpose.msra.mxu0 0.0
        %2120 = vmatprep.subr.mxu0 0.0
        %2121 = vmatpush1.xpose.msra.mxu0 0.0
        %2122 = vmatprep.subr.mxu0 0.0
        %2123 = vmatpush1.xpose.msra.mxu0 0.0
        %2124 = vmatprep.subr.mxu0 0.0
        %2125 = vmatpush1.xpose.msra.mxu0 0.0
        %2126 = vmatprep.subr.mxu0 0.0
        %2127 = vmatpush1.xpose.msra.mxu0 0.0
        %2128 = vmatprep.subr.mxu0 0.0
        %2129 = vmatpush1.xpose.msra.mxu0 0.0
        %2130 = vmatprep.subr.mxu0 0.0
        %2131 = vmatpush1.xpose.msra.mxu0 0.0
        %2132 = vmatprep.mubr.f32.mxu0 0.0
        %2133 = vmatmul.mubr.f32.gmra.mrb[0].mxu0 %v2057
        %v2134 = vpop.f32.mrb[0].mxu0
        %v2135 = vadd.f32 0.0, %v2134
        %v2136 = vpop.f32.mrb[0].mxu0
        %2137 = vmatprep.mubr.f32.mxu0 0.0
        %2138 = vmatmul.mubr.f32.gmra.mrb[0].mxu0 %v2060
        %v2139 = vpop.f32.mrb[0].mxu0
        %v2140 = vadd.f32 0.0, %v2139
        %v2141 = vpop.f32.mrb[0].mxu0
        %2142 = vdwg.mxu0
        %v2143 = vsel %vm1446, %v1526, -inf
        %2144 = vmax.xlane.f32.xlu0 %v2143
        %v2145 = vpop.xlane.xlu0 %2144
        %v2146 = vsel %vm1446, %v1531, -inf
        %2147 = vmax.xlane.f32.xlu0 %v2146
        %v2148 = vpop.xlane.xlu0 %2147
        %v2149 = vsel %vm1446, %v1613, -inf
        %2150 = vmax.xlane.f32.xlu0 %v2149
        %v2151 = vpop.xlane.xlu0 %2150
        %v2152 = vsel %vm1446, %v1618, -inf
        %2153 = vmax.xlane.f32.xlu0 %v2152
        %v2154 = vpop.xlane.xlu0 %2153
        %v2155 = vsel %vm1446, %v1700, -inf
        %2156 = vmax.xlane.f32.xlu0 %v2155
        %v2157 = vpop.xlane.xlu0 %2156
        %v2158 = vsel %vm1446, %v1705, -inf
        %2159 = vmax.xlane.f32.xlu0 %v2158
        %v2160 = vpop.xlane.xlu0 %2159
        %v2161 = vsel %vm1446, %v1787, -inf
        %2162 = vmax.xlane.f32.xlu0 %v2161
        %v2163 = vpop.xlane.xlu0 %2162
        %v2164 = vsel %vm1446, %v1792, -inf
        %2165 = vmax.xlane.f32.xlu0 %v2164
        %v2166 = vpop.xlane.xlu0 %2165
        %v2167 = vsel %vm1446, %v1874, -inf
        %2168 = vmax.xlane.f32.xlu0 %v2167
        %v2169 = vpop.xlane.xlu0 %2168
        %v2170 = vsel %vm1446, %v1879, -inf
        %2171 = vmax.xlane.f32.xlu0 %v2170
        %v2172 = vpop.xlane.xlu0 %2171
        %v2173 = vsel %vm1446, %v1961, -inf
        %2174 = vmax.xlane.f32.xlu0 %v2173
        %v2175 = vpop.xlane.xlu0 %2174
        %v2176 = vsel %vm1446, %v1966, -inf
        %2177 = vmax.xlane.f32.xlu0 %v2176
        %v2178 = vpop.xlane.xlu0 %2177
        %v2179 = vsel %vm1446, %v2048, -inf
        %2180 = vmax.xlane.f32.xlu0 %v2179
        %v2181 = vpop.xlane.xlu0 %2180
        %v2182 = vsel %vm1446, %v2053, -inf
        %2183 = vmax.xlane.f32.xlu0 %v2182
        %v2184 = vpop.xlane.xlu0 %2183
        %v2185 = vsel %vm1446, %v2135, -inf
        %2186 = vmax.xlane.f32.xlu0 %v2185
        %v2187 = vpop.xlane.xlu0 %2186
        %v2188 = vsel %vm1446, %v2140, -inf
        %2189 = vmax.xlane.f32.xlu0 %v2188
        %v2190 = vpop.xlane.xlu0 %2189
        %v2191 = vsub.f32 %v1526, %v2145
        %v2192 = vsub.f32 %v1531, %v2148
        %v2193 = vsub.f32 %v1613, %v2151
        %v2194 = vsub.f32 %v1618, %v2154
        %v2195 = vsub.f32 %v1700, %v2157
        %v2196 = vsub.f32 %v1705, %v2160
        %v2197 = vsub.f32 %v1787, %v2163
        %v2198 = vsub.f32 %v1792, %v2166
        %v2199 = vsub.f32 %v1874, %v2169
        %v2200 = vsub.f32 %v1879, %v2172
        %v2201 = vsub.f32 %v1961, %v2175
        %v2202 = vsub.f32 %v1966, %v2178
        %v2203 = vsub.f32 %v2048, %v2181
        %v2204 = vsub.f32 %v2053, %v2184
        %v2205 = vsub.f32 %v2135, %v2187
        %v2206 = vsub.f32 %v2140, %v2190
        %v2207 = vmul.f32 %v2191, 1.442695
        %v2208 = vpow.pop %v2207
        %v2209 = vmul.f32 %v2192, 1.442695
        %v2210 = vpow.pop %v2209
        %v2211 = vmul.f32 %v2193, 1.442695
        %v2212 = vpow.pop %v2211
        %v2213 = vmul.f32 %v2194, 1.442695
        %v2214 = vpow.pop %v2213
        %v2215 = vmul.f32 %v2195, 1.442695
        %v2216 = vpow.pop %v2215
        %v2217 = vmul.f32 %v2196, 1.442695
        %v2218 = vpow.pop %v2217
        %v2219 = vmul.f32 %v2197, 1.442695
        %v2220 = vpow.pop %v2219
        %v2221 = vmul.f32 %v2198, 1.442695
        %v2222 = vpow.pop %v2221
        %v2223 = vmul.f32 %v2199, 1.442695
        %v2224 = vpow.pop %v2223
        %v2225 = vmul.f32 %v2200, 1.442695
        %v2226 = vpow.pop %v2225
        %v2227 = vmul.f32 %v2201, 1.442695
        %v2228 = vpow.pop %v2227
        %v2229 = vmul.f32 %v2202, 1.442695
        %v2230 = vpow.pop %v2229
        %v2231 = vmul.f32 %v2203, 1.442695
        %v2232 = vpow.pop %v2231
        %v2233 = vmul.f32 %v2204, 1.442695
        %v2234 = vpow.pop %v2233
        %v2235 = vmul.f32 %v2205, 1.442695
        %v2236 = vpow.pop %v2235
        %v2237 = vmul.f32 %v2206, 1.442695
        %v2238 = vpow.pop %v2237
        %v2239 = vsel %vm1446, %v2208, 0.0
        %2240 = vadd.xlane.f32.xlu0 %v2239
        %v2241 = vpop.xlane.xlu0 %2240
        %v2242 = vsel %vm1446, %v2210, 0.0
        %2243 = vadd.xlane.f32.xlu0 %v2242
        %v2244 = vpop.xlane.xlu0 %2243
        %v2245 = vsel %vm1446, %v2212, 0.0
        %2246 = vadd.xlane.f32.xlu0 %v2245
        %v2247 = vpop.xlane.xlu0 %2246
        %v2248 = vsel %vm1446, %v2214, 0.0
        %2249 = vadd.xlane.f32.xlu0 %v2248
        %v2250 = vpop.xlane.xlu0 %2249
        %v2251 = vsel %vm1446, %v2216, 0.0
        %2252 = vadd.xlane.f32.xlu0 %v2251
        %v2253 = vpop.xlane.xlu0 %2252
        %v2254 = vsel %vm1446, %v2218, 0.0
        %2255 = vadd.xlane.f32.xlu0 %v2254
        %v2256 = vpop.xlane.xlu0 %2255
        %v2257 = vsel %vm1446, %v2220, 0.0
        %2258 = vadd.xlane.f32.xlu0 %v2257
        %v2259 = vpop.xlane.xlu0 %2258
        %v2260 = vsel %vm1446, %v2222, 0.0
        %2261 = vadd.xlane.f32.xlu0 %v2260
        %v2262 = vpop.xlane.xlu0 %2261
        %v2263 = vsel %vm1446, %v2224, 0.0
        %2264 = vadd.xlane.f32.xlu0 %v2263
        %v2265 = vpop.xlane.xlu0 %2264
        %v2266 = vsel %vm1446, %v2226, 0.0
        %2267 = vadd.xlane.f32.xlu0 %v2266
        %v2268 = vpop.xlane.xlu0 %2267
        %v2269 = vsel %vm1446, %v2228, 0.0
        %2270 = vadd.xlane.f32.xlu0 %v2269
        %v2271 = vpop.xlane.xlu0 %2270
        %v2272 = vsel %vm1446, %v2230, 0.0
        %2273 = vadd.xlane.f32.xlu0 %v2272
        %v2274 = vpop.xlane.xlu0 %2273
        %v2275 = vsel %vm1446, %v2232, 0.0
        %2276 = vadd.xlane.f32.xlu0 %v2275
        %v2277 = vpop.xlane.xlu0 %2276
        %v2278 = vsel %vm1446, %v2234, 0.0
        %2279 = vadd.xlane.f32.xlu0 %v2278
        %v2280 = vpop.xlane.xlu0 %2279
        %v2281 = vsel %vm1446, %v2236, 0.0
        %2282 = vadd.xlane.f32.xlu0 %v2281
        %v2283 = vpop.xlane.xlu0 %2282
        %v2284 = vsel %vm1446, %v2238, 0.0
        %2285 = vadd.xlane.f32.xlu0 %v2284
        %v2286 = vpop.xlane.xlu0 %2285
        %v2287 = vrcp.pop %v2241
        %v2288 = vrcp.pop %v2244
        %v2289 = vrcp.pop %v2247
        %v2290 = vrcp.pop %v2250
        %v2291 = vrcp.pop %v2253
        %v2292 = vrcp.pop %v2256
        %v2293 = vrcp.pop %v2259
        %v2294 = vrcp.pop %v2262
        %v2295 = vrcp.pop %v2265
        %v2296 = vrcp.pop %v2268
        %v2297 = vrcp.pop %v2271
        %v2298 = vrcp.pop %v2274
        %v2299 = vrcp.pop %v2277
        %v2300 = vrcp.pop %v2280
        %v2301 = vrcp.pop %v2283
        %v2302 = vrcp.pop %v2286
        %v2303 = vmul.f32 %v2208, %v2287
        %v2304 = vmul.f32 %v2210, %v2288
        %v2305 = vmul.f32 %v2212, %v2289
        %v2306 = vmul.f32 %v2214, %v2290
        %v2307 = vmul.f32 %v2216, %v2291
        %v2308 = vmul.f32 %v2218, %v2292
        %v2309 = vmul.f32 %v2220, %v2293
        %v2310 = vmul.f32 %v2222, %v2294
        %v2311 = vmul.f32 %v2224, %v2295
        %v2312 = vmul.f32 %v2226, %v2296
        %v2313 = vmul.f32 %v2228, %v2297
        %v2314 = vmul.f32 %v2230, %v2298
        %v2315 = vmul.f32 %v2232, %v2299
        %v2316 = vmul.f32 %v2234, %v2300
        %v2317 = vmul.f32 %v2236, %v2301
        %v2318 = vmul.f32 %v2238, %v2302
        %v2320 = vsel %vm1446, %v2303, 0
        %v2323 = vsel %vm1446, %v2304, 0
        %2325 = vmatprep.subr.mxu0 0.0
        %2326 = vmatpush1.msra.mxu0 %v1352
        %2327 = vmatprep.subr.mxu0 0.0
        %2328 = vmatpush1.msra.mxu0 %v1357
        %2329 = vmatprep.subr.mxu0 0.0
        %2330 = vmatpush1.msra.mxu0 0.0
        %2331 = vmatprep.subr.mxu0 0.0
        %2332 = vmatpush1.msra.mxu0 0.0
        %2333 = vmatprep.subr.mxu0 0.0
        %2334 = vmatpush1.msra.mxu0 0.0
        %2335 = vmatprep.subr.mxu0 0.0
        %2336 = vmatpush1.msra.mxu0 0.0
        %2337 = vmatprep.subr.mxu0 0.0
        %2338 = vmatpush1.msra.mxu0 0.0
        %2339 = vmatprep.subr.mxu0 0.0
        %2340 = vmatpush1.msra.mxu0 0.0
        %2341 = vmatprep.subr.mxu0 0.0
        %2342 = vmatpush1.msra.mxu0 0.0
        %2343 = vmatprep.subr.mxu0 0.0
        %2344 = vmatpush1.msra.mxu0 0.0
        %2345 = vmatprep.subr.mxu0 0.0
        %2346 = vmatpush1.msra.mxu0 0.0
        %2347 = vmatprep.subr.mxu0 0.0
        %2348 = vmatpush1.msra.mxu0 0.0
        %2349 = vmatprep.subr.mxu0 0.0
        %2350 = vmatpush1.msra.mxu0 0.0
        %2351 = vmatprep.subr.mxu0 0.0
        %2352 = vmatpush1.msra.mxu0 0.0
        %2353 = vmatprep.subr.mxu0 0.0
        %2354 = vmatpush1.msra.mxu0 0.0
        %2355 = vmatprep.subr.mxu0 0.0
        %2356 = vmatpush1.msra.mxu0 0.0
        %2357 = vmatprep.subr.mxu0 0.0
        %2358 = vmatpush1.msra.mxu0 0.0
        %2359 = vmatprep.subr.mxu0 0.0
        %2360 = vmatpush1.msra.mxu0 0.0
        %2361 = vmatprep.subr.mxu0 0.0
        %2362 = vmatpush1.msra.mxu0 0.0
        %2363 = vmatprep.subr.mxu0 0.0
        %2364 = vmatpush1.msra.mxu0 0.0
        %2365 = vmatprep.subr.mxu0 0.0
        %2366 = vmatpush1.msra.mxu0 0.0
        %2367 = vmatprep.subr.mxu0 0.0
        %2368 = vmatpush1.msra.mxu0 0.0
        %2369 = vmatprep.subr.mxu0 0.0
        %2370 = vmatpush1.msra.mxu0 0.0
        %2371 = vmatprep.subr.mxu0 0.0
        %2372 = vmatpush1.msra.mxu0 0.0
        %2373 = vmatprep.subr.mxu0 0.0
        %2374 = vmatpush1.msra.mxu0 0.0
        %2375 = vmatprep.subr.mxu0 0.0
        %2376 = vmatpush1.msra.mxu0 0.0
        %2377 = vmatprep.subr.mxu0 0.0
        %2378 = vmatpush1.msra.mxu0 0.0
        %2379 = vmatprep.subr.mxu0 0.0
        %2380 = vmatpush1.msra.mxu0 0.0
        %2381 = vmatprep.subr.mxu0 0.0
        %2382 = vmatpush1.msra.mxu0 0.0
        %2383 = vmatprep.subr.mxu0 0.0
        %2384 = vmatpush1.msra.mxu0 0.0
        %2385 = vmatprep.subr.mxu0 0.0
        %2386 = vmatpush1.msra.mxu0 0.0
        %2387 = vmatprep.subr.mxu0 0.0
        %2388 = vmatpush1.msra.mxu0 0.0
        %2389 = vmatprep.mubr.f32.mxu0 0.0
        %2390 = vmatmul.mubr.f32.gmra.mrb[0].mxu0 %v2320
        %v2391 = vpop.f32.mrb[0].mxu0
        %v2392 = vadd.f32 0.0, %v2391
        %v2393 = vpop.f32.mrb[0].mxu0
        %2394 = vmatprep.mubr.f32.mxu0 0.0
        %2395 = vmatmul.mubr.f32.gmra.mrb[0].mxu0 %v2323
        %v2396 = vpop.f32.mrb[0].mxu0
        %v2397 = vadd.f32 0.0, %v2396
        %v2398 = vpop.f32.mrb[0].mxu0
        %2399 = vdwg.mxu0
        %v2401 = vsel %vm1446, %v2305, 0
        %v2404 = vsel %vm1446, %v2306, 0
        %2406 = vmatprep.subr.mxu0 0.0
        %2407 = vmatpush1.msra.mxu0 %v1362
        %2408 = vmatprep.subr.mxu0 0.0
        %2409 = vmatpush1.msra.mxu0 %v1367
        %2410 = vmatprep.subr.mxu0 0.0
        %2411 = vmatpush1.msra.mxu0 0.0
        %2412 = vmatprep.subr.mxu0 0.0
        %2413 = vmatpush1.msra.mxu0 0.0
        %2414 = vmatprep.subr.mxu0 0.0
        %2415 = vmatpush1.msra.mxu0 0.0
        %2416 = vmatprep.subr.mxu0 0.0
        %2417 = vmatpush1.msra.mxu0 0.0
        %2418 = vmatprep.subr.mxu0 0.0
        %2419 = vmatpush1.msra.mxu0 0.0
        %2420 = vmatprep.subr.mxu0 0.0
        %2421 = vmatpush1.msra.mxu0 0.0
        %2422 = vmatprep.subr.mxu0 0.0
        %2423 = vmatpush1.msra.mxu0 0.0
        %2424 = vmatprep.subr.mxu0 0.0
        %2425 = vmatpush1.msra.mxu0 0.0
        %2426 = vmatprep.subr.mxu0 0.0
        %2427 = vmatpush1.msra.mxu0 0.0
        %2428 = vmatprep.subr.mxu0 0.0
        %2429 = vmatpush1.msra.mxu0 0.0
        %2430 = vmatprep.subr.mxu0 0.0
        %2431 = vmatpush1.msra.mxu0 0.0
        %2432 = vmatprep.subr.mxu0 0.0
        %2433 = vmatpush1.msra.mxu0 0.0
        %2434 = vmatprep.subr.mxu0 0.0
        %2435 = vmatpush1.msra.mxu0 0.0
        %2436 = vmatprep.subr.mxu0 0.0
        %2437 = vmatpush1.msra.mxu0 0.0
        %2438 = vmatprep.subr.mxu0 0.0
        %2439 = vmatpush1.msra.mxu0 0.0
        %2440 = vmatprep.subr.mxu0 0.0
        %2441 = vmatpush1.msra.mxu0 0.0
        %2442 = vmatprep.subr.mxu0 0.0
        %2443 = vmatpush1.msra.mxu0 0.0
        %2444 = vmatprep.subr.mxu0 0.0
        %2445 = vmatpush1.msra.mxu0 0.0
        %2446 = vmatprep.subr.mxu0 0.0
        %2447 = vmatpush1.msra.mxu0 0.0
        %2448 = vmatprep.subr.mxu0 0.0
        %2449 = vmatpush1.msra.mxu0 0.0
        %2450 = vmatprep.subr.mxu0 0.0
        %2451 = vmatpush1.msra.mxu0 0.0
        %2452 = vmatprep.subr.mxu0 0.0
        %2453 = vmatpush1.msra.mxu0 0.0
        %2454 = vmatprep.subr.mxu0 0.0
        %2455 = vmatpush1.msra.mxu0 0.0
        %2456 = vmatprep.subr.mxu0 0.0
        %2457 = vmatpush1.msra.mxu0 0.0
        %2458 = vmatprep.subr.mxu0 0.0
        %2459 = vmatpush1.msra.mxu0 0.0
        %2460 = vmatprep.subr.mxu0 0.0
        %2461 = vmatpush1.msra.mxu0 0.0
        %2462 = vmatprep.subr.mxu0 0.0
        %2463 = vmatpush1.msra.mxu0 0.0
        %2464 = vmatprep.subr.mxu0 0.0
        %2465 = vmatpush1.msra.mxu0 0.0
        %2466 = vmatprep.subr.mxu0 0.0
        %2467 = vmatpush1.msra.mxu0 0.0
        %2468 = vmatprep.subr.mxu0 0.0
        %2469 = vmatpush1.msra.mxu0 0.0
        %2470 = vmatprep.mubr.f32.mxu0 0.0
        %2471 = vmatmul.mubr.f32.gmra.mrb[0].mxu0 %v2401
        %v2472 = vpop.f32.mrb[0].mxu0
        %v2473 = vadd.f32 0.0, %v2472
        %v2474 = vpop.f32.mrb[0].mxu0
        %2475 = vmatprep.mubr.f32.mxu0 0.0
        %2476 = vmatmul.mubr.f32.gmra.mrb[0].mxu0 %v2404
        %v2477 = vpop.f32.mrb[0].mxu0
        %v2478 = vadd.f32 0.0, %v2477
        %v2479 = vpop.f32.mrb[0].mxu0
        %2480 = vdwg.mxu0
        %v2482 = vsel %vm1446, %v2307, 0
        %v2485 = vsel %vm1446, %v2308, 0
        %2487 = vmatprep.subr.mxu0 0.0
        %2488 = vmatpush1.msra.mxu0 %v1372
        %2489 = vmatprep.subr.mxu0 0.0
        %2490 = vmatpush1.msra.mxu0 %v1377
        %2491 = vmatprep.subr.mxu0 0.0
        %2492 = vmatpush1.msra.mxu0 0.0
        %2493 = vmatprep.subr.mxu0 0.0
        %2494 = vmatpush1.msra.mxu0 0.0
        %2495 = vmatprep.subr.mxu0 0.0
        %2496 = vmatpush1.msra.mxu0 0.0
        %2497 = vmatprep.subr.mxu0 0.0
        %2498 = vmatpush1.msra.mxu0 0.0
        %2499 = vmatprep.subr.mxu0 0.0
        %2500 = vmatpush1.msra.mxu0 0.0
        %2501 = vmatprep.subr.mxu0 0.0
        %2502 = vmatpush1.msra.mxu0 0.0
        %2503 = vmatprep.subr.mxu0 0.0
        %2504 = vmatpush1.msra.mxu0 0.0
        %2505 = vmatprep.subr.mxu0 0.0
        %2506 = vmatpush1.msra.mxu0 0.0
        %2507 = vmatprep.subr.mxu0 0.0
        %2508 = vmatpush1.msra.mxu0 0.0
        %2509 = vmatprep.subr.mxu0 0.0
        %2510 = vmatpush1.msra.mxu0 0.0
        %2511 = vmatprep.subr.mxu0 0.0
        %2512 = vmatpush1.msra.mxu0 0.0
        %2513 = vmatprep.subr.mxu0 0.0
        %2514 = vmatpush1.msra.mxu0 0.0
        %2515 = vmatprep.subr.mxu0 0.0
        %2516 = vmatpush1.msra.mxu0 0.0
        %2517 = vmatprep.subr.mxu0 0.0
        %2518 = vmatpush1.msra.mxu0 0.0
        %2519 = vmatprep.subr.mxu0 0.0
        %2520 = vmatpush1.msra.mxu0 0.0
        %2521 = vmatprep.subr.mxu0 0.0
        %2522 = vmatpush1.msra.mxu0 0.0
        %2523 = vmatprep.subr.mxu0 0.0
        %2524 = vmatpush1.msra.mxu0 0.0
        %2525 = vmatprep.subr.mxu0 0.0
        %2526 = vmatpush1.msra.mxu0 0.0
        %2527 = vmatprep.subr.mxu0 0.0
        %2528 = vmatpush1.msra.mxu0 0.0
        %2529 = vmatprep.subr.mxu0 0.0
        %2530 = vmatpush1.msra.mxu0 0.0
        %2531 = vmatprep.subr.mxu0 0.0
        %2532 = vmatpush1.msra.mxu0 0.0
        %2533 = vmatprep.subr.mxu0 0.0
        %2534 = vmatpush1.msra.mxu0 0.0
        %2535 = vmatprep.subr.mxu0 0.0
        %2536 = vmatpush1.msra.mxu0 0.0
        %2537 = vmatprep.subr.mxu0 0.0
        %2538 = vmatpush1.msra.mxu0 0.0
        %2539 = vmatprep.subr.mxu0 0.0
        %2540 = vmatpush1.msra.mxu0 0.0
        %2541 = vmatprep.subr.mxu0 0.0
        %2542 = vmatpush1.msra.mxu0 0.0
        %2543 = vmatprep.subr.mxu0 0.0
        %2544 = vmatpush1.msra.mxu0 0.0
        %2545 = vmatprep.subr.mxu0 0.0
        %2546 = vmatpush1.msra.mxu0 0.0
        %2547 = vmatprep.subr.mxu0 0.0
        %2548 = vmatpush1.msra.mxu0 0.0
        %2549 = vmatprep.subr.mxu0 0.0
        %2550 = vmatpush1.msra.mxu0 0.0
        %2551 = vmatprep.mubr.f32.mxu0 0.0
        %2552 = vmatmul.mubr.f32.gmra.mrb[0].mxu0 %v2482
        %v2553 = vpop.f32.mrb[0].mxu0
        %v2554 = vadd.f32 0.0, %v2553
        %v2555 = vpop.f32.mrb[0].mxu0
        %2556 = vmatprep.mubr.f32.mxu0 0.0
        %2557 = vmatmul.mubr.f32.gmra.mrb[0].mxu0 %v2485
        %v2558 = vpop.f32.mrb[0].mxu0
        %v2559 = vadd.f32 0.0, %v2558
        %v2560 = vpop.f32.mrb[0].mxu0
        %2561 = vdwg.mxu0
        %v2563 = vsel %vm1446, %v2309, 0
        %v2566 = vsel %vm1446, %v2310, 0
        %2568 = vmatprep.subr.mxu0 0.0
        %2569 = vmatpush1.msra.mxu0 %v1382
        %2570 = vmatprep.subr.mxu0 0.0
        %2571 = vmatpush1.msra.mxu0 %v1387
        %2572 = vmatprep.subr.mxu0 0.0
        %2573 = vmatpush1.msra.mxu0 0.0
        %2574 = vmatprep.subr.mxu0 0.0
        %2575 = vmatpush1.msra.mxu0 0.0
        %2576 = vmatprep.subr.mxu0 0.0
        %2577 = vmatpush1.msra.mxu0 0.0
        %2578 = vmatprep.subr.mxu0 0.0
        %2579 = vmatpush1.msra.mxu0 0.0
        %2580 = vmatprep.subr.mxu0 0.0
        %2581 = vmatpush1.msra.mxu0 0.0
        %2582 = vmatprep.subr.mxu0 0.0
        %2583 = vmatpush1.msra.mxu0 0.0
        %2584 = vmatprep.subr.mxu0 0.0
        %2585 = vmatpush1.msra.mxu0 0.0
        %2586 = vmatprep.subr.mxu0 0.0
        %2587 = vmatpush1.msra.mxu0 0.0
        %2588 = vmatprep.subr.mxu0 0.0
        %2589 = vmatpush1.msra.mxu0 0.0
        %2590 = vmatprep.subr.mxu0 0.0
        %2591 = vmatpush1.msra.mxu0 0.0
        %2592 = vmatprep.subr.mxu0 0.0
        %2593 = vmatpush1.msra.mxu0 0.0
        %2594 = vmatprep.subr.mxu0 0.0
        %2595 = vmatpush1.msra.mxu0 0.0
        %2596 = vmatprep.subr.mxu0 0.0
        %2597 = vmatpush1.msra.mxu0 0.0
        %2598 = vmatprep.subr.mxu0 0.0
        %2599 = vmatpush1.msra.mxu0 0.0
        %2600 = vmatprep.subr.mxu0 0.0
        %2601 = vmatpush1.msra.mxu0 0.0
        %2602 = vmatprep.subr.mxu0 0.0
        %2603 = vmatpush1.msra.mxu0 0.0
        %2604 = vmatprep.subr.mxu0 0.0
        %2605 = vmatpush1.msra.mxu0 0.0
        %2606 = vmatprep.subr.mxu0 0.0
        %2607 = vmatpush1.msra.mxu0 0.0
        %2608 = vmatprep.subr.mxu0 0.0
        %2609 = vmatpush1.msra.mxu0 0.0
        %2610 = vmatprep.subr.mxu0 0.0
        %2611 = vmatpush1.msra.mxu0 0.0
        %2612 = vmatprep.subr.mxu0 0.0
        %2613 = vmatpush1.msra.mxu0 0.0
        %2614 = vmatprep.subr.mxu0 0.0
        %2615 = vmatpush1.msra.mxu0 0.0
        %2616 = vmatprep.subr.mxu0 0.0
        %2617 = vmatpush1.msra.mxu0 0.0
        %2618 = vmatprep.subr.mxu0 0.0
        %2619 = vmatpush1.msra.mxu0 0.0
        %2620 = vmatprep.subr.mxu0 0.0
        %2621 = vmatpush1.msra.mxu0 0.0
        %2622 = vmatprep.subr.mxu0 0.0
        %2623 = vmatpush1.msra.mxu0 0.0
        %2624 = vmatprep.subr.mxu0 0.0
        %2625 = vmatpush1.msra.mxu0 0.0
        %2626 = vmatprep.subr.mxu0 0.0
        %2627 = vmatpush1.msra.mxu0 0.0
        %2628 = vmatprep.subr.mxu0 0.0
        %2629 = vmatpush1.msra.mxu0 0.0
        %2630 = vmatprep.subr.mxu0 0.0
        %2631 = vmatpush1.msra.mxu0 0.0
        %2632 = vmatprep.mubr.f32.mxu0 0.0
        %2633 = vmatmul.mubr.f32.gmra.mrb[0].mxu0 %v2563
        %v2634 = vpop.f32.mrb[0].mxu0
        %v2635 = vadd.f32 0.0, %v2634
        %v2636 = vpop.f32.mrb[0].mxu0
        %2637 = vmatprep.mubr.f32.mxu0 0.0
        %2638 = vmatmul.mubr.f32.gmra.mrb[0].mxu0 %v2566
        %v2639 = vpop.f32.mrb[0].mxu0
        %v2640 = vadd.f32 0.0, %v2639
        %v2641 = vpop.f32.mrb[0].mxu0
        %2642 = vdwg.mxu0
        %v2644 = vsel %vm1446, %v2311, 0
        %v2647 = vsel %vm1446, %v2312, 0
        %2649 = vmatprep.subr.mxu0 0.0
        %2650 = vmatpush1.msra.mxu0 %v1392
        %2651 = vmatprep.subr.mxu0 0.0
        %2652 = vmatpush1.msra.mxu0 %v1397
        %2653 = vmatprep.subr.mxu0 0.0
        %2654 = vmatpush1.msra.mxu0 0.0
        %2655 = vmatprep.subr.mxu0 0.0
        %2656 = vmatpush1.msra.mxu0 0.0
        %2657 = vmatprep.subr.mxu0 0.0
        %2658 = vmatpush1.msra.mxu0 0.0
        %2659 = vmatprep.subr.mxu0 0.0
        %2660 = vmatpush1.msra.mxu0 0.0
        %2661 = vmatprep.subr.mxu0 0.0
        %2662 = vmatpush1.msra.mxu0 0.0
        %2663 = vmatprep.subr.mxu0 0.0
        %2664 = vmatpush1.msra.mxu0 0.0
        %2665 = vmatprep.subr.mxu0 0.0
        %2666 = vmatpush1.msra.mxu0 0.0
        %2667 = vmatprep.subr.mxu0 0.0
        %2668 = vmatpush1.msra.mxu0 0.0
        %2669 = vmatprep.subr.mxu0 0.0
        %2670 = vmatpush1.msra.mxu0 0.0
        %2671 = vmatprep.subr.mxu0 0.0
        %2672 = vmatpush1.msra.mxu0 0.0
        %2673 = vmatprep.subr.mxu0 0.0
        %2674 = vmatpush1.msra.mxu0 0.0
        %2675 = vmatprep.subr.mxu0 0.0
        %2676 = vmatpush1.msra.mxu0 0.0
        %2677 = vmatprep.subr.mxu0 0.0
        %2678 = vmatpush1.msra.mxu0 0.0
        %2679 = vmatprep.subr.mxu0 0.0
        %2680 = vmatpush1.msra.mxu0 0.0
        %2681 = vmatprep.subr.mxu0 0.0
        %2682 = vmatpush1.msra.mxu0 0.0
        %2683 = vmatprep.subr.mxu0 0.0
        %2684 = vmatpush1.msra.mxu0 0.0
        %2685 = vmatprep.subr.mxu0 0.0
        %2686 = vmatpush1.msra.mxu0 0.0
        %2687 = vmatprep.subr.mxu0 0.0
        %2688 = vmatpush1.msra.mxu0 0.0
        %2689 = vmatprep.subr.mxu0 0.0
        %2690 = vmatpush1.msra.mxu0 0.0
        %2691 = vmatprep.subr.mxu0 0.0
        %2692 = vmatpush1.msra.mxu0 0.0
        %2693 = vmatprep.subr.mxu0 0.0
        %2694 = vmatpush1.msra.mxu0 0.0
        %2695 = vmatprep.subr.mxu0 0.0
        %2696 = vmatpush1.msra.mxu0 0.0
        %2697 = vmatprep.subr.mxu0 0.0
        %2698 = vmatpush1.msra.mxu0 0.0
        %2699 = vmatprep.subr.mxu0 0.0
        %2700 = vmatpush1.msra.mxu0 0.0
        %2701 = vmatprep.subr.mxu0 0.0
        %2702 = vmatpush1.msra.mxu0 0.0
        %2703 = vmatprep.subr.mxu0 0.0
        %2704 = vmatpush1.msra.mxu0 0.0
        %2705 = vmatprep.subr.mxu0 0.0
        %2706 = vmatpush1.msra.mxu0 0.0
        %2707 = vmatprep.subr.mxu0 0.0
        %2708 = vmatpush1.msra.mxu0 0.0
        %2709 = vmatprep.subr.mxu0 0.0
        %2710 = vmatpush1.msra.mxu0 0.0
        %2711 = vmatprep.subr.mxu0 0.0
        %2712 = vmatpush1.msra.mxu0 0.0
        %2713 = vmatprep.mubr.f32.mxu0 0.0
        %2714 = vmatmul.mubr.f32.gmra.mrb[0].mxu0 %v2644
        %v2715 = vpop.f32.mrb[0].mxu0
        %v2716 = vadd.f32 0.0, %v2715
        %v2717 = vpop.f32.mrb[0].mxu0
        %2718 = vmatprep.mubr.f32.mxu0 0.0
        %2719 = vmatmul.mubr.f32.gmra.mrb[0].mxu0 %v2647
        %v2720 = vpop.f32.mrb[0].mxu0
        %v2721 = vadd.f32 0.0, %v2720
        %v2722 = vpop.f32.mrb[0].mxu0
        %2723 = vdwg.mxu0
        %v2725 = vsel %vm1446, %v2313, 0
        %v2728 = vsel %vm1446, %v2314, 0
        %2730 = vmatprep.subr.mxu0 0.0
        %2731 = vmatpush1.msra.mxu0 %v1402
        %2732 = vmatprep.subr.mxu0 0.0
        %2733 = vmatpush1.msra.mxu0 %v1407
        %2734 = vmatprep.subr.mxu0 0.0
        %2735 = vmatpush1.msra.mxu0 0.0
        %2736 = vmatprep.subr.mxu0 0.0
        %2737 = vmatpush1.msra.mxu0 0.0
        %2738 = vmatprep.subr.mxu0 0.0
        %2739 = vmatpush1.msra.mxu0 0.0
        %2740 = vmatprep.subr.mxu0 0.0
        %2741 = vmatpush1.msra.mxu0 0.0
        %2742 = vmatprep.subr.mxu0 0.0
        %2743 = vmatpush1.msra.mxu0 0.0
        %2744 = vmatprep.subr.mxu0 0.0
        %2745 = vmatpush1.msra.mxu0 0.0
        %2746 = vmatprep.subr.mxu0 0.0
        %2747 = vmatpush1.msra.mxu0 0.0
        %2748 = vmatprep.subr.mxu0 0.0
        %2749 = vmatpush1.msra.mxu0 0.0
        %2750 = vmatprep.subr.mxu0 0.0
        %2751 = vmatpush1.msra.mxu0 0.0
        %2752 = vmatprep.subr.mxu0 0.0
        %2753 = vmatpush1.msra.mxu0 0.0
        %2754 = vmatprep.subr.mxu0 0.0
        %2755 = vmatpush1.msra.mxu0 0.0
        %2756 = vmatprep.subr.mxu0 0.0
        %2757 = vmatpush1.msra.mxu0 0.0
        %2758 = vmatprep.subr.mxu0 0.0
        %2759 = vmatpush1.msra.mxu0 0.0
        %2760 = vmatprep.subr.mxu0 0.0
        %2761 = vmatpush1.msra.mxu0 0.0
        %2762 = vmatprep.subr.mxu0 0.0
        %2763 = vmatpush1.msra.mxu0 0.0
        %2764 = vmatprep.subr.mxu0 0.0
        %2765 = vmatpush1.msra.mxu0 0.0
        %2766 = vmatprep.subr.mxu0 0.0
        %2767 = vmatpush1.msra.mxu0 0.0
        %2768 = vmatprep.subr.mxu0 0.0
        %2769 = vmatpush1.msra.mxu0 0.0
        %2770 = vmatprep.subr.mxu0 0.0
        %2771 = vmatpush1.msra.mxu0 0.0
        %2772 = vmatprep.subr.mxu0 0.0
        %2773 = vmatpush1.msra.mxu0 0.0
        %2774 = vmatprep.subr.mxu0 0.0
        %2775 = vmatpush1.msra.mxu0 0.0
        %2776 = vmatprep.subr.mxu0 0.0
        %2777 = vmatpush1.msra.mxu0 0.0
        %2778 = vmatprep.subr.mxu0 0.0
        %2779 = vmatpush1.msra.mxu0 0.0
        %2780 = vmatprep.subr.mxu0 0.0
        %2781 = vmatpush1.msra.mxu0 0.0
        %2782 = vmatprep.subr.mxu0 0.0
        %2783 = vmatpush1.msra.mxu0 0.0
        %2784 = vmatprep.subr.mxu0 0.0
        %2785 = vmatpush1.msra.mxu0 0.0
        %2786 = vmatprep.subr.mxu0 0.0
        %2787 = vmatpush1.msra.mxu0 0.0
        %2788 = vmatprep.subr.mxu0 0.0
        %2789 = vmatpush1.msra.mxu0 0.0
        %2790 = vmatprep.subr.mxu0 0.0
        %2791 = vmatpush1.msra.mxu0 0.0
        %2792 = vmatprep.subr.mxu0 0.0
        %2793 = vmatpush1.msra.mxu0 0.0
        %2794 = vmatprep.mubr.f32.mxu0 0.0
        %2795 = vmatmul.mubr.f32.gmra.mrb[0].mxu0 %v2725
        %v2796 = vpop.f32.mrb[0].mxu0
        %v2797 = vadd.f32 0.0, %v2796
        %v2798 = vpop.f32.mrb[0].mxu0
        %2799 = vmatprep.mubr.f32.mxu0 0.0
        %2800 = vmatmul.mubr.f32.gmra.mrb[0].mxu0 %v2728
        %v2801 = vpop.f32.mrb[0].mxu0
        %v2802 = vadd.f32 0.0, %v2801
        %v2803 = vpop.f32.mrb[0].mxu0
        %2804 = vdwg.mxu0
        %v2806 = vsel %vm1446, %v2315, 0
        %v2809 = vsel %vm1446, %v2316, 0
        %2811 = vmatprep.subr.mxu0 0.0
        %2812 = vmatpush1.msra.mxu0 %v1412
        %2813 = vmatprep.subr.mxu0 0.0
        %2814 = vmatpush1.msra.mxu0 %v1417
        %2815 = vmatprep.subr.mxu0 0.0
        %2816 = vmatpush1.msra.mxu0 0.0
        %2817 = vmatprep.subr.mxu0 0.0
        %2818 = vmatpush1.msra.mxu0 0.0
        %2819 = vmatprep.subr.mxu0 0.0
        %2820 = vmatpush1.msra.mxu0 0.0
        %2821 = vmatprep.subr.mxu0 0.0
        %2822 = vmatpush1.msra.mxu0 0.0
        %2823 = vmatprep.subr.mxu0 0.0
        %2824 = vmatpush1.msra.mxu0 0.0
        %2825 = vmatprep.subr.mxu0 0.0
        %2826 = vmatpush1.msra.mxu0 0.0
        %2827 = vmatprep.subr.mxu0 0.0
        %2828 = vmatpush1.msra.mxu0 0.0
        %2829 = vmatprep.subr.mxu0 0.0
        %2830 = vmatpush1.msra.mxu0 0.0
        %2831 = vmatprep.subr.mxu0 0.0
        %2832 = vmatpush1.msra.mxu0 0.0
        %2833 = vmatprep.subr.mxu0 0.0
        %2834 = vmatpush1.msra.mxu0 0.0
        %2835 = vmatprep.subr.mxu0 0.0
        %2836 = vmatpush1.msra.mxu0 0.0
        %2837 = vmatprep.subr.mxu0 0.0
        %2838 = vmatpush1.msra.mxu0 0.0
        %2839 = vmatprep.subr.mxu0 0.0
        %2840 = vmatpush1.msra.mxu0 0.0
        %2841 = vmatprep.subr.mxu0 0.0
        %2842 = vmatpush1.msra.mxu0 0.0
        %2843 = vmatprep.subr.mxu0 0.0
        %2844 = vmatpush1.msra.mxu0 0.0
        %2845 = vmatprep.subr.mxu0 0.0
        %2846 = vmatpush1.msra.mxu0 0.0
        %2847 = vmatprep.subr.mxu0 0.0
        %2848 = vmatpush1.msra.mxu0 0.0
        %2849 = vmatprep.subr.mxu0 0.0
        %2850 = vmatpush1.msra.mxu0 0.0
        %2851 = vmatprep.subr.mxu0 0.0
        %2852 = vmatpush1.msra.mxu0 0.0
        %2853 = vmatprep.subr.mxu0 0.0
        %2854 = vmatpush1.msra.mxu0 0.0
        %2855 = vmatprep.subr.mxu0 0.0
        %2856 = vmatpush1.msra.mxu0 0.0
        %2857 = vmatprep.subr.mxu0 0.0
        %2858 = vmatpush1.msra.mxu0 0.0
        %2859 = vmatprep.subr.mxu0 0.0
        %2860 = vmatpush1.msra.mxu0 0.0
        %2861 = vmatprep.subr.mxu0 0.0
        %2862 = vmatpush1.msra.mxu0 0.0
        %2863 = vmatprep.subr.mxu0 0.0
        %2864 = vmatpush1.msra.mxu0 0.0
        %2865 = vmatprep.subr.mxu0 0.0
        %2866 = vmatpush1.msra.mxu0 0.0
        %2867 = vmatprep.subr.mxu0 0.0
        %2868 = vmatpush1.msra.mxu0 0.0
        %2869 = vmatprep.subr.mxu0 0.0
        %2870 = vmatpush1.msra.mxu0 0.0
        %2871 = vmatprep.subr.mxu0 0.0
        %2872 = vmatpush1.msra.mxu0 0.0
        %2873 = vmatprep.subr.mxu0 0.0
        %2874 = vmatpush1.msra.mxu0 0.0
        %2875 = vmatprep.mubr.f32.mxu0 0.0
        %2876 = vmatmul.mubr.f32.gmra.mrb[0].mxu0 %v2806
        %v2877 = vpop.f32.mrb[0].mxu0
        %v2878 = vadd.f32 0.0, %v2877
        %v2879 = vpop.f32.mrb[0].mxu0
        %2880 = vmatprep.mubr.f32.mxu0 0.0
        %2881 = vmatmul.mubr.f32.gmra.mrb[0].mxu0 %v2809
        %v2882 = vpop.f32.mrb[0].mxu0
        %v2883 = vadd.f32 0.0, %v2882
        %v2884 = vpop.f32.mrb[0].mxu0
        %2885 = vdwg.mxu0
        %v2887 = vsel %vm1446, %v2317, 0
        %v2890 = vsel %vm1446, %v2318, 0
        %2892 = vmatprep.subr.mxu0 0.0
        %2893 = vmatpush1.msra.mxu0 %v1422
        %2894 = vmatprep.subr.mxu0 0.0
        %2895 = vmatpush1.msra.mxu0 %v1427
        %2896 = vmatprep.subr.mxu0 0.0
        %2897 = vmatpush1.msra.mxu0 0.0
        %2898 = vmatprep.subr.mxu0 0.0
        %2899 = vmatpush1.msra.mxu0 0.0
        %2900 = vmatprep.subr.mxu0 0.0
        %2901 = vmatpush1.msra.mxu0 0.0
        %2902 = vmatprep.subr.mxu0 0.0
        %2903 = vmatpush1.msra.mxu0 0.0
        %2904 = vmatprep.subr.mxu0 0.0
        %2905 = vmatpush1.msra.mxu0 0.0
        %2906 = vmatprep.subr.mxu0 0.0
        %2907 = vmatpush1.msra.mxu0 0.0
        %2908 = vmatprep.subr.mxu0 0.0
        %2909 = vmatpush1.msra.mxu0 0.0
        %2910 = vmatprep.subr.mxu0 0.0
        %2911 = vmatpush1.msra.mxu0 0.0
        %2912 = vmatprep.subr.mxu0 0.0
        %2913 = vmatpush1.msra.mxu0 0.0
        %2914 = vmatprep.subr.mxu0 0.0
        %2915 = vmatpush1.msra.mxu0 0.0
        %2916 = vmatprep.subr.mxu0 0.0
        %2917 = vmatpush1.msra.mxu0 0.0
        %2918 = vmatprep.subr.mxu0 0.0
        %2919 = vmatpush1.msra.mxu0 0.0
        %2920 = vmatprep.subr.mxu0 0.0
        %2921 = vmatpush1.msra.mxu0 0.0
        %2922 = vmatprep.subr.mxu0 0.0
        %2923 = vmatpush1.msra.mxu0 0.0
        %2924 = vmatprep.subr.mxu0 0.0
        %2925 = vmatpush1.msra.mxu0 0.0
        %2926 = vmatprep.subr.mxu0 0.0
        %2927 = vmatpush1.msra.mxu0 0.0
        %2928 = vmatprep.subr.mxu0 0.0
        %2929 = vmatpush1.msra.mxu0 0.0
        %2930 = vmatprep.subr.mxu0 0.0
        %2931 = vmatpush1.msra.mxu0 0.0
        %2932 = vmatprep.subr.mxu0 0.0
        %2933 = vmatpush1.msra.mxu0 0.0
        %2934 = vmatprep.subr.mxu0 0.0
        %2935 = vmatpush1.msra.mxu0 0.0
        %2936 = vmatprep.subr.mxu0 0.0
        %2937 = vmatpush1.msra.mxu0 0.0
        %2938 = vmatprep.subr.mxu0 0.0
        %2939 = vmatpush1.msra.mxu0 0.0
        %2940 = vmatprep.subr.mxu0 0.0
        %2941 = vmatpush1.msra.mxu0 0.0
        %2942 = vmatprep.subr.mxu0 0.0
        %2943 = vmatpush1.msra.mxu0 0.0
        %2944 = vmatprep.subr.mxu0 0.0
        %2945 = vmatpush1.msra.mxu0 0.0
        %2946 = vmatprep.subr.mxu0 0.0
        %2947 = vmatpush1.msra.mxu0 0.0
        %2948 = vmatprep.subr.mxu0 0.0
        %2949 = vmatpush1.msra.mxu0 0.0
        %2950 = vmatprep.subr.mxu0 0.0
        %2951 = vmatpush1.msra.mxu0 0.0
        %2952 = vmatprep.subr.mxu0 0.0
        %2953 = vmatpush1.msra.mxu0 0.0
        %2954 = vmatprep.subr.mxu0 0.0
        %2955 = vmatpush1.msra.mxu0 0.0
        %2956 = vmatprep.mubr.f32.mxu0 0.0
        %2957 = vmatmul.mubr.f32.gmra.mrb[0].mxu0 %v2887
        %v2958 = vpop.f32.mrb[0].mxu0
        %v2959 = vadd.f32 0.0, %v2958
        %v2960 = vpop.f32.mrb[0].mxu0
        %2961 = vmatprep.mubr.f32.mxu0 0.0
        %2962 = vmatmul.mubr.f32.gmra.mrb[0].mxu0 %v2890
        %v2963 = vpop.f32.mrb[0].mxu0
        %v2964 = vadd.f32 0.0, %v2963
        %v2965 = vpop.f32.mrb[0].mxu0
        %2966 = vdwg.mxu0
        %v2967 = vld [vmem:[%s4] sm:$0xff]
        %v2968 = vld [vmem:[%s4 + $0x8] sm:$0xff]
        %v2969 = vld [vmem:[%s4 + $0x10] sm:$0xff]
        %v2970 = vld [vmem:[%s4 + $0x18] sm:$0xff]
        %v2971 = vld [vmem:[%s4 + $0x20] sm:$0xff]
        %v2972 = vld [vmem:[%s4 + $0x28] sm:$0xff]
        %v2973 = vld [vmem:[%s4 + $0x30] sm:$0xff]
        %v2974 = vld [vmem:[%s4 + $0x38] sm:$0xff]
        %v2975 = vld [vmem:[%s5] sm:$0x1]
        %v2977 = vlaneseq
        %v2978 = vshrl.u32 %v2977, 7
        %v2979 = vsub.s32 0, %v2978
        %v2980 = vrot.slane %v2975, %v2979
        %2989 = vrot.lane.b32.xlu0 %v2967, 112
        %v2990 = vpop.permute.xlu0 %2989
        %2991 = vrot.lane.b32.xlu0 %v2968, 112
        %v2992 = vpop.permute.xlu0 %2991
        %2993 = vrot.lane.b32.xlu0 %v2969, 112
        %v2994 = vpop.permute.xlu0 %2993
        %2995 = vrot.lane.b32.xlu0 %v2970, 112
        %v2996 = vpop.permute.xlu0 %2995
        %2997 = vrot.lane.b32.xlu0 %v2971, 112
        %v2998 = vpop.permute.xlu0 %2997
        %2999 = vrot.lane.b32.xlu0 %v2972, 112
        %v3000 = vpop.permute.xlu0 %2999
        %3001 = vrot.lane.b32.xlu0 %v2973, 112
        %v3002 = vpop.permute.xlu0 %3001
        %3003 = vrot.lane.b32.xlu0 %v2974, 112
        %v3004 = vpop.permute.xlu0 %3003
        %3013 = vrot.lane.b32.xlu0 %v2980, 112
        %v3014 = vpop.permute.xlu0 %3013
        %3016 = vmatprep.subr.mxu0 0.0
        %3017 = vmatpush1.msra.mxu0 %v2990
        %3018 = vmatprep.subr.mxu0 0.0
        %3019 = vmatpush1.msra.mxu0 %v2992
        %3020 = vmatprep.subr.mxu0 0.0
        %3021 = vmatpush1.msra.mxu0 %v2994
        %3022 = vmatprep.subr.mxu0 0.0
        %3023 = vmatpush1.msra.mxu0 %v2996
        %3024 = vmatprep.subr.mxu0 0.0
        %3025 = vmatpush1.msra.mxu0 %v2998
        %3026 = vmatprep.subr.mxu0 0.0
        %3027 = vmatpush1.msra.mxu0 %v3000
        %3028 = vmatprep.subr.mxu0 0.0
        %3029 = vmatpush1.msra.mxu0 %v3002
        %3030 = vmatprep.subr.mxu0 0.0
        %3031 = vmatpush1.msra.mxu0 %v3004
        %3032 = vmatprep.subr.mxu0 0.0
        %3033 = vmatpush1.msra.mxu0 0.0
        %3034 = vmatprep.subr.mxu0 0.0
        %3035 = vmatpush1.msra.mxu0 0.0
        %3036 = vmatprep.subr.mxu0 0.0
        %3037 = vmatpush1.msra.mxu0 0.0
        %3038 = vmatprep.subr.mxu0 0.0
        %3039 = vmatpush1.msra.mxu0 0.0
        %3040 = vmatprep.subr.mxu0 0.0
        %3041 = vmatpush1.msra.mxu0 0.0
        %3042 = vmatprep.subr.mxu0 0.0
        %3043 = vmatpush1.msra.mxu0 0.0
        %3044 = vmatprep.subr.mxu0 0.0
        %3045 = vmatpush1.msra.mxu0 0.0
        %3046 = vmatprep.subr.mxu0 0.0
        %3047 = vmatpush1.msra.mxu0 0.0
        %3048 = vmatprep.subr.mxu0 0.0
        %3049 = vmatpush1.msra.mxu0 0.0
        %3050 = vmatprep.subr.mxu0 0.0
        %3051 = vmatpush1.msra.mxu0 0.0
        %3052 = vmatprep.subr.mxu0 0.0
        %3053 = vmatpush1.msra.mxu0 0.0
        %3054 = vmatprep.subr.mxu0 0.0
        %3055 = vmatpush1.msra.mxu0 0.0
        %3056 = vmatprep.subr.mxu0 0.0
        %3057 = vmatpush1.msra.mxu0 0.0
        %3058 = vmatprep.subr.mxu0 0.0
        %3059 = vmatpush1.msra.mxu0 0.0
        %3060 = vmatprep.subr.mxu0 0.0
        %3061 = vmatpush1.msra.mxu0 0.0
        %3062 = vmatprep.subr.mxu0 0.0
        %3063 = vmatpush1.msra.mxu0 0.0
        %3064 = vmatprep.subr.mxu0 0.0
        %3065 = vmatpush1.msra.mxu0 0.0
        %3066 = vmatprep.subr.mxu0 0.0
        %3067 = vmatpush1.msra.mxu0 0.0
        %3068 = vmatprep.subr.mxu0 0.0
        %3069 = vmatpush1.msra.mxu0 0.0
        %3070 = vmatprep.subr.mxu0 0.0
        %3071 = vmatpush1.msra.mxu0 0.0
        %3072 = vmatprep.subr.mxu0 0.0
        %3073 = vmatpush1.msra.mxu0 0.0
        %3074 = vmatprep.subr.mxu0 0.0
        %3075 = vmatpush1.msra.mxu0 0.0
        %3076 = vmatprep.subr.mxu0 0.0
        %3077 = vmatpush1.msra.mxu0 0.0
        %3078 = vmatprep.subr.mxu0 0.0
        %3079 = vmatpush1.msra.mxu0 0.0
        %3080 = vmatprep.mubr.f32.mxu0 0.0
        %3081 = vmatmul.mubr.f32.gmra.mrb[0].mxu0 %v918
        %v3082 = vpop.f32.mrb[0].mxu0
        %v3083 = vadd.f32 %v3014, %v3082
        %v3084 = vpop.f32.mrb[0].mxu0
        %3085 = vmatprep.mubr.f32.mxu0 0.0
        %3086 = vmatmul.mubr.f32.gmra.mrb[0].mxu0 %v921
        %v3087 = vpop.f32.mrb[0].mxu0
        %v3088 = vadd.f32 %v3014, %v3087
        %v3089 = vpop.f32.mrb[0].mxu0
        %3090 = vmatprep.mubr.f32.mxu0 0.0
        %3091 = vmatmul.mubr.f32.gmra.mrb[0].mxu0 %v924
        %v3092 = vpop.f32.mrb[0].mxu0
        %v3093 = vadd.f32 %v3014, %v3092
        %v3094 = vpop.f32.mrb[0].mxu0
        %3095 = vmatprep.mubr.f32.mxu0 0.0
        %3096 = vmatmul.mubr.f32.gmra.mrb[0].mxu0 %v927
        %v3097 = vpop.f32.mrb[0].mxu0
        %v3098 = vadd.f32 %v3014, %v3097
        %v3099 = vpop.f32.mrb[0].mxu0
        %3100 = vmatprep.mubr.f32.mxu0 0.0
        %3101 = vmatmul.mubr.f32.gmra.mrb[0].mxu0 %v930
        %v3102 = vpop.f32.mrb[0].mxu0
        %v3103 = vadd.f32 %v3014, %v3102
        %v3104 = vpop.f32.mrb[0].mxu0
        %3105 = vmatprep.mubr.f32.mxu0 0.0
        %3106 = vmatmul.mubr.f32.gmra.mrb[0].mxu0 %v933
        %v3107 = vpop.f32.mrb[0].mxu0
        %v3108 = vadd.f32 %v3014, %v3107
        %v3109 = vpop.f32.mrb[0].mxu0
        %3110 = vmatprep.mubr.f32.mxu0 0.0
        %3111 = vmatmul.mubr.f32.gmra.mrb[0].mxu0 %v936
        %v3112 = vpop.f32.mrb[0].mxu0
        %v3113 = vadd.f32 %v3014, %v3112
        %v3114 = vpop.f32.mrb[0].mxu0
        %3115 = vmatprep.mubr.f32.mxu0 0.0
        %3116 = vmatmul.mubr.f32.gmra.mrb[0].mxu0 %v939
        %v3117 = vpop.f32.mrb[0].mxu0
        %v3118 = vadd.f32 %v3014, %v3117
        %v3119 = vpop.f32.mrb[0].mxu0
        %3120 = vmatprep.mubr.f32.mxu0 0.0
        %3121 = vmatmul.mubr.f32.gmra.mrb[0].mxu0 %v942
        %v3122 = vpop.f32.mrb[0].mxu0
        %v3123 = vadd.f32 %v3014, %v3122
        %v3124 = vpop.f32.mrb[0].mxu0
        %3125 = vmatprep.mubr.f32.mxu0 0.0
        %3126 = vmatmul.mubr.f32.gmra.mrb[0].mxu0 %v945
        %v3127 = vpop.f32.mrb[0].mxu0
        %v3128 = vadd.f32 %v3014, %v3127
        %v3129 = vpop.f32.mrb[0].mxu0
        %3130 = vmatprep.mubr.f32.mxu0 0.0
        %3131 = vmatmul.mubr.f32.gmra.mrb[0].mxu0 %v948
        %v3132 = vpop.f32.mrb[0].mxu0
        %v3133 = vadd.f32 %v3014, %v3132
        %v3134 = vpop.f32.mrb[0].mxu0
        %3135 = vmatprep.mubr.f32.mxu0 0.0
        %3136 = vmatmul.mubr.f32.gmra.mrb[0].mxu0 %v951
        %v3137 = vpop.f32.mrb[0].mxu0
        %v3138 = vadd.f32 %v3014, %v3137
        %v3139 = vpop.f32.mrb[0].mxu0
        %3140 = vmatprep.mubr.f32.mxu0 0.0
        %3141 = vmatmul.mubr.f32.gmra.mrb[0].mxu0 %v954
        %v3142 = vpop.f32.mrb[0].mxu0
        %v3143 = vadd.f32 %v3014, %v3142
        %v3144 = vpop.f32.mrb[0].mxu0
        %3145 = vmatprep.mubr.f32.mxu0 0.0
        %3146 = vmatmul.mubr.f32.gmra.mrb[0].mxu0 %v957
        %v3147 = vpop.f32.mrb[0].mxu0
        %v3148 = vadd.f32 %v3014, %v3147
        %v3149 = vpop.f32.mrb[0].mxu0
        %3150 = vmatprep.mubr.f32.mxu0 0.0
        %3151 = vmatmul.mubr.f32.gmra.mrb[0].mxu0 %v960
        %v3152 = vpop.f32.mrb[0].mxu0
        %v3153 = vadd.f32 %v3014, %v3152
        %v3154 = vpop.f32.mrb[0].mxu0
        %3155 = vmatprep.mubr.f32.mxu0 0.0
        %3156 = vmatmul.mubr.f32.gmra.mrb[0].mxu0 %v963
        %v3157 = vpop.f32.mrb[0].mxu0
        %v3158 = vadd.f32 %v3014, %v3157
        %v3159 = vpop.f32.mrb[0].mxu0
        %3160 = vdwg.mxu0
        %v3161 = vld [vmem:[%s6] sm:$0xff]
        %v3162 = vld [vmem:[%s6 + $0x8] sm:$0xff]
        %v3163 = vld [vmem:[%s6 + $0x10] sm:$0xff]
        %v3164 = vld [vmem:[%s6 + $0x18] sm:$0xff]
        %v3165 = vld [vmem:[%s6 + $0x20] sm:$0xff]
        %v3166 = vld [vmem:[%s6 + $0x28] sm:$0xff]
        %v3167 = vld [vmem:[%s6 + $0x30] sm:$0xff]
        %v3168 = vld [vmem:[%s6 + $0x38] sm:$0xff]
        %v3169 = vld [vmem:[%s7] sm:$0x1]
        %v3171 = vlaneseq
        %v3172 = vshrl.u32 %v3171, 7
        %v3173 = vsub.s32 0, %v3172
        %v3174 = vrot.slane %v3169, %v3173
        %3183 = vrot.lane.b32.xlu0 %v3161, 112
        %v3184 = vpop.permute.xlu0 %3183
        %3185 = vrot.lane.b32.xlu0 %v3162, 112
        %v3186 = vpop.permute.xlu0 %3185
        %3187 = vrot.lane.b32.xlu0 %v3163, 112
        %v3188 = vpop.permute.xlu0 %3187
        %3189 = vrot.lane.b32.xlu0 %v3164, 112
        %v3190 = vpop.permute.xlu0 %3189
        %3191 = vrot.lane.b32.xlu0 %v3165, 112
        %v3192 = vpop.permute.xlu0 %3191
        %3193 = vrot.lane.b32.xlu0 %v3166, 112
        %v3194 = vpop.permute.xlu0 %3193
        %3195 = vrot.lane.b32.xlu0 %v3167, 112
        %v3196 = vpop.permute.xlu0 %3195
        %3197 = vrot.lane.b32.xlu0 %v3168, 112
        %v3198 = vpop.permute.xlu0 %3197
        %3207 = vrot.lane.b32.xlu0 %v3174, 112
        %v3208 = vpop.permute.xlu0 %3207
        %3210 = vmatprep.subr.mxu0 0.0
        %3211 = vmatpush1.msra.mxu0 %v3184
        %3212 = vmatprep.subr.mxu0 0.0
        %3213 = vmatpush1.msra.mxu0 %v3186
        %3214 = vmatprep.subr.mxu0 0.0
        %3215 = vmatpush1.msra.mxu0 %v3188
        %3216 = vmatprep.subr.mxu0 0.0
        %3217 = vmatpush1.msra.mxu0 %v3190
        %3218 = vmatprep.subr.mxu0 0.0
        %3219 = vmatpush1.msra.mxu0 %v3192
        %3220 = vmatprep.subr.mxu0 0.0
        %3221 = vmatpush1.msra.mxu0 %v3194
        %3222 = vmatprep.subr.mxu0 0.0
        %3223 = vmatpush1.msra.mxu0 %v3196
        %3224 = vmatprep.subr.mxu0 0.0
        %3225 = vmatpush1.msra.mxu0 %v3198
        %3226 = vmatprep.subr.mxu0 0.0
        %3227 = vmatpush1.msra.mxu0 0.0
        %3228 = vmatprep.subr.mxu0 0.0
        %3229 = vmatpush1.msra.mxu0 0.0
        %3230 = vmatprep.subr.mxu0 0.0
        %3231 = vmatpush1.msra.mxu0 0.0
        %3232 = vmatprep.subr.mxu0 0.0
        %3233 = vmatpush1.msra.mxu0 0.0
        %3234 = vmatprep.subr.mxu0 0.0
        %3235 = vmatpush1.msra.mxu0 0.0
        %3236 = vmatprep.subr.mxu0 0.0
        %3237 = vmatpush1.msra.mxu0 0.0
        %3238 = vmatprep.subr.mxu0 0.0
        %3239 = vmatpush1.msra.mxu0 0.0
        %3240 = vmatprep.subr.mxu0 0.0
        %3241 = vmatpush1.msra.mxu0 0.0
        %3242 = vmatprep.subr.mxu0 0.0
        %3243 = vmatpush1.msra.mxu0 0.0
        %3244 = vmatprep.subr.mxu0 0.0
        %3245 = vmatpush1.msra.mxu0 0.0
        %3246 = vmatprep.subr.mxu0 0.0
        %3247 = vmatpush1.msra.mxu0 0.0
        %3248 = vmatprep.subr.mxu0 0.0
        %3249 = vmatpush1.msra.mxu0 0.0
        %3250 = vmatprep.subr.mxu0 0.0
        %3251 = vmatpush1.msra.mxu0 0.0
        %3252 = vmatprep.subr.mxu0 0.0
        %3253 = vmatpush1.msra.mxu0 0.0
        %3254 = vmatprep.subr.mxu0 0.0
        %3255 = vmatpush1.msra.mxu0 0.0
        %3256 = vmatprep.subr.mxu0 0.0
        %3257 = vmatpush1.msra.mxu0 0.0
        %3258 = vmatprep.subr.mxu0 0.0
        %3259 = vmatpush1.msra.mxu0 0.0
        %3260 = vmatprep.subr.mxu0 0.0
        %3261 = vmatpush1.msra.mxu0 0.0
        %3262 = vmatprep.subr.mxu0 0.0
        %3263 = vmatpush1.msra.mxu0 0.0
        %3264 = vmatprep.subr.mxu0 0.0
        %3265 = vmatpush1.msra.mxu0 0.0
        %3266 = vmatprep.subr.mxu0 0.0
        %3267 = vmatpush1.msra.mxu0 0.0
        %3268 = vmatprep.subr.mxu0 0.0
        %3269 = vmatpush1.msra.mxu0 0.0
        %3270 = vmatprep.subr.mxu0 0.0
        %3271 = vmatpush1.msra.mxu0 0.0
        %3272 = vmatprep.subr.mxu0 0.0
        %3273 = vmatpush1.msra.mxu0 0.0
        %3274 = vmatprep.mubr.f32.mxu0 0.0
        %3275 = vmatmul.mubr.f32.gmra.mrb[0].mxu0 %v918
        %v3276 = vpop.f32.mrb[0].mxu0
        %v3277 = vadd.f32 %v3208, %v3276
        %v3278 = vpop.f32.mrb[0].mxu0
        %3279 = vmatprep.mubr.f32.mxu0 0.0
        %3280 = vmatmul.mubr.f32.gmra.mrb[0].mxu0 %v921
        %v3281 = vpop.f32.mrb[0].mxu0
        %v3282 = vadd.f32 %v3208, %v3281
        %v3283 = vpop.f32.mrb[0].mxu0
        %3284 = vmatprep.mubr.f32.mxu0 0.0
        %3285 = vmatmul.mubr.f32.gmra.mrb[0].mxu0 %v924
        %v3286 = vpop.f32.mrb[0].mxu0
        %v3287 = vadd.f32 %v3208, %v3286
        %v3288 = vpop.f32.mrb[0].mxu0
        %3289 = vmatprep.mubr.f32.mxu0 0.0
        %3290 = vmatmul.mubr.f32.gmra.mrb[0].mxu0 %v927
        %v3291 = vpop.f32.mrb[0].mxu0
        %v3292 = vadd.f32 %v3208, %v3291
        %v3293 = vpop.f32.mrb[0].mxu0
        %3294 = vmatprep.mubr.f32.mxu0 0.0
        %3295 = vmatmul.mubr.f32.gmra.mrb[0].mxu0 %v930
        %v3296 = vpop.f32.mrb[0].mxu0
        %v3297 = vadd.f32 %v3208, %v3296
        %v3298 = vpop.f32.mrb[0].mxu0
        %3299 = vmatprep.mubr.f32.mxu0 0.0
        %3300 = vmatmul.mubr.f32.gmra.mrb[0].mxu0 %v933
        %v3301 = vpop.f32.mrb[0].mxu0
        %v3302 = vadd.f32 %v3208, %v3301
        %v3303 = vpop.f32.mrb[0].mxu0
        %3304 = vmatprep.mubr.f32.mxu0 0.0
        %3305 = vmatmul.mubr.f32.gmra.mrb[0].mxu0 %v936
        %v3306 = vpop.f32.mrb[0].mxu0
        %v3307 = vadd.f32 %v3208, %v3306
        %v3308 = vpop.f32.mrb[0].mxu0
        %3309 = vmatprep.mubr.f32.mxu0 0.0
        %3310 = vmatmul.mubr.f32.gmra.mrb[0].mxu0 %v939
        %v3311 = vpop.f32.mrb[0].mxu0
        %v3312 = vadd.f32 %v3208, %v3311
        %v3313 = vpop.f32.mrb[0].mxu0
        %3314 = vmatprep.mubr.f32.mxu0 0.0
        %3315 = vmatmul.mubr.f32.gmra.mrb[0].mxu0 %v942
        %v3316 = vpop.f32.mrb[0].mxu0
        %v3317 = vadd.f32 %v3208, %v3316
        %v3318 = vpop.f32.mrb[0].mxu0
        %3319 = vmatprep.mubr.f32.mxu0 0.0
        %3320 = vmatmul.mubr.f32.gmra.mrb[0].mxu0 %v945
        %v3321 = vpop.f32.mrb[0].mxu0
        %v3322 = vadd.f32 %v3208, %v3321
        %v3323 = vpop.f32.mrb[0].mxu0
        %3324 = vmatprep.mubr.f32.mxu0 0.0
        %3325 = vmatmul.mubr.f32.gmra.mrb[0].mxu0 %v948
        %v3326 = vpop.f32.mrb[0].mxu0
        %v3327 = vadd.f32 %v3208, %v3326
        %v3328 = vpop.f32.mrb[0].mxu0
        %3329 = vmatprep.mubr.f32.mxu0 0.0
        %3330 = vmatmul.mubr.f32.gmra.mrb[0].mxu0 %v951
        %v3331 = vpop.f32.mrb[0].mxu0
        %v3332 = vadd.f32 %v3208, %v3331
        %v3333 = vpop.f32.mrb[0].mxu0
        %3334 = vmatprep.mubr.f32.mxu0 0.0
        %3335 = vmatmul.mubr.f32.gmra.mrb[0].mxu0 %v954
        %v3336 = vpop.f32.mrb[0].mxu0
        %v3337 = vadd.f32 %v3208, %v3336
        %v3338 = vpop.f32.mrb[0].mxu0
        %3339 = vmatprep.mubr.f32.mxu0 0.0
        %3340 = vmatmul.mubr.f32.gmra.mrb[0].mxu0 %v957
        %v3341 = vpop.f32.mrb[0].mxu0
        %v3342 = vadd.f32 %v3208, %v3341
        %v3343 = vpop.f32.mrb[0].mxu0
        %3344 = vmatprep.mubr.f32.mxu0 0.0
        %3345 = vmatmul.mubr.f32.gmra.mrb[0].mxu0 %v960
        %v3346 = vpop.f32.mrb[0].mxu0
        %v3347 = vadd.f32 %v3208, %v3346
        %v3348 = vpop.f32.mrb[0].mxu0
        %3349 = vmatprep.mubr.f32.mxu0 0.0
        %3350 = vmatmul.mubr.f32.gmra.mrb[0].mxu0 %v963
        %v3351 = vpop.f32.mrb[0].mxu0
        %v3352 = vadd.f32 %v3208, %v3351
        %v3353 = vpop.f32.mrb[0].mxu0
        %3354 = vdwg.mxu0
        %v3355 = vld [vmem:[%s8] sm:$0xff]
        %v3356 = vld [vmem:[%s8 + $0x8] sm:$0xff]
        %v3357 = vld [vmem:[%s8 + $0x10] sm:$0xff]
        %v3358 = vld [vmem:[%s8 + $0x18] sm:$0xff]
        %v3359 = vld [vmem:[%s8 + $0x20] sm:$0xff]
        %v3360 = vld [vmem:[%s8 + $0x28] sm:$0xff]
        %v3361 = vld [vmem:[%s8 + $0x30] sm:$0xff]
        %v3362 = vld [vmem:[%s8 + $0x38] sm:$0xff]
        %v3363 = vld [vmem:[%s9] sm:$0x1]
        %v3365 = vlaneseq
        %v3366 = vshrl.u32 %v3365, 7
        %v3367 = vsub.s32 0, %v3366
        %v3368 = vrot.slane %v3363, %v3367
        %3377 = vrot.lane.b32.xlu0 %v3355, 112
        %v3378 = vpop.permute.xlu0 %3377
        %3379 = vrot.lane.b32.xlu0 %v3356, 112
        %v3380 = vpop.permute.xlu0 %3379
        %3381 = vrot.lane.b32.xlu0 %v3357, 112
        %v3382 = vpop.permute.xlu0 %3381
        %3383 = vrot.lane.b32.xlu0 %v3358, 112
        %v3384 = vpop.permute.xlu0 %3383
        %3385 = vrot.lane.b32.xlu0 %v3359, 112
        %v3386 = vpop.permute.xlu0 %3385
        %3387 = vrot.lane.b32.xlu0 %v3360, 112
        %v3388 = vpop.permute.xlu0 %3387
        %3389 = vrot.lane.b32.xlu0 %v3361, 112
        %v3390 = vpop.permute.xlu0 %3389
        %3391 = vrot.lane.b32.xlu0 %v3362, 112
        %v3392 = vpop.permute.xlu0 %3391
        %3401 = vrot.lane.b32.xlu0 %v3368, 112
        %v3402 = vpop.permute.xlu0 %3401
        %3404 = vmatprep.subr.mxu0 0.0
        %3405 = vmatpush1.msra.mxu0 %v3378
        %3406 = vmatprep.subr.mxu0 0.0
        %3407 = vmatpush1.msra.mxu0 %v3380
        %3408 = vmatprep.subr.mxu0 0.0
        %3409 = vmatpush1.msra.mxu0 %v3382
        %3410 = vmatprep.subr.mxu0 0.0
        %3411 = vmatpush1.msra.mxu0 %v3384
        %3412 = vmatprep.subr.mxu0 0.0
        %3413 = vmatpush1.msra.mxu0 %v3386
        %3414 = vmatprep.subr.mxu0 0.0
        %3415 = vmatpush1.msra.mxu0 %v3388
        %3416 = vmatprep.subr.mxu0 0.0
        %3417 = vmatpush1.msra.mxu0 %v3390
        %3418 = vmatprep.subr.mxu0 0.0
        %3419 = vmatpush1.msra.mxu0 %v3392
        %3420 = vmatprep.subr.mxu0 0.0
        %3421 = vmatpush1.msra.mxu0 0.0
        %3422 = vmatprep.subr.mxu0 0.0
        %3423 = vmatpush1.msra.mxu0 0.0
        %3424 = vmatprep.subr.mxu0 0.0
        %3425 = vmatpush1.msra.mxu0 0.0
        %3426 = vmatprep.subr.mxu0 0.0
        %3427 = vmatpush1.msra.mxu0 0.0
        %3428 = vmatprep.subr.mxu0 0.0
        %3429 = vmatpush1.msra.mxu0 0.0
        %3430 = vmatprep.subr.mxu0 0.0
        %3431 = vmatpush1.msra.mxu0 0.0
        %3432 = vmatprep.subr.mxu0 0.0
        %3433 = vmatpush1.msra.mxu0 0.0
        %3434 = vmatprep.subr.mxu0 0.0
        %3435 = vmatpush1.msra.mxu0 0.0
        %3436 = vmatprep.subr.mxu0 0.0
        %3437 = vmatpush1.msra.mxu0 0.0
        %3438 = vmatprep.subr.mxu0 0.0
        %3439 = vmatpush1.msra.mxu0 0.0
        %3440 = vmatprep.subr.mxu0 0.0
        %3441 = vmatpush1.msra.mxu0 0.0
        %3442 = vmatprep.subr.mxu0 0.0
        %3443 = vmatpush1.msra.mxu0 0.0
        %3444 = vmatprep.subr.mxu0 0.0
        %3445 = vmatpush1.msra.mxu0 0.0
        %3446 = vmatprep.subr.mxu0 0.0
        %3447 = vmatpush1.msra.mxu0 0.0
        %3448 = vmatprep.subr.mxu0 0.0
        %3449 = vmatpush1.msra.mxu0 0.0
        %3450 = vmatprep.subr.mxu0 0.0
        %3451 = vmatpush1.msra.mxu0 0.0
        %3452 = vmatprep.subr.mxu0 0.0
        %3453 = vmatpush1.msra.mxu0 0.0
        %3454 = vmatprep.subr.mxu0 0.0
        %3455 = vmatpush1.msra.mxu0 0.0
        %3456 = vmatprep.subr.mxu0 0.0
        %3457 = vmatpush1.msra.mxu0 0.0
        %3458 = vmatprep.subr.mxu0 0.0
        %3459 = vmatpush1.msra.mxu0 0.0
        %3460 = vmatprep.subr.mxu0 0.0
        %3461 = vmatpush1.msra.mxu0 0.0
        %3462 = vmatprep.subr.mxu0 0.0
        %3463 = vmatpush1.msra.mxu0 0.0
        %3464 = vmatprep.subr.mxu0 0.0
        %3465 = vmatpush1.msra.mxu0 0.0
        %3466 = vmatprep.subr.mxu0 0.0
        %3467 = vmatpush1.msra.mxu0 0.0
        %3468 = vmatprep.mubr.f32.mxu0 0.0
        %3469 = vmatmul.mubr.f32.gmra.mrb[0].mxu0 %v918
        %v3470 = vpop.f32.mrb[0].mxu0
        %v3471 = vadd.f32 %v3402, %v3470
        %v3472 = vpop.f32.mrb[0].mxu0
        %3473 = vmatprep.mubr.f32.mxu0 0.0
        %3474 = vmatmul.mubr.f32.gmra.mrb[0].mxu0 %v921
        %v3475 = vpop.f32.mrb[0].mxu0
        %v3476 = vadd.f32 %v3402, %v3475
        %v3477 = vpop.f32.mrb[0].mxu0
        %3478 = vmatprep.mubr.f32.mxu0 0.0
        %3479 = vmatmul.mubr.f32.gmra.mrb[0].mxu0 %v924
        %v3480 = vpop.f32.mrb[0].mxu0
        %v3481 = vadd.f32 %v3402, %v3480
        %v3482 = vpop.f32.mrb[0].mxu0
        %3483 = vmatprep.mubr.f32.mxu0 0.0
        %3484 = vmatmul.mubr.f32.gmra.mrb[0].mxu0 %v927
        %v3485 = vpop.f32.mrb[0].mxu0
        %v3486 = vadd.f32 %v3402, %v3485
        %v3487 = vpop.f32.mrb[0].mxu0
        %3488 = vmatprep.mubr.f32.mxu0 0.0
        %3489 = vmatmul.mubr.f32.gmra.mrb[0].mxu0 %v930
        %v3490 = vpop.f32.mrb[0].mxu0
        %v3491 = vadd.f32 %v3402, %v3490
        %v3492 = vpop.f32.mrb[0].mxu0
        %3493 = vmatprep.mubr.f32.mxu0 0.0
        %3494 = vmatmul.mubr.f32.gmra.mrb[0].mxu0 %v933
        %v3495 = vpop.f32.mrb[0].mxu0
        %v3496 = vadd.f32 %v3402, %v3495
        %v3497 = vpop.f32.mrb[0].mxu0
        %3498 = vmatprep.mubr.f32.mxu0 0.0
        %3499 = vmatmul.mubr.f32.gmra.mrb[0].mxu0 %v936
        %v3500 = vpop.f32.mrb[0].mxu0
        %v3501 = vadd.f32 %v3402, %v3500
        %v3502 = vpop.f32.mrb[0].mxu0
        %3503 = vmatprep.mubr.f32.mxu0 0.0
        %3504 = vmatmul.mubr.f32.gmra.mrb[0].mxu0 %v939
        %v3505 = vpop.f32.mrb[0].mxu0
        %v3506 = vadd.f32 %v3402, %v3505
        %v3507 = vpop.f32.mrb[0].mxu0
        %3508 = vmatprep.mubr.f32.mxu0 0.0
        %3509 = vmatmul.mubr.f32.gmra.mrb[0].mxu0 %v942
        %v3510 = vpop.f32.mrb[0].mxu0
        %v3511 = vadd.f32 %v3402, %v3510
        %v3512 = vpop.f32.mrb[0].mxu0
        %3513 = vmatprep.mubr.f32.mxu0 0.0
        %3514 = vmatmul.mubr.f32.gmra.mrb[0].mxu0 %v945
        %v3515 = vpop.f32.mrb[0].mxu0
        %v3516 = vadd.f32 %v3402, %v3515
        %v3517 = vpop.f32.mrb[0].mxu0
        %3518 = vmatprep.mubr.f32.mxu0 0.0
        %3519 = vmatmul.mubr.f32.gmra.mrb[0].mxu0 %v948
        %v3520 = vpop.f32.mrb[0].mxu0
        %v3521 = vadd.f32 %v3402, %v3520
        %v3522 = vpop.f32.mrb[0].mxu0
        %3523 = vmatprep.mubr.f32.mxu0 0.0
        %3524 = vmatmul.mubr.f32.gmra.mrb[0].mxu0 %v951
        %v3525 = vpop.f32.mrb[0].mxu0
        %v3526 = vadd.f32 %v3402, %v3525
        %v3527 = vpop.f32.mrb[0].mxu0
        %3528 = vmatprep.mubr.f32.mxu0 0.0
        %3529 = vmatmul.mubr.f32.gmra.mrb[0].mxu0 %v954
        %v3530 = vpop.f32.mrb[0].mxu0
        %v3531 = vadd.f32 %v3402, %v3530
        %v3532 = vpop.f32.mrb[0].mxu0
        %3533 = vmatprep.mubr.f32.mxu0 0.0
        %3534 = vmatmul.mubr.f32.gmra.mrb[0].mxu0 %v957
        %v3535 = vpop.f32.mrb[0].mxu0
        %v3536 = vadd.f32 %v3402, %v3535
        %v3537 = vpop.f32.mrb[0].mxu0
        %3538 = vmatprep.mubr.f32.mxu0 0.0
        %3539 = vmatmul.mubr.f32.gmra.mrb[0].mxu0 %v960
        %v3540 = vpop.f32.mrb[0].mxu0
        %v3541 = vadd.f32 %v3402, %v3540
        %v3542 = vpop.f32.mrb[0].mxu0
        %3543 = vmatprep.mubr.f32.mxu0 0.0
        %3544 = vmatmul.mubr.f32.gmra.mrb[0].mxu0 %v963
        %v3545 = vpop.f32.mrb[0].mxu0
        %v3546 = vadd.f32 %v3402, %v3545
        %v3547 = vpop.f32.mrb[0].mxu0
        %3548 = vdwg.mxu0
        %v3549 = vmul.f32 %v3083, 0.25
        %v3550 = vmul.f32 %v3088, 0.25
        %v3551 = vmul.f32 %v3093, 0.25
        %v3552 = vmul.f32 %v3098, 0.25
        %v3553 = vmul.f32 %v3103, 0.25
        %v3554 = vmul.f32 %v3108, 0.25
        %v3555 = vmul.f32 %v3113, 0.25
        %v3556 = vmul.f32 %v3118, 0.25
        %v3557 = vmul.f32 %v3123, 0.25
        %v3558 = vmul.f32 %v3128, 0.25
        %v3559 = vmul.f32 %v3133, 0.25
        %v3560 = vmul.f32 %v3138, 0.25
        %v3561 = vmul.f32 %v3143, 0.25
        %v3562 = vmul.f32 %v3148, 0.25
        %v3563 = vmul.f32 %v3153, 0.25
        %v3564 = vmul.f32 %v3158, 0.25
        %v3566 = vsel %vm1446, %v3549, 0
        %v3569 = vsel %vm1446, %v3550, 0
        %v3572 = vsel %vm1446, %v3277, 0
        %v3575 = vsel %vm1446, %v3282, 0
        %3577 = vmatprep.subr.mxu0 0.0
        %3578 = vmatpush1.xpose.msra.mxu0 %v3572
        %3579 = vmatprep.subr.mxu0 0.0
        %3580 = vmatpush1.xpose.msra.mxu0 %v3575
        %3581 = vmatprep.subr.mxu0 0.0
        %3582 = vmatpush1.xpose.msra.mxu0 0.0
        %3583 = vmatprep.subr.mxu0 0.0
        %3584 = vmatpush1.xpose.msra.mxu0 0.0
        %3585 = vmatprep.subr.mxu0 0.0
        %3586 = vmatpush1.xpose.msra.mxu0 0.0
        %3587 = vmatprep.subr.mxu0 0.0
        %3588 = vmatpush1.xpose.msra.mxu0 0.0
        %3589 = vmatprep.subr.mxu0 0.0
        %3590 = vmatpush1.xpose.msra.mxu0 0.0
        %3591 = vmatprep.subr.mxu0 0.0
        %3592 = vmatpush1.xpose.msra.mxu0 0.0
        %3593 = vmatprep.subr.mxu0 0.0
        %3594 = vmatpush1.xpose.msra.mxu0 0.0
        %3595 = vmatprep.subr.mxu0 0.0
        %3596 = vmatpush1.xpose.msra.mxu0 0.0
        %3597 = vmatprep.subr.mxu0 0.0
        %3598 = vmatpush1.xpose.msra.mxu0 0.0
        %3599 = vmatprep.subr.mxu0 0.0
        %3600 = vmatpush1.xpose.msra.mxu0 0.0
        %3601 = vmatprep.subr.mxu0 0.0
        %3602 = vmatpush1.xpose.msra.mxu0 0.0
        %3603 = vmatprep.subr.mxu0 0.0
        %3604 = vmatpush1.xpose.msra.mxu0 0.0
        %3605 = vmatprep.subr.mxu0 0.0
        %3606 = vmatpush1.xpose.msra.mxu0 0.0
        %3607 = vmatprep.subr.mxu0 0.0
        %3608 = vmatpush1.xpose.msra.mxu0 0.0
        %3609 = vmatprep.subr.mxu0 0.0
        %3610 = vmatpush1.xpose.msra.mxu0 0.0
        %3611 = vmatprep.subr.mxu0 0.0
        %3612 = vmatpush1.xpose.msra.mxu0 0.0
        %3613 = vmatprep.subr.mxu0 0.0
        %3614 = vmatpush1.xpose.msra.mxu0 0.0
        %3615 = vmatprep.subr.mxu0 0.0
        %3616 = vmatpush1.xpose.msra.mxu0 0.0
        %3617 = vmatprep.subr.mxu0 0.0
        %3618 = vmatpush1.xpose.msra.mxu0 0.0
        %3619 = vmatprep.subr.mxu0 0.0
        %3620 = vmatpush1.xpose.msra.mxu0 0.0
        %3621 = vmatprep.subr.mxu0 0.0
        %3622 = vmatpush1.xpose.msra.mxu0 0.0
        %3623 = vmatprep.subr.mxu0 0.0
        %3624 = vmatpush1.xpose.msra.mxu0 0.0
        %3625 = vmatprep.subr.mxu0 0.0
        %3626 = vmatpush1.xpose.msra.mxu0 0.0
        %3627 = vmatprep.subr.mxu0 0.0
        %3628 = vmatpush1.xpose.msra.mxu0 0.0
        %3629 = vmatprep.subr.mxu0 0.0
        %3630 = vmatpush1.xpose.msra.mxu0 0.0
        %3631 = vmatprep.subr.mxu0 0.0
        %3632 = vmatpush1.xpose.msra.mxu0 0.0
        %3633 = vmatprep.subr.mxu0 0.0
        %3634 = vmatpush1.xpose.msra.mxu0 0.0
        %3635 = vmatprep.subr.mxu0 0.0
        %3636 = vmatpush1.xpose.msra.mxu0 0.0
        %3637 = vmatprep.subr.mxu0 0.0
        %3638 = vmatpush1.xpose.msra.mxu0 0.0
        %3639 = vmatprep.subr.mxu0 0.0
        %3640 = vmatpush1.xpose.msra.mxu0 0.0
        %3641 = vmatprep.mubr.f32.mxu0 0.0
        %3642 = vmatmul.mubr.f32.gmra.mrb[0].mxu0 %v3566
        %v3643 = vpop.f32.mrb[0].mxu0
        %v3644 = vadd.f32 0.0, %v3643
        %v3645 = vpop.f32.mrb[0].mxu0
        %3646 = vmatprep.mubr.f32.mxu0 0.0
        %3647 = vmatmul.mubr.f32.gmra.mrb[0].mxu0 %v3569
        %v3648 = vpop.f32.mrb[0].mxu0
        %v3649 = vadd.f32 0.0, %v3648
        %v3650 = vpop.f32.mrb[0].mxu0
        %3651 = vdwg.mxu0
        %v3653 = vsel %vm1446, %v3551, 0
        %v3656 = vsel %vm1446, %v3552, 0
        %v3659 = vsel %vm1446, %v3287, 0
        %v3662 = vsel %vm1446, %v3292, 0
        %3664 = vmatprep.subr.mxu0 0.0
        %3665 = vmatpush1.xpose.msra.mxu0 %v3659
        %3666 = vmatprep.subr.mxu0 0.0
        %3667 = vmatpush1.xpose.msra.mxu0 %v3662
        %3668 = vmatprep.subr.mxu0 0.0
        %3669 = vmatpush1.xpose.msra.mxu0 0.0
        %3670 = vmatprep.subr.mxu0 0.0
        %3671 = vmatpush1.xpose.msra.mxu0 0.0
        %3672 = vmatprep.subr.mxu0 0.0
        %3673 = vmatpush1.xpose.msra.mxu0 0.0
        %3674 = vmatprep.subr.mxu0 0.0
        %3675 = vmatpush1.xpose.msra.mxu0 0.0
        %3676 = vmatprep.subr.mxu0 0.0
        %3677 = vmatpush1.xpose.msra.mxu0 0.0
        %3678 = vmatprep.subr.mxu0 0.0
        %3679 = vmatpush1.xpose.msra.mxu0 0.0
        %3680 = vmatprep.subr.mxu0 0.0
        %3681 = vmatpush1.xpose.msra.mxu0 0.0
        %3682 = vmatprep.subr.mxu0 0.0
        %3683 = vmatpush1.xpose.msra.mxu0 0.0
        %3684 = vmatprep.subr.mxu0 0.0
        %3685 = vmatpush1.xpose.msra.mxu0 0.0
        %3686 = vmatprep.subr.mxu0 0.0
        %3687 = vmatpush1.xpose.msra.mxu0 0.0
        %3688 = vmatprep.subr.mxu0 0.0
        %3689 = vmatpush1.xpose.msra.mxu0 0.0
        %3690 = vmatprep.subr.mxu0 0.0
        %3691 = vmatpush1.xpose.msra.mxu0 0.0
        %3692 = vmatprep.subr.mxu0 0.0
        %3693 = vmatpush1.xpose.msra.mxu0 0.0
        %3694 = vmatprep.subr.mxu0 0.0
        %3695 = vmatpush1.xpose.msra.mxu0 0.0
        %3696 = vmatprep.subr.mxu0 0.0
        %3697 = vmatpush1.xpose.msra.mxu0 0.0
        %3698 = vmatprep.subr.mxu0 0.0
        %3699 = vmatpush1.xpose.msra.mxu0 0.0
        %3700 = vmatprep.subr.mxu0 0.0
        %3701 = vmatpush1.xpose.msra.mxu0 0.0
        %3702 = vmatprep.subr.mxu0 0.0
        %3703 = vmatpush1.xpose.msra.mxu0 0.0
        %3704 = vmatprep.subr.mxu0 0.0
        %3705 = vmatpush1.xpose.msra.mxu0 0.0
        %3706 = vmatprep.subr.mxu0 0.0
        %3707 = vmatpush1.xpose.msra.mxu0 0.0
        %3708 = vmatprep.subr.mxu0 0.0
        %3709 = vmatpush1.xpose.msra.mxu0 0.0
        %3710 = vmatprep.subr.mxu0 0.0
        %3711 = vmatpush1.xpose.msra.mxu0 0.0
        %3712 = vmatprep.subr.mxu0 0.0
        %3713 = vmatpush1.xpose.msra.mxu0 0.0
        %3714 = vmatprep.subr.mxu0 0.0
        %3715 = vmatpush1.xpose.msra.mxu0 0.0
        %3716 = vmatprep.subr.mxu0 0.0
        %3717 = vmatpush1.xpose.msra.mxu0 0.0
        %3718 = vmatprep.subr.mxu0 0.0
        %3719 = vmatpush1.xpose.msra.mxu0 0.0
        %3720 = vmatprep.subr.mxu0 0.0
        %3721 = vmatpush1.xpose.msra.mxu0 0.0
        %3722 = vmatprep.subr.mxu0 0.0
        %3723 = vmatpush1.xpose.msra.mxu0 0.0
        %3724 = vmatprep.subr.mxu0 0.0
        %3725 = vmatpush1.xpose.msra.mxu0 0.0
        %3726 = vmatprep.subr.mxu0 0.0
        %3727 = vmatpush1.xpose.msra.mxu0 0.0
        %3728 = vmatprep.mubr.f32.mxu0 0.0
        %3729 = vmatmul.mubr.f32.gmra.mrb[0].mxu0 %v3653
        %v3730 = vpop.f32.mrb[0].mxu0
        %v3731 = vadd.f32 0.0, %v3730
        %v3732 = vpop.f32.mrb[0].mxu0
        %3733 = vmatprep.mubr.f32.mxu0 0.0
        %3734 = vmatmul.mubr.f32.gmra.mrb[0].mxu0 %v3656
        %v3735 = vpop.f32.mrb[0].mxu0
        %v3736 = vadd.f32 0.0, %v3735
        %v3737 = vpop.f32.mrb[0].mxu0
        %3738 = vdwg.mxu0
        %v3740 = vsel %vm1446, %v3553, 0
        %v3743 = vsel %vm1446, %v3554, 0
        %v3746 = vsel %vm1446, %v3297, 0
        %v3749 = vsel %vm1446, %v3302, 0
        %3751 = vmatprep.subr.mxu0 0.0
        %3752 = vmatpush1.xpose.msra.mxu0 %v3746
        %3753 = vmatprep.subr.mxu0 0.0
        %3754 = vmatpush1.xpose.msra.mxu0 %v3749
        %3755 = vmatprep.subr.mxu0 0.0
        %3756 = vmatpush1.xpose.msra.mxu0 0.0
        %3757 = vmatprep.subr.mxu0 0.0
        %3758 = vmatpush1.xpose.msra.mxu0 0.0
        %3759 = vmatprep.subr.mxu0 0.0
        %3760 = vmatpush1.xpose.msra.mxu0 0.0
        %3761 = vmatprep.subr.mxu0 0.0
        %3762 = vmatpush1.xpose.msra.mxu0 0.0
        %3763 = vmatprep.subr.mxu0 0.0
        %3764 = vmatpush1.xpose.msra.mxu0 0.0
        %3765 = vmatprep.subr.mxu0 0.0
        %3766 = vmatpush1.xpose.msra.mxu0 0.0
        %3767 = vmatprep.subr.mxu0 0.0
        %3768 = vmatpush1.xpose.msra.mxu0 0.0
        %3769 = vmatprep.subr.mxu0 0.0
        %3770 = vmatpush1.xpose.msra.mxu0 0.0
        %3771 = vmatprep.subr.mxu0 0.0
        %3772 = vmatpush1.xpose.msra.mxu0 0.0
        %3773 = vmatprep.subr.mxu0 0.0
        %3774 = vmatpush1.xpose.msra.mxu0 0.0
        %3775 = vmatprep.subr.mxu0 0.0
        %3776 = vmatpush1.xpose.msra.mxu0 0.0
        %3777 = vmatprep.subr.mxu0 0.0
        %3778 = vmatpush1.xpose.msra.mxu0 0.0
        %3779 = vmatprep.subr.mxu0 0.0
        %3780 = vmatpush1.xpose.msra.mxu0 0.0
        %3781 = vmatprep.subr.mxu0 0.0
        %3782 = vmatpush1.xpose.msra.mxu0 0.0
        %3783 = vmatprep.subr.mxu0 0.0
        %3784 = vmatpush1.xpose.msra.mxu0 0.0
        %3785 = vmatprep.subr.mxu0 0.0
        %3786 = vmatpush1.xpose.msra.mxu0 0.0
        %3787 = vmatprep.subr.mxu0 0.0
        %3788 = vmatpush1.xpose.msra.mxu0 0.0
        %3789 = vmatprep.subr.mxu0 0.0
        %3790 = vmatpush1.xpose.msra.mxu0 0.0
        %3791 = vmatprep.subr.mxu0 0.0
        %3792 = vmatpush1.xpose.msra.mxu0 0.0
        %3793 = vmatprep.subr.mxu0 0.0
        %3794 = vmatpush1.xpose.msra.mxu0 0.0
        %3795 = vmatprep.subr.mxu0 0.0
        %3796 = vmatpush1.xpose.msra.mxu0 0.0
        %3797 = vmatprep.subr.mxu0 0.0
        %3798 = vmatpush1.xpose.msra.mxu0 0.0
        %3799 = vmatprep.subr.mxu0 0.0
        %3800 = vmatpush1.xpose.msra.mxu0 0.0
        %3801 = vmatprep.subr.mxu0 0.0
        %3802 = vmatpush1.xpose.msra.mxu0 0.0
        %3803 = vmatprep.subr.mxu0 0.0
        %3804 = vmatpush1.xpose.msra.mxu0 0.0
        %3805 = vmatprep.subr.mxu0 0.0
        %3806 = vmatpush1.xpose.msra.mxu0 0.0
        %3807 = vmatprep.subr.mxu0 0.0
        %3808 = vmatpush1.xpose.msra.mxu0 0.0
        %3809 = vmatprep.subr.mxu0 0.0
        %3810 = vmatpush1.xpose.msra.mxu0 0.0
        %3811 = vmatprep.subr.mxu0 0.0
        %3812 = vmatpush1.xpose.msra.mxu0 0.0
        %3813 = vmatprep.subr.mxu0 0.0
        %3814 = vmatpush1.xpose.msra.mxu0 0.0
        %3815 = vmatprep.mubr.f32.mxu0 0.0
        %3816 = vmatmul.mubr.f32.gmra.mrb[0].mxu0 %v3740
        %v3817 = vpop.f32.mrb[0].mxu0
        %v3818 = vadd.f32 0.0, %v3817
        %v3819 = vpop.f32.mrb[0].mxu0
        %3820 = vmatprep.mubr.f32.mxu0 0.0
        %3821 = vmatmul.mubr.f32.gmra.mrb[0].mxu0 %v3743
        %v3822 = vpop.f32.mrb[0].mxu0
        %v3823 = vadd.f32 0.0, %v3822
        %v3824 = vpop.f32.mrb[0].mxu0
        %3825 = vdwg.mxu0
        %v3827 = vsel %vm1446, %v3555, 0
        %v3830 = vsel %vm1446, %v3556, 0
        %v3833 = vsel %vm1446, %v3307, 0
        %v3836 = vsel %vm1446, %v3312, 0
        %3838 = vmatprep.subr.mxu0 0.0
        %3839 = vmatpush1.xpose.msra.mxu0 %v3833
        %3840 = vmatprep.subr.mxu0 0.0
        %3841 = vmatpush1.xpose.msra.mxu0 %v3836
        %3842 = vmatprep.subr.mxu0 0.0
        %3843 = vmatpush1.xpose.msra.mxu0 0.0
        %3844 = vmatprep.subr.mxu0 0.0
        %3845 = vmatpush1.xpose.msra.mxu0 0.0
        %3846 = vmatprep.subr.mxu0 0.0
        %3847 = vmatpush1.xpose.msra.mxu0 0.0
        %3848 = vmatprep.subr.mxu0 0.0
        %3849 = vmatpush1.xpose.msra.mxu0 0.0
        %3850 = vmatprep.subr.mxu0 0.0
        %3851 = vmatpush1.xpose.msra.mxu0 0.0
        %3852 = vmatprep.subr.mxu0 0.0
        %3853 = vmatpush1.xpose.msra.mxu0 0.0
        %3854 = vmatprep.subr.mxu0 0.0
        %3855 = vmatpush1.xpose.msra.mxu0 0.0
        %3856 = vmatprep.subr.mxu0 0.0
        %3857 = vmatpush1.xpose.msra.mxu0 0.0
        %3858 = vmatprep.subr.mxu0 0.0
        %3859 = vmatpush1.xpose.msra.mxu0 0.0
        %3860 = vmatprep.subr.mxu0 0.0
        %3861 = vmatpush1.xpose.msra.mxu0 0.0
        %3862 = vmatprep.subr.mxu0 0.0
        %3863 = vmatpush1.xpose.msra.mxu0 0.0
        %3864 = vmatprep.subr.mxu0 0.0
        %3865 = vmatpush1.xpose.msra.mxu0 0.0
        %3866 = vmatprep.subr.mxu0 0.0
        %3867 = vmatpush1.xpose.msra.mxu0 0.0
        %3868 = vmatprep.subr.mxu0 0.0
        %3869 = vmatpush1.xpose.msra.mxu0 0.0
        %3870 = vmatprep.subr.mxu0 0.0
        %3871 = vmatpush1.xpose.msra.mxu0 0.0
        %3872 = vmatprep.subr.mxu0 0.0
        %3873 = vmatpush1.xpose.msra.mxu0 0.0
        %3874 = vmatprep.subr.mxu0 0.0
        %3875 = vmatpush1.xpose.msra.mxu0 0.0
        %3876 = vmatprep.subr.mxu0 0.0
        %3877 = vmatpush1.xpose.msra.mxu0 0.0
        %3878 = vmatprep.subr.mxu0 0.0
        %3879 = vmatpush1.xpose.msra.mxu0 0.0
        %3880 = vmatprep.subr.mxu0 0.0
        %3881 = vmatpush1.xpose.msra.mxu0 0.0
        %3882 = vmatprep.subr.mxu0 0.0
        %3883 = vmatpush1.xpose.msra.mxu0 0.0
        %3884 = vmatprep.subr.mxu0 0.0
        %3885 = vmatpush1.xpose.msra.mxu0 0.0
        %3886 = vmatprep.subr.mxu0 0.0
        %3887 = vmatpush1.xpose.msra.mxu0 0.0
        %3888 = vmatprep.subr.mxu0 0.0
        %3889 = vmatpush1.xpose.msra.mxu0 0.0
        %3890 = vmatprep.subr.mxu0 0.0
        %3891 = vmatpush1.xpose.msra.mxu0 0.0
        %3892 = vmatprep.subr.mxu0 0.0
        %3893 = vmatpush1.xpose.msra.mxu0 0.0
        %3894 = vmatprep.subr.mxu0 0.0
        %3895 = vmatpush1.xpose.msra.mxu0 0.0
        %3896 = vmatprep.subr.mxu0 0.0
        %3897 = vmatpush1.xpose.msra.mxu0 0.0
        %3898 = vmatprep.subr.mxu0 0.0
        %3899 = vmatpush1.xpose.msra.mxu0 0.0
        %3900 = vmatprep.subr.mxu0 0.0
        %3901 = vmatpush1.xpose.msra.mxu0 0.0
        %3902 = vmatprep.mubr.f32.mxu0 0.0
        %3903 = vmatmul.mubr.f32.gmra.mrb[0].mxu0 %v3827
        %v3904 = vpop.f32.mrb[0].mxu0
        %v3905 = vadd.f32 0.0, %v3904
        %v3906 = vpop.f32.mrb[0].mxu0
        %3907 = vmatprep.mubr.f32.mxu0 0.0
        %3908 = vmatmul.mubr.f32.gmra.mrb[0].mxu0 %v3830
        %v3909 = vpop.f32.mrb[0].mxu0
        %v3910 = vadd.f32 0.0, %v3909
        %v3911 = vpop.f32.mrb[0].mxu0
        %3912 = vdwg.mxu0
        %v3914 = vsel %vm1446, %v3557, 0
        %v3917 = vsel %vm1446, %v3558, 0
        %v3920 = vsel %vm1446, %v3317, 0
        %v3923 = vsel %vm1446, %v3322, 0
        %3925 = vmatprep.subr.mxu0 0.0
        %3926 = vmatpush1.xpose.msra.mxu0 %v3920
        %3927 = vmatprep.subr.mxu0 0.0
        %3928 = vmatpush1.xpose.msra.mxu0 %v3923
        %3929 = vmatprep.subr.mxu0 0.0
        %3930 = vmatpush1.xpose.msra.mxu0 0.0
        %3931 = vmatprep.subr.mxu0 0.0
        %3932 = vmatpush1.xpose.msra.mxu0 0.0
        %3933 = vmatprep.subr.mxu0 0.0
        %3934 = vmatpush1.xpose.msra.mxu0 0.0
        %3935 = vmatprep.subr.mxu0 0.0
        %3936 = vmatpush1.xpose.msra.mxu0 0.0
        %3937 = vmatprep.subr.mxu0 0.0
        %3938 = vmatpush1.xpose.msra.mxu0 0.0
        %3939 = vmatprep.subr.mxu0 0.0
        %3940 = vmatpush1.xpose.msra.mxu0 0.0
        %3941 = vmatprep.subr.mxu0 0.0
        %3942 = vmatpush1.xpose.msra.mxu0 0.0
        %3943 = vmatprep.subr.mxu0 0.0
        %3944 = vmatpush1.xpose.msra.mxu0 0.0
        %3945 = vmatprep.subr.mxu0 0.0
        %3946 = vmatpush1.xpose.msra.mxu0 0.0
        %3947 = vmatprep.subr.mxu0 0.0
        %3948 = vmatpush1.xpose.msra.mxu0 0.0
        %3949 = vmatprep.subr.mxu0 0.0
        %3950 = vmatpush1.xpose.msra.mxu0 0.0
        %3951 = vmatprep.subr.mxu0 0.0
        %3952 = vmatpush1.xpose.msra.mxu0 0.0
        %3953 = vmatprep.subr.mxu0 0.0
        %3954 = vmatpush1.xpose.msra.mxu0 0.0
        %3955 = vmatprep.subr.mxu0 0.0
        %3956 = vmatpush1.xpose.msra.mxu0 0.0
        %3957 = vmatprep.subr.mxu0 0.0
        %3958 = vmatpush1.xpose.msra.mxu0 0.0
        %3959 = vmatprep.subr.mxu0 0.0
        %3960 = vmatpush1.xpose.msra.mxu0 0.0
        %3961 = vmatprep.subr.mxu0 0.0
        %3962 = vmatpush1.xpose.msra.mxu0 0.0
        %3963 = vmatprep.subr.mxu0 0.0
        %3964 = vmatpush1.xpose.msra.mxu0 0.0
        %3965 = vmatprep.subr.mxu0 0.0
        %3966 = vmatpush1.xpose.msra.mxu0 0.0
        %3967 = vmatprep.subr.mxu0 0.0
        %3968 = vmatpush1.xpose.msra.mxu0 0.0
        %3969 = vmatprep.subr.mxu0 0.0
        %3970 = vmatpush1.xpose.msra.mxu0 0.0
        %3971 = vmatprep.subr.mxu0 0.0
        %3972 = vmatpush1.xpose.msra.mxu0 0.0
        %3973 = vmatprep.subr.mxu0 0.0
        %3974 = vmatpush1.xpose.msra.mxu0 0.0
        %3975 = vmatprep.subr.mxu0 0.0
        %3976 = vmatpush1.xpose.msra.mxu0 0.0
        %3977 = vmatprep.subr.mxu0 0.0
        %3978 = vmatpush1.xpose.msra.mxu0 0.0
        %3979 = vmatprep.subr.mxu0 0.0
        %3980 = vmatpush1.xpose.msra.mxu0 0.0
        %3981 = vmatprep.subr.mxu0 0.0
        %3982 = vmatpush1.xpose.msra.mxu0 0.0
        %3983 = vmatprep.subr.mxu0 0.0
        %3984 = vmatpush1.xpose.msra.mxu0 0.0
        %3985 = vmatprep.subr.mxu0 0.0
        %3986 = vmatpush1.xpose.msra.mxu0 0.0
        %3987 = vmatprep.subr.mxu0 0.0
        %3988 = vmatpush1.xpose.msra.mxu0 0.0
        %3989 = vmatprep.mubr.f32.mxu0 0.0
        %3990 = vmatmul.mubr.f32.gmra.mrb[0].mxu0 %v3914
        %v3991 = vpop.f32.mrb[0].mxu0
        %v3992 = vadd.f32 0.0, %v3991
        %v3993 = vpop.f32.mrb[0].mxu0
        %3994 = vmatprep.mubr.f32.mxu0 0.0
        %3995 = vmatmul.mubr.f32.gmra.mrb[0].mxu0 %v3917
        %v3996 = vpop.f32.mrb[0].mxu0
        %v3997 = vadd.f32 0.0, %v3996
        %v3998 = vpop.f32.mrb[0].mxu0
        %3999 = vdwg.mxu0
        %v4001 = vsel %vm1446, %v3559, 0
        %v4004 = vsel %vm1446, %v3560, 0
        %v4007 = vsel %vm1446, %v3327, 0
        %v4010 = vsel %vm1446, %v3332, 0
        %4012 = vmatprep.subr.mxu0 0.0
        %4013 = vmatpush1.xpose.msra.mxu0 %v4007
        %4014 = vmatprep.subr.mxu0 0.0
        %4015 = vmatpush1.xpose.msra.mxu0 %v4010
        %4016 = vmatprep.subr.mxu0 0.0
        %4017 = vmatpush1.xpose.msra.mxu0 0.0
        %4018 = vmatprep.subr.mxu0 0.0
        %4019 = vmatpush1.xpose.msra.mxu0 0.0
        %4020 = vmatprep.subr.mxu0 0.0
        %4021 = vmatpush1.xpose.msra.mxu0 0.0
        %4022 = vmatprep.subr.mxu0 0.0
        %4023 = vmatpush1.xpose.msra.mxu0 0.0
        %4024 = vmatprep.subr.mxu0 0.0
        %4025 = vmatpush1.xpose.msra.mxu0 0.0
        %4026 = vmatprep.subr.mxu0 0.0
        %4027 = vmatpush1.xpose.msra.mxu0 0.0
        %4028 = vmatprep.subr.mxu0 0.0
        %4029 = vmatpush1.xpose.msra.mxu0 0.0
        %4030 = vmatprep.subr.mxu0 0.0
        %4031 = vmatpush1.xpose.msra.mxu0 0.0
        %4032 = vmatprep.subr.mxu0 0.0
        %4033 = vmatpush1.xpose.msra.mxu0 0.0
        %4034 = vmatprep.subr.mxu0 0.0
        %4035 = vmatpush1.xpose.msra.mxu0 0.0
        %4036 = vmatprep.subr.mxu0 0.0
        %4037 = vmatpush1.xpose.msra.mxu0 0.0
        %4038 = vmatprep.subr.mxu0 0.0
        %4039 = vmatpush1.xpose.msra.mxu0 0.0
        %4040 = vmatprep.subr.mxu0 0.0
        %4041 = vmatpush1.xpose.msra.mxu0 0.0
        %4042 = vmatprep.subr.mxu0 0.0
        %4043 = vmatpush1.xpose.msra.mxu0 0.0
        %4044 = vmatprep.subr.mxu0 0.0
        %4045 = vmatpush1.xpose.msra.mxu0 0.0
        %4046 = vmatprep.subr.mxu0 0.0
        %4047 = vmatpush1.xpose.msra.mxu0 0.0
        %4048 = vmatprep.subr.mxu0 0.0
        %4049 = vmatpush1.xpose.msra.mxu0 0.0
        %4050 = vmatprep.subr.mxu0 0.0
        %4051 = vmatpush1.xpose.msra.mxu0 0.0
        %4052 = vmatprep.subr.mxu0 0.0
        %4053 = vmatpush1.xpose.msra.mxu0 0.0
        %4054 = vmatprep.subr.mxu0 0.0
        %4055 = vmatpush1.xpose.msra.mxu0 0.0
        %4056 = vmatprep.subr.mxu0 0.0
        %4057 = vmatpush1.xpose.msra.mxu0 0.0
        %4058 = vmatprep.subr.mxu0 0.0
        %4059 = vmatpush1.xpose.msra.mxu0 0.0
        %4060 = vmatprep.subr.mxu0 0.0
        %4061 = vmatpush1.xpose.msra.mxu0 0.0
        %4062 = vmatprep.subr.mxu0 0.0
        %4063 = vmatpush1.xpose.msra.mxu0 0.0
        %4064 = vmatprep.subr.mxu0 0.0
        %4065 = vmatpush1.xpose.msra.mxu0 0.0
        %4066 = vmatprep.subr.mxu0 0.0
        %4067 = vmatpush1.xpose.msra.mxu0 0.0
        %4068 = vmatprep.subr.mxu0 0.0
        %4069 = vmatpush1.xpose.msra.mxu0 0.0
        %4070 = vmatprep.subr.mxu0 0.0
        %4071 = vmatpush1.xpose.msra.mxu0 0.0
        %4072 = vmatprep.subr.mxu0 0.0
        %4073 = vmatpush1.xpose.msra.mxu0 0.0
        %4074 = vmatprep.subr.mxu0 0.0
        %4075 = vmatpush1.xpose.msra.mxu0 0.0
        %4076 = vmatprep.mubr.f32.mxu0 0.0
        %4077 = vmatmul.mubr.f32.gmra.mrb[0].mxu0 %v4001
        %v4078 = vpop.f32.mrb[0].mxu0
        %v4079 = vadd.f32 0.0, %v4078
        %v4080 = vpop.f32.mrb[0].mxu0
        %4081 = vmatprep.mubr.f32.mxu0 0.0
        %4082 = vmatmul.mubr.f32.gmra.mrb[0].mxu0 %v4004
        %v4083 = vpop.f32.mrb[0].mxu0
        %v4084 = vadd.f32 0.0, %v4083
        %v4085 = vpop.f32.mrb[0].mxu0
        %4086 = vdwg.mxu0
        %v4088 = vsel %vm1446, %v3561, 0
        %v4091 = vsel %vm1446, %v3562, 0
        %v4094 = vsel %vm1446, %v3337, 0
        %v4097 = vsel %vm1446, %v3342, 0
        %4099 = vmatprep.subr.mxu0 0.0
        %4100 = vmatpush1.xpose.msra.mxu0 %v4094
        %4101 = vmatprep.subr.mxu0 0.0
        %4102 = vmatpush1.xpose.msra.mxu0 %v4097
        %4103 = vmatprep.subr.mxu0 0.0
        %4104 = vmatpush1.xpose.msra.mxu0 0.0
        %4105 = vmatprep.subr.mxu0 0.0
        %4106 = vmatpush1.xpose.msra.mxu0 0.0
        %4107 = vmatprep.subr.mxu0 0.0
        %4108 = vmatpush1.xpose.msra.mxu0 0.0
        %4109 = vmatprep.subr.mxu0 0.0
        %4110 = vmatpush1.xpose.msra.mxu0 0.0
        %4111 = vmatprep.subr.mxu0 0.0
        %4112 = vmatpush1.xpose.msra.mxu0 0.0
        %4113 = vmatprep.subr.mxu0 0.0
        %4114 = vmatpush1.xpose.msra.mxu0 0.0
        %4115 = vmatprep.subr.mxu0 0.0
        %4116 = vmatpush1.xpose.msra.mxu0 0.0
        %4117 = vmatprep.subr.mxu0 0.0
        %4118 = vmatpush1.xpose.msra.mxu0 0.0
        %4119 = vmatprep.subr.mxu0 0.0
        %4120 = vmatpush1.xpose.msra.mxu0 0.0
        %4121 = vmatprep.subr.mxu0 0.0
        %4122 = vmatpush1.xpose.msra.mxu0 0.0
        %4123 = vmatprep.subr.mxu0 0.0
        %4124 = vmatpush1.xpose.msra.mxu0 0.0
        %4125 = vmatprep.subr.mxu0 0.0
        %4126 = vmatpush1.xpose.msra.mxu0 0.0
        %4127 = vmatprep.subr.mxu0 0.0
        %4128 = vmatpush1.xpose.msra.mxu0 0.0
        %4129 = vmatprep.subr.mxu0 0.0
        %4130 = vmatpush1.xpose.msra.mxu0 0.0
        %4131 = vmatprep.subr.mxu0 0.0
        %4132 = vmatpush1.xpose.msra.mxu0 0.0
        %4133 = vmatprep.subr.mxu0 0.0
        %4134 = vmatpush1.xpose.msra.mxu0 0.0
        %4135 = vmatprep.subr.mxu0 0.0
        %4136 = vmatpush1.xpose.msra.mxu0 0.0
        %4137 = vmatprep.subr.mxu0 0.0
        %4138 = vmatpush1.xpose.msra.mxu0 0.0
        %4139 = vmatprep.subr.mxu0 0.0
        %4140 = vmatpush1.xpose.msra.mxu0 0.0
        %4141 = vmatprep.subr.mxu0 0.0
        %4142 = vmatpush1.xpose.msra.mxu0 0.0
        %4143 = vmatprep.subr.mxu0 0.0
        %4144 = vmatpush1.xpose.msra.mxu0 0.0
        %4145 = vmatprep.subr.mxu0 0.0
        %4146 = vmatpush1.xpose.msra.mxu0 0.0
        %4147 = vmatprep.subr.mxu0 0.0
        %4148 = vmatpush1.xpose.msra.mxu0 0.0
        %4149 = vmatprep.subr.mxu0 0.0
        %4150 = vmatpush1.xpose.msra.mxu0 0.0
        %4151 = vmatprep.subr.mxu0 0.0
        %4152 = vmatpush1.xpose.msra.mxu0 0.0
        %4153 = vmatprep.subr.mxu0 0.0
        %4154 = vmatpush1.xpose.msra.mxu0 0.0
        %4155 = vmatprep.subr.mxu0 0.0
        %4156 = vmatpush1.xpose.msra.mxu0 0.0
        %4157 = vmatprep.subr.mxu0 0.0
        %4158 = vmatpush1.xpose.msra.mxu0 0.0
        %4159 = vmatprep.subr.mxu0 0.0
        %4160 = vmatpush1.xpose.msra.mxu0 0.0
        %4161 = vmatprep.subr.mxu0 0.0
        %4162 = vmatpush1.xpose.msra.mxu0 0.0
        %4163 = vmatprep.mubr.f32.mxu0 0.0
        %4164 = vmatmul.mubr.f32.gmra.mrb[0].mxu0 %v4088
        %v4165 = vpop.f32.mrb[0].mxu0
        %v4166 = vadd.f32 0.0, %v4165
        %v4167 = vpop.f32.mrb[0].mxu0
        %4168 = vmatprep.mubr.f32.mxu0 0.0
        %4169 = vmatmul.mubr.f32.gmra.mrb[0].mxu0 %v4091
        %v4170 = vpop.f32.mrb[0].mxu0
        %v4171 = vadd.f32 0.0, %v4170
        %v4172 = vpop.f32.mrb[0].mxu0
        %4173 = vdwg.mxu0
        %v4175 = vsel %vm1446, %v3563, 0
        %v4178 = vsel %vm1446, %v3564, 0
        %v4181 = vsel %vm1446, %v3347, 0
        %v4184 = vsel %vm1446, %v3352, 0
        %4186 = vmatprep.subr.mxu0 0.0
        %4187 = vmatpush1.xpose.msra.mxu0 %v4181
        %4188 = vmatprep.subr.mxu0 0.0
        %4189 = vmatpush1.xpose.msra.mxu0 %v4184
        %4190 = vmatprep.subr.mxu0 0.0
        %4191 = vmatpush1.xpose.msra.mxu0 0.0
        %4192 = vmatprep.subr.mxu0 0.0
        %4193 = vmatpush1.xpose.msra.mxu0 0.0
        %4194 = vmatprep.subr.mxu0 0.0
        %4195 = vmatpush1.xpose.msra.mxu0 0.0
        %4196 = vmatprep.subr.mxu0 0.0
        %4197 = vmatpush1.xpose.msra.mxu0 0.0
        %4198 = vmatprep.subr.mxu0 0.0
        %4199 = vmatpush1.xpose.msra.mxu0 0.0
        %4200 = vmatprep.subr.mxu0 0.0
        %4201 = vmatpush1.xpose.msra.mxu0 0.0
        %4202 = vmatprep.subr.mxu0 0.0
        %4203 = vmatpush1.xpose.msra.mxu0 0.0
        %4204 = vmatprep.subr.mxu0 0.0
        %4205 = vmatpush1.xpose.msra.mxu0 0.0
        %4206 = vmatprep.subr.mxu0 0.0
        %4207 = vmatpush1.xpose.msra.mxu0 0.0
        %4208 = vmatprep.subr.mxu0 0.0
        %4209 = vmatpush1.xpose.msra.mxu0 0.0
        %4210 = vmatprep.subr.mxu0 0.0
        %4211 = vmatpush1.xpose.msra.mxu0 0.0
        %4212 = vmatprep.subr.mxu0 0.0
        %4213 = vmatpush1.xpose.msra.mxu0 0.0
        %4214 = vmatprep.subr.mxu0 0.0
        %4215 = vmatpush1.xpose.msra.mxu0 0.0
        %4216 = vmatprep.subr.mxu0 0.0
        %4217 = vmatpush1.xpose.msra.mxu0 0.0
        %4218 = vmatprep.subr.mxu0 0.0
        %4219 = vmatpush1.xpose.msra.mxu0 0.0
        %4220 = vmatprep.subr.mxu0 0.0
        %4221 = vmatpush1.xpose.msra.mxu0 0.0
        %4222 = vmatprep.subr.mxu0 0.0
        %4223 = vmatpush1.xpose.msra.mxu0 0.0
        %4224 = vmatprep.subr.mxu0 0.0
        %4225 = vmatpush1.xpose.msra.mxu0 0.0
        %4226 = vmatprep.subr.mxu0 0.0
        %4227 = vmatpush1.xpose.msra.mxu0 0.0
        %4228 = vmatprep.subr.mxu0 0.0
        %4229 = vmatpush1.xpose.msra.mxu0 0.0
        %4230 = vmatprep.subr.mxu0 0.0
        %4231 = vmatpush1.xpose.msra.mxu0 0.0
        %4232 = vmatprep.subr.mxu0 0.0
        %4233 = vmatpush1.xpose.msra.mxu0 0.0
        %4234 = vmatprep.subr.mxu0 0.0
        %4235 = vmatpush1.xpose.msra.mxu0 0.0
        %4236 = vmatprep.subr.mxu0 0.0
        %4237 = vmatpush1.xpose.msra.mxu0 0.0
        %4238 = vmatprep.subr.mxu0 0.0
        %4239 = vmatpush1.xpose.msra.mxu0 0.0
        %4240 = vmatprep.subr.mxu0 0.0
        %4241 = vmatpush1.xpose.msra.mxu0 0.0
        %4242 = vmatprep.subr.mxu0 0.0
        %4243 = vmatpush1.xpose.msra.mxu0 0.0
        %4244 = vmatprep.subr.mxu0 0.0
        %4245 = vmatpush1.xpose.msra.mxu0 0.0
        %4246 = vmatprep.subr.mxu0 0.0
        %4247 = vmatpush1.xpose.msra.mxu0 0.0
        %4248 = vmatprep.subr.mxu0 0.0
        %4249 = vmatpush1.xpose.msra.mxu0 0.0
        %4250 = vmatprep.mubr.f32.mxu0 0.0
        %4251 = vmatmul.mubr.f32.gmra.mrb[0].mxu0 %v4175
        %v4252 = vpop.f32.mrb[0].mxu0
        %v4253 = vadd.f32 0.0, %v4252
        %v4254 = vpop.f32.mrb[0].mxu0
        %4255 = vmatprep.mubr.f32.mxu0 0.0
        %4256 = vmatmul.mubr.f32.gmra.mrb[0].mxu0 %v4178
        %v4257 = vpop.f32.mrb[0].mxu0
        %v4258 = vadd.f32 0.0, %v4257
        %v4259 = vpop.f32.mrb[0].mxu0
        %4260 = vdwg.mxu0
        %v4261 = vsel %vm1446, %v3644, -inf
        %4262 = vmax.xlane.f32.xlu0 %v4261
        %v4263 = vpop.xlane.xlu0 %4262
        %v4264 = vsel %vm1446, %v3649, -inf
        %4265 = vmax.xlane.f32.xlu0 %v4264
        %v4266 = vpop.xlane.xlu0 %4265
        %v4267 = vsel %vm1446, %v3731, -inf
        %4268 = vmax.xlane.f32.xlu0 %v4267
        %v4269 = vpop.xlane.xlu0 %4268
        %v4270 = vsel %vm1446, %v3736, -inf
        %4271 = vmax.xlane.f32.xlu0 %v4270
        %v4272 = vpop.xlane.xlu0 %4271
        %v4273 = vsel %vm1446, %v3818, -inf
        %4274 = vmax.xlane.f32.xlu0 %v4273
        %v4275 = vpop.xlane.xlu0 %4274
        %v4276 = vsel %vm1446, %v3823, -inf
        %4277 = vmax.xlane.f32.xlu0 %v4276
        %v4278 = vpop.xlane.xlu0 %4277
        %v4279 = vsel %vm1446, %v3905, -inf
        %4280 = vmax.xlane.f32.xlu0 %v4279
        %v4281 = vpop.xlane.xlu0 %4280
        %v4282 = vsel %vm1446, %v3910, -inf
        %4283 = vmax.xlane.f32.xlu0 %v4282
        %v4284 = vpop.xlane.xlu0 %4283
        %v4285 = vsel %vm1446, %v3992, -inf
        %4286 = vmax.xlane.f32.xlu0 %v4285
        %v4287 = vpop.xlane.xlu0 %4286
        %v4288 = vsel %vm1446, %v3997, -inf
        %4289 = vmax.xlane.f32.xlu0 %v4288
        %v4290 = vpop.xlane.xlu0 %4289
        %v4291 = vsel %vm1446, %v4079, -inf
        %4292 = vmax.xlane.f32.xlu0 %v4291
        %v4293 = vpop.xlane.xlu0 %4292
        %v4294 = vsel %vm1446, %v4084, -inf
        %4295 = vmax.xlane.f32.xlu0 %v4294
        %v4296 = vpop.xlane.xlu0 %4295
        %v4297 = vsel %vm1446, %v4166, -inf
        %4298 = vmax.xlane.f32.xlu0 %v4297
        %v4299 = vpop.xlane.xlu0 %4298
        %v4300 = vsel %vm1446, %v4171, -inf
        %4301 = vmax.xlane.f32.xlu0 %v4300
        %v4302 = vpop.xlane.xlu0 %4301
        %v4303 = vsel %vm1446, %v4253, -inf
        %4304 = vmax.xlane.f32.xlu0 %v4303
        %v4305 = vpop.xlane.xlu0 %4304
        %v4306 = vsel %vm1446, %v4258, -inf
        %4307 = vmax.xlane.f32.xlu0 %v4306
        %v4308 = vpop.xlane.xlu0 %4307
        %v4309 = vsub.f32 %v3644, %v4263
        %v4310 = vsub.f32 %v3649, %v4266
        %v4311 = vsub.f32 %v3731, %v4269
        %v4312 = vsub.f32 %v3736, %v4272
        %v4313 = vsub.f32 %v3818, %v4275
        %v4314 = vsub.f32 %v3823, %v4278
        %v4315 = vsub.f32 %v3905, %v4281
        %v4316 = vsub.f32 %v3910, %v4284
        %v4317 = vsub.f32 %v3992, %v4287
        %v4318 = vsub.f32 %v3997, %v4290
        %v4319 = vsub.f32 %v4079, %v4293
        %v4320 = vsub.f32 %v4084, %v4296
        %v4321 = vsub.f32 %v4166, %v4299
        %v4322 = vsub.f32 %v4171, %v4302
        %v4323 = vsub.f32 %v4253, %v4305
        %v4324 = vsub.f32 %v4258, %v4308
        %v4325 = vmul.f32 %v4309, 1.442695
        %v4326 = vpow.pop %v4325
        %v4327 = vmul.f32 %v4310, 1.442695
        %v4328 = vpow.pop %v4327
        %v4329 = vmul.f32 %v4311, 1.442695
        %v4330 = vpow.pop %v4329
        %v4331 = vmul.f32 %v4312, 1.442695
        %v4332 = vpow.pop %v4331
        %v4333 = vmul.f32 %v4313, 1.442695
        %v4334 = vpow.pop %v4333
        %v4335 = vmul.f32 %v4314, 1.442695
        %v4336 = vpow.pop %v4335
        %v4337 = vmul.f32 %v4315, 1.442695
        %v4338 = vpow.pop %v4337
        %v4339 = vmul.f32 %v4316, 1.442695
        %v4340 = vpow.pop %v4339
        %v4341 = vmul.f32 %v4317, 1.442695
        %v4342 = vpow.pop %v4341
        %v4343 = vmul.f32 %v4318, 1.442695
        %v4344 = vpow.pop %v4343
        %v4345 = vmul.f32 %v4319, 1.442695
        %v4346 = vpow.pop %v4345
        %v4347 = vmul.f32 %v4320, 1.442695
        %v4348 = vpow.pop %v4347
        %v4349 = vmul.f32 %v4321, 1.442695
        %v4350 = vpow.pop %v4349
        %v4351 = vmul.f32 %v4322, 1.442695
        %v4352 = vpow.pop %v4351
        %v4353 = vmul.f32 %v4323, 1.442695
        %v4354 = vpow.pop %v4353
        %v4355 = vmul.f32 %v4324, 1.442695
        %v4356 = vpow.pop %v4355
        %v4357 = vsel %vm1446, %v4326, 0.0
        %4358 = vadd.xlane.f32.xlu0 %v4357
        %v4359 = vpop.xlane.xlu0 %4358
        %v4360 = vsel %vm1446, %v4328, 0.0
        %4361 = vadd.xlane.f32.xlu0 %v4360
        %v4362 = vpop.xlane.xlu0 %4361
        %v4363 = vsel %vm1446, %v4330, 0.0
        %4364 = vadd.xlane.f32.xlu0 %v4363
        %v4365 = vpop.xlane.xlu0 %4364
        %v4366 = vsel %vm1446, %v4332, 0.0
        %4367 = vadd.xlane.f32.xlu0 %v4366
        %v4368 = vpop.xlane.xlu0 %4367
        %v4369 = vsel %vm1446, %v4334, 0.0
        %4370 = vadd.xlane.f32.xlu0 %v4369
        %v4371 = vpop.xlane.xlu0 %4370
        %v4372 = vsel %vm1446, %v4336, 0.0
        %4373 = vadd.xlane.f32.xlu0 %v4372
        %v4374 = vpop.xlane.xlu0 %4373
        %v4375 = vsel %vm1446, %v4338, 0.0
        %4376 = vadd.xlane.f32.xlu0 %v4375
        %v4377 = vpop.xlane.xlu0 %4376
        %v4378 = vsel %vm1446, %v4340, 0.0
        %4379 = vadd.xlane.f32.xlu0 %v4378
        %v4380 = vpop.xlane.xlu0 %4379
        %v4381 = vsel %vm1446, %v4342, 0.0
        %4382 = vadd.xlane.f32.xlu0 %v4381
        %v4383 = vpop.xlane.xlu0 %4382
        %v4384 = vsel %vm1446, %v4344, 0.0
        %4385 = vadd.xlane.f32.xlu0 %v4384
        %v4386 = vpop.xlane.xlu0 %4385
        %v4387 = vsel %vm1446, %v4346, 0.0
        %4388 = vadd.xlane.f32.xlu0 %v4387
        %v4389 = vpop.xlane.xlu0 %4388
        %v4390 = vsel %vm1446, %v4348, 0.0
        %4391 = vadd.xlane.f32.xlu0 %v4390
        %v4392 = vpop.xlane.xlu0 %4391
        %v4393 = vsel %vm1446, %v4350, 0.0
        %4394 = vadd.xlane.f32.xlu0 %v4393
        %v4395 = vpop.xlane.xlu0 %4394
        %v4396 = vsel %vm1446, %v4352, 0.0
        %4397 = vadd.xlane.f32.xlu0 %v4396
        %v4398 = vpop.xlane.xlu0 %4397
        %v4399 = vsel %vm1446, %v4354, 0.0
        %4400 = vadd.xlane.f32.xlu0 %v4399
        %v4401 = vpop.xlane.xlu0 %4400
        %v4402 = vsel %vm1446, %v4356, 0.0
        %4403 = vadd.xlane.f32.xlu0 %v4402
        %v4404 = vpop.xlane.xlu0 %4403
        %v4405 = vrcp.pop %v4359
        %v4406 = vrcp.pop %v4362
        %v4407 = vrcp.pop %v4365
        %v4408 = vrcp.pop %v4368
        %v4409 = vrcp.pop %v4371
        %v4410 = vrcp.pop %v4374
        %v4411 = vrcp.pop %v4377
        %v4412 = vrcp.pop %v4380
        %v4413 = vrcp.pop %v4383
        %v4414 = vrcp.pop %v4386
        %v4415 = vrcp.pop %v4389
        %v4416 = vrcp.pop %v4392
        %v4417 = vrcp.pop %v4395
        %v4418 = vrcp.pop %v4398
        %v4419 = vrcp.pop %v4401
        %v4420 = vrcp.pop %v4404
        %v4421 = vmul.f32 %v4326, %v4405
        %v4422 = vmul.f32 %v4328, %v4406
        %v4423 = vmul.f32 %v4330, %v4407
        %v4424 = vmul.f32 %v4332, %v4408
        %v4425 = vmul.f32 %v4334, %v4409
        %v4426 = vmul.f32 %v4336, %v4410
        %v4427 = vmul.f32 %v4338, %v4411
        %v4428 = vmul.f32 %v4340, %v4412
        %v4429 = vmul.f32 %v4342, %v4413
        %v4430 = vmul.f32 %v4344, %v4414
        %v4431 = vmul.f32 %v4346, %v4415
        %v4432 = vmul.f32 %v4348, %v4416
        %v4433 = vmul.f32 %v4350, %v4417
        %v4434 = vmul.f32 %v4352, %v4418
        %v4435 = vmul.f32 %v4354, %v4419
        %v4436 = vmul.f32 %v4356, %v4420
        %v4438 = vsel %vm1446, %v4421, 0
        %v4441 = vsel %vm1446, %v4422, 0
        %4443 = vmatprep.subr.mxu0 0.0
        %4444 = vmatpush1.msra.mxu0 %v3471
        %4445 = vmatprep.subr.mxu0 0.0
        %4446 = vmatpush1.msra.mxu0 %v3476
        %4447 = vmatprep.subr.mxu0 0.0
        %4448 = vmatpush1.msra.mxu0 0.0
        %4449 = vmatprep.subr.mxu0 0.0
        %4450 = vmatpush1.msra.mxu0 0.0
        %4451 = vmatprep.subr.mxu0 0.0
        %4452 = vmatpush1.msra.mxu0 0.0
        %4453 = vmatprep.subr.mxu0 0.0
        %4454 = vmatpush1.msra.mxu0 0.0
        %4455 = vmatprep.subr.mxu0 0.0
        %4456 = vmatpush1.msra.mxu0 0.0
        %4457 = vmatprep.subr.mxu0 0.0
        %4458 = vmatpush1.msra.mxu0 0.0
        %4459 = vmatprep.subr.mxu0 0.0
        %4460 = vmatpush1.msra.mxu0 0.0
        %4461 = vmatprep.subr.mxu0 0.0
        %4462 = vmatpush1.msra.mxu0 0.0
        %4463 = vmatprep.subr.mxu0 0.0
        %4464 = vmatpush1.msra.mxu0 0.0
        %4465 = vmatprep.subr.mxu0 0.0
        %4466 = vmatpush1.msra.mxu0 0.0
        %4467 = vmatprep.subr.mxu0 0.0
        %4468 = vmatpush1.msra.mxu0 0.0
        %4469 = vmatprep.subr.mxu0 0.0
        %4470 = vmatpush1.msra.mxu0 0.0
        %4471 = vmatprep.subr.mxu0 0.0
        %4472 = vmatpush1.msra.mxu0 0.0
        %4473 = vmatprep.subr.mxu0 0.0
        %4474 = vmatpush1.msra.mxu0 0.0
        %4475 = vmatprep.subr.mxu0 0.0
        %4476 = vmatpush1.msra.mxu0 0.0
        %4477 = vmatprep.subr.mxu0 0.0
        %4478 = vmatpush1.msra.mxu0 0.0
        %4479 = vmatprep.subr.mxu0 0.0
        %4480 = vmatpush1.msra.mxu0 0.0
        %4481 = vmatprep.subr.mxu0 0.0
        %4482 = vmatpush1.msra.mxu0 0.0
        %4483 = vmatprep.subr.mxu0 0.0
        %4484 = vmatpush1.msra.mxu0 0.0
        %4485 = vmatprep.subr.mxu0 0.0
        %4486 = vmatpush1.msra.mxu0 0.0
        %4487 = vmatprep.subr.mxu0 0.0
        %4488 = vmatpush1.msra.mxu0 0.0
        %4489 = vmatprep.subr.mxu0 0.0
        %4490 = vmatpush1.msra.mxu0 0.0
        %4491 = vmatprep.subr.mxu0 0.0
        %4492 = vmatpush1.msra.mxu0 0.0
        %4493 = vmatprep.subr.mxu0 0.0
        %4494 = vmatpush1.msra.mxu0 0.0
        %4495 = vmatprep.subr.mxu0 0.0
        %4496 = vmatpush1.msra.mxu0 0.0
        %4497 = vmatprep.subr.mxu0 0.0
        %4498 = vmatpush1.msra.mxu0 0.0
        %4499 = vmatprep.subr.mxu0 0.0
        %4500 = vmatpush1.msra.mxu0 0.0
        %4501 = vmatprep.subr.mxu0 0.0
        %4502 = vmatpush1.msra.mxu0 0.0
        %4503 = vmatprep.subr.mxu0 0.0
        %4504 = vmatpush1.msra.mxu0 0.0
        %4505 = vmatprep.subr.mxu0 0.0
        %4506 = vmatpush1.msra.mxu0 0.0
        %4507 = vmatprep.mubr.f32.mxu0 0.0
        %4508 = vmatmul.mubr.f32.gmra.mrb[0].mxu0 %v4438
        %v4509 = vpop.f32.mrb[0].mxu0
        %v4510 = vadd.f32 0.0, %v4509
        %v4511 = vpop.f32.mrb[0].mxu0
        %4512 = vmatprep.mubr.f32.mxu0 0.0
        %4513 = vmatmul.mubr.f32.gmra.mrb[0].mxu0 %v4441
        %v4514 = vpop.f32.mrb[0].mxu0
        %v4515 = vadd.f32 0.0, %v4514
        %v4516 = vpop.f32.mrb[0].mxu0
        %4517 = vdwg.mxu0
        %v4519 = vsel %vm1446, %v4423, 0
        %v4522 = vsel %vm1446, %v4424, 0
        %4524 = vmatprep.subr.mxu0 0.0
        %4525 = vmatpush1.msra.mxu0 %v3481
        %4526 = vmatprep.subr.mxu0 0.0
        %4527 = vmatpush1.msra.mxu0 %v3486
        %4528 = vmatprep.subr.mxu0 0.0
        %4529 = vmatpush1.msra.mxu0 0.0
        %4530 = vmatprep.subr.mxu0 0.0
        %4531 = vmatpush1.msra.mxu0 0.0
        %4532 = vmatprep.subr.mxu0 0.0
        %4533 = vmatpush1.msra.mxu0 0.0
        %4534 = vmatprep.subr.mxu0 0.0
        %4535 = vmatpush1.msra.mxu0 0.0
        %4536 = vmatprep.subr.mxu0 0.0
        %4537 = vmatpush1.msra.mxu0 0.0
        %4538 = vmatprep.subr.mxu0 0.0
        %4539 = vmatpush1.msra.mxu0 0.0
        %4540 = vmatprep.subr.mxu0 0.0
        %4541 = vmatpush1.msra.mxu0 0.0
        %4542 = vmatprep.subr.mxu0 0.0
        %4543 = vmatpush1.msra.mxu0 0.0
        %4544 = vmatprep.subr.mxu0 0.0
        %4545 = vmatpush1.msra.mxu0 0.0
        %4546 = vmatprep.subr.mxu0 0.0
        %4547 = vmatpush1.msra.mxu0 0.0
        %4548 = vmatprep.subr.mxu0 0.0
        %4549 = vmatpush1.msra.mxu0 0.0
        %4550 = vmatprep.subr.mxu0 0.0
        %4551 = vmatpush1.msra.mxu0 0.0
        %4552 = vmatprep.subr.mxu0 0.0
        %4553 = vmatpush1.msra.mxu0 0.0
        %4554 = vmatprep.subr.mxu0 0.0
        %4555 = vmatpush1.msra.mxu0 0.0
        %4556 = vmatprep.subr.mxu0 0.0
        %4557 = vmatpush1.msra.mxu0 0.0
        %4558 = vmatprep.subr.mxu0 0.0
        %4559 = vmatpush1.msra.mxu0 0.0
        %4560 = vmatprep.subr.mxu0 0.0
        %4561 = vmatpush1.msra.mxu0 0.0
        %4562 = vmatprep.subr.mxu0 0.0
        %4563 = vmatpush1.msra.mxu0 0.0
        %4564 = vmatprep.subr.mxu0 0.0
        %4565 = vmatpush1.msra.mxu0 0.0
        %4566 = vmatprep.subr.mxu0 0.0
        %4567 = vmatpush1.msra.mxu0 0.0
        %4568 = vmatprep.subr.mxu0 0.0
        %4569 = vmatpush1.msra.mxu0 0.0
        %4570 = vmatprep.subr.mxu0 0.0
        %4571 = vmatpush1.msra.mxu0 0.0
        %4572 = vmatprep.subr.mxu0 0.0
        %4573 = vmatpush1.msra.mxu0 0.0
        %4574 = vmatprep.subr.mxu0 0.0
        %4575 = vmatpush1.msra.mxu0 0.0
        %4576 = vmatprep.subr.mxu0 0.0
        %4577 = vmatpush1.msra.mxu0 0.0
        %4578 = vmatprep.subr.mxu0 0.0
        %4579 = vmatpush1.msra.mxu0 0.0
        %4580 = vmatprep.subr.mxu0 0.0
        %4581 = vmatpush1.msra.mxu0 0.0
        %4582 = vmatprep.subr.mxu0 0.0
        %4583 = vmatpush1.msra.mxu0 0.0
        %4584 = vmatprep.subr.mxu0 0.0
        %4585 = vmatpush1.msra.mxu0 0.0
        %4586 = vmatprep.subr.mxu0 0.0
        %4587 = vmatpush1.msra.mxu0 0.0
        %4588 = vmatprep.mubr.f32.mxu0 0.0
        %4589 = vmatmul.mubr.f32.gmra.mrb[0].mxu0 %v4519
        %v4590 = vpop.f32.mrb[0].mxu0
        %v4591 = vadd.f32 0.0, %v4590
        %v4592 = vpop.f32.mrb[0].mxu0
        %4593 = vmatprep.mubr.f32.mxu0 0.0
        %4594 = vmatmul.mubr.f32.gmra.mrb[0].mxu0 %v4522
        %v4595 = vpop.f32.mrb[0].mxu0
        %v4596 = vadd.f32 0.0, %v4595
        %v4597 = vpop.f32.mrb[0].mxu0
        %4598 = vdwg.mxu0
        %v4600 = vsel %vm1446, %v4425, 0
        %v4603 = vsel %vm1446, %v4426, 0
        %4605 = vmatprep.subr.mxu0 0.0
        %4606 = vmatpush1.msra.mxu0 %v3491
        %4607 = vmatprep.subr.mxu0 0.0
        %4608 = vmatpush1.msra.mxu0 %v3496
        %4609 = vmatprep.subr.mxu0 0.0
        %4610 = vmatpush1.msra.mxu0 0.0
        %4611 = vmatprep.subr.mxu0 0.0
        %4612 = vmatpush1.msra.mxu0 0.0
        %4613 = vmatprep.subr.mxu0 0.0
        %4614 = vmatpush1.msra.mxu0 0.0
        %4615 = vmatprep.subr.mxu0 0.0
        %4616 = vmatpush1.msra.mxu0 0.0
        %4617 = vmatprep.subr.mxu0 0.0
        %4618 = vmatpush1.msra.mxu0 0.0
        %4619 = vmatprep.subr.mxu0 0.0
        %4620 = vmatpush1.msra.mxu0 0.0
        %4621 = vmatprep.subr.mxu0 0.0
        %4622 = vmatpush1.msra.mxu0 0.0
        %4623 = vmatprep.subr.mxu0 0.0
        %4624 = vmatpush1.msra.mxu0 0.0
        %4625 = vmatprep.subr.mxu0 0.0
        %4626 = vmatpush1.msra.mxu0 0.0
        %4627 = vmatprep.subr.mxu0 0.0
        %4628 = vmatpush1.msra.mxu0 0.0
        %4629 = vmatprep.subr.mxu0 0.0
        %4630 = vmatpush1.msra.mxu0 0.0
        %4631 = vmatprep.subr.mxu0 0.0
        %4632 = vmatpush1.msra.mxu0 0.0
        %4633 = vmatprep.subr.mxu0 0.0
        %4634 = vmatpush1.msra.mxu0 0.0
        %4635 = vmatprep.subr.mxu0 0.0
        %4636 = vmatpush1.msra.mxu0 0.0
        %4637 = vmatprep.subr.mxu0 0.0
        %4638 = vmatpush1.msra.mxu0 0.0
        %4639 = vmatprep.subr.mxu0 0.0
        %4640 = vmatpush1.msra.mxu0 0.0
        %4641 = vmatprep.subr.mxu0 0.0
        %4642 = vmatpush1.msra.mxu0 0.0
        %4643 = vmatprep.subr.mxu0 0.0
        %4644 = vmatpush1.msra.mxu0 0.0
        %4645 = vmatprep.subr.mxu0 0.0
        %4646 = vmatpush1.msra.mxu0 0.0
        %4647 = vmatprep.subr.mxu0 0.0
        %4648 = vmatpush1.msra.mxu0 0.0
        %4649 = vmatprep.subr.mxu0 0.0
        %4650 = vmatpush1.msra.mxu0 0.0
        %4651 = vmatprep.subr.mxu0 0.0
        %4652 = vmatpush1.msra.mxu0 0.0
        %4653 = vmatprep.subr.mxu0 0.0
        %4654 = vmatpush1.msra.mxu0 0.0
        %4655 = vmatprep.subr.mxu0 0.0
        %4656 = vmatpush1.msra.mxu0 0.0
        %4657 = vmatprep.subr.mxu0 0.0
        %4658 = vmatpush1.msra.mxu0 0.0
        %4659 = vmatprep.subr.mxu0 0.0
        %4660 = vmatpush1.msra.mxu0 0.0
        %4661 = vmatprep.subr.mxu0 0.0
        %4662 = vmatpush1.msra.mxu0 0.0
        %4663 = vmatprep.subr.mxu0 0.0
        %4664 = vmatpush1.msra.mxu0 0.0
        %4665 = vmatprep.subr.mxu0 0.0
        %4666 = vmatpush1.msra.mxu0 0.0
        %4667 = vmatprep.subr.mxu0 0.0
        %4668 = vmatpush1.msra.mxu0 0.0
        %4669 = vmatprep.mubr.f32.mxu0 0.0
        %4670 = vmatmul.mubr.f32.gmra.mrb[0].mxu0 %v4600
        %v4671 = vpop.f32.mrb[0].mxu0
        %v4672 = vadd.f32 0.0, %v4671
        %v4673 = vpop.f32.mrb[0].mxu0
        %4674 = vmatprep.mubr.f32.mxu0 0.0
        %4675 = vmatmul.mubr.f32.gmra.mrb[0].mxu0 %v4603
        %v4676 = vpop.f32.mrb[0].mxu0
        %v4677 = vadd.f32 0.0, %v4676
        %v4678 = vpop.f32.mrb[0].mxu0
        %4679 = vdwg.mxu0
        %v4681 = vsel %vm1446, %v4427, 0
        %v4684 = vsel %vm1446, %v4428, 0
        %4686 = vmatprep.subr.mxu0 0.0
        %4687 = vmatpush1.msra.mxu0 %v3501
        %4688 = vmatprep.subr.mxu0 0.0
        %4689 = vmatpush1.msra.mxu0 %v3506
        %4690 = vmatprep.subr.mxu0 0.0
        %4691 = vmatpush1.msra.mxu0 0.0
        %4692 = vmatprep.subr.mxu0 0.0
        %4693 = vmatpush1.msra.mxu0 0.0
        %4694 = vmatprep.subr.mxu0 0.0
        %4695 = vmatpush1.msra.mxu0 0.0
        %4696 = vmatprep.subr.mxu0 0.0
        %4697 = vmatpush1.msra.mxu0 0.0
        %4698 = vmatprep.subr.mxu0 0.0
        %4699 = vmatpush1.msra.mxu0 0.0
        %4700 = vmatprep.subr.mxu0 0.0
        %4701 = vmatpush1.msra.mxu0 0.0
        %4702 = vmatprep.subr.mxu0 0.0
        %4703 = vmatpush1.msra.mxu0 0.0
        %4704 = vmatprep.subr.mxu0 0.0
        %4705 = vmatpush1.msra.mxu0 0.0
        %4706 = vmatprep.subr.mxu0 0.0
        %4707 = vmatpush1.msra.mxu0 0.0
        %4708 = vmatprep.subr.mxu0 0.0
        %4709 = vmatpush1.msra.mxu0 0.0
        %4710 = vmatprep.subr.mxu0 0.0
        %4711 = vmatpush1.msra.mxu0 0.0
        %4712 = vmatprep.subr.mxu0 0.0
        %4713 = vmatpush1.msra.mxu0 0.0
        %4714 = vmatprep.subr.mxu0 0.0
        %4715 = vmatpush1.msra.mxu0 0.0
        %4716 = vmatprep.subr.mxu0 0.0
        %4717 = vmatpush1.msra.mxu0 0.0
        %4718 = vmatprep.subr.mxu0 0.0
        %4719 = vmatpush1.msra.mxu0 0.0
        %4720 = vmatprep.subr.mxu0 0.0
        %4721 = vmatpush1.msra.mxu0 0.0
        %4722 = vmatprep.subr.mxu0 0.0
        %4723 = vmatpush1.msra.mxu0 0.0
        %4724 = vmatprep.subr.mxu0 0.0
        %4725 = vmatpush1.msra.mxu0 0.0
        %4726 = vmatprep.subr.mxu0 0.0
        %4727 = vmatpush1.msra.mxu0 0.0
        %4728 = vmatprep.subr.mxu0 0.0
        %4729 = vmatpush1.msra.mxu0 0.0
        %4730 = vmatprep.subr.mxu0 0.0
        %4731 = vmatpush1.msra.mxu0 0.0
        %4732 = vmatprep.subr.mxu0 0.0
        %4733 = vmatpush1.msra.mxu0 0.0
        %4734 = vmatprep.subr.mxu0 0.0
        %4735 = vmatpush1.msra.mxu0 0.0
        %4736 = vmatprep.subr.mxu0 0.0
        %4737 = vmatpush1.msra.mxu0 0.0
        %4738 = vmatprep.subr.mxu0 0.0
        %4739 = vmatpush1.msra.mxu0 0.0
        %4740 = vmatprep.subr.mxu0 0.0
        %4741 = vmatpush1.msra.mxu0 0.0
        %4742 = vmatprep.subr.mxu0 0.0
        %4743 = vmatpush1.msra.mxu0 0.0
        %4744 = vmatprep.subr.mxu0 0.0
        %4745 = vmatpush1.msra.mxu0 0.0
        %4746 = vmatprep.subr.mxu0 0.0
        %4747 = vmatpush1.msra.mxu0 0.0
        %4748 = vmatprep.subr.mxu0 0.0
        %4749 = vmatpush1.msra.mxu0 0.0
        %4750 = vmatprep.mubr.f32.mxu0 0.0
        %4751 = vmatmul.mubr.f32.gmra.mrb[0].mxu0 %v4681
        %v4752 = vpop.f32.mrb[0].mxu0
        %v4753 = vadd.f32 0.0, %v4752
        %v4754 = vpop.f32.mrb[0].mxu0
        %4755 = vmatprep.mubr.f32.mxu0 0.0
        %4756 = vmatmul.mubr.f32.gmra.mrb[0].mxu0 %v4684
        %v4757 = vpop.f32.mrb[0].mxu0
        %v4758 = vadd.f32 0.0, %v4757
        %v4759 = vpop.f32.mrb[0].mxu0
        %4760 = vdwg.mxu0
        %v4762 = vsel %vm1446, %v4429, 0
        %v4765 = vsel %vm1446, %v4430, 0
        %4767 = vmatprep.subr.mxu0 0.0
        %4768 = vmatpush1.msra.mxu0 %v3511
        %4769 = vmatprep.subr.mxu0 0.0
        %4770 = vmatpush1.msra.mxu0 %v3516
        %4771 = vmatprep.subr.mxu0 0.0
        %4772 = vmatpush1.msra.mxu0 0.0
        %4773 = vmatprep.subr.mxu0 0.0
        %4774 = vmatpush1.msra.mxu0 0.0
        %4775 = vmatprep.subr.mxu0 0.0
        %4776 = vmatpush1.msra.mxu0 0.0
        %4777 = vmatprep.subr.mxu0 0.0
        %4778 = vmatpush1.msra.mxu0 0.0
        %4779 = vmatprep.subr.mxu0 0.0
        %4780 = vmatpush1.msra.mxu0 0.0
        %4781 = vmatprep.subr.mxu0 0.0
        %4782 = vmatpush1.msra.mxu0 0.0
        %4783 = vmatprep.subr.mxu0 0.0
        %4784 = vmatpush1.msra.mxu0 0.0
        %4785 = vmatprep.subr.mxu0 0.0
        %4786 = vmatpush1.msra.mxu0 0.0
        %4787 = vmatprep.subr.mxu0 0.0
        %4788 = vmatpush1.msra.mxu0 0.0
        %4789 = vmatprep.subr.mxu0 0.0
        %4790 = vmatpush1.msra.mxu0 0.0
        %4791 = vmatprep.subr.mxu0 0.0
        %4792 = vmatpush1.msra.mxu0 0.0
        %4793 = vmatprep.subr.mxu0 0.0
        %4794 = vmatpush1.msra.mxu0 0.0
        %4795 = vmatprep.subr.mxu0 0.0
        %4796 = vmatpush1.msra.mxu0 0.0
        %4797 = vmatprep.subr.mxu0 0.0
        %4798 = vmatpush1.msra.mxu0 0.0
        %4799 = vmatprep.subr.mxu0 0.0
        %4800 = vmatpush1.msra.mxu0 0.0
        %4801 = vmatprep.subr.mxu0 0.0
        %4802 = vmatpush1.msra.mxu0 0.0
        %4803 = vmatprep.subr.mxu0 0.0
        %4804 = vmatpush1.msra.mxu0 0.0
        %4805 = vmatprep.subr.mxu0 0.0
        %4806 = vmatpush1.msra.mxu0 0.0
        %4807 = vmatprep.subr.mxu0 0.0
        %4808 = vmatpush1.msra.mxu0 0.0
        %4809 = vmatprep.subr.mxu0 0.0
        %4810 = vmatpush1.msra.mxu0 0.0
        %4811 = vmatprep.subr.mxu0 0.0
        %4812 = vmatpush1.msra.mxu0 0.0
        %4813 = vmatprep.subr.mxu0 0.0
        %4814 = vmatpush1.msra.mxu0 0.0
        %4815 = vmatprep.subr.mxu0 0.0
        %4816 = vmatpush1.msra.mxu0 0.0
        %4817 = vmatprep.subr.mxu0 0.0
        %4818 = vmatpush1.msra.mxu0 0.0
        %4819 = vmatprep.subr.mxu0 0.0
        %4820 = vmatpush1.msra.mxu0 0.0
        %4821 = vmatprep.subr.mxu0 0.0
        %4822 = vmatpush1.msra.mxu0 0.0
        %4823 = vmatprep.subr.mxu0 0.0
        %4824 = vmatpush1.msra.mxu0 0.0
        %4825 = vmatprep.subr.mxu0 0.0
        %4826 = vmatpush1.msra.mxu0 0.0
        %4827 = vmatprep.subr.mxu0 0.0
        %4828 = vmatpush1.msra.mxu0 0.0
        %4829 = vmatprep.subr.mxu0 0.0
        %4830 = vmatpush1.msra.mxu0 0.0
        %4831 = vmatprep.mubr.f32.mxu0 0.0
        %4832 = vmatmul.mubr.f32.gmra.mrb[0].mxu0 %v4762
        %v4833 = vpop.f32.mrb[0].mxu0
        %v4834 = vadd.f32 0.0, %v4833
        %v4835 = vpop.f32.mrb[0].mxu0
        %4836 = vmatprep.mubr.f32.mxu0 0.0
        %4837 = vmatmul.mubr.f32.gmra.mrb[0].mxu0 %v4765
        %v4838 = vpop.f32.mrb[0].mxu0
        %v4839 = vadd.f32 0.0, %v4838
        %v4840 = vpop.f32.mrb[0].mxu0
        %4841 = vdwg.mxu0
        %v4843 = vsel %vm1446, %v4431, 0
        %v4846 = vsel %vm1446, %v4432, 0
        %4848 = vmatprep.subr.mxu0 0.0
        %4849 = vmatpush1.msra.mxu0 %v3521
        %4850 = vmatprep.subr.mxu0 0.0
        %4851 = vmatpush1.msra.mxu0 %v3526
        %4852 = vmatprep.subr.mxu0 0.0
        %4853 = vmatpush1.msra.mxu0 0.0
        %4854 = vmatprep.subr.mxu0 0.0
        %4855 = vmatpush1.msra.mxu0 0.0
        %4856 = vmatprep.subr.mxu0 0.0
        %4857 = vmatpush1.msra.mxu0 0.0
        %4858 = vmatprep.subr.mxu0 0.0
        %4859 = vmatpush1.msra.mxu0 0.0
        %4860 = vmatprep.subr.mxu0 0.0
        %4861 = vmatpush1.msra.mxu0 0.0
        %4862 = vmatprep.subr.mxu0 0.0
        %4863 = vmatpush1.msra.mxu0 0.0
        %4864 = vmatprep.subr.mxu0 0.0
        %4865 = vmatpush1.msra.mxu0 0.0
        %4866 = vmatprep.subr.mxu0 0.0
        %4867 = vmatpush1.msra.mxu0 0.0
        %4868 = vmatprep.subr.mxu0 0.0
        %4869 = vmatpush1.msra.mxu0 0.0
        %4870 = vmatprep.subr.mxu0 0.0
        %4871 = vmatpush1.msra.mxu0 0.0
        %4872 = vmatprep.subr.mxu0 0.0
        %4873 = vmatpush1.msra.mxu0 0.0
        %4874 = vmatprep.subr.mxu0 0.0
        %4875 = vmatpush1.msra.mxu0 0.0
        %4876 = vmatprep.subr.mxu0 0.0
        %4877 = vmatpush1.msra.mxu0 0.0
        %4878 = vmatprep.subr.mxu0 0.0
        %4879 = vmatpush1.msra.mxu0 0.0
        %4880 = vmatprep.subr.mxu0 0.0
        %4881 = vmatpush1.msra.mxu0 0.0
        %4882 = vmatprep.subr.mxu0 0.0
        %4883 = vmatpush1.msra.mxu0 0.0
        %4884 = vmatprep.subr.mxu0 0.0
        %4885 = vmatpush1.msra.mxu0 0.0
        %4886 = vmatprep.subr.mxu0 0.0
        %4887 = vmatpush1.msra.mxu0 0.0
        %4888 = vmatprep.subr.mxu0 0.0
        %4889 = vmatpush1.msra.mxu0 0.0
        %4890 = vmatprep.subr.mxu0 0.0
        %4891 = vmatpush1.msra.mxu0 0.0
        %4892 = vmatprep.subr.mxu0 0.0
        %4893 = vmatpush1.msra.mxu0 0.0
        %4894 = vmatprep.subr.mxu0 0.0
        %4895 = vmatpush1.msra.mxu0 0.0
        %4896 = vmatprep.subr.mxu0 0.0
        %4897 = vmatpush1.msra.mxu0 0.0
        %4898 = vmatprep.subr.mxu0 0.0
        %4899 = vmatpush1.msra.mxu0 0.0
        %4900 = vmatprep.subr.mxu0 0.0
        %4901 = vmatpush1.msra.mxu0 0.0
        %4902 = vmatprep.subr.mxu0 0.0
        %4903 = vmatpush1.msra.mxu0 0.0
        %4904 = vmatprep.subr.mxu0 0.0
        %4905 = vmatpush1.msra.mxu0 0.0
        %4906 = vmatprep.subr.mxu0 0.0
        %4907 = vmatpush1.msra.mxu0 0.0
        %4908 = vmatprep.subr.mxu0 0.0
        %4909 = vmatpush1.msra.mxu0 0.0
        %4910 = vmatprep.subr.mxu0 0.0
        %4911 = vmatpush1.msra.mxu0 0.0
        %4912 = vmatprep.mubr.f32.mxu0 0.0
        %4913 = vmatmul.mubr.f32.gmra.mrb[0].mxu0 %v4843
        %v4914 = vpop.f32.mrb[0].mxu0
        %v4915 = vadd.f32 0.0, %v4914
        %v4916 = vpop.f32.mrb[0].mxu0
        %4917 = vmatprep.mubr.f32.mxu0 0.0
        %4918 = vmatmul.mubr.f32.gmra.mrb[0].mxu0 %v4846
        %v4919 = vpop.f32.mrb[0].mxu0
        %v4920 = vadd.f32 0.0, %v4919
        %v4921 = vpop.f32.mrb[0].mxu0
        %4922 = vdwg.mxu0
        %v4924 = vsel %vm1446, %v4433, 0
        %v4927 = vsel %vm1446, %v4434, 0
        %4929 = vmatprep.subr.mxu0 0.0
        %4930 = vmatpush1.msra.mxu0 %v3531
        %4931 = vmatprep.subr.mxu0 0.0
        %4932 = vmatpush1.msra.mxu0 %v3536
        %4933 = vmatprep.subr.mxu0 0.0
        %4934 = vmatpush1.msra.mxu0 0.0
        %4935 = vmatprep.subr.mxu0 0.0
        %4936 = vmatpush1.msra.mxu0 0.0
        %4937 = vmatprep.subr.mxu0 0.0
        %4938 = vmatpush1.msra.mxu0 0.0
        %4939 = vmatprep.subr.mxu0 0.0
        %4940 = vmatpush1.msra.mxu0 0.0
        %4941 = vmatprep.subr.mxu0 0.0
        %4942 = vmatpush1.msra.mxu0 0.0
        %4943 = vmatprep.subr.mxu0 0.0
        %4944 = vmatpush1.msra.mxu0 0.0
        %4945 = vmatprep.subr.mxu0 0.0
        %4946 = vmatpush1.msra.mxu0 0.0
        %4947 = vmatprep.subr.mxu0 0.0
        %4948 = vmatpush1.msra.mxu0 0.0
        %4949 = vmatprep.subr.mxu0 0.0
        %4950 = vmatpush1.msra.mxu0 0.0
        %4951 = vmatprep.subr.mxu0 0.0
        %4952 = vmatpush1.msra.mxu0 0.0
        %4953 = vmatprep.subr.mxu0 0.0
        %4954 = vmatpush1.msra.mxu0 0.0
        %4955 = vmatprep.subr.mxu0 0.0
        %4956 = vmatpush1.msra.mxu0 0.0
        %4957 = vmatprep.subr.mxu0 0.0
        %4958 = vmatpush1.msra.mxu0 0.0
        %4959 = vmatprep.subr.mxu0 0.0
        %4960 = vmatpush1.msra.mxu0 0.0
        %4961 = vmatprep.subr.mxu0 0.0
        %4962 = vmatpush1.msra.mxu0 0.0
        %4963 = vmatprep.subr.mxu0 0.0
        %4964 = vmatpush1.msra.mxu0 0.0
        %4965 = vmatprep.subr.mxu0 0.0
        %4966 = vmatpush1.msra.mxu0 0.0
        %4967 = vmatprep.subr.mxu0 0.0
        %4968 = vmatpush1.msra.mxu0 0.0
        %4969 = vmatprep.subr.mxu0 0.0
        %4970 = vmatpush1.msra.mxu0 0.0
        %4971 = vmatprep.subr.mxu0 0.0
        %4972 = vmatpush1.msra.mxu0 0.0
        %4973 = vmatprep.subr.mxu0 0.0
        %4974 = vmatpush1.msra.mxu0 0.0
        %4975 = vmatprep.subr.mxu0 0.0
        %4976 = vmatpush1.msra.mxu0 0.0
        %4977 = vmatprep.subr.mxu0 0.0
        %4978 = vmatpush1.msra.mxu0 0.0
        %4979 = vmatprep.subr.mxu0 0.0
        %4980 = vmatpush1.msra.mxu0 0.0
        %4981 = vmatprep.subr.mxu0 0.0
        %4982 = vmatpush1.msra.mxu0 0.0
        %4983 = vmatprep.subr.mxu0 0.0
        %4984 = vmatpush1.msra.mxu0 0.0
        %4985 = vmatprep.subr.mxu0 0.0
        %4986 = vmatpush1.msra.mxu0 0.0
        %4987 = vmatprep.subr.mxu0 0.0
        %4988 = vmatpush1.msra.mxu0 0.0
        %4989 = vmatprep.subr.mxu0 0.0
        %4990 = vmatpush1.msra.mxu0 0.0
        %4991 = vmatprep.subr.mxu0 0.0
        %4992 = vmatpush1.msra.mxu0 0.0
        %4993 = vmatprep.mubr.f32.mxu0 0.0
        %4994 = vmatmul.mubr.f32.gmra.mrb[0].mxu0 %v4924
        %v4995 = vpop.f32.mrb[0].mxu0
        %v4996 = vadd.f32 0.0, %v4995
        %v4997 = vpop.f32.mrb[0].mxu0
        %4998 = vmatprep.mubr.f32.mxu0 0.0
        %4999 = vmatmul.mubr.f32.gmra.mrb[0].mxu0 %v4927
        %v5000 = vpop.f32.mrb[0].mxu0
        %v5001 = vadd.f32 0.0, %v5000
        %v5002 = vpop.f32.mrb[0].mxu0
        %5003 = vdwg.mxu0
        %v5005 = vsel %vm1446, %v4435, 0
        %v5008 = vsel %vm1446, %v4436, 0
        %5010 = vmatprep.subr.mxu0 0.0
        %5011 = vmatpush1.msra.mxu0 %v3541
        %5012 = vmatprep.subr.mxu0 0.0
        %5013 = vmatpush1.msra.mxu0 %v3546
        %5014 = vmatprep.subr.mxu0 0.0
        %5015 = vmatpush1.msra.mxu0 0.0
        %5016 = vmatprep.subr.mxu0 0.0
        %5017 = vmatpush1.msra.mxu0 0.0
        %5018 = vmatprep.subr.mxu0 0.0
        %5019 = vmatpush1.msra.mxu0 0.0
        %5020 = vmatprep.subr.mxu0 0.0
        %5021 = vmatpush1.msra.mxu0 0.0
        %5022 = vmatprep.subr.mxu0 0.0
        %5023 = vmatpush1.msra.mxu0 0.0
        %5024 = vmatprep.subr.mxu0 0.0
        %5025 = vmatpush1.msra.mxu0 0.0
        %5026 = vmatprep.subr.mxu0 0.0
        %5027 = vmatpush1.msra.mxu0 0.0
        %5028 = vmatprep.subr.mxu0 0.0
        %5029 = vmatpush1.msra.mxu0 0.0
        %5030 = vmatprep.subr.mxu0 0.0
        %5031 = vmatpush1.msra.mxu0 0.0
        %5032 = vmatprep.subr.mxu0 0.0
        %5033 = vmatpush1.msra.mxu0 0.0
        %5034 = vmatprep.subr.mxu0 0.0
        %5035 = vmatpush1.msra.mxu0 0.0
        %5036 = vmatprep.subr.mxu0 0.0
        %5037 = vmatpush1.msra.mxu0 0.0
        %5038 = vmatprep.subr.mxu0 0.0
        %5039 = vmatpush1.msra.mxu0 0.0
        %5040 = vmatprep.subr.mxu0 0.0
        %5041 = vmatpush1.msra.mxu0 0.0
        %5042 = vmatprep.subr.mxu0 0.0
        %5043 = vmatpush1.msra.mxu0 0.0
        %5044 = vmatprep.subr.mxu0 0.0
        %5045 = vmatpush1.msra.mxu0 0.0
        %5046 = vmatprep.subr.mxu0 0.0
        %5047 = vmatpush1.msra.mxu0 0.0
        %5048 = vmatprep.subr.mxu0 0.0
        %5049 = vmatpush1.msra.mxu0 0.0
        %5050 = vmatprep.subr.mxu0 0.0
        %5051 = vmatpush1.msra.mxu0 0.0
        %5052 = vmatprep.subr.mxu0 0.0
        %5053 = vmatpush1.msra.mxu0 0.0
        %5054 = vmatprep.subr.mxu0 0.0
        %5055 = vmatpush1.msra.mxu0 0.0
        %5056 = vmatprep.subr.mxu0 0.0
        %5057 = vmatpush1.msra.mxu0 0.0
        %5058 = vmatprep.subr.mxu0 0.0
        %5059 = vmatpush1.msra.mxu0 0.0
        %5060 = vmatprep.subr.mxu0 0.0
        %5061 = vmatpush1.msra.mxu0 0.0
        %5062 = vmatprep.subr.mxu0 0.0
        %5063 = vmatpush1.msra.mxu0 0.0
        %5064 = vmatprep.subr.mxu0 0.0
        %5065 = vmatpush1.msra.mxu0 0.0
        %5066 = vmatprep.subr.mxu0 0.0
        %5067 = vmatpush1.msra.mxu0 0.0
        %5068 = vmatprep.subr.mxu0 0.0
        %5069 = vmatpush1.msra.mxu0 0.0
        %5070 = vmatprep.subr.mxu0 0.0
        %5071 = vmatpush1.msra.mxu0 0.0
        %5072 = vmatprep.subr.mxu0 0.0
        %5073 = vmatpush1.msra.mxu0 0.0
        %5074 = vmatprep.mubr.f32.mxu0 0.0
        %5075 = vmatmul.mubr.f32.gmra.mrb[0].mxu0 %v5005
        %v5076 = vpop.f32.mrb[0].mxu0
        %v5077 = vadd.f32 0.0, %v5076
        %v5078 = vpop.f32.mrb[0].mxu0
        %5079 = vmatprep.mubr.f32.mxu0 0.0
        %5080 = vmatmul.mubr.f32.gmra.mrb[0].mxu0 %v5008
        %v5081 = vpop.f32.mrb[0].mxu0
        %v5082 = vadd.f32 0.0, %v5081
        %v5083 = vpop.f32.mrb[0].mxu0
        %5084 = vdwg.mxu0
        %v5085 = vld [vmem:[%s4] sm:$0xff]
        %v5086 = vld [vmem:[%s4 + $0x8] sm:$0xff]
        %v5087 = vld [vmem:[%s4 + $0x10] sm:$0xff]
        %v5088 = vld [vmem:[%s4 + $0x18] sm:$0xff]
        %v5089 = vld [vmem:[%s4 + $0x20] sm:$0xff]
        %v5090 = vld [vmem:[%s4 + $0x28] sm:$0xff]
        %v5091 = vld [vmem:[%s4 + $0x30] sm:$0xff]
        %v5092 = vld [vmem:[%s4 + $0x38] sm:$0xff]
        %v5093 = vld [vmem:[%s5] sm:$0x1]
        %v5095 = vlaneseq
        %v5096 = vshrl.u32 %v5095, 7
        %v5097 = vsub.s32 0, %v5096
        %v5098 = vrot.slane %v5093, %v5097
        %5107 = vrot.lane.b32.xlu0 %v5085, 96
        %v5108 = vpop.permute.xlu0 %5107
        %5109 = vrot.lane.b32.xlu0 %v5086, 96
        %v5110 = vpop.permute.xlu0 %5109
        %5111 = vrot.lane.b32.xlu0 %v5087, 96
        %v5112 = vpop.permute.xlu0 %5111
        %5113 = vrot.lane.b32.xlu0 %v5088, 96
        %v5114 = vpop.permute.xlu0 %5113
        %5115 = vrot.lane.b32.xlu0 %v5089, 96
        %v5116 = vpop.permute.xlu0 %5115
        %5117 = vrot.lane.b32.xlu0 %v5090, 96
        %v5118 = vpop.permute.xlu0 %5117
        %5119 = vrot.lane.b32.xlu0 %v5091, 96
        %v5120 = vpop.permute.xlu0 %5119
        %5121 = vrot.lane.b32.xlu0 %v5092, 96
        %v5122 = vpop.permute.xlu0 %5121
        %5131 = vrot.lane.b32.xlu0 %v5098, 96
        %v5132 = vpop.permute.xlu0 %5131
        %5134 = vmatprep.subr.mxu0 0.0
        %5135 = vmatpush1.msra.mxu0 %v5108
        %5136 = vmatprep.subr.mxu0 0.0
        %5137 = vmatpush1.msra.mxu0 %v5110
        %5138 = vmatprep.subr.mxu0 0.0
        %5139 = vmatpush1.msra.mxu0 %v5112
        %5140 = vmatprep.subr.mxu0 0.0
        %5141 = vmatpush1.msra.mxu0 %v5114
        %5142 = vmatprep.subr.mxu0 0.0
        %5143 = vmatpush1.msra.mxu0 %v5116
        %5144 = vmatprep.subr.mxu0 0.0
        %5145 = vmatpush1.msra.mxu0 %v5118
        %5146 = vmatprep.subr.mxu0 0.0
        %5147 = vmatpush1.msra.mxu0 %v5120
        %5148 = vmatprep.subr.mxu0 0.0
        %5149 = vmatpush1.msra.mxu0 %v5122
        %5150 = vmatprep.subr.mxu0 0.0
        %5151 = vmatpush1.msra.mxu0 0.0
        %5152 = vmatprep.subr.mxu0 0.0
        %5153 = vmatpush1.msra.mxu0 0.0
        %5154 = vmatprep.subr.mxu0 0.0
        %5155 = vmatpush1.msra.mxu0 0.0
        %5156 = vmatprep.subr.mxu0 0.0
        %5157 = vmatpush1.msra.mxu0 0.0
        %5158 = vmatprep.subr.mxu0 0.0
        %5159 = vmatpush1.msra.mxu0 0.0
        %5160 = vmatprep.subr.mxu0 0.0
        %5161 = vmatpush1.msra.mxu0 0.0
        %5162 = vmatprep.subr.mxu0 0.0
        %5163 = vmatpush1.msra.mxu0 0.0
        %5164 = vmatprep.subr.mxu0 0.0
        %5165 = vmatpush1.msra.mxu0 0.0
        %5166 = vmatprep.subr.mxu0 0.0
        %5167 = vmatpush1.msra.mxu0 0.0
        %5168 = vmatprep.subr.mxu0 0.0
        %5169 = vmatpush1.msra.mxu0 0.0
        %5170 = vmatprep.subr.mxu0 0.0
        %5171 = vmatpush1.msra.mxu0 0.0
        %5172 = vmatprep.subr.mxu0 0.0
        %5173 = vmatpush1.msra.mxu0 0.0
        %5174 = vmatprep.subr.mxu0 0.0
        %5175 = vmatpush1.msra.mxu0 0.0
        %5176 = vmatprep.subr.mxu0 0.0
        %5177 = vmatpush1.msra.mxu0 0.0
        %5178 = vmatprep.subr.mxu0 0.0
        %5179 = vmatpush1.msra.mxu0 0.0
        %5180 = vmatprep.subr.mxu0 0.0
        %5181 = vmatpush1.msra.mxu0 0.0
        %5182 = vmatprep.subr.mxu0 0.0
        %5183 = vmatpush1.msra.mxu0 0.0
        %5184 = vmatprep.subr.mxu0 0.0
        %5185 = vmatpush1.msra.mxu0 0.0
        %5186 = vmatprep.subr.mxu0 0.0
        %5187 = vmatpush1.msra.mxu0 0.0
        %5188 = vmatprep.subr.mxu0 0.0
        %5189 = vmatpush1.msra.mxu0 0.0
        %5190 = vmatprep.subr.mxu0 0.0
        %5191 = vmatpush1.msra.mxu0 0.0
        %5192 = vmatprep.subr.mxu0 0.0
        %5193 = vmatpush1.msra.mxu0 0.0
        %5194 = vmatprep.subr.mxu0 0.0
        %5195 = vmatpush1.msra.mxu0 0.0
        %5196 = vmatprep.subr.mxu0 0.0
        %5197 = vmatpush1.msra.mxu0 0.0
        %5198 = vmatprep.mubr.f32.mxu0 0.0
        %5199 = vmatmul.mubr.f32.gmra.mrb[0].mxu0 %v918
        %v5200 = vpop.f32.mrb[0].mxu0
        %v5201 = vadd.f32 %v5132, %v5200
        %v5202 = vpop.f32.mrb[0].mxu0
        %5203 = vmatprep.mubr.f32.mxu0 0.0
        %5204 = vmatmul.mubr.f32.gmra.mrb[0].mxu0 %v921
        %v5205 = vpop.f32.mrb[0].mxu0
        %v5206 = vadd.f32 %v5132, %v5205
        %v5207 = vpop.f32.mrb[0].mxu0
        %5208 = vmatprep.mubr.f32.mxu0 0.0
        %5209 = vmatmul.mubr.f32.gmra.mrb[0].mxu0 %v924
        %v5210 = vpop.f32.mrb[0].mxu0
        %v5211 = vadd.f32 %v5132, %v5210
        %v5212 = vpop.f32.mrb[0].mxu0
        %5213 = vmatprep.mubr.f32.mxu0 0.0
        %5214 = vmatmul.mubr.f32.gmra.mrb[0].mxu0 %v927
        %v5215 = vpop.f32.mrb[0].mxu0
        %v5216 = vadd.f32 %v5132, %v5215
        %v5217 = vpop.f32.mrb[0].mxu0
        %5218 = vmatprep.mubr.f32.mxu0 0.0
        %5219 = vmatmul.mubr.f32.gmra.mrb[0].mxu0 %v930
        %v5220 = vpop.f32.mrb[0].mxu0
        %v5221 = vadd.f32 %v5132, %v5220
        %v5222 = vpop.f32.mrb[0].mxu0
        %5223 = vmatprep.mubr.f32.mxu0 0.0
        %5224 = vmatmul.mubr.f32.gmra.mrb[0].mxu0 %v933
        %v5225 = vpop.f32.mrb[0].mxu0
        %v5226 = vadd.f32 %v5132, %v5225
        %v5227 = vpop.f32.mrb[0].mxu0
        %5228 = vmatprep.mubr.f32.mxu0 0.0
        %5229 = vmatmul.mubr.f32.gmra.mrb[0].mxu0 %v936
        %v5230 = vpop.f32.mrb[0].mxu0
        %v5231 = vadd.f32 %v5132, %v5230
        %v5232 = vpop.f32.mrb[0].mxu0
        %5233 = vmatprep.mubr.f32.mxu0 0.0
        %5234 = vmatmul.mubr.f32.gmra.mrb[0].mxu0 %v939
        %v5235 = vpop.f32.mrb[0].mxu0
        %v5236 = vadd.f32 %v5132, %v5235
        %v5237 = vpop.f32.mrb[0].mxu0
        %5238 = vmatprep.mubr.f32.mxu0 0.0
        %5239 = vmatmul.mubr.f32.gmra.mrb[0].mxu0 %v942
        %v5240 = vpop.f32.mrb[0].mxu0
        %v5241 = vadd.f32 %v5132, %v5240
        %v5242 = vpop.f32.mrb[0].mxu0
        %5243 = vmatprep.mubr.f32.mxu0 0.0
        %5244 = vmatmul.mubr.f32.gmra.mrb[0].mxu0 %v945
        %v5245 = vpop.f32.mrb[0].mxu0
        %v5246 = vadd.f32 %v5132, %v5245
        %v5247 = vpop.f32.mrb[0].mxu0
        %5248 = vmatprep.mubr.f32.mxu0 0.0
        %5249 = vmatmul.mubr.f32.gmra.mrb[0].mxu0 %v948
        %v5250 = vpop.f32.mrb[0].mxu0
        %v5251 = vadd.f32 %v5132, %v5250
        %v5252 = vpop.f32.mrb[0].mxu0
        %5253 = vmatprep.mubr.f32.mxu0 0.0
        %5254 = vmatmul.mubr.f32.gmra.mrb[0].mxu0 %v951
        %v5255 = vpop.f32.mrb[0].mxu0
        %v5256 = vadd.f32 %v5132, %v5255
        %v5257 = vpop.f32.mrb[0].mxu0
        %5258 = vmatprep.mubr.f32.mxu0 0.0
        %5259 = vmatmul.mubr.f32.gmra.mrb[0].mxu0 %v954
        %v5260 = vpop.f32.mrb[0].mxu0
        %v5261 = vadd.f32 %v5132, %v5260
        %v5262 = vpop.f32.mrb[0].mxu0
        %5263 = vmatprep.mubr.f32.mxu0 0.0
        %5264 = vmatmul.mubr.f32.gmra.mrb[0].mxu0 %v957
        %v5265 = vpop.f32.mrb[0].mxu0
        %v5266 = vadd.f32 %v5132, %v5265
        %v5267 = vpop.f32.mrb[0].mxu0
        %5268 = vmatprep.mubr.f32.mxu0 0.0
        %5269 = vmatmul.mubr.f32.gmra.mrb[0].mxu0 %v960
        %v5270 = vpop.f32.mrb[0].mxu0
        %v5271 = vadd.f32 %v5132, %v5270
        %v5272 = vpop.f32.mrb[0].mxu0
        %5273 = vmatprep.mubr.f32.mxu0 0.0
        %5274 = vmatmul.mubr.f32.gmra.mrb[0].mxu0 %v963
        %v5275 = vpop.f32.mrb[0].mxu0
        %v5276 = vadd.f32 %v5132, %v5275
        %v5277 = vpop.f32.mrb[0].mxu0
        %5278 = vdwg.mxu0
        %v5279 = vld [vmem:[%s6] sm:$0xff]
        %v5280 = vld [vmem:[%s6 + $0x8] sm:$0xff]
        %v5281 = vld [vmem:[%s6 + $0x10] sm:$0xff]
        %v5282 = vld [vmem:[%s6 + $0x18] sm:$0xff]
        %v5283 = vld [vmem:[%s6 + $0x20] sm:$0xff]
        %v5284 = vld [vmem:[%s6 + $0x28] sm:$0xff]
        %v5285 = vld [vmem:[%s6 + $0x30] sm:$0xff]
        %v5286 = vld [vmem:[%s6 + $0x38] sm:$0xff]
        %v5287 = vld [vmem:[%s7] sm:$0x1]
        %v5289 = vlaneseq
        %v5290 = vshrl.u32 %v5289, 7
        %v5291 = vsub.s32 0, %v5290
        %v5292 = vrot.slane %v5287, %v5291
        %5301 = vrot.lane.b32.xlu0 %v5279, 96
        %v5302 = vpop.permute.xlu0 %5301
        %5303 = vrot.lane.b32.xlu0 %v5280, 96
        %v5304 = vpop.permute.xlu0 %5303
        %5305 = vrot.lane.b32.xlu0 %v5281, 96
        %v5306 = vpop.permute.xlu0 %5305
        %5307 = vrot.lane.b32.xlu0 %v5282, 96
        %v5308 = vpop.permute.xlu0 %5307
        %5309 = vrot.lane.b32.xlu0 %v5283, 96
        %v5310 = vpop.permute.xlu0 %5309
        %5311 = vrot.lane.b32.xlu0 %v5284, 96
        %v5312 = vpop.permute.xlu0 %5311
        %5313 = vrot.lane.b32.xlu0 %v5285, 96
        %v5314 = vpop.permute.xlu0 %5313
        %5315 = vrot.lane.b32.xlu0 %v5286, 96
        %v5316 = vpop.permute.xlu0 %5315
        %5325 = vrot.lane.b32.xlu0 %v5292, 96
        %v5326 = vpop.permute.xlu0 %5325
        %5328 = vmatprep.subr.mxu0 0.0
        %5329 = vmatpush1.msra.mxu0 %v5302
        %5330 = vmatprep.subr.mxu0 0.0
        %5331 = vmatpush1.msra.mxu0 %v5304
        %5332 = vmatprep.subr.mxu0 0.0
        %5333 = vmatpush1.msra.mxu0 %v5306
        %5334 = vmatprep.subr.mxu0 0.0
        %5335 = vmatpush1.msra.mxu0 %v5308
        %5336 = vmatprep.subr.mxu0 0.0
        %5337 = vmatpush1.msra.mxu0 %v5310
        %5338 = vmatprep.subr.mxu0 0.0
        %5339 = vmatpush1.msra.mxu0 %v5312
        %5340 = vmatprep.subr.mxu0 0.0
        %5341 = vmatpush1.msra.mxu0 %v5314
        %5342 = vmatprep.subr.mxu0 0.0
        %5343 = vmatpush1.msra.mxu0 %v5316
        %5344 = vmatprep.subr.mxu0 0.0
        %5345 = vmatpush1.msra.mxu0 0.0
        %5346 = vmatprep.subr.mxu0 0.0
        %5347 = vmatpush1.msra.mxu0 0.0
        %5348 = vmatprep.subr.mxu0 0.0
        %5349 = vmatpush1.msra.mxu0 0.0
        %5350 = vmatprep.subr.mxu0 0.0
        %5351 = vmatpush1.msra.mxu0 0.0
        %5352 = vmatprep.subr.mxu0 0.0
        %5353 = vmatpush1.msra.mxu0 0.0
        %5354 = vmatprep.subr.mxu0 0.0
        %5355 = vmatpush1.msra.mxu0 0.0
        %5356 = vmatprep.subr.mxu0 0.0
        %5357 = vmatpush1.msra.mxu0 0.0
        %5358 = vmatprep.subr.mxu0 0.0
        %5359 = vmatpush1.msra.mxu0 0.0
        %5360 = vmatprep.subr.mxu0 0.0
        %5361 = vmatpush1.msra.mxu0 0.0
        %5362 = vmatprep.subr.mxu0 0.0
        %5363 = vmatpush1.msra.mxu0 0.0
        %5364 = vmatprep.subr.mxu0 0.0
        %5365 = vmatpush1.msra.mxu0 0.0
        %5366 = vmatprep.subr.mxu0 0.0
        %5367 = vmatpush1.msra.mxu0 0.0
        %5368 = vmatprep.subr.mxu0 0.0
        %5369 = vmatpush1.msra.mxu0 0.0
        %5370 = vmatprep.subr.mxu0 0.0
        %5371 = vmatpush1.msra.mxu0 0.0
        %5372 = vmatprep.subr.mxu0 0.0
        %5373 = vmatpush1.msra.mxu0 0.0
        %5374 = vmatprep.subr.mxu0 0.0
        %5375 = vmatpush1.msra.mxu0 0.0
        %5376 = vmatprep.subr.mxu0 0.0
        %5377 = vmatpush1.msra.mxu0 0.0
        %5378 = vmatprep.subr.mxu0 0.0
        %5379 = vmatpush1.msra.mxu0 0.0
        %5380 = vmatprep.subr.mxu0 0.0
        %5381 = vmatpush1.msra.mxu0 0.0
        %5382 = vmatprep.subr.mxu0 0.0
        %5383 = vmatpush1.msra.mxu0 0.0
        %5384 = vmatprep.subr.mxu0 0.0
        %5385 = vmatpush1.msra.mxu0 0.0
        %5386 = vmatprep.subr.mxu0 0.0
        %5387 = vmatpush1.msra.mxu0 0.0
        %5388 = vmatprep.subr.mxu0 0.0
        %5389 = vmatpush1.msra.mxu0 0.0
        %5390 = vmatprep.subr.mxu0 0.0
        %5391 = vmatpush1.msra.mxu0 0.0
        %5392 = vmatprep.mubr.f32.mxu0 0.0
        %5393 = vmatmul.mubr.f32.gmra.mrb[0].mxu0 %v918
        %v5394 = vpop.f32.mrb[0].mxu0
        %v5395 = vadd.f32 %v5326, %v5394
        %v5396 = vpop.f32.mrb[0].mxu0
        %5397 = vmatprep.mubr.f32.mxu0 0.0
        %5398 = vmatmul.mubr.f32.gmra.mrb[0].mxu0 %v921
        %v5399 = vpop.f32.mrb[0].mxu0
        %v5400 = vadd.f32 %v5326, %v5399
        %v5401 = vpop.f32.mrb[0].mxu0
        %5402 = vmatprep.mubr.f32.mxu0 0.0
        %5403 = vmatmul.mubr.f32.gmra.mrb[0].mxu0 %v924
        %v5404 = vpop.f32.mrb[0].mxu0
        %v5405 = vadd.f32 %v5326, %v5404
        %v5406 = vpop.f32.mrb[0].mxu0
        %5407 = vmatprep.mubr.f32.mxu0 0.0
        %5408 = vmatmul.mubr.f32.gmra.mrb[0].mxu0 %v927
        %v5409 = vpop.f32.mrb[0].mxu0
        %v5410 = vadd.f32 %v5326, %v5409
        %v5411 = vpop.f32.mrb[0].mxu0
        %5412 = vmatprep.mubr.f32.mxu0 0.0
        %5413 = vmatmul.mubr.f32.gmra.mrb[0].mxu0 %v930
        %v5414 = vpop.f32.mrb[0].mxu0
        %v5415 = vadd.f32 %v5326, %v5414
        %v5416 = vpop.f32.mrb[0].mxu0
        %5417 = vmatprep.mubr.f32.mxu0 0.0
        %5418 = vmatmul.mubr.f32.gmra.mrb[0].mxu0 %v933
        %v5419 = vpop.f32.mrb[0].mxu0
        %v5420 = vadd.f32 %v5326, %v5419
        %v5421 = vpop.f32.mrb[0].mxu0
        %5422 = vmatprep.mubr.f32.mxu0 0.0
        %5423 = vmatmul.mubr.f32.gmra.mrb[0].mxu0 %v936
        %v5424 = vpop.f32.mrb[0].mxu0
        %v5425 = vadd.f32 %v5326, %v5424
        %v5426 = vpop.f32.mrb[0].mxu0
        %5427 = vmatprep.mubr.f32.mxu0 0.0
        %5428 = vmatmul.mubr.f32.gmra.mrb[0].mxu0 %v939
        %v5429 = vpop.f32.mrb[0].mxu0
        %v5430 = vadd.f32 %v5326, %v5429
        %v5431 = vpop.f32.mrb[0].mxu0
        %5432 = vmatprep.mubr.f32.mxu0 0.0
        %5433 = vmatmul.mubr.f32.gmra.mrb[0].mxu0 %v942
        %v5434 = vpop.f32.mrb[0].mxu0
        %v5435 = vadd.f32 %v5326, %v5434
        %v5436 = vpop.f32.mrb[0].mxu0
        %5437 = vmatprep.mubr.f32.mxu0 0.0
        %5438 = vmatmul.mubr.f32.gmra.mrb[0].mxu0 %v945
        %v5439 = vpop.f32.mrb[0].mxu0
        %v5440 = vadd.f32 %v5326, %v5439
        %v5441 = vpop.f32.mrb[0].mxu0
        %5442 = vmatprep.mubr.f32.mxu0 0.0
        %5443 = vmatmul.mubr.f32.gmra.mrb[0].mxu0 %v948
        %v5444 = vpop.f32.mrb[0].mxu0
        %v5445 = vadd.f32 %v5326, %v5444
        %v5446 = vpop.f32.mrb[0].mxu0
        %5447 = vmatprep.mubr.f32.mxu0 0.0
        %5448 = vmatmul.mubr.f32.gmra.mrb[0].mxu0 %v951
        %v5449 = vpop.f32.mrb[0].mxu0
        %v5450 = vadd.f32 %v5326, %v5449
        %v5451 = vpop.f32.mrb[0].mxu0
        %5452 = vmatprep.mubr.f32.mxu0 0.0
        %5453 = vmatmul.mubr.f32.gmra.mrb[0].mxu0 %v954
        %v5454 = vpop.f32.mrb[0].mxu0
        %v5455 = vadd.f32 %v5326, %v5454
        %v5456 = vpop.f32.mrb[0].mxu0
        %5457 = vmatprep.mubr.f32.mxu0 0.0
        %5458 = vmatmul.mubr.f32.gmra.mrb[0].mxu0 %v957
        %v5459 = vpop.f32.mrb[0].mxu0
        %v5460 = vadd.f32 %v5326, %v5459
        %v5461 = vpop.f32.mrb[0].mxu0
        %5462 = vmatprep.mubr.f32.mxu0 0.0
        %5463 = vmatmul.mubr.f32.gmra.mrb[0].mxu0 %v960
        %v5464 = vpop.f32.mrb[0].mxu0
        %v5465 = vadd.f32 %v5326, %v5464
        %v5466 = vpop.f32.mrb[0].mxu0
        %5467 = vmatprep.mubr.f32.mxu0 0.0
        %5468 = vmatmul.mubr.f32.gmra.mrb[0].mxu0 %v963
        %v5469 = vpop.f32.mrb[0].mxu0
        %v5470 = vadd.f32 %v5326, %v5469
        %v5471 = vpop.f32.mrb[0].mxu0
        %5472 = vdwg.mxu0
        %v5473 = vld [vmem:[%s8] sm:$0xff]
        %v5474 = vld [vmem:[%s8 + $0x8] sm:$0xff]
        %v5475 = vld [vmem:[%s8 + $0x10] sm:$0xff]
        %v5476 = vld [vmem:[%s8 + $0x18] sm:$0xff]
        %v5477 = vld [vmem:[%s8 + $0x20] sm:$0xff]
        %v5478 = vld [vmem:[%s8 + $0x28] sm:$0xff]
        %v5479 = vld [vmem:[%s8 + $0x30] sm:$0xff]
        %v5480 = vld [vmem:[%s8 + $0x38] sm:$0xff]
        %v5481 = vld [vmem:[%s9] sm:$0x1]
        %v5483 = vlaneseq
        %v5484 = vshrl.u32 %v5483, 7
        %v5485 = vsub.s32 0, %v5484
        %v5486 = vrot.slane %v5481, %v5485
        %5495 = vrot.lane.b32.xlu0 %v5473, 96
        %v5496 = vpop.permute.xlu0 %5495
        %5497 = vrot.lane.b32.xlu0 %v5474, 96
        %v5498 = vpop.permute.xlu0 %5497
        %5499 = vrot.lane.b32.xlu0 %v5475, 96
        %v5500 = vpop.permute.xlu0 %5499
        %5501 = vrot.lane.b32.xlu0 %v5476, 96
        %v5502 = vpop.permute.xlu0 %5501
        %5503 = vrot.lane.b32.xlu0 %v5477, 96
        %v5504 = vpop.permute.xlu0 %5503
        %5505 = vrot.lane.b32.xlu0 %v5478, 96
        %v5506 = vpop.permute.xlu0 %5505
        %5507 = vrot.lane.b32.xlu0 %v5479, 96
        %v5508 = vpop.permute.xlu0 %5507
        %5509 = vrot.lane.b32.xlu0 %v5480, 96
        %v5510 = vpop.permute.xlu0 %5509
        %5519 = vrot.lane.b32.xlu0 %v5486, 96
        %v5520 = vpop.permute.xlu0 %5519
        %5522 = vmatprep.subr.mxu0 0.0
        %5523 = vmatpush1.msra.mxu0 %v5496
        %5524 = vmatprep.subr.mxu0 0.0
        %5525 = vmatpush1.msra.mxu0 %v5498
        %5526 = vmatprep.subr.mxu0 0.0
        %5527 = vmatpush1.msra.mxu0 %v5500
        %5528 = vmatprep.subr.mxu0 0.0
        %5529 = vmatpush1.msra.mxu0 %v5502
        %5530 = vmatprep.subr.mxu0 0.0
        %5531 = vmatpush1.msra.mxu0 %v5504
        %5532 = vmatprep.subr.mxu0 0.0
        %5533 = vmatpush1.msra.mxu0 %v5506
        %5534 = vmatprep.subr.mxu0 0.0
        %5535 = vmatpush1.msra.mxu0 %v5508
        %5536 = vmatprep.subr.mxu0 0.0
        %5537 = vmatpush1.msra.mxu0 %v5510
        %5538 = vmatprep.subr.mxu0 0.0
        %5539 = vmatpush1.msra.mxu0 0.0
        %5540 = vmatprep.subr.mxu0 0.0
        %5541 = vmatpush1.msra.mxu0 0.0
        %5542 = vmatprep.subr.mxu0 0.0
        %5543 = vmatpush1.msra.mxu0 0.0
        %5544 = vmatprep.subr.mxu0 0.0
        %5545 = vmatpush1.msra.mxu0 0.0
        %5546 = vmatprep.subr.mxu0 0.0
        %5547 = vmatpush1.msra.mxu0 0.0
        %5548 = vmatprep.subr.mxu0 0.0
        %5549 = vmatpush1.msra.mxu0 0.0
        %5550 = vmatprep.subr.mxu0 0.0
        %5551 = vmatpush1.msra.mxu0 0.0
        %5552 = vmatprep.subr.mxu0 0.0
        %5553 = vmatpush1.msra.mxu0 0.0
        %5554 = vmatprep.subr.mxu0 0.0
        %5555 = vmatpush1.msra.mxu0 0.0
        %5556 = vmatprep.subr.mxu0 0.0
        %5557 = vmatpush1.msra.mxu0 0.0
        %5558 = vmatprep.subr.mxu0 0.0
        %5559 = vmatpush1.msra.mxu0 0.0
        %5560 = vmatprep.subr.mxu0 0.0
        %5561 = vmatpush1.msra.mxu0 0.0
        %5562 = vmatprep.subr.mxu0 0.0
        %5563 = vmatpush1.msra.mxu0 0.0
        %5564 = vmatprep.subr.mxu0 0.0
        %5565 = vmatpush1.msra.mxu0 0.0
        %5566 = vmatprep.subr.mxu0 0.0
        %5567 = vmatpush1.msra.mxu0 0.0
        %5568 = vmatprep.subr.mxu0 0.0
        %5569 = vmatpush1.msra.mxu0 0.0
        %5570 = vmatprep.subr.mxu0 0.0
        %5571 = vmatpush1.msra.mxu0 0.0
        %5572 = vmatprep.subr.mxu0 0.0
        %5573 = vmatpush1.msra.mxu0 0.0
        %5574 = vmatprep.subr.mxu0 0.0
        %5575 = vmatpush1.msra.mxu0 0.0
        %5576 = vmatprep.subr.mxu0 0.0
        %5577 = vmatpush1.msra.mxu0 0.0
        %5578 = vmatprep.subr.mxu0 0.0
        %5579 = vmatpush1.msra.mxu0 0.0
        %5580 = vmatprep.subr.mxu0 0.0
        %5581 = vmatpush1.msra.mxu0 0.0
        %5582 = vmatprep.subr.mxu0 0.0
        %5583 = vmatpush1.msra.mxu0 0.0
        %5584 = vmatprep.subr.mxu0 0.0
        %5585 = vmatpush1.msra.mxu0 0.0
        %5586 = vmatprep.mubr.f32.mxu0 0.0
        %5587 = vmatmul.mubr.f32.gmra.mrb[0].mxu0 %v918
        %v5588 = vpop.f32.mrb[0].mxu0
        %v5589 = vadd.f32 %v5520, %v5588
        %v5590 = vpop.f32.mrb[0].mxu0
        %5591 = vmatprep.mubr.f32.mxu0 0.0
        %5592 = vmatmul.mubr.f32.gmra.mrb[0].mxu0 %v921
        %v5593 = vpop.f32.mrb[0].mxu0
        %v5594 = vadd.f32 %v5520, %v5593
        %v5595 = vpop.f32.mrb[0].mxu0
        %5596 = vmatprep.mubr.f32.mxu0 0.0
        %5597 = vmatmul.mubr.f32.gmra.mrb[0].mxu0 %v924
        %v5598 = vpop.f32.mrb[0].mxu0
        %v5599 = vadd.f32 %v5520, %v5598
        %v5600 = vpop.f32.mrb[0].mxu0
        %5601 = vmatprep.mubr.f32.mxu0 0.0
        %5602 = vmatmul.mubr.f32.gmra.mrb[0].mxu0 %v927
        %v5603 = vpop.f32.mrb[0].mxu0
        %v5604 = vadd.f32 %v5520, %v5603
        %v5605 = vpop.f32.mrb[0].mxu0
        %5606 = vmatprep.mubr.f32.mxu0 0.0
        %5607 = vmatmul.mubr.f32.gmra.mrb[0].mxu0 %v930
        %v5608 = vpop.f32.mrb[0].mxu0
        %v5609 = vadd.f32 %v5520, %v5608
        %v5610 = vpop.f32.mrb[0].mxu0
        %5611 = vmatprep.mubr.f32.mxu0 0.0
        %5612 = vmatmul.mubr.f32.gmra.mrb[0].mxu0 %v933
        %v5613 = vpop.f32.mrb[0].mxu0
        %v5614 = vadd.f32 %v5520, %v5613
        %v5615 = vpop.f32.mrb[0].mxu0
        %5616 = vmatprep.mubr.f32.mxu0 0.0
        %5617 = vmatmul.mubr.f32.gmra.mrb[0].mxu0 %v936
        %v5618 = vpop.f32.mrb[0].mxu0
        %v5619 = vadd.f32 %v5520, %v5618
        %v5620 = vpop.f32.mrb[0].mxu0
        %5621 = vmatprep.mubr.f32.mxu0 0.0
        %5622 = vmatmul.mubr.f32.gmra.mrb[0].mxu0 %v939
        %v5623 = vpop.f32.mrb[0].mxu0
        %v5624 = vadd.f32 %v5520, %v5623
        %v5625 = vpop.f32.mrb[0].mxu0
        %5626 = vmatprep.mubr.f32.mxu0 0.0
        %5627 = vmatmul.mubr.f32.gmra.mrb[0].mxu0 %v942
        %v5628 = vpop.f32.mrb[0].mxu0
        %v5629 = vadd.f32 %v5520, %v5628
        %v5630 = vpop.f32.mrb[0].mxu0
        %5631 = vmatprep.mubr.f32.mxu0 0.0
        %5632 = vmatmul.mubr.f32.gmra.mrb[0].mxu0 %v945
        %v5633 = vpop.f32.mrb[0].mxu0
        %v5634 = vadd.f32 %v5520, %v5633
        %v5635 = vpop.f32.mrb[0].mxu0
        %5636 = vmatprep.mubr.f32.mxu0 0.0
        %5637 = vmatmul.mubr.f32.gmra.mrb[0].mxu0 %v948
        %v5638 = vpop.f32.mrb[0].mxu0
        %v5639 = vadd.f32 %v5520, %v5638
        %v5640 = vpop.f32.mrb[0].mxu0
        %5641 = vmatprep.mubr.f32.mxu0 0.0
        %5642 = vmatmul.mubr.f32.gmra.mrb[0].mxu0 %v951
        %v5643 = vpop.f32.mrb[0].mxu0
        %v5644 = vadd.f32 %v5520, %v5643
        %v5645 = vpop.f32.mrb[0].mxu0
        %5646 = vmatprep.mubr.f32.mxu0 0.0
        %5647 = vmatmul.mubr.f32.gmra.mrb[0].mxu0 %v954
        %v5648 = vpop.f32.mrb[0].mxu0
        %v5649 = vadd.f32 %v5520, %v5648
        %v5650 = vpop.f32.mrb[0].mxu0
        %5651 = vmatprep.mubr.f32.mxu0 0.0
        %5652 = vmatmul.mubr.f32.gmra.mrb[0].mxu0 %v957
        %v5653 = vpop.f32.mrb[0].mxu0
        %v5654 = vadd.f32 %v5520, %v5653
        %v5655 = vpop.f32.mrb[0].mxu0
        %5656 = vmatprep.mubr.f32.mxu0 0.0
        %5657 = vmatmul.mubr.f32.gmra.mrb[0].mxu0 %v960
        %v5658 = vpop.f32.mrb[0].mxu0
        %v5659 = vadd.f32 %v5520, %v5658
        %v5660 = vpop.f32.mrb[0].mxu0
        %5661 = vmatprep.mubr.f32.mxu0 0.0
        %5662 = vmatmul.mubr.f32.gmra.mrb[0].mxu0 %v963
        %v5663 = vpop.f32.mrb[0].mxu0
        %v5664 = vadd.f32 %v5520, %v5663
        %v5665 = vpop.f32.mrb[0].mxu0
        %5666 = vdwg.mxu0
        %v5667 = vmul.f32 %v5201, 0.25
        %v5668 = vmul.f32 %v5206, 0.25
        %v5669 = vmul.f32 %v5211, 0.25
        %v5670 = vmul.f32 %v5216, 0.25
        %v5671 = vmul.f32 %v5221, 0.25
        %v5672 = vmul.f32 %v5226, 0.25
        %v5673 = vmul.f32 %v5231, 0.25
        %v5674 = vmul.f32 %v5236, 0.25
        %v5675 = vmul.f32 %v5241, 0.25
        %v5676 = vmul.f32 %v5246, 0.25
        %v5677 = vmul.f32 %v5251, 0.25
        %v5678 = vmul.f32 %v5256, 0.25
        %v5679 = vmul.f32 %v5261, 0.25
        %v5680 = vmul.f32 %v5266, 0.25
        %v5681 = vmul.f32 %v5271, 0.25
        %v5682 = vmul.f32 %v5276, 0.25
        %v5684 = vsel %vm1446, %v5667, 0
        %v5687 = vsel %vm1446, %v5668, 0
        %v5690 = vsel %vm1446, %v5395, 0
        %v5693 = vsel %vm1446, %v5400, 0
        %5695 = vmatprep.subr.mxu0 0.0
        %5696 = vmatpush1.xpose.msra.mxu0 %v5690
        %5697 = vmatprep.subr.mxu0 0.0
        %5698 = vmatpush1.xpose.msra.mxu0 %v5693
        %5699 = vmatprep.subr.mxu0 0.0
        %5700 = vmatpush1.xpose.msra.mxu0 0.0
        %5701 = vmatprep.subr.mxu0 0.0
        %5702 = vmatpush1.xpose.msra.mxu0 0.0
        %5703 = vmatprep.subr.mxu0 0.0
        %5704 = vmatpush1.xpose.msra.mxu0 0.0
        %5705 = vmatprep.subr.mxu0 0.0
        %5706 = vmatpush1.xpose.msra.mxu0 0.0
        %5707 = vmatprep.subr.mxu0 0.0
        %5708 = vmatpush1.xpose.msra.mxu0 0.0
        %5709 = vmatprep.subr.mxu0 0.0
        %5710 = vmatpush1.xpose.msra.mxu0 0.0
        %5711 = vmatprep.subr.mxu0 0.0
        %5712 = vmatpush1.xpose.msra.mxu0 0.0
        %5713 = vmatprep.subr.mxu0 0.0
        %5714 = vmatpush1.xpose.msra.mxu0 0.0
        %5715 = vmatprep.subr.mxu0 0.0
        %5716 = vmatpush1.xpose.msra.mxu0 0.0
        %5717 = vmatprep.subr.mxu0 0.0
        %5718 = vmatpush1.xpose.msra.mxu0 0.0
        %5719 = vmatprep.subr.mxu0 0.0
        %5720 = vmatpush1.xpose.msra.mxu0 0.0
        %5721 = vmatprep.subr.mxu0 0.0
        %5722 = vmatpush1.xpose.msra.mxu0 0.0
        %5723 = vmatprep.subr.mxu0 0.0
        %5724 = vmatpush1.xpose.msra.mxu0 0.0
        %5725 = vmatprep.subr.mxu0 0.0
        %5726 = vmatpush1.xpose.msra.mxu0 0.0
        %5727 = vmatprep.subr.mxu0 0.0
        %5728 = vmatpush1.xpose.msra.mxu0 0.0
        %5729 = vmatprep.subr.mxu0 0.0
        %5730 = vmatpush1.xpose.msra.mxu0 0.0
        %5731 = vmatprep.subr.mxu0 0.0
        %5732 = vmatpush1.xpose.msra.mxu0 0.0
        %5733 = vmatprep.subr.mxu0 0.0
        %5734 = vmatpush1.xpose.msra.mxu0 0.0
        %5735 = vmatprep.subr.mxu0 0.0
        %5736 = vmatpush1.xpose.msra.mxu0 0.0
        %5737 = vmatprep.subr.mxu0 0.0
        %5738 = vmatpush1.xpose.msra.mxu0 0.0
        %5739 = vmatprep.subr.mxu0 0.0
        %5740 = vmatpush1.xpose.msra.mxu0 0.0
        %5741 = vmatprep.subr.mxu0 0.0
        %5742 = vmatpush1.xpose.msra.mxu0 0.0
        %5743 = vmatprep.subr.mxu0 0.0
        %5744 = vmatpush1.xpose.msra.mxu0 0.0
        %5745 = vmatprep.subr.mxu0 0.0
        %5746 = vmatpush1.xpose.msra.mxu0 0.0
        %5747 = vmatprep.subr.mxu0 0.0
        %5748 = vmatpush1.xpose.msra.mxu0 0.0
        %5749 = vmatprep.subr.mxu0 0.0
        %5750 = vmatpush1.xpose.msra.mxu0 0.0
        %5751 = vmatprep.subr.mxu0 0.0
        %5752 = vmatpush1.xpose.msra.mxu0 0.0
        %5753 = vmatprep.subr.mxu0 0.0
        %5754 = vmatpush1.xpose.msra.mxu0 0.0
        %5755 = vmatprep.subr.mxu0 0.0
        %5756 = vmatpush1.xpose.msra.mxu0 0.0
        %5757 = vmatprep.subr.mxu0 0.0
        %5758 = vmatpush1.xpose.msra.mxu0 0.0
        %5759 = vmatprep.mubr.f32.mxu0 0.0
        %5760 = vmatmul.mubr.f32.gmra.mrb[0].mxu0 %v5684
        %v5761 = vpop.f32.mrb[0].mxu0
        %v5762 = vadd.f32 0.0, %v5761
        %v5763 = vpop.f32.mrb[0].mxu0
        %5764 = vmatprep.mubr.f32.mxu0 0.0
        %5765 = vmatmul.mubr.f32.gmra.mrb[0].mxu0 %v5687
        %v5766 = vpop.f32.mrb[0].mxu0
        %v5767 = vadd.f32 0.0, %v5766
        %v5768 = vpop.f32.mrb[0].mxu0
        %5769 = vdwg.mxu0
        %v5771 = vsel %vm1446, %v5669, 0
        %v5774 = vsel %vm1446, %v5670, 0
        %v5777 = vsel %vm1446, %v5405, 0
        %v5780 = vsel %vm1446, %v5410, 0
        %5782 = vmatprep.subr.mxu0 0.0
        %5783 = vmatpush1.xpose.msra.mxu0 %v5777
        %5784 = vmatprep.subr.mxu0 0.0
        %5785 = vmatpush1.xpose.msra.mxu0 %v5780
        %5786 = vmatprep.subr.mxu0 0.0
        %5787 = vmatpush1.xpose.msra.mxu0 0.0
        %5788 = vmatprep.subr.mxu0 0.0
        %5789 = vmatpush1.xpose.msra.mxu0 0.0
        %5790 = vmatprep.subr.mxu0 0.0
        %5791 = vmatpush1.xpose.msra.mxu0 0.0
        %5792 = vmatprep.subr.mxu0 0.0
        %5793 = vmatpush1.xpose.msra.mxu0 0.0
        %5794 = vmatprep.subr.mxu0 0.0
        %5795 = vmatpush1.xpose.msra.mxu0 0.0
        %5796 = vmatprep.subr.mxu0 0.0
        %5797 = vmatpush1.xpose.msra.mxu0 0.0
        %5798 = vmatprep.subr.mxu0 0.0
        %5799 = vmatpush1.xpose.msra.mxu0 0.0
        %5800 = vmatprep.subr.mxu0 0.0
        %5801 = vmatpush1.xpose.msra.mxu0 0.0
        %5802 = vmatprep.subr.mxu0 0.0
        %5803 = vmatpush1.xpose.msra.mxu0 0.0
        %5804 = vmatprep.subr.mxu0 0.0
        %5805 = vmatpush1.xpose.msra.mxu0 0.0
        %5806 = vmatprep.subr.mxu0 0.0
        %5807 = vmatpush1.xpose.msra.mxu0 0.0
        %5808 = vmatprep.subr.mxu0 0.0
        %5809 = vmatpush1.xpose.msra.mxu0 0.0
        %5810 = vmatprep.subr.mxu0 0.0
        %5811 = vmatpush1.xpose.msra.mxu0 0.0
        %5812 = vmatprep.subr.mxu0 0.0
        %5813 = vmatpush1.xpose.msra.mxu0 0.0
        %5814 = vmatprep.subr.mxu0 0.0
        %5815 = vmatpush1.xpose.msra.mxu0 0.0
        %5816 = vmatprep.subr.mxu0 0.0
        %5817 = vmatpush1.xpose.msra.mxu0 0.0
        %5818 = vmatprep.subr.mxu0 0.0
        %5819 = vmatpush1.xpose.msra.mxu0 0.0
        %5820 = vmatprep.subr.mxu0 0.0
        %5821 = vmatpush1.xpose.msra.mxu0 0.0
        %5822 = vmatprep.subr.mxu0 0.0
        %5823 = vmatpush1.xpose.msra.mxu0 0.0
        %5824 = vmatprep.subr.mxu0 0.0
        %5825 = vmatpush1.xpose.msra.mxu0 0.0
        %5826 = vmatprep.subr.mxu0 0.0
        %5827 = vmatpush1.xpose.msra.mxu0 0.0
        %5828 = vmatprep.subr.mxu0 0.0
        %5829 = vmatpush1.xpose.msra.mxu0 0.0
        %5830 = vmatprep.subr.mxu0 0.0
        %5831 = vmatpush1.xpose.msra.mxu0 0.0
        %5832 = vmatprep.subr.mxu0 0.0
        %5833 = vmatpush1.xpose.msra.mxu0 0.0
        %5834 = vmatprep.subr.mxu0 0.0
        %5835 = vmatpush1.xpose.msra.mxu0 0.0
        %5836 = vmatprep.subr.mxu0 0.0
        %5837 = vmatpush1.xpose.msra.mxu0 0.0
        %5838 = vmatprep.subr.mxu0 0.0
        %5839 = vmatpush1.xpose.msra.mxu0 0.0
        %5840 = vmatprep.subr.mxu0 0.0
        %5841 = vmatpush1.xpose.msra.mxu0 0.0
        %5842 = vmatprep.subr.mxu0 0.0
        %5843 = vmatpush1.xpose.msra.mxu0 0.0
        %5844 = vmatprep.subr.mxu0 0.0
        %5845 = vmatpush1.xpose.msra.mxu0 0.0
        %5846 = vmatprep.mubr.f32.mxu0 0.0
        %5847 = vmatmul.mubr.f32.gmra.mrb[0].mxu0 %v5771
        %v5848 = vpop.f32.mrb[0].mxu0
        %v5849 = vadd.f32 0.0, %v5848
        %v5850 = vpop.f32.mrb[0].mxu0
        %5851 = vmatprep.mubr.f32.mxu0 0.0
        %5852 = vmatmul.mubr.f32.gmra.mrb[0].mxu0 %v5774
        %v5853 = vpop.f32.mrb[0].mxu0
        %v5854 = vadd.f32 0.0, %v5853
        %v5855 = vpop.f32.mrb[0].mxu0
        %5856 = vdwg.mxu0
        %v5858 = vsel %vm1446, %v5671, 0
        %v5861 = vsel %vm1446, %v5672, 0
        %v5864 = vsel %vm1446, %v5415, 0
        %v5867 = vsel %vm1446, %v5420, 0
        %5869 = vmatprep.subr.mxu0 0.0
        %5870 = vmatpush1.xpose.msra.mxu0 %v5864
        %5871 = vmatprep.subr.mxu0 0.0
        %5872 = vmatpush1.xpose.msra.mxu0 %v5867
        %5873 = vmatprep.subr.mxu0 0.0
        %5874 = vmatpush1.xpose.msra.mxu0 0.0
        %5875 = vmatprep.subr.mxu0 0.0
        %5876 = vmatpush1.xpose.msra.mxu0 0.0
        %5877 = vmatprep.subr.mxu0 0.0
        %5878 = vmatpush1.xpose.msra.mxu0 0.0
        %5879 = vmatprep.subr.mxu0 0.0
        %5880 = vmatpush1.xpose.msra.mxu0 0.0
        %5881 = vmatprep.subr.mxu0 0.0
        %5882 = vmatpush1.xpose.msra.mxu0 0.0
        %5883 = vmatprep.subr.mxu0 0.0
        %5884 = vmatpush1.xpose.msra.mxu0 0.0
        %5885 = vmatprep.subr.mxu0 0.0
        %5886 = vmatpush1.xpose.msra.mxu0 0.0
        %5887 = vmatprep.subr.mxu0 0.0
        %5888 = vmatpush1.xpose.msra.mxu0 0.0
        %5889 = vmatprep.subr.mxu0 0.0
        %5890 = vmatpush1.xpose.msra.mxu0 0.0
        %5891 = vmatprep.subr.mxu0 0.0
        %5892 = vmatpush1.xpose.msra.mxu0 0.0
        %5893 = vmatprep.subr.mxu0 0.0
        %5894 = vmatpush1.xpose.msra.mxu0 0.0
        %5895 = vmatprep.subr.mxu0 0.0
        %5896 = vmatpush1.xpose.msra.mxu0 0.0
        %5897 = vmatprep.subr.mxu0 0.0
        %5898 = vmatpush1.xpose.msra.mxu0 0.0
        %5899 = vmatprep.subr.mxu0 0.0
        %5900 = vmatpush1.xpose.msra.mxu0 0.0
        %5901 = vmatprep.subr.mxu0 0.0
        %5902 = vmatpush1.xpose.msra.mxu0 0.0
        %5903 = vmatprep.subr.mxu0 0.0
        %5904 = vmatpush1.xpose.msra.mxu0 0.0
        %5905 = vmatprep.subr.mxu0 0.0
        %5906 = vmatpush1.xpose.msra.mxu0 0.0
        %5907 = vmatprep.subr.mxu0 0.0
        %5908 = vmatpush1.xpose.msra.mxu0 0.0
        %5909 = vmatprep.subr.mxu0 0.0
        %5910 = vmatpush1.xpose.msra.mxu0 0.0
        %5911 = vmatprep.subr.mxu0 0.0
        %5912 = vmatpush1.xpose.msra.mxu0 0.0
        %5913 = vmatprep.subr.mxu0 0.0
        %5914 = vmatpush1.xpose.msra.mxu0 0.0
        %5915 = vmatprep.subr.mxu0 0.0
        %5916 = vmatpush1.xpose.msra.mxu0 0.0
        %5917 = vmatprep.subr.mxu0 0.0
        %5918 = vmatpush1.xpose.msra.mxu0 0.0
        %5919 = vmatprep.subr.mxu0 0.0
        %5920 = vmatpush1.xpose.msra.mxu0 0.0
        %5921 = vmatprep.subr.mxu0 0.0
        %5922 = vmatpush1.xpose.msra.mxu0 0.0
        %5923 = vmatprep.subr.mxu0 0.0
        %5924 = vmatpush1.xpose.msra.mxu0 0.0
        %5925 = vmatprep.subr.mxu0 0.0
        %5926 = vmatpush1.xpose.msra.mxu0 0.0
        %5927 = vmatprep.subr.mxu0 0.0
        %5928 = vmatpush1.xpose.msra.mxu0 0.0
        %5929 = vmatprep.subr.mxu0 0.0
        %5930 = vmatpush1.xpose.msra.mxu0 0.0
        %5931 = vmatprep.subr.mxu0 0.0
        %5932 = vmatpush1.xpose.msra.mxu0 0.0
        %5933 = vmatprep.mubr.f32.mxu0 0.0
        %5934 = vmatmul.mubr.f32.gmra.mrb[0].mxu0 %v5858
        %v5935 = vpop.f32.mrb[0].mxu0
        %v5936 = vadd.f32 0.0, %v5935
        %v5937 = vpop.f32.mrb[0].mxu0
        %5938 = vmatprep.mubr.f32.mxu0 0.0
        %5939 = vmatmul.mubr.f32.gmra.mrb[0].mxu0 %v5861
        %v5940 = vpop.f32.mrb[0].mxu0
        %v5941 = vadd.f32 0.0, %v5940
        %v5942 = vpop.f32.mrb[0].mxu0
        %5943 = vdwg.mxu0
        %v5945 = vsel %vm1446, %v5673, 0
        %v5948 = vsel %vm1446, %v5674, 0
        %v5951 = vsel %vm1446, %v5425, 0
        %v5954 = vsel %vm1446, %v5430, 0
        %5956 = vmatprep.subr.mxu0 0.0
        %5957 = vmatpush1.xpose.msra.mxu0 %v5951
        %5958 = vmatprep.subr.mxu0 0.0
        %5959 = vmatpush1.xpose.msra.mxu0 %v5954
        %5960 = vmatprep.subr.mxu0 0.0
        %5961 = vmatpush1.xpose.msra.mxu0 0.0
        %5962 = vmatprep.subr.mxu0 0.0
        %5963 = vmatpush1.xpose.msra.mxu0 0.0
        %5964 = vmatprep.subr.mxu0 0.0
        %5965 = vmatpush1.xpose.msra.mxu0 0.0
        %5966 = vmatprep.subr.mxu0 0.0
        %5967 = vmatpush1.xpose.msra.mxu0 0.0
        %5968 = vmatprep.subr.mxu0 0.0
        %5969 = vmatpush1.xpose.msra.mxu0 0.0
        %5970 = vmatprep.subr.mxu0 0.0
        %5971 = vmatpush1.xpose.msra.mxu0 0.0
        %5972 = vmatprep.subr.mxu0 0.0
        %5973 = vmatpush1.xpose.msra.mxu0 0.0
        %5974 = vmatprep.subr.mxu0 0.0
        %5975 = vmatpush1.xpose.msra.mxu0 0.0
        %5976 = vmatprep.subr.mxu0 0.0
        %5977 = vmatpush1.xpose.msra.mxu0 0.0
        %5978 = vmatprep.subr.mxu0 0.0
        %5979 = vmatpush1.xpose.msra.mxu0 0.0
        %5980 = vmatprep.subr.mxu0 0.0
        %5981 = vmatpush1.xpose.msra.mxu0 0.0
        %5982 = vmatprep.subr.mxu0 0.0
        %5983 = vmatpush1.xpose.msra.mxu0 0.0
        %5984 = vmatprep.subr.mxu0 0.0
        %5985 = vmatpush1.xpose.msra.mxu0 0.0
        %5986 = vmatprep.subr.mxu0 0.0
        %5987 = vmatpush1.xpose.msra.mxu0 0.0
        %5988 = vmatprep.subr.mxu0 0.0
        %5989 = vmatpush1.xpose.msra.mxu0 0.0
        %5990 = vmatprep.subr.mxu0 0.0
        %5991 = vmatpush1.xpose.msra.mxu0 0.0
        %5992 = vmatprep.subr.mxu0 0.0
        %5993 = vmatpush1.xpose.msra.mxu0 0.0
        %5994 = vmatprep.subr.mxu0 0.0
        %5995 = vmatpush1.xpose.msra.mxu0 0.0
        %5996 = vmatprep.subr.mxu0 0.0
        %5997 = vmatpush1.xpose.msra.mxu0 0.0
        %5998 = vmatprep.subr.mxu0 0.0
        %5999 = vmatpush1.xpose.msra.mxu0 0.0
        %6000 = vmatprep.subr.mxu0 0.0
        %6001 = vmatpush1.xpose.msra.mxu0 0.0
        %6002 = vmatprep.subr.mxu0 0.0
        %6003 = vmatpush1.xpose.msra.mxu0 0.0
        %6004 = vmatprep.subr.mxu0 0.0
        %6005 = vmatpush1.xpose.msra.mxu0 0.0
        %6006 = vmatprep.subr.mxu0 0.0
        %6007 = vmatpush1.xpose.msra.mxu0 0.0
        %6008 = vmatprep.subr.mxu0 0.0
        %6009 = vmatpush1.xpose.msra.mxu0 0.0
        %6010 = vmatprep.subr.mxu0 0.0
        %6011 = vmatpush1.xpose.msra.mxu0 0.0
        %6012 = vmatprep.subr.mxu0 0.0
        %6013 = vmatpush1.xpose.msra.mxu0 0.0
        %6014 = vmatprep.subr.mxu0 0.0
        %6015 = vmatpush1.xpose.msra.mxu0 0.0
        %6016 = vmatprep.subr.mxu0 0.0
        %6017 = vmatpush1.xpose.msra.mxu0 0.0
        %6018 = vmatprep.subr.mxu0 0.0
        %6019 = vmatpush1.xpose.msra.mxu0 0.0
        %6020 = vmatprep.mubr.f32.mxu0 0.0
        %6021 = vmatmul.mubr.f32.gmra.mrb[0].mxu0 %v5945
        %v6022 = vpop.f32.mrb[0].mxu0
        %v6023 = vadd.f32 0.0, %v6022
        %v6024 = vpop.f32.mrb[0].mxu0
        %6025 = vmatprep.mubr.f32.mxu0 0.0
        %6026 = vmatmul.mubr.f32.gmra.mrb[0].mxu0 %v5948
        %v6027 = vpop.f32.mrb[0].mxu0
        %v6028 = vadd.f32 0.0, %v6027
        %v6029 = vpop.f32.mrb[0].mxu0
        %6030 = vdwg.mxu0
        %v6032 = vsel %vm1446, %v5675, 0
        %v6035 = vsel %vm1446, %v5676, 0
        %v6038 = vsel %vm1446, %v5435, 0
        %v6041 = vsel %vm1446, %v5440, 0
        %6043 = vmatprep.subr.mxu0 0.0
        %6044 = vmatpush1.xpose.msra.mxu0 %v6038
        %6045 = vmatprep.subr.mxu0 0.0
        %6046 = vmatpush1.xpose.msra.mxu0 %v6041
        %6047 = vmatprep.subr.mxu0 0.0
        %6048 = vmatpush1.xpose.msra.mxu0 0.0
        %6049 = vmatprep.subr.mxu0 0.0
        %6050 = vmatpush1.xpose.msra.mxu0 0.0
        %6051 = vmatprep.subr.mxu0 0.0
        %6052 = vmatpush1.xpose.msra.mxu0 0.0
        %6053 = vmatprep.subr.mxu0 0.0
        %6054 = vmatpush1.xpose.msra.mxu0 0.0
        %6055 = vmatprep.subr.mxu0 0.0
        %6056 = vmatpush1.xpose.msra.mxu0 0.0
        %6057 = vmatprep.subr.mxu0 0.0
        %6058 = vmatpush1.xpose.msra.mxu0 0.0
        %6059 = vmatprep.subr.mxu0 0.0
        %6060 = vmatpush1.xpose.msra.mxu0 0.0
        %6061 = vmatprep.subr.mxu0 0.0
        %6062 = vmatpush1.xpose.msra.mxu0 0.0
        %6063 = vmatprep.subr.mxu0 0.0
        %6064 = vmatpush1.xpose.msra.mxu0 0.0
        %6065 = vmatprep.subr.mxu0 0.0
        %6066 = vmatpush1.xpose.msra.mxu0 0.0
        %6067 = vmatprep.subr.mxu0 0.0
        %6068 = vmatpush1.xpose.msra.mxu0 0.0
        %6069 = vmatprep.subr.mxu0 0.0
        %6070 = vmatpush1.xpose.msra.mxu0 0.0
        %6071 = vmatprep.subr.mxu0 0.0
        %6072 = vmatpush1.xpose.msra.mxu0 0.0
        %6073 = vmatprep.subr.mxu0 0.0
        %6074 = vmatpush1.xpose.msra.mxu0 0.0
        %6075 = vmatprep.subr.mxu0 0.0
        %6076 = vmatpush1.xpose.msra.mxu0 0.0
        %6077 = vmatprep.subr.mxu0 0.0
        %6078 = vmatpush1.xpose.msra.mxu0 0.0
        %6079 = vmatprep.subr.mxu0 0.0
        %6080 = vmatpush1.xpose.msra.mxu0 0.0
        %6081 = vmatprep.subr.mxu0 0.0
        %6082 = vmatpush1.xpose.msra.mxu0 0.0
        %6083 = vmatprep.subr.mxu0 0.0
        %6084 = vmatpush1.xpose.msra.mxu0 0.0
        %6085 = vmatprep.subr.mxu0 0.0
        %6086 = vmatpush1.xpose.msra.mxu0 0.0
        %6087 = vmatprep.subr.mxu0 0.0
        %6088 = vmatpush1.xpose.msra.mxu0 0.0
        %6089 = vmatprep.subr.mxu0 0.0
        %6090 = vmatpush1.xpose.msra.mxu0 0.0
        %6091 = vmatprep.subr.mxu0 0.0
        %6092 = vmatpush1.xpose.msra.mxu0 0.0
        %6093 = vmatprep.subr.mxu0 0.0
        %6094 = vmatpush1.xpose.msra.mxu0 0.0
        %6095 = vmatprep.subr.mxu0 0.0
        %6096 = vmatpush1.xpose.msra.mxu0 0.0
        %6097 = vmatprep.subr.mxu0 0.0
        %6098 = vmatpush1.xpose.msra.mxu0 0.0
        %6099 = vmatprep.subr.mxu0 0.0
        %6100 = vmatpush1.xpose.msra.mxu0 0.0
        %6101 = vmatprep.subr.mxu0 0.0
        %6102 = vmatpush1.xpose.msra.mxu0 0.0
        %6103 = vmatprep.subr.mxu0 0.0
        %6104 = vmatpush1.xpose.msra.mxu0 0.0
        %6105 = vmatprep.subr.mxu0 0.0
        %6106 = vmatpush1.xpose.msra.mxu0 0.0
        %6107 = vmatprep.mubr.f32.mxu0 0.0
        %6108 = vmatmul.mubr.f32.gmra.mrb[0].mxu0 %v6032
        %v6109 = vpop.f32.mrb[0].mxu0
        %v6110 = vadd.f32 0.0, %v6109
        %v6111 = vpop.f32.mrb[0].mxu0
        %6112 = vmatprep.mubr.f32.mxu0 0.0
        %6113 = vmatmul.mubr.f32.gmra.mrb[0].mxu0 %v6035
        %v6114 = vpop.f32.mrb[0].mxu0
        %v6115 = vadd.f32 0.0, %v6114
        %v6116 = vpop.f32.mrb[0].mxu0
        %6117 = vdwg.mxu0
        %v6119 = vsel %vm1446, %v5677, 0
        %v6122 = vsel %vm1446, %v5678, 0
        %v6125 = vsel %vm1446, %v5445, 0
        %v6128 = vsel %vm1446, %v5450, 0
        %6130 = vmatprep.subr.mxu0 0.0
        %6131 = vmatpush1.xpose.msra.mxu0 %v6125
        %6132 = vmatprep.subr.mxu0 0.0
        %6133 = vmatpush1.xpose.msra.mxu0 %v6128
        %6134 = vmatprep.subr.mxu0 0.0
        %6135 = vmatpush1.xpose.msra.mxu0 0.0
        %6136 = vmatprep.subr.mxu0 0.0
        %6137 = vmatpush1.xpose.msra.mxu0 0.0
        %6138 = vmatprep.subr.mxu0 0.0
        %6139 = vmatpush1.xpose.msra.mxu0 0.0
        %6140 = vmatprep.subr.mxu0 0.0
        %6141 = vmatpush1.xpose.msra.mxu0 0.0
        %6142 = vmatprep.subr.mxu0 0.0
        %6143 = vmatpush1.xpose.msra.mxu0 0.0
        %6144 = vmatprep.subr.mxu0 0.0
        %6145 = vmatpush1.xpose.msra.mxu0 0.0
        %6146 = vmatprep.subr.mxu0 0.0
        %6147 = vmatpush1.xpose.msra.mxu0 0.0
        %6148 = vmatprep.subr.mxu0 0.0
        %6149 = vmatpush1.xpose.msra.mxu0 0.0
        %6150 = vmatprep.subr.mxu0 0.0
        %6151 = vmatpush1.xpose.msra.mxu0 0.0
        %6152 = vmatprep.subr.mxu0 0.0
        %6153 = vmatpush1.xpose.msra.mxu0 0.0
        %6154 = vmatprep.subr.mxu0 0.0
        %6155 = vmatpush1.xpose.msra.mxu0 0.0
        %6156 = vmatprep.subr.mxu0 0.0
        %6157 = vmatpush1.xpose.msra.mxu0 0.0
        %6158 = vmatprep.subr.mxu0 0.0
        %6159 = vmatpush1.xpose.msra.mxu0 0.0
        %6160 = vmatprep.subr.mxu0 0.0
        %6161 = vmatpush1.xpose.msra.mxu0 0.0
        %6162 = vmatprep.subr.mxu0 0.0
        %6163 = vmatpush1.xpose.msra.mxu0 0.0
        %6164 = vmatprep.subr.mxu0 0.0
        %6165 = vmatpush1.xpose.msra.mxu0 0.0
        %6166 = vmatprep.subr.mxu0 0.0
        %6167 = vmatpush1.xpose.msra.mxu0 0.0
        %6168 = vmatprep.subr.mxu0 0.0
        %6169 = vmatpush1.xpose.msra.mxu0 0.0
        %6170 = vmatprep.subr.mxu0 0.0
        %6171 = vmatpush1.xpose.msra.mxu0 0.0
        %6172 = vmatprep.subr.mxu0 0.0
        %6173 = vmatpush1.xpose.msra.mxu0 0.0
        %6174 = vmatprep.subr.mxu0 0.0
        %6175 = vmatpush1.xpose.msra.mxu0 0.0
        %6176 = vmatprep.subr.mxu0 0.0
        %6177 = vmatpush1.xpose.msra.mxu0 0.0
        %6178 = vmatprep.subr.mxu0 0.0
        %6179 = vmatpush1.xpose.msra.mxu0 0.0
        %6180 = vmatprep.subr.mxu0 0.0
        %6181 = vmatpush1.xpose.msra.mxu0 0.0
        %6182 = vmatprep.subr.mxu0 0.0
        %6183 = vmatpush1.xpose.msra.mxu0 0.0
        %6184 = vmatprep.subr.mxu0 0.0
        %6185 = vmatpush1.xpose.msra.mxu0 0.0
        %6186 = vmatprep.subr.mxu0 0.0
        %6187 = vmatpush1.xpose.msra.mxu0 0.0
        %6188 = vmatprep.subr.mxu0 0.0
        %6189 = vmatpush1.xpose.msra.mxu0 0.0
        %6190 = vmatprep.subr.mxu0 0.0
        %6191 = vmatpush1.xpose.msra.mxu0 0.0
        %6192 = vmatprep.subr.mxu0 0.0
        %6193 = vmatpush1.xpose.msra.mxu0 0.0
        %6194 = vmatprep.mubr.f32.mxu0 0.0
        %6195 = vmatmul.mubr.f32.gmra.mrb[0].mxu0 %v6119
        %v6196 = vpop.f32.mrb[0].mxu0
        %v6197 = vadd.f32 0.0, %v6196
        %v6198 = vpop.f32.mrb[0].mxu0
        %6199 = vmatprep.mubr.f32.mxu0 0.0
        %6200 = vmatmul.mubr.f32.gmra.mrb[0].mxu0 %v6122
        %v6201 = vpop.f32.mrb[0].mxu0
        %v6202 = vadd.f32 0.0, %v6201
        %v6203 = vpop.f32.mrb[0].mxu0
        %6204 = vdwg.mxu0
        %v6206 = vsel %vm1446, %v5679, 0
        %v6209 = vsel %vm1446, %v5680, 0
        %v6212 = vsel %vm1446, %v5455, 0
        %v6215 = vsel %vm1446, %v5460, 0
        %6217 = vmatprep.subr.mxu0 0.0
        %6218 = vmatpush1.xpose.msra.mxu0 %v6212
        %6219 = vmatprep.subr.mxu0 0.0
        %6220 = vmatpush1.xpose.msra.mxu0 %v6215
        %6221 = vmatprep.subr.mxu0 0.0
        %6222 = vmatpush1.xpose.msra.mxu0 0.0
        %6223 = vmatprep.subr.mxu0 0.0
        %6224 = vmatpush1.xpose.msra.mxu0 0.0
        %6225 = vmatprep.subr.mxu0 0.0
        %6226 = vmatpush1.xpose.msra.mxu0 0.0
        %6227 = vmatprep.subr.mxu0 0.0
        %6228 = vmatpush1.xpose.msra.mxu0 0.0
        %6229 = vmatprep.subr.mxu0 0.0
        %6230 = vmatpush1.xpose.msra.mxu0 0.0
        %6231 = vmatprep.subr.mxu0 0.0
        %6232 = vmatpush1.xpose.msra.mxu0 0.0
        %6233 = vmatprep.subr.mxu0 0.0
        %6234 = vmatpush1.xpose.msra.mxu0 0.0
        %6235 = vmatprep.subr.mxu0 0.0
        %6236 = vmatpush1.xpose.msra.mxu0 0.0
        %6237 = vmatprep.subr.mxu0 0.0
        %6238 = vmatpush1.xpose.msra.mxu0 0.0
        %6239 = vmatprep.subr.mxu0 0.0
        %6240 = vmatpush1.xpose.msra.mxu0 0.0
        %6241 = vmatprep.subr.mxu0 0.0
        %6242 = vmatpush1.xpose.msra.mxu0 0.0
        %6243 = vmatprep.subr.mxu0 0.0
        %6244 = vmatpush1.xpose.msra.mxu0 0.0
        %6245 = vmatprep.subr.mxu0 0.0
        %6246 = vmatpush1.xpose.msra.mxu0 0.0
        %6247 = vmatprep.subr.mxu0 0.0
        %6248 = vmatpush1.xpose.msra.mxu0 0.0
        %6249 = vmatprep.subr.mxu0 0.0
        %6250 = vmatpush1.xpose.msra.mxu0 0.0
        %6251 = vmatprep.subr.mxu0 0.0
        %6252 = vmatpush1.xpose.msra.mxu0 0.0
        %6253 = vmatprep.subr.mxu0 0.0
        %6254 = vmatpush1.xpose.msra.mxu0 0.0
        %6255 = vmatprep.subr.mxu0 0.0
        %6256 = vmatpush1.xpose.msra.mxu0 0.0
        %6257 = vmatprep.subr.mxu0 0.0
        %6258 = vmatpush1.xpose.msra.mxu0 0.0
        %6259 = vmatprep.subr.mxu0 0.0
        %6260 = vmatpush1.xpose.msra.mxu0 0.0
        %6261 = vmatprep.subr.mxu0 0.0
        %6262 = vmatpush1.xpose.msra.mxu0 0.0
        %6263 = vmatprep.subr.mxu0 0.0
        %6264 = vmatpush1.xpose.msra.mxu0 0.0
        %6265 = vmatprep.subr.mxu0 0.0
        %6266 = vmatpush1.xpose.msra.mxu0 0.0
        %6267 = vmatprep.subr.mxu0 0.0
        %6268 = vmatpush1.xpose.msra.mxu0 0.0
        %6269 = vmatprep.subr.mxu0 0.0
        %6270 = vmatpush1.xpose.msra.mxu0 0.0
        %6271 = vmatprep.subr.mxu0 0.0
        %6272 = vmatpush1.xpose.msra.mxu0 0.0
        %6273 = vmatprep.subr.mxu0 0.0
        %6274 = vmatpush1.xpose.msra.mxu0 0.0
        %6275 = vmatprep.subr.mxu0 0.0
        %6276 = vmatpush1.xpose.msra.mxu0 0.0
        %6277 = vmatprep.subr.mxu0 0.0
        %6278 = vmatpush1.xpose.msra.mxu0 0.0
        %6279 = vmatprep.subr.mxu0 0.0
        %6280 = vmatpush1.xpose.msra.mxu0 0.0
        %6281 = vmatprep.mubr.f32.mxu0 0.0
        %6282 = vmatmul.mubr.f32.gmra.mrb[0].mxu0 %v6206
        %v6283 = vpop.f32.mrb[0].mxu0
        %v6284 = vadd.f32 0.0, %v6283
        %v6285 = vpop.f32.mrb[0].mxu0
        %6286 = vmatprep.mubr.f32.mxu0 0.0
        %6287 = vmatmul.mubr.f32.gmra.mrb[0].mxu0 %v6209
        %v6288 = vpop.f32.mrb[0].mxu0
        %v6289 = vadd.f32 0.0, %v6288
        %v6290 = vpop.f32.mrb[0].mxu0
        %6291 = vdwg.mxu0
        %v6293 = vsel %vm1446, %v5681, 0
        %v6296 = vsel %vm1446, %v5682, 0
        %v6299 = vsel %vm1446, %v5465, 0
        %v6302 = vsel %vm1446, %v5470, 0
        %6304 = vmatprep.subr.mxu0 0.0
        %6305 = vmatpush1.xpose.msra.mxu0 %v6299
        %6306 = vmatprep.subr.mxu0 0.0
        %6307 = vmatpush1.xpose.msra.mxu0 %v6302
        %6308 = vmatprep.subr.mxu0 0.0
        %6309 = vmatpush1.xpose.msra.mxu0 0.0
        %6310 = vmatprep.subr.mxu0 0.0
        %6311 = vmatpush1.xpose.msra.mxu0 0.0
        %6312 = vmatprep.subr.mxu0 0.0
        %6313 = vmatpush1.xpose.msra.mxu0 0.0
        %6314 = vmatprep.subr.mxu0 0.0
        %6315 = vmatpush1.xpose.msra.mxu0 0.0
        %6316 = vmatprep.subr.mxu0 0.0
        %6317 = vmatpush1.xpose.msra.mxu0 0.0
        %6318 = vmatprep.subr.mxu0 0.0
        %6319 = vmatpush1.xpose.msra.mxu0 0.0
        %6320 = vmatprep.subr.mxu0 0.0
        %6321 = vmatpush1.xpose.msra.mxu0 0.0
        %6322 = vmatprep.subr.mxu0 0.0
        %6323 = vmatpush1.xpose.msra.mxu0 0.0
        %6324 = vmatprep.subr.mxu0 0.0
        %6325 = vmatpush1.xpose.msra.mxu0 0.0
        %6326 = vmatprep.subr.mxu0 0.0
        %6327 = vmatpush1.xpose.msra.mxu0 0.0
        %6328 = vmatprep.subr.mxu0 0.0
        %6329 = vmatpush1.xpose.msra.mxu0 0.0
        %6330 = vmatprep.subr.mxu0 0.0
        %6331 = vmatpush1.xpose.msra.mxu0 0.0
        %6332 = vmatprep.subr.mxu0 0.0
        %6333 = vmatpush1.xpose.msra.mxu0 0.0
        %6334 = vmatprep.subr.mxu0 0.0
        %6335 = vmatpush1.xpose.msra.mxu0 0.0
        %6336 = vmatprep.subr.mxu0 0.0
        %6337 = vmatpush1.xpose.msra.mxu0 0.0
        %6338 = vmatprep.subr.mxu0 0.0
        %6339 = vmatpush1.xpose.msra.mxu0 0.0
        %6340 = vmatprep.subr.mxu0 0.0
        %6341 = vmatpush1.xpose.msra.mxu0 0.0
        %6342 = vmatprep.subr.mxu0 0.0
        %6343 = vmatpush1.xpose.msra.mxu0 0.0
        %6344 = vmatprep.subr.mxu0 0.0
        %6345 = vmatpush1.xpose.msra.mxu0 0.0
        %6346 = vmatprep.subr.mxu0 0.0
        %6347 = vmatpush1.xpose.msra.mxu0 0.0
        %6348 = vmatprep.subr.mxu0 0.0
        %6349 = vmatpush1.xpose.msra.mxu0 0.0
        %6350 = vmatprep.subr.mxu0 0.0
        %6351 = vmatpush1.xpose.msra.mxu0 0.0
        %6352 = vmatprep.subr.mxu0 0.0
        %6353 = vmatpush1.xpose.msra.mxu0 0.0
        %6354 = vmatprep.subr.mxu0 0.0
        %6355 = vmatpush1.xpose.msra.mxu0 0.0
        %6356 = vmatprep.subr.mxu0 0.0
        %6357 = vmatpush1.xpose.msra.mxu0 0.0
        %6358 = vmatprep.subr.mxu0 0.0
        %6359 = vmatpush1.xpose.msra.mxu0 0.0
        %6360 = vmatprep.subr.mxu0 0.0
        %6361 = vmatpush1.xpose.msra.mxu0 0.0
        %6362 = vmatprep.subr.mxu0 0.0
        %6363 = vmatpush1.xpose.msra.mxu0 0.0
        %6364 = vmatprep.subr.mxu0 0.0
        %6365 = vmatpush1.xpose.msra.mxu0 0.0
        %6366 = vmatprep.subr.mxu0 0.0
        %6367 = vmatpush1.xpose.msra.mxu0 0.0
        %6368 = vmatprep.mubr.f32.mxu0 0.0
        %6369 = vmatmul.mubr.f32.gmra.mrb[0].mxu0 %v6293
        %v6370 = vpop.f32.mrb[0].mxu0
        %v6371 = vadd.f32 0.0, %v6370
        %v6372 = vpop.f32.mrb[0].mxu0
        %6373 = vmatprep.mubr.f32.mxu0 0.0
        %6374 = vmatmul.mubr.f32.gmra.mrb[0].mxu0 %v6296
        %v6375 = vpop.f32.mrb[0].mxu0
        %v6376 = vadd.f32 0.0, %v6375
        %v6377 = vpop.f32.mrb[0].mxu0
        %6378 = vdwg.mxu0
        %v6379 = vsel %vm1446, %v5762, -inf
        %6380 = vmax.xlane.f32.xlu0 %v6379
        %v6381 = vpop.xlane.xlu0 %6380
        %v6382 = vsel %vm1446, %v5767, -inf
        %6383 = vmax.xlane.f32.xlu0 %v6382
        %v6384 = vpop.xlane.xlu0 %6383
        %v6385 = vsel %vm1446, %v5849, -inf
        %6386 = vmax.xlane.f32.xlu0 %v6385
        %v6387 = vpop.xlane.xlu0 %6386
        %v6388 = vsel %vm1446, %v5854, -inf
        %6389 = vmax.xlane.f32.xlu0 %v6388
        %v6390 = vpop.xlane.xlu0 %6389
        %v6391 = vsel %vm1446, %v5936, -inf
        %6392 = vmax.xlane.f32.xlu0 %v6391
        %v6393 = vpop.xlane.xlu0 %6392
        %v6394 = vsel %vm1446, %v5941, -inf
        %6395 = vmax.xlane.f32.xlu0 %v6394
        %v6396 = vpop.xlane.xlu0 %6395
        %v6397 = vsel %vm1446, %v6023, -inf
        %6398 = vmax.xlane.f32.xlu0 %v6397
        %v6399 = vpop.xlane.xlu0 %6398
        %v6400 = vsel %vm1446, %v6028, -inf
        %6401 = vmax.xlane.f32.xlu0 %v6400
        %v6402 = vpop.xlane.xlu0 %6401
        %v6403 = vsel %vm1446, %v6110, -inf
        %6404 = vmax.xlane.f32.xlu0 %v6403
        %v6405 = vpop.xlane.xlu0 %6404
        %v6406 = vsel %vm1446, %v6115, -inf
        %6407 = vmax.xlane.f32.xlu0 %v6406
        %v6408 = vpop.xlane.xlu0 %6407
        %v6409 = vsel %vm1446, %v6197, -inf
        %6410 = vmax.xlane.f32.xlu0 %v6409
        %v6411 = vpop.xlane.xlu0 %6410
        %v6412 = vsel %vm1446, %v6202, -inf
        %6413 = vmax.xlane.f32.xlu0 %v6412
        %v6414 = vpop.xlane.xlu0 %6413
        %v6415 = vsel %vm1446, %v6284, -inf
        %6416 = vmax.xlane.f32.xlu0 %v6415
        %v6417 = vpop.xlane.xlu0 %6416
        %v6418 = vsel %vm1446, %v6289, -inf
        %6419 = vmax.xlane.f32.xlu0 %v6418
        %v6420 = vpop.xlane.xlu0 %6419
        %v6421 = vsel %vm1446, %v6371, -inf
        %6422 = vmax.xlane.f32.xlu0 %v6421
        %v6423 = vpop.xlane.xlu0 %6422
        %v6424 = vsel %vm1446, %v6376, -inf
        %6425 = vmax.xlane.f32.xlu0 %v6424
        %v6426 = vpop.xlane.xlu0 %6425
        %v6427 = vsub.f32 %v5762, %v6381
        %v6428 = vsub.f32 %v5767, %v6384
        %v6429 = vsub.f32 %v5849, %v6387
        %v6430 = vsub.f32 %v5854, %v6390
        %v6431 = vsub.f32 %v5936, %v6393
        %v6432 = vsub.f32 %v5941, %v6396
        %v6433 = vsub.f32 %v6023, %v6399
        %v6434 = vsub.f32 %v6028, %v6402
        %v6435 = vsub.f32 %v6110, %v6405
        %v6436 = vsub.f32 %v6115, %v6408
        %v6437 = vsub.f32 %v6197, %v6411
        %v6438 = vsub.f32 %v6202, %v6414
        %v6439 = vsub.f32 %v6284, %v6417
        %v6440 = vsub.f32 %v6289, %v6420
        %v6441 = vsub.f32 %v6371, %v6423
        %v6442 = vsub.f32 %v6376, %v6426
        %v6443 = vmul.f32 %v6427, 1.442695
        %v6444 = vpow.pop %v6443
        %v6445 = vmul.f32 %v6428, 1.442695
        %v6446 = vpow.pop %v6445
        %v6447 = vmul.f32 %v6429, 1.442695
        %v6448 = vpow.pop %v6447
        %v6449 = vmul.f32 %v6430, 1.442695
        %v6450 = vpow.pop %v6449
        %v6451 = vmul.f32 %v6431, 1.442695
        %v6452 = vpow.pop %v6451
        %v6453 = vmul.f32 %v6432, 1.442695
        %v6454 = vpow.pop %v6453
        %v6455 = vmul.f32 %v6433, 1.442695
        %v6456 = vpow.pop %v6455
        %v6457 = vmul.f32 %v6434, 1.442695
        %v6458 = vpow.pop %v6457
        %v6459 = vmul.f32 %v6435, 1.442695
        %v6460 = vpow.pop %v6459
        %v6461 = vmul.f32 %v6436, 1.442695
        %v6462 = vpow.pop %v6461
        %v6463 = vmul.f32 %v6437, 1.442695
        %v6464 = vpow.pop %v6463
        %v6465 = vmul.f32 %v6438, 1.442695
        %v6466 = vpow.pop %v6465
        %v6467 = vmul.f32 %v6439, 1.442695
        %v6468 = vpow.pop %v6467
        %v6469 = vmul.f32 %v6440, 1.442695
        %v6470 = vpow.pop %v6469
        %v6471 = vmul.f32 %v6441, 1.442695
        %v6472 = vpow.pop %v6471
        %v6473 = vmul.f32 %v6442, 1.442695
        %v6474 = vpow.pop %v6473
        %v6475 = vsel %vm1446, %v6444, 0.0
        %6476 = vadd.xlane.f32.xlu0 %v6475
        %v6477 = vpop.xlane.xlu0 %6476
        %v6478 = vsel %vm1446, %v6446, 0.0
        %6479 = vadd.xlane.f32.xlu0 %v6478
        %v6480 = vpop.xlane.xlu0 %6479
        %v6481 = vsel %vm1446, %v6448, 0.0
        %6482 = vadd.xlane.f32.xlu0 %v6481
        %v6483 = vpop.xlane.xlu0 %6482
        %v6484 = vsel %vm1446, %v6450, 0.0
        %6485 = vadd.xlane.f32.xlu0 %v6484
        %v6486 = vpop.xlane.xlu0 %6485
        %v6487 = vsel %vm1446, %v6452, 0.0
        %6488 = vadd.xlane.f32.xlu0 %v6487
        %v6489 = vpop.xlane.xlu0 %6488
        %v6490 = vsel %vm1446, %v6454, 0.0
        %6491 = vadd.xlane.f32.xlu0 %v6490
        %v6492 = vpop.xlane.xlu0 %6491
        %v6493 = vsel %vm1446, %v6456, 0.0
        %6494 = vadd.xlane.f32.xlu0 %v6493
        %v6495 = vpop.xlane.xlu0 %6494
        %v6496 = vsel %vm1446, %v6458, 0.0
        %6497 = vadd.xlane.f32.xlu0 %v6496
        %v6498 = vpop.xlane.xlu0 %6497
        %v6499 = vsel %vm1446, %v6460, 0.0
        %6500 = vadd.xlane.f32.xlu0 %v6499
        %v6501 = vpop.xlane.xlu0 %6500
        %v6502 = vsel %vm1446, %v6462, 0.0
        %6503 = vadd.xlane.f32.xlu0 %v6502
        %v6504 = vpop.xlane.xlu0 %6503
        %v6505 = vsel %vm1446, %v6464, 0.0
        %6506 = vadd.xlane.f32.xlu0 %v6505
        %v6507 = vpop.xlane.xlu0 %6506
        %v6508 = vsel %vm1446, %v6466, 0.0
        %6509 = vadd.xlane.f32.xlu0 %v6508
        %v6510 = vpop.xlane.xlu0 %6509
        %v6511 = vsel %vm1446, %v6468, 0.0
        %6512 = vadd.xlane.f32.xlu0 %v6511
        %v6513 = vpop.xlane.xlu0 %6512
        %v6514 = vsel %vm1446, %v6470, 0.0
        %6515 = vadd.xlane.f32.xlu0 %v6514
        %v6516 = vpop.xlane.xlu0 %6515
        %v6517 = vsel %vm1446, %v6472, 0.0
        %6518 = vadd.xlane.f32.xlu0 %v6517
        %v6519 = vpop.xlane.xlu0 %6518
        %v6520 = vsel %vm1446, %v6474, 0.0
        %6521 = vadd.xlane.f32.xlu0 %v6520
        %v6522 = vpop.xlane.xlu0 %6521
        %v6523 = vrcp.pop %v6477
        %v6524 = vrcp.pop %v6480
        %v6525 = vrcp.pop %v6483
        %v6526 = vrcp.pop %v6486
        %v6527 = vrcp.pop %v6489
        %v6528 = vrcp.pop %v6492
        %v6529 = vrcp.pop %v6495
        %v6530 = vrcp.pop %v6498
        %v6531 = vrcp.pop %v6501
        %v6532 = vrcp.pop %v6504
        %v6533 = vrcp.pop %v6507
        %v6534 = vrcp.pop %v6510
        %v6535 = vrcp.pop %v6513
        %v6536 = vrcp.pop %v6516
        %v6537 = vrcp.pop %v6519
        %v6538 = vrcp.pop %v6522
        %v6539 = vmul.f32 %v6444, %v6523
        %v6540 = vmul.f32 %v6446, %v6524
        %v6541 = vmul.f32 %v6448, %v6525
        %v6542 = vmul.f32 %v6450, %v6526
        %v6543 = vmul.f32 %v6452, %v6527
        %v6544 = vmul.f32 %v6454, %v6528
        %v6545 = vmul.f32 %v6456, %v6529
        %v6546 = vmul.f32 %v6458, %v6530
        %v6547 = vmul.f32 %v6460, %v6531
        %v6548 = vmul.f32 %v6462, %v6532
        %v6549 = vmul.f32 %v6464, %v6533
        %v6550 = vmul.f32 %v6466, %v6534
        %v6551 = vmul.f32 %v6468, %v6535
        %v6552 = vmul.f32 %v6470, %v6536
        %v6553 = vmul.f32 %v6472, %v6537
        %v6554 = vmul.f32 %v6474, %v6538
        %v6556 = vsel %vm1446, %v6539, 0
        %v6559 = vsel %vm1446, %v6540, 0
        %6561 = vmatprep.subr.mxu0 0.0
        %6562 = vmatpush1.msra.mxu0 %v5589
        %6563 = vmatprep.subr.mxu0 0.0
        %6564 = vmatpush1.msra.mxu0 %v5594
        %6565 = vmatprep.subr.mxu0 0.0
        %6566 = vmatpush1.msra.mxu0 0.0
        %6567 = vmatprep.subr.mxu0 0.0
        %6568 = vmatpush1.msra.mxu0 0.0
        %6569 = vmatprep.subr.mxu0 0.0
        %6570 = vmatpush1.msra.mxu0 0.0
        %6571 = vmatprep.subr.mxu0 0.0
        %6572 = vmatpush1.msra.mxu0 0.0
        %6573 = vmatprep.subr.mxu0 0.0
        %6574 = vmatpush1.msra.mxu0 0.0
        %6575 = vmatprep.subr.mxu0 0.0
        %6576 = vmatpush1.msra.mxu0 0.0
        %6577 = vmatprep.subr.mxu0 0.0
        %6578 = vmatpush1.msra.mxu0 0.0
        %6579 = vmatprep.subr.mxu0 0.0
        %6580 = vmatpush1.msra.mxu0 0.0
        %6581 = vmatprep.subr.mxu0 0.0
        %6582 = vmatpush1.msra.mxu0 0.0
        %6583 = vmatprep.subr.mxu0 0.0
        %6584 = vmatpush1.msra.mxu0 0.0
        %6585 = vmatprep.subr.mxu0 0.0
        %6586 = vmatpush1.msra.mxu0 0.0
        %6587 = vmatprep.subr.mxu0 0.0
        %6588 = vmatpush1.msra.mxu0 0.0
        %6589 = vmatprep.subr.mxu0 0.0
        %6590 = vmatpush1.msra.mxu0 0.0
        %6591 = vmatprep.subr.mxu0 0.0
        %6592 = vmatpush1.msra.mxu0 0.0
        %6593 = vmatprep.subr.mxu0 0.0
        %6594 = vmatpush1.msra.mxu0 0.0
        %6595 = vmatprep.subr.mxu0 0.0
        %6596 = vmatpush1.msra.mxu0 0.0
        %6597 = vmatprep.subr.mxu0 0.0
        %6598 = vmatpush1.msra.mxu0 0.0
        %6599 = vmatprep.subr.mxu0 0.0
        %6600 = vmatpush1.msra.mxu0 0.0
        %6601 = vmatprep.subr.mxu0 0.0
        %6602 = vmatpush1.msra.mxu0 0.0
        %6603 = vmatprep.subr.mxu0 0.0
        %6604 = vmatpush1.msra.mxu0 0.0
        %6605 = vmatprep.subr.mxu0 0.0
        %6606 = vmatpush1.msra.mxu0 0.0
        %6607 = vmatprep.subr.mxu0 0.0
        %6608 = vmatpush1.msra.mxu0 0.0
        %6609 = vmatprep.subr.mxu0 0.0
        %6610 = vmatpush1.msra.mxu0 0.0
        %6611 = vmatprep.subr.mxu0 0.0
        %6612 = vmatpush1.msra.mxu0 0.0
        %6613 = vmatprep.subr.mxu0 0.0
        %6614 = vmatpush1.msra.mxu0 0.0
        %6615 = vmatprep.subr.mxu0 0.0
        %6616 = vmatpush1.msra.mxu0 0.0
        %6617 = vmatprep.subr.mxu0 0.0
        %6618 = vmatpush1.msra.mxu0 0.0
        %6619 = vmatprep.subr.mxu0 0.0
        %6620 = vmatpush1.msra.mxu0 0.0
        %6621 = vmatprep.subr.mxu0 0.0
        %6622 = vmatpush1.msra.mxu0 0.0
        %6623 = vmatprep.subr.mxu0 0.0
        %6624 = vmatpush1.msra.mxu0 0.0
        %6625 = vmatprep.mubr.f32.mxu0 0.0
        %6626 = vmatmul.mubr.f32.gmra.mrb[0].mxu0 %v6556
        %v6627 = vpop.f32.mrb[0].mxu0
        %v6628 = vadd.f32 0.0, %v6627
        %v6629 = vpop.f32.mrb[0].mxu0
        %6630 = vmatprep.mubr.f32.mxu0 0.0
        %6631 = vmatmul.mubr.f32.gmra.mrb[0].mxu0 %v6559
        %v6632 = vpop.f32.mrb[0].mxu0
        %v6633 = vadd.f32 0.0, %v6632
        %v6634 = vpop.f32.mrb[0].mxu0
        %6635 = vdwg.mxu0
        %v6637 = vsel %vm1446, %v6541, 0
        %v6640 = vsel %vm1446, %v6542, 0
        %6642 = vmatprep.subr.mxu0 0.0
        %6643 = vmatpush1.msra.mxu0 %v5599
        %6644 = vmatprep.subr.mxu0 0.0
        %6645 = vmatpush1.msra.mxu0 %v5604
        %6646 = vmatprep.subr.mxu0 0.0
        %6647 = vmatpush1.msra.mxu0 0.0
        %6648 = vmatprep.subr.mxu0 0.0
        %6649 = vmatpush1.msra.mxu0 0.0
        %6650 = vmatprep.subr.mxu0 0.0
        %6651 = vmatpush1.msra.mxu0 0.0
        %6652 = vmatprep.subr.mxu0 0.0
        %6653 = vmatpush1.msra.mxu0 0.0
        %6654 = vmatprep.subr.mxu0 0.0
        %6655 = vmatpush1.msra.mxu0 0.0
        %6656 = vmatprep.subr.mxu0 0.0
        %6657 = vmatpush1.msra.mxu0 0.0
        %6658 = vmatprep.subr.mxu0 0.0
        %6659 = vmatpush1.msra.mxu0 0.0
        %6660 = vmatprep.subr.mxu0 0.0
        %6661 = vmatpush1.msra.mxu0 0.0
        %6662 = vmatprep.subr.mxu0 0.0
        %6663 = vmatpush1.msra.mxu0 0.0
        %6664 = vmatprep.subr.mxu0 0.0
        %6665 = vmatpush1.msra.mxu0 0.0
        %6666 = vmatprep.subr.mxu0 0.0
        %6667 = vmatpush1.msra.mxu0 0.0
        %6668 = vmatprep.subr.mxu0 0.0
        %6669 = vmatpush1.msra.mxu0 0.0
        %6670 = vmatprep.subr.mxu0 0.0
        %6671 = vmatpush1.msra.mxu0 0.0
        %6672 = vmatprep.subr.mxu0 0.0
        %6673 = vmatpush1.msra.mxu0 0.0
        %6674 = vmatprep.subr.mxu0 0.0
        %6675 = vmatpush1.msra.mxu0 0.0
        %6676 = vmatprep.subr.mxu0 0.0
        %6677 = vmatpush1.msra.mxu0 0.0
        %6678 = vmatprep.subr.mxu0 0.0
        %6679 = vmatpush1.msra.mxu0 0.0
        %6680 = vmatprep.subr.mxu0 0.0
        %6681 = vmatpush1.msra.mxu0 0.0
        %6682 = vmatprep.subr.mxu0 0.0
        %6683 = vmatpush1.msra.mxu0 0.0
        %6684 = vmatprep.subr.mxu0 0.0
        %6685 = vmatpush1.msra.mxu0 0.0
        %6686 = vmatprep.subr.mxu0 0.0
        %6687 = vmatpush1.msra.mxu0 0.0
        %6688 = vmatprep.subr.mxu0 0.0
        %6689 = vmatpush1.msra.mxu0 0.0
        %6690 = vmatprep.subr.mxu0 0.0
        %6691 = vmatpush1.msra.mxu0 0.0
        %6692 = vmatprep.subr.mxu0 0.0
        %6693 = vmatpush1.msra.mxu0 0.0
        %6694 = vmatprep.subr.mxu0 0.0
        %6695 = vmatpush1.msra.mxu0 0.0
        %6696 = vmatprep.subr.mxu0 0.0
        %6697 = vmatpush1.msra.mxu0 0.0
        %6698 = vmatprep.subr.mxu0 0.0
        %6699 = vmatpush1.msra.mxu0 0.0
        %6700 = vmatprep.subr.mxu0 0.0
        %6701 = vmatpush1.msra.mxu0 0.0
        %6702 = vmatprep.subr.mxu0 0.0
        %6703 = vmatpush1.msra.mxu0 0.0
        %6704 = vmatprep.subr.mxu0 0.0
        %6705 = vmatpush1.msra.mxu0 0.0
        %6706 = vmatprep.mubr.f32.mxu0 0.0
        %6707 = vmatmul.mubr.f32.gmra.mrb[0].mxu0 %v6637
        %v6708 = vpop.f32.mrb[0].mxu0
        %v6709 = vadd.f32 0.0, %v6708
        %v6710 = vpop.f32.mrb[0].mxu0
        %6711 = vmatprep.mubr.f32.mxu0 0.0
        %6712 = vmatmul.mubr.f32.gmra.mrb[0].mxu0 %v6640
        %v6713 = vpop.f32.mrb[0].mxu0
        %v6714 = vadd.f32 0.0, %v6713
        %v6715 = vpop.f32.mrb[0].mxu0
        %6716 = vdwg.mxu0
        %v6718 = vsel %vm1446, %v6543, 0
        %v6721 = vsel %vm1446, %v6544, 0
        %6723 = vmatprep.subr.mxu0 0.0
        %6724 = vmatpush1.msra.mxu0 %v5609
        %6725 = vmatprep.subr.mxu0 0.0
        %6726 = vmatpush1.msra.mxu0 %v5614
        %6727 = vmatprep.subr.mxu0 0.0
        %6728 = vmatpush1.msra.mxu0 0.0
        %6729 = vmatprep.subr.mxu0 0.0
        %6730 = vmatpush1.msra.mxu0 0.0
        %6731 = vmatprep.subr.mxu0 0.0
        %6732 = vmatpush1.msra.mxu0 0.0
        %6733 = vmatprep.subr.mxu0 0.0
        %6734 = vmatpush1.msra.mxu0 0.0
        %6735 = vmatprep.subr.mxu0 0.0
        %6736 = vmatpush1.msra.mxu0 0.0
        %6737 = vmatprep.subr.mxu0 0.0
        %6738 = vmatpush1.msra.mxu0 0.0
        %6739 = vmatprep.subr.mxu0 0.0
        %6740 = vmatpush1.msra.mxu0 0.0
        %6741 = vmatprep.subr.mxu0 0.0
        %6742 = vmatpush1.msra.mxu0 0.0
        %6743 = vmatprep.subr.mxu0 0.0
        %6744 = vmatpush1.msra.mxu0 0.0
        %6745 = vmatprep.subr.mxu0 0.0
        %6746 = vmatpush1.msra.mxu0 0.0
        %6747 = vmatprep.subr.mxu0 0.0
        %6748 = vmatpush1.msra.mxu0 0.0
        %6749 = vmatprep.subr.mxu0 0.0
        %6750 = vmatpush1.msra.mxu0 0.0
        %6751 = vmatprep.subr.mxu0 0.0
        %6752 = vmatpush1.msra.mxu0 0.0
        %6753 = vmatprep.subr.mxu0 0.0
        %6754 = vmatpush1.msra.mxu0 0.0
        %6755 = vmatprep.subr.mxu0 0.0
        %6756 = vmatpush1.msra.mxu0 0.0
        %6757 = vmatprep.subr.mxu0 0.0
        %6758 = vmatpush1.msra.mxu0 0.0
        %6759 = vmatprep.subr.mxu0 0.0
        %6760 = vmatpush1.msra.mxu0 0.0
        %6761 = vmatprep.subr.mxu0 0.0
        %6762 = vmatpush1.msra.mxu0 0.0
        %6763 = vmatprep.subr.mxu0 0.0
        %6764 = vmatpush1.msra.mxu0 0.0
        %6765 = vmatprep.subr.mxu0 0.0
        %6766 = vmatpush1.msra.mxu0 0.0
        %6767 = vmatprep.subr.mxu0 0.0
        %6768 = vmatpush1.msra.mxu0 0.0
        %6769 = vmatprep.subr.mxu0 0.0
        %6770 = vmatpush1.msra.mxu0 0.0
        %6771 = vmatprep.subr.mxu0 0.0
        %6772 = vmatpush1.msra.mxu0 0.0
        %6773 = vmatprep.subr.mxu0 0.0
        %6774 = vmatpush1.msra.mxu0 0.0
        %6775 = vmatprep.subr.mxu0 0.0
        %6776 = vmatpush1.msra.mxu0 0.0
        %6777 = vmatprep.subr.mxu0 0.0
        %6778 = vmatpush1.msra.mxu0 0.0
        %6779 = vmatprep.subr.mxu0 0.0
        %6780 = vmatpush1.msra.mxu0 0.0
        %6781 = vmatprep.subr.mxu0 0.0
        %6782 = vmatpush1.msra.mxu0 0.0
        %6783 = vmatprep.subr.mxu0 0.0
        %6784 = vmatpush1.msra.mxu0 0.0
        %6785 = vmatprep.subr.mxu0 0.0
        %6786 = vmatpush1.msra.mxu0 0.0
        %6787 = vmatprep.mubr.f32.mxu0 0.0
        %6788 = vmatmul.mubr.f32.gmra.mrb[0].mxu0 %v6718
        %v6789 = vpop.f32.mrb[0].mxu0
        %v6790 = vadd.f32 0.0, %v6789
        %v6791 = vpop.f32.mrb[0].mxu0
        %6792 = vmatprep.mubr.f32.mxu0 0.0
        %6793 = vmatmul.mubr.f32.gmra.mrb[0].mxu0 %v6721
        %v6794 = vpop.f32.mrb[0].mxu0
        %v6795 = vadd.f32 0.0, %v6794
        %v6796 = vpop.f32.mrb[0].mxu0
        %6797 = vdwg.mxu0
        %v6799 = vsel %vm1446, %v6545, 0
        %v6802 = vsel %vm1446, %v6546, 0
        %6804 = vmatprep.subr.mxu0 0.0
        %6805 = vmatpush1.msra.mxu0 %v5619
        %6806 = vmatprep.subr.mxu0 0.0
        %6807 = vmatpush1.msra.mxu0 %v5624
        %6808 = vmatprep.subr.mxu0 0.0
        %6809 = vmatpush1.msra.mxu0 0.0
        %6810 = vmatprep.subr.mxu0 0.0
        %6811 = vmatpush1.msra.mxu0 0.0
        %6812 = vmatprep.subr.mxu0 0.0
        %6813 = vmatpush1.msra.mxu0 0.0
        %6814 = vmatprep.subr.mxu0 0.0
        %6815 = vmatpush1.msra.mxu0 0.0
        %6816 = vmatprep.subr.mxu0 0.0
        %6817 = vmatpush1.msra.mxu0 0.0
        %6818 = vmatprep.subr.mxu0 0.0
        %6819 = vmatpush1.msra.mxu0 0.0
        %6820 = vmatprep.subr.mxu0 0.0
        %6821 = vmatpush1.msra.mxu0 0.0
        %6822 = vmatprep.subr.mxu0 0.0
        %6823 = vmatpush1.msra.mxu0 0.0
        %6824 = vmatprep.subr.mxu0 0.0
        %6825 = vmatpush1.msra.mxu0 0.0
        %6826 = vmatprep.subr.mxu0 0.0
        %6827 = vmatpush1.msra.mxu0 0.0
        %6828 = vmatprep.subr.mxu0 0.0
        %6829 = vmatpush1.msra.mxu0 0.0
        %6830 = vmatprep.subr.mxu0 0.0
        %6831 = vmatpush1.msra.mxu0 0.0
        %6832 = vmatprep.subr.mxu0 0.0
        %6833 = vmatpush1.msra.mxu0 0.0
        %6834 = vmatprep.subr.mxu0 0.0
        %6835 = vmatpush1.msra.mxu0 0.0
        %6836 = vmatprep.subr.mxu0 0.0
        %6837 = vmatpush1.msra.mxu0 0.0
        %6838 = vmatprep.subr.mxu0 0.0
        %6839 = vmatpush1.msra.mxu0 0.0
        %6840 = vmatprep.subr.mxu0 0.0
        %6841 = vmatpush1.msra.mxu0 0.0
        %6842 = vmatprep.subr.mxu0 0.0
        %6843 = vmatpush1.msra.mxu0 0.0
        %6844 = vmatprep.subr.mxu0 0.0
        %6845 = vmatpush1.msra.mxu0 0.0
        %6846 = vmatprep.subr.mxu0 0.0
        %6847 = vmatpush1.msra.mxu0 0.0
        %6848 = vmatprep.subr.mxu0 0.0
        %6849 = vmatpush1.msra.mxu0 0.0
        %6850 = vmatprep.subr.mxu0 0.0
        %6851 = vmatpush1.msra.mxu0 0.0
        %6852 = vmatprep.subr.mxu0 0.0
        %6853 = vmatpush1.msra.mxu0 0.0
        %6854 = vmatprep.subr.mxu0 0.0
        %6855 = vmatpush1.msra.mxu0 0.0
        %6856 = vmatprep.subr.mxu0 0.0
        %6857 = vmatpush1.msra.mxu0 0.0
        %6858 = vmatprep.subr.mxu0 0.0
        %6859 = vmatpush1.msra.mxu0 0.0
        %6860 = vmatprep.subr.mxu0 0.0
        %6861 = vmatpush1.msra.mxu0 0.0
        %6862 = vmatprep.subr.mxu0 0.0
        %6863 = vmatpush1.msra.mxu0 0.0
        %6864 = vmatprep.subr.mxu0 0.0
        %6865 = vmatpush1.msra.mxu0 0.0
        %6866 = vmatprep.subr.mxu0 0.0
        %6867 = vmatpush1.msra.mxu0 0.0
        %6868 = vmatprep.mubr.f32.mxu0 0.0
        %6869 = vmatmul.mubr.f32.gmra.mrb[0].mxu0 %v6799
        %v6870 = vpop.f32.mrb[0].mxu0
        %v6871 = vadd.f32 0.0, %v6870
        %v6872 = vpop.f32.mrb[0].mxu0
        %6873 = vmatprep.mubr.f32.mxu0 0.0
        %6874 = vmatmul.mubr.f32.gmra.mrb[0].mxu0 %v6802
        %v6875 = vpop.f32.mrb[0].mxu0
        %v6876 = vadd.f32 0.0, %v6875
        %v6877 = vpop.f32.mrb[0].mxu0
        %6878 = vdwg.mxu0
        %v6880 = vsel %vm1446, %v6547, 0
        %v6883 = vsel %vm1446, %v6548, 0
        %6885 = vmatprep.subr.mxu0 0.0
        %6886 = vmatpush1.msra.mxu0 %v5629
        %6887 = vmatprep.subr.mxu0 0.0
        %6888 = vmatpush1.msra.mxu0 %v5634
        %6889 = vmatprep.subr.mxu0 0.0
        %6890 = vmatpush1.msra.mxu0 0.0
        %6891 = vmatprep.subr.mxu0 0.0
        %6892 = vmatpush1.msra.mxu0 0.0
        %6893 = vmatprep.subr.mxu0 0.0
        %6894 = vmatpush1.msra.mxu0 0.0
        %6895 = vmatprep.subr.mxu0 0.0
        %6896 = vmatpush1.msra.mxu0 0.0
        %6897 = vmatprep.subr.mxu0 0.0
        %6898 = vmatpush1.msra.mxu0 0.0
        %6899 = vmatprep.subr.mxu0 0.0
        %6900 = vmatpush1.msra.mxu0 0.0
        %6901 = vmatprep.subr.mxu0 0.0
        %6902 = vmatpush1.msra.mxu0 0.0
        %6903 = vmatprep.subr.mxu0 0.0
        %6904 = vmatpush1.msra.mxu0 0.0
        %6905 = vmatprep.subr.mxu0 0.0
        %6906 = vmatpush1.msra.mxu0 0.0
        %6907 = vmatprep.subr.mxu0 0.0
        %6908 = vmatpush1.msra.mxu0 0.0
        %6909 = vmatprep.subr.mxu0 0.0
        %6910 = vmatpush1.msra.mxu0 0.0
        %6911 = vmatprep.subr.mxu0 0.0
        %6912 = vmatpush1.msra.mxu0 0.0
        %6913 = vmatprep.subr.mxu0 0.0
        %6914 = vmatpush1.msra.mxu0 0.0
        %6915 = vmatprep.subr.mxu0 0.0
        %6916 = vmatpush1.msra.mxu0 0.0
        %6917 = vmatprep.subr.mxu0 0.0
        %6918 = vmatpush1.msra.mxu0 0.0
        %6919 = vmatprep.subr.mxu0 0.0
        %6920 = vmatpush1.msra.mxu0 0.0
        %6921 = vmatprep.subr.mxu0 0.0
        %6922 = vmatpush1.msra.mxu0 0.0
        %6923 = vmatprep.subr.mxu0 0.0
        %6924 = vmatpush1.msra.mxu0 0.0
        %6925 = vmatprep.subr.mxu0 0.0
        %6926 = vmatpush1.msra.mxu0 0.0
        %6927 = vmatprep.subr.mxu0 0.0
        %6928 = vmatpush1.msra.mxu0 0.0
        %6929 = vmatprep.subr.mxu0 0.0
        %6930 = vmatpush1.msra.mxu0 0.0
        %6931 = vmatprep.subr.mxu0 0.0
        %6932 = vmatpush1.msra.mxu0 0.0
        %6933 = vmatprep.subr.mxu0 0.0
        %6934 = vmatpush1.msra.mxu0 0.0
        %6935 = vmatprep.subr.mxu0 0.0
        %6936 = vmatpush1.msra.mxu0 0.0
        %6937 = vmatprep.subr.mxu0 0.0
        %6938 = vmatpush1.msra.mxu0 0.0
        %6939 = vmatprep.subr.mxu0 0.0
        %6940 = vmatpush1.msra.mxu0 0.0
        %6941 = vmatprep.subr.mxu0 0.0
        %6942 = vmatpush1.msra.mxu0 0.0
        %6943 = vmatprep.subr.mxu0 0.0
        %6944 = vmatpush1.msra.mxu0 0.0
        %6945 = vmatprep.subr.mxu0 0.0
        %6946 = vmatpush1.msra.mxu0 0.0
        %6947 = vmatprep.subr.mxu0 0.0
        %6948 = vmatpush1.msra.mxu0 0.0
        %6949 = vmatprep.mubr.f32.mxu0 0.0
        %6950 = vmatmul.mubr.f32.gmra.mrb[0].mxu0 %v6880
        %v6951 = vpop.f32.mrb[0].mxu0
        %v6952 = vadd.f32 0.0, %v6951
        %v6953 = vpop.f32.mrb[0].mxu0
        %6954 = vmatprep.mubr.f32.mxu0 0.0
        %6955 = vmatmul.mubr.f32.gmra.mrb[0].mxu0 %v6883
        %v6956 = vpop.f32.mrb[0].mxu0
        %v6957 = vadd.f32 0.0, %v6956
        %v6958 = vpop.f32.mrb[0].mxu0
        %6959 = vdwg.mxu0
        %v6961 = vsel %vm1446, %v6549, 0
        %v6964 = vsel %vm1446, %v6550, 0
        %6966 = vmatprep.subr.mxu0 0.0
        %6967 = vmatpush1.msra.mxu0 %v5639
        %6968 = vmatprep.subr.mxu0 0.0
        %6969 = vmatpush1.msra.mxu0 %v5644
        %6970 = vmatprep.subr.mxu0 0.0
        %6971 = vmatpush1.msra.mxu0 0.0
        %6972 = vmatprep.subr.mxu0 0.0
        %6973 = vmatpush1.msra.mxu0 0.0
        %6974 = vmatprep.subr.mxu0 0.0
        %6975 = vmatpush1.msra.mxu0 0.0
        %6976 = vmatprep.subr.mxu0 0.0
        %6977 = vmatpush1.msra.mxu0 0.0
        %6978 = vmatprep.subr.mxu0 0.0
        %6979 = vmatpush1.msra.mxu0 0.0
        %6980 = vmatprep.subr.mxu0 0.0
        %6981 = vmatpush1.msra.mxu0 0.0
        %6982 = vmatprep.subr.mxu0 0.0
        %6983 = vmatpush1.msra.mxu0 0.0
        %6984 = vmatprep.subr.mxu0 0.0
        %6985 = vmatpush1.msra.mxu0 0.0
        %6986 = vmatprep.subr.mxu0 0.0
        %6987 = vmatpush1.msra.mxu0 0.0
        %6988 = vmatprep.subr.mxu0 0.0
        %6989 = vmatpush1.msra.mxu0 0.0
        %6990 = vmatprep.subr.mxu0 0.0
        %6991 = vmatpush1.msra.mxu0 0.0
        %6992 = vmatprep.subr.mxu0 0.0
        %6993 = vmatpush1.msra.mxu0 0.0
        %6994 = vmatprep.subr.mxu0 0.0
        %6995 = vmatpush1.msra.mxu0 0.0
        %6996 = vmatprep.subr.mxu0 0.0
        %6997 = vmatpush1.msra.mxu0 0.0
        %6998 = vmatprep.subr.mxu0 0.0
        %6999 = vmatpush1.msra.mxu0 0.0
        %7000 = vmatprep.subr.mxu0 0.0
        %7001 = vmatpush1.msra.mxu0 0.0
        %7002 = vmatprep.subr.mxu0 0.0
        %7003 = vmatpush1.msra.mxu0 0.0
        %7004 = vmatprep.subr.mxu0 0.0
        %7005 = vmatpush1.msra.mxu0 0.0
        %7006 = vmatprep.subr.mxu0 0.0
        %7007 = vmatpush1.msra.mxu0 0.0
        %7008 = vmatprep.subr.mxu0 0.0
        %7009 = vmatpush1.msra.mxu0 0.0
        %7010 = vmatprep.subr.mxu0 0.0
        %7011 = vmatpush1.msra.mxu0 0.0
        %7012 = vmatprep.subr.mxu0 0.0
        %7013 = vmatpush1.msra.mxu0 0.0
        %7014 = vmatprep.subr.mxu0 0.0
        %7015 = vmatpush1.msra.mxu0 0.0
        %7016 = vmatprep.subr.mxu0 0.0
        %7017 = vmatpush1.msra.mxu0 0.0
        %7018 = vmatprep.subr.mxu0 0.0
        %7019 = vmatpush1.msra.mxu0 0.0
        %7020 = vmatprep.subr.mxu0 0.0
        %7021 = vmatpush1.msra.mxu0 0.0
        %7022 = vmatprep.subr.mxu0 0.0
        %7023 = vmatpush1.msra.mxu0 0.0
        %7024 = vmatprep.subr.mxu0 0.0
        %7025 = vmatpush1.msra.mxu0 0.0
        %7026 = vmatprep.subr.mxu0 0.0
        %7027 = vmatpush1.msra.mxu0 0.0
        %7028 = vmatprep.subr.mxu0 0.0
        %7029 = vmatpush1.msra.mxu0 0.0
        %7030 = vmatprep.mubr.f32.mxu0 0.0
        %7031 = vmatmul.mubr.f32.gmra.mrb[0].mxu0 %v6961
        %v7032 = vpop.f32.mrb[0].mxu0
        %v7033 = vadd.f32 0.0, %v7032
        %v7034 = vpop.f32.mrb[0].mxu0
        %7035 = vmatprep.mubr.f32.mxu0 0.0
        %7036 = vmatmul.mubr.f32.gmra.mrb[0].mxu0 %v6964
        %v7037 = vpop.f32.mrb[0].mxu0
        %v7038 = vadd.f32 0.0, %v7037
        %v7039 = vpop.f32.mrb[0].mxu0
        %7040 = vdwg.mxu0
        %v7042 = vsel %vm1446, %v6551, 0
        %v7045 = vsel %vm1446, %v6552, 0
        %7047 = vmatprep.subr.mxu0 0.0
        %7048 = vmatpush1.msra.mxu0 %v5649
        %7049 = vmatprep.subr.mxu0 0.0
        %7050 = vmatpush1.msra.mxu0 %v5654
        %7051 = vmatprep.subr.mxu0 0.0
        %7052 = vmatpush1.msra.mxu0 0.0
        %7053 = vmatprep.subr.mxu0 0.0
        %7054 = vmatpush1.msra.mxu0 0.0
        %7055 = vmatprep.subr.mxu0 0.0
        %7056 = vmatpush1.msra.mxu0 0.0
        %7057 = vmatprep.subr.mxu0 0.0
        %7058 = vmatpush1.msra.mxu0 0.0
        %7059 = vmatprep.subr.mxu0 0.0
        %7060 = vmatpush1.msra.mxu0 0.0
        %7061 = vmatprep.subr.mxu0 0.0
        %7062 = vmatpush1.msra.mxu0 0.0
        %7063 = vmatprep.subr.mxu0 0.0
        %7064 = vmatpush1.msra.mxu0 0.0
        %7065 = vmatprep.subr.mxu0 0.0
        %7066 = vmatpush1.msra.mxu0 0.0
        %7067 = vmatprep.subr.mxu0 0.0
        %7068 = vmatpush1.msra.mxu0 0.0
        %7069 = vmatprep.subr.mxu0 0.0
        %7070 = vmatpush1.msra.mxu0 0.0
        %7071 = vmatprep.subr.mxu0 0.0
        %7072 = vmatpush1.msra.mxu0 0.0
        %7073 = vmatprep.subr.mxu0 0.0
        %7074 = vmatpush1.msra.mxu0 0.0
        %7075 = vmatprep.subr.mxu0 0.0
        %7076 = vmatpush1.msra.mxu0 0.0
        %7077 = vmatprep.subr.mxu0 0.0
        %7078 = vmatpush1.msra.mxu0 0.0
        %7079 = vmatprep.subr.mxu0 0.0
        %7080 = vmatpush1.msra.mxu0 0.0
        %7081 = vmatprep.subr.mxu0 0.0
        %7082 = vmatpush1.msra.mxu0 0.0
        %7083 = vmatprep.subr.mxu0 0.0
        %7084 = vmatpush1.msra.mxu0 0.0
        %7085 = vmatprep.subr.mxu0 0.0
        %7086 = vmatpush1.msra.mxu0 0.0
        %7087 = vmatprep.subr.mxu0 0.0
        %7088 = vmatpush1.msra.mxu0 0.0
        %7089 = vmatprep.subr.mxu0 0.0
        %7090 = vmatpush1.msra.mxu0 0.0
        %7091 = vmatprep.subr.mxu0 0.0
        %7092 = vmatpush1.msra.mxu0 0.0
        %7093 = vmatprep.subr.mxu0 0.0
        %7094 = vmatpush1.msra.mxu0 0.0
        %7095 = vmatprep.subr.mxu0 0.0
        %7096 = vmatpush1.msra.mxu0 0.0
        %7097 = vmatprep.subr.mxu0 0.0
        %7098 = vmatpush1.msra.mxu0 0.0
        %7099 = vmatprep.subr.mxu0 0.0
        %7100 = vmatpush1.msra.mxu0 0.0
        %7101 = vmatprep.subr.mxu0 0.0
        %7102 = vmatpush1.msra.mxu0 0.0
        %7103 = vmatprep.subr.mxu0 0.0
        %7104 = vmatpush1.msra.mxu0 0.0
        %7105 = vmatprep.subr.mxu0 0.0
        %7106 = vmatpush1.msra.mxu0 0.0
        %7107 = vmatprep.subr.mxu0 0.0
        %7108 = vmatpush1.msra.mxu0 0.0
        %7109 = vmatprep.subr.mxu0 0.0
        %7110 = vmatpush1.msra.mxu0 0.0
        %7111 = vmatprep.mubr.f32.mxu0 0.0
        %7112 = vmatmul.mubr.f32.gmra.mrb[0].mxu0 %v7042
        %v7113 = vpop.f32.mrb[0].mxu0
        %v7114 = vadd.f32 0.0, %v7113
        %v7115 = vpop.f32.mrb[0].mxu0
        %7116 = vmatprep.mubr.f32.mxu0 0.0
        %7117 = vmatmul.mubr.f32.gmra.mrb[0].mxu0 %v7045
        %v7118 = vpop.f32.mrb[0].mxu0
        %v7119 = vadd.f32 0.0, %v7118
        %v7120 = vpop.f32.mrb[0].mxu0
        %7121 = vdwg.mxu0
        %v7123 = vsel %vm1446, %v6553, 0
        %v7126 = vsel %vm1446, %v6554, 0
        %7128 = vmatprep.subr.mxu0 0.0
        %7129 = vmatpush1.msra.mxu0 %v5659
        %7130 = vmatprep.subr.mxu0 0.0
        %7131 = vmatpush1.msra.mxu0 %v5664
        %7132 = vmatprep.subr.mxu0 0.0
        %7133 = vmatpush1.msra.mxu0 0.0
        %7134 = vmatprep.subr.mxu0 0.0
        %7135 = vmatpush1.msra.mxu0 0.0
        %7136 = vmatprep.subr.mxu0 0.0
        %7137 = vmatpush1.msra.mxu0 0.0
        %7138 = vmatprep.subr.mxu0 0.0
        %7139 = vmatpush1.msra.mxu0 0.0
        %7140 = vmatprep.subr.mxu0 0.0
        %7141 = vmatpush1.msra.mxu0 0.0
        %7142 = vmatprep.subr.mxu0 0.0
        %7143 = vmatpush1.msra.mxu0 0.0
        %7144 = vmatprep.subr.mxu0 0.0
        %7145 = vmatpush1.msra.mxu0 0.0
        %7146 = vmatprep.subr.mxu0 0.0
        %7147 = vmatpush1.msra.mxu0 0.0
        %7148 = vmatprep.subr.mxu0 0.0
        %7149 = vmatpush1.msra.mxu0 0.0
        %7150 = vmatprep.subr.mxu0 0.0
        %7151 = vmatpush1.msra.mxu0 0.0
        %7152 = vmatprep.subr.mxu0 0.0
        %7153 = vmatpush1.msra.mxu0 0.0
        %7154 = vmatprep.subr.mxu0 0.0
        %7155 = vmatpush1.msra.mxu0 0.0
        %7156 = vmatprep.subr.mxu0 0.0
        %7157 = vmatpush1.msra.mxu0 0.0
        %7158 = vmatprep.subr.mxu0 0.0
        %7159 = vmatpush1.msra.mxu0 0.0
        %7160 = vmatprep.subr.mxu0 0.0
        %7161 = vmatpush1.msra.mxu0 0.0
        %7162 = vmatprep.subr.mxu0 0.0
        %7163 = vmatpush1.msra.mxu0 0.0
        %7164 = vmatprep.subr.mxu0 0.0
        %7165 = vmatpush1.msra.mxu0 0.0
        %7166 = vmatprep.subr.mxu0 0.0
        %7167 = vmatpush1.msra.mxu0 0.0
        %7168 = vmatprep.subr.mxu0 0.0
        %7169 = vmatpush1.msra.mxu0 0.0
        %7170 = vmatprep.subr.mxu0 0.0
        %7171 = vmatpush1.msra.mxu0 0.0
        %7172 = vmatprep.subr.mxu0 0.0
        %7173 = vmatpush1.msra.mxu0 0.0
        %7174 = vmatprep.subr.mxu0 0.0
        %7175 = vmatpush1.msra.mxu0 0.0
        %7176 = vmatprep.subr.mxu0 0.0
        %7177 = vmatpush1.msra.mxu0 0.0
        %7178 = vmatprep.subr.mxu0 0.0
        %7179 = vmatpush1.msra.mxu0 0.0
        %7180 = vmatprep.subr.mxu0 0.0
        %7181 = vmatpush1.msra.mxu0 0.0
        %7182 = vmatprep.subr.mxu0 0.0
        %7183 = vmatpush1.msra.mxu0 0.0
        %7184 = vmatprep.subr.mxu0 0.0
        %7185 = vmatpush1.msra.mxu0 0.0
        %7186 = vmatprep.subr.mxu0 0.0
        %7187 = vmatpush1.msra.mxu0 0.0
        %7188 = vmatprep.subr.mxu0 0.0
        %7189 = vmatpush1.msra.mxu0 0.0
        %7190 = vmatprep.subr.mxu0 0.0
        %7191 = vmatpush1.msra.mxu0 0.0
        %7192 = vmatprep.mubr.f32.mxu0 0.0
        %7193 = vmatmul.mubr.f32.gmra.mrb[0].mxu0 %v7123
        %v7194 = vpop.f32.mrb[0].mxu0
        %v7195 = vadd.f32 0.0, %v7194
        %v7196 = vpop.f32.mrb[0].mxu0
        %7197 = vmatprep.mubr.f32.mxu0 0.0
        %7198 = vmatmul.mubr.f32.gmra.mrb[0].mxu0 %v7126
        %v7199 = vpop.f32.mrb[0].mxu0
        %v7200 = vadd.f32 0.0, %v7199
        %v7201 = vpop.f32.mrb[0].mxu0
        %7202 = vdwg.mxu0
        %v7203 = vld [vmem:[%s4] sm:$0xff]
        %v7204 = vld [vmem:[%s4 + $0x8] sm:$0xff]
        %v7205 = vld [vmem:[%s4 + $0x10] sm:$0xff]
        %v7206 = vld [vmem:[%s4 + $0x18] sm:$0xff]
        %v7207 = vld [vmem:[%s4 + $0x20] sm:$0xff]
        %v7208 = vld [vmem:[%s4 + $0x28] sm:$0xff]
        %v7209 = vld [vmem:[%s4 + $0x30] sm:$0xff]
        %v7210 = vld [vmem:[%s4 + $0x38] sm:$0xff]
        %v7211 = vld [vmem:[%s5] sm:$0x1]
        %v7213 = vlaneseq
        %v7214 = vshrl.u32 %v7213, 7
        %v7215 = vsub.s32 0, %v7214
        %v7216 = vrot.slane %v7211, %v7215
        %7225 = vrot.lane.b32.xlu0 %v7203, 80
        %v7226 = vpop.permute.xlu0 %7225
        %7227 = vrot.lane.b32.xlu0 %v7204, 80
        %v7228 = vpop.permute.xlu0 %7227
        %7229 = vrot.lane.b32.xlu0 %v7205, 80
        %v7230 = vpop.permute.xlu0 %7229
        %7231 = vrot.lane.b32.xlu0 %v7206, 80
        %v7232 = vpop.permute.xlu0 %7231
        %7233 = vrot.lane.b32.xlu0 %v7207, 80
        %v7234 = vpop.permute.xlu0 %7233
        %7235 = vrot.lane.b32.xlu0 %v7208, 80
        %v7236 = vpop.permute.xlu0 %7235
        %7237 = vrot.lane.b32.xlu0 %v7209, 80
        %v7238 = vpop.permute.xlu0 %7237
        %7239 = vrot.lane.b32.xlu0 %v7210, 80
        %v7240 = vpop.permute.xlu0 %7239
        %7249 = vrot.lane.b32.xlu0 %v7216, 80
        %v7250 = vpop.permute.xlu0 %7249
        %7252 = vmatprep.subr.mxu0 0.0
        %7253 = vmatpush1.msra.mxu0 %v7226
        %7254 = vmatprep.subr.mxu0 0.0
        %7255 = vmatpush1.msra.mxu0 %v7228
        %7256 = vmatprep.subr.mxu0 0.0
        %7257 = vmatpush1.msra.mxu0 %v7230
        %7258 = vmatprep.subr.mxu0 0.0
        %7259 = vmatpush1.msra.mxu0 %v7232
        %7260 = vmatprep.subr.mxu0 0.0
        %7261 = vmatpush1.msra.mxu0 %v7234
        %7262 = vmatprep.subr.mxu0 0.0
        %7263 = vmatpush1.msra.mxu0 %v7236
        %7264 = vmatprep.subr.mxu0 0.0
        %7265 = vmatpush1.msra.mxu0 %v7238
        %7266 = vmatprep.subr.mxu0 0.0
        %7267 = vmatpush1.msra.mxu0 %v7240
        %7268 = vmatprep.subr.mxu0 0.0
        %7269 = vmatpush1.msra.mxu0 0.0
        %7270 = vmatprep.subr.mxu0 0.0
        %7271 = vmatpush1.msra.mxu0 0.0
        %7272 = vmatprep.subr.mxu0 0.0
        %7273 = vmatpush1.msra.mxu0 0.0
        %7274 = vmatprep.subr.mxu0 0.0
        %7275 = vmatpush1.msra.mxu0 0.0
        %7276 = vmatprep.subr.mxu0 0.0
        %7277 = vmatpush1.msra.mxu0 0.0
        %7278 = vmatprep.subr.mxu0 0.0
        %7279 = vmatpush1.msra.mxu0 0.0
        %7280 = vmatprep.subr.mxu0 0.0
        %7281 = vmatpush1.msra.mxu0 0.0
        %7282 = vmatprep.subr.mxu0 0.0
        %7283 = vmatpush1.msra.mxu0 0.0
        %7284 = vmatprep.subr.mxu0 0.0
        %7285 = vmatpush1.msra.mxu0 0.0
        %7286 = vmatprep.subr.mxu0 0.0
        %7287 = vmatpush1.msra.mxu0 0.0
        %7288 = vmatprep.subr.mxu0 0.0
        %7289 = vmatpush1.msra.mxu0 0.0
        %7290 = vmatprep.subr.mxu0 0.0
        %7291 = vmatpush1.msra.mxu0 0.0
        %7292 = vmatprep.subr.mxu0 0.0
        %7293 = vmatpush1.msra.mxu0 0.0
        %7294 = vmatprep.subr.mxu0 0.0
        %7295 = vmatpush1.msra.mxu0 0.0
        %7296 = vmatprep.subr.mxu0 0.0
        %7297 = vmatpush1.msra.mxu0 0.0
        %7298 = vmatprep.subr.mxu0 0.0
        %7299 = vmatpush1.msra.mxu0 0.0
        %7300 = vmatprep.subr.mxu0 0.0
        %7301 = vmatpush1.msra.mxu0 0.0
        %7302 = vmatprep.subr.mxu0 0.0
        %7303 = vmatpush1.msra.mxu0 0.0
        %7304 = vmatprep.subr.mxu0 0.0
        %7305 = vmatpush1.msra.mxu0 0.0
        %7306 = vmatprep.subr.mxu0 0.0
        %7307 = vmatpush1.msra.mxu0 0.0
        %7308 = vmatprep.subr.mxu0 0.0
        %7309 = vmatpush1.msra.mxu0 0.0
        %7310 = vmatprep.subr.mxu0 0.0
        %7311 = vmatpush1.msra.mxu0 0.0
        %7312 = vmatprep.subr.mxu0 0.0
        %7313 = vmatpush1.msra.mxu0 0.0
        %7314 = vmatprep.subr.mxu0 0.0
        %7315 = vmatpush1.msra.mxu0 0.0
        %7316 = vmatprep.mubr.f32.mxu0 0.0
        %7317 = vmatmul.mubr.f32.gmra.mrb[0].mxu0 %v918
        %v7318 = vpop.f32.mrb[0].mxu0
        %v7319 = vadd.f32 %v7250, %v7318
        %v7320 = vpop.f32.mrb[0].mxu0
        %7321 = vmatprep.mubr.f32.mxu0 0.0
        %7322 = vmatmul.mubr.f32.gmra.mrb[0].mxu0 %v921
        %v7323 = vpop.f32.mrb[0].mxu0
        %v7324 = vadd.f32 %v7250, %v7323
        %v7325 = vpop.f32.mrb[0].mxu0
        %7326 = vmatprep.mubr.f32.mxu0 0.0
        %7327 = vmatmul.mubr.f32.gmra.mrb[0].mxu0 %v924
        %v7328 = vpop.f32.mrb[0].mxu0
        %v7329 = vadd.f32 %v7250, %v7328
        %v7330 = vpop.f32.mrb[0].mxu0
        %7331 = vmatprep.mubr.f32.mxu0 0.0
        %7332 = vmatmul.mubr.f32.gmra.mrb[0].mxu0 %v927
        %v7333 = vpop.f32.mrb[0].mxu0
        %v7334 = vadd.f32 %v7250, %v7333
        %v7335 = vpop.f32.mrb[0].mxu0
        %7336 = vmatprep.mubr.f32.mxu0 0.0
        %7337 = vmatmul.mubr.f32.gmra.mrb[0].mxu0 %v930
        %v7338 = vpop.f32.mrb[0].mxu0
        %v7339 = vadd.f32 %v7250, %v7338
        %v7340 = vpop.f32.mrb[0].mxu0
        %7341 = vmatprep.mubr.f32.mxu0 0.0
        %7342 = vmatmul.mubr.f32.gmra.mrb[0].mxu0 %v933
        %v7343 = vpop.f32.mrb[0].mxu0
        %v7344 = vadd.f32 %v7250, %v7343
        %v7345 = vpop.f32.mrb[0].mxu0
        %7346 = vmatprep.mubr.f32.mxu0 0.0
        %7347 = vmatmul.mubr.f32.gmra.mrb[0].mxu0 %v936
        %v7348 = vpop.f32.mrb[0].mxu0
        %v7349 = vadd.f32 %v7250, %v7348
        %v7350 = vpop.f32.mrb[0].mxu0
        %7351 = vmatprep.mubr.f32.mxu0 0.0
        %7352 = vmatmul.mubr.f32.gmra.mrb[0].mxu0 %v939
        %v7353 = vpop.f32.mrb[0].mxu0
        %v7354 = vadd.f32 %v7250, %v7353
        %v7355 = vpop.f32.mrb[0].mxu0
        %7356 = vmatprep.mubr.f32.mxu0 0.0
        %7357 = vmatmul.mubr.f32.gmra.mrb[0].mxu0 %v942
        %v7358 = vpop.f32.mrb[0].mxu0
        %v7359 = vadd.f32 %v7250, %v7358
        %v7360 = vpop.f32.mrb[0].mxu0
        %7361 = vmatprep.mubr.f32.mxu0 0.0
        %7362 = vmatmul.mubr.f32.gmra.mrb[0].mxu0 %v945
        %v7363 = vpop.f32.mrb[0].mxu0
        %v7364 = vadd.f32 %v7250, %v7363
        %v7365 = vpop.f32.mrb[0].mxu0
        %7366 = vmatprep.mubr.f32.mxu0 0.0
        %7367 = vmatmul.mubr.f32.gmra.mrb[0].mxu0 %v948
        %v7368 = vpop.f32.mrb[0].mxu0
        %v7369 = vadd.f32 %v7250, %v7368
        %v7370 = vpop.f32.mrb[0].mxu0
        %7371 = vmatprep.mubr.f32.mxu0 0.0
        %7372 = vmatmul.mubr.f32.gmra.mrb[0].mxu0 %v951
        %v7373 = vpop.f32.mrb[0].mxu0
        %v7374 = vadd.f32 %v7250, %v7373
        %v7375 = vpop.f32.mrb[0].mxu0
        %7376 = vmatprep.mubr.f32.mxu0 0.0
        %7377 = vmatmul.mubr.f32.gmra.mrb[0].mxu0 %v954
        %v7378 = vpop.f32.mrb[0].mxu0
        %v7379 = vadd.f32 %v7250, %v7378
        %v7380 = vpop.f32.mrb[0].mxu0
        %7381 = vmatprep.mubr.f32.mxu0 0.0
        %7382 = vmatmul.mubr.f32.gmra.mrb[0].mxu0 %v957
        %v7383 = vpop.f32.mrb[0].mxu0
        %v7384 = vadd.f32 %v7250, %v7383
        %v7385 = vpop.f32.mrb[0].mxu0
        %7386 = vmatprep.mubr.f32.mxu0 0.0
        %7387 = vmatmul.mubr.f32.gmra.mrb[0].mxu0 %v960
        %v7388 = vpop.f32.mrb[0].mxu0
        %v7389 = vadd.f32 %v7250, %v7388
        %v7390 = vpop.f32.mrb[0].mxu0
        %7391 = vmatprep.mubr.f32.mxu0 0.0
        %7392 = vmatmul.mubr.f32.gmra.mrb[0].mxu0 %v963
        %v7393 = vpop.f32.mrb[0].mxu0
        %v7394 = vadd.f32 %v7250, %v7393
        %v7395 = vpop.f32.mrb[0].mxu0
        %7396 = vdwg.mxu0
        %v7397 = vld [vmem:[%s6] sm:$0xff]
        %v7398 = vld [vmem:[%s6 + $0x8] sm:$0xff]
        %v7399 = vld [vmem:[%s6 + $0x10] sm:$0xff]
        %v7400 = vld [vmem:[%s6 + $0x18] sm:$0xff]
        %v7401 = vld [vmem:[%s6 + $0x20] sm:$0xff]
        %v7402 = vld [vmem:[%s6 + $0x28] sm:$0xff]
        %v7403 = vld [vmem:[%s6 + $0x30] sm:$0xff]
        %v7404 = vld [vmem:[%s6 + $0x38] sm:$0xff]
        %v7405 = vld [vmem:[%s7] sm:$0x1]
        %v7407 = vlaneseq
        %v7408 = vshrl.u32 %v7407, 7
        %v7409 = vsub.s32 0, %v7408
        %v7410 = vrot.slane %v7405, %v7409
        %7419 = vrot.lane.b32.xlu0 %v7397, 80
        %v7420 = vpop.permute.xlu0 %7419
        %7421 = vrot.lane.b32.xlu0 %v7398, 80
        %v7422 = vpop.permute.xlu0 %7421
        %7423 = vrot.lane.b32.xlu0 %v7399, 80
        %v7424 = vpop.permute.xlu0 %7423
        %7425 = vrot.lane.b32.xlu0 %v7400, 80
        %v7426 = vpop.permute.xlu0 %7425
        %7427 = vrot.lane.b32.xlu0 %v7401, 80
        %v7428 = vpop.permute.xlu0 %7427
        %7429 = vrot.lane.b32.xlu0 %v7402, 80
        %v7430 = vpop.permute.xlu0 %7429
        %7431 = vrot.lane.b32.xlu0 %v7403, 80
        %v7432 = vpop.permute.xlu0 %7431
        %7433 = vrot.lane.b32.xlu0 %v7404, 80
        %v7434 = vpop.permute.xlu0 %7433
        %7443 = vrot.lane.b32.xlu0 %v7410, 80
        %v7444 = vpop.permute.xlu0 %7443
        %7446 = vmatprep.subr.mxu0 0.0
        %7447 = vmatpush1.msra.mxu0 %v7420
        %7448 = vmatprep.subr.mxu0 0.0
        %7449 = vmatpush1.msra.mxu0 %v7422
        %7450 = vmatprep.subr.mxu0 0.0
        %7451 = vmatpush1.msra.mxu0 %v7424
        %7452 = vmatprep.subr.mxu0 0.0
        %7453 = vmatpush1.msra.mxu0 %v7426
        %7454 = vmatprep.subr.mxu0 0.0
        %7455 = vmatpush1.msra.mxu0 %v7428
        %7456 = vmatprep.subr.mxu0 0.0
        %7457 = vmatpush1.msra.mxu0 %v7430
        %7458 = vmatprep.subr.mxu0 0.0
        %7459 = vmatpush1.msra.mxu0 %v7432
        %7460 = vmatprep.subr.mxu0 0.0
        %7461 = vmatpush1.msra.mxu0 %v7434
        %7462 = vmatprep.subr.mxu0 0.0
        %7463 = vmatpush1.msra.mxu0 0.0
        %7464 = vmatprep.subr.mxu0 0.0
        %7465 = vmatpush1.msra.mxu0 0.0
        %7466 = vmatprep.subr.mxu0 0.0
        %7467 = vmatpush1.msra.mxu0 0.0
        %7468 = vmatprep.subr.mxu0 0.0
        %7469 = vmatpush1.msra.mxu0 0.0
        %7470 = vmatprep.subr.mxu0 0.0
        %7471 = vmatpush1.msra.mxu0 0.0
        %7472 = vmatprep.subr.mxu0 0.0
        %7473 = vmatpush1.msra.mxu0 0.0
        %7474 = vmatprep.subr.mxu0 0.0
        %7475 = vmatpush1.msra.mxu0 0.0
        %7476 = vmatprep.subr.mxu0 0.0
        %7477 = vmatpush1.msra.mxu0 0.0
        %7478 = vmatprep.subr.mxu0 0.0
        %7479 = vmatpush1.msra.mxu0 0.0
        %7480 = vmatprep.subr.mxu0 0.0
        %7481 = vmatpush1.msra.mxu0 0.0
        %7482 = vmatprep.subr.mxu0 0.0
        %7483 = vmatpush1.msra.mxu0 0.0
        %7484 = vmatprep.subr.mxu0 0.0
        %7485 = vmatpush1.msra.mxu0 0.0
        %7486 = vmatprep.subr.mxu0 0.0
        %7487 = vmatpush1.msra.mxu0 0.0
        %7488 = vmatprep.subr.mxu0 0.0
        %7489 = vmatpush1.msra.mxu0 0.0
        %7490 = vmatprep.subr.mxu0 0.0
        %7491 = vmatpush1.msra.mxu0 0.0
        %7492 = vmatprep.subr.mxu0 0.0
        %7493 = vmatpush1.msra.mxu0 0.0
        %7494 = vmatprep.subr.mxu0 0.0
        %7495 = vmatpush1.msra.mxu0 0.0
        %7496 = vmatprep.subr.mxu0 0.0
        %7497 = vmatpush1.msra.mxu0 0.0
        %7498 = vmatprep.subr.mxu0 0.0
        %7499 = vmatpush1.msra.mxu0 0.0
        %7500 = vmatprep.subr.mxu0 0.0
        %7501 = vmatpush1.msra.mxu0 0.0
        %7502 = vmatprep.subr.mxu0 0.0
        %7503 = vmatpush1.msra.mxu0 0.0
        %7504 = vmatprep.subr.mxu0 0.0
        %7505 = vmatpush1.msra.mxu0 0.0
        %7506 = vmatprep.subr.mxu0 0.0
        %7507 = vmatpush1.msra.mxu0 0.0
        %7508 = vmatprep.subr.mxu0 0.0
        %7509 = vmatpush1.msra.mxu0 0.0
        %7510 = vmatprep.mubr.f32.mxu0 0.0
        %7511 = vmatmul.mubr.f32.gmra.mrb[0].mxu0 %v918
        %v7512 = vpop.f32.mrb[0].mxu0
        %v7513 = vadd.f32 %v7444, %v7512
        %v7514 = vpop.f32.mrb[0].mxu0
        %7515 = vmatprep.mubr.f32.mxu0 0.0
        %7516 = vmatmul.mubr.f32.gmra.mrb[0].mxu0 %v921
        %v7517 = vpop.f32.mrb[0].mxu0
        %v7518 = vadd.f32 %v7444, %v7517
        %v7519 = vpop.f32.mrb[0].mxu0
        %7520 = vmatprep.mubr.f32.mxu0 0.0
        %7521 = vmatmul.mubr.f32.gmra.mrb[0].mxu0 %v924
        %v7522 = vpop.f32.mrb[0].mxu0
        %v7523 = vadd.f32 %v7444, %v7522
        %v7524 = vpop.f32.mrb[0].mxu0
        %7525 = vmatprep.mubr.f32.mxu0 0.0
        %7526 = vmatmul.mubr.f32.gmra.mrb[0].mxu0 %v927
        %v7527 = vpop.f32.mrb[0].mxu0
        %v7528 = vadd.f32 %v7444, %v7527
        %v7529 = vpop.f32.mrb[0].mxu0
        %7530 = vmatprep.mubr.f32.mxu0 0.0
        %7531 = vmatmul.mubr.f32.gmra.mrb[0].mxu0 %v930
        %v7532 = vpop.f32.mrb[0].mxu0
        %v7533 = vadd.f32 %v7444, %v7532
        %v7534 = vpop.f32.mrb[0].mxu0
        %7535 = vmatprep.mubr.f32.mxu0 0.0
        %7536 = vmatmul.mubr.f32.gmra.mrb[0].mxu0 %v933
        %v7537 = vpop.f32.mrb[0].mxu0
        %v7538 = vadd.f32 %v7444, %v7537
        %v7539 = vpop.f32.mrb[0].mxu0
        %7540 = vmatprep.mubr.f32.mxu0 0.0
        %7541 = vmatmul.mubr.f32.gmra.mrb[0].mxu0 %v936
        %v7542 = vpop.f32.mrb[0].mxu0
        %v7543 = vadd.f32 %v7444, %v7542
        %v7544 = vpop.f32.mrb[0].mxu0
        %7545 = vmatprep.mubr.f32.mxu0 0.0
        %7546 = vmatmul.mubr.f32.gmra.mrb[0].mxu0 %v939
        %v7547 = vpop.f32.mrb[0].mxu0
        %v7548 = vadd.f32 %v7444, %v7547
        %v7549 = vpop.f32.mrb[0].mxu0
        %7550 = vmatprep.mubr.f32.mxu0 0.0
        %7551 = vmatmul.mubr.f32.gmra.mrb[0].mxu0 %v942
        %v7552 = vpop.f32.mrb[0].mxu0
        %v7553 = vadd.f32 %v7444, %v7552
        %v7554 = vpop.f32.mrb[0].mxu0
        %7555 = vmatprep.mubr.f32.mxu0 0.0
        %7556 = vmatmul.mubr.f32.gmra.mrb[0].mxu0 %v945
        %v7557 = vpop.f32.mrb[0].mxu0
        %v7558 = vadd.f32 %v7444, %v7557
        %v7559 = vpop.f32.mrb[0].mxu0
        %7560 = vmatprep.mubr.f32.mxu0 0.0
        %7561 = vmatmul.mubr.f32.gmra.mrb[0].mxu0 %v948
        %v7562 = vpop.f32.mrb[0].mxu0
        %v7563 = vadd.f32 %v7444, %v7562
        %v7564 = vpop.f32.mrb[0].mxu0
        %7565 = vmatprep.mubr.f32.mxu0 0.0
        %7566 = vmatmul.mubr.f32.gmra.mrb[0].mxu0 %v951
        %v7567 = vpop.f32.mrb[0].mxu0
        %v7568 = vadd.f32 %v7444, %v7567
        %v7569 = vpop.f32.mrb[0].mxu0
        %7570 = vmatprep.mubr.f32.mxu0 0.0
        %7571 = vmatmul.mubr.f32.gmra.mrb[0].mxu0 %v954
        %v7572 = vpop.f32.mrb[0].mxu0
        %v7573 = vadd.f32 %v7444, %v7572
        %v7574 = vpop.f32.mrb[0].mxu0
        %7575 = vmatprep.mubr.f32.mxu0 0.0
        %7576 = vmatmul.mubr.f32.gmra.mrb[0].mxu0 %v957
        %v7577 = vpop.f32.mrb[0].mxu0
        %v7578 = vadd.f32 %v7444, %v7577
        %v7579 = vpop.f32.mrb[0].mxu0
        %7580 = vmatprep.mubr.f32.mxu0 0.0
        %7581 = vmatmul.mubr.f32.gmra.mrb[0].mxu0 %v960
        %v7582 = vpop.f32.mrb[0].mxu0
        %v7583 = vadd.f32 %v7444, %v7582
        %v7584 = vpop.f32.mrb[0].mxu0
        %7585 = vmatprep.mubr.f32.mxu0 0.0
        %7586 = vmatmul.mubr.f32.gmra.mrb[0].mxu0 %v963
        %v7587 = vpop.f32.mrb[0].mxu0
        %v7588 = vadd.f32 %v7444, %v7587
        %v7589 = vpop.f32.mrb[0].mxu0
        %7590 = vdwg.mxu0
        %v7591 = vld [vmem:[%s8] sm:$0xff]
        %v7592 = vld [vmem:[%s8 + $0x8] sm:$0xff]
        %v7593 = vld [vmem:[%s8 + $0x10] sm:$0xff]
        %v7594 = vld [vmem:[%s8 + $0x18] sm:$0xff]
        %v7595 = vld [vmem:[%s8 + $0x20] sm:$0xff]
        %v7596 = vld [vmem:[%s8 + $0x28] sm:$0xff]
        %v7597 = vld [vmem:[%s8 + $0x30] sm:$0xff]
        %v7598 = vld [vmem:[%s8 + $0x38] sm:$0xff]
        %v7599 = vld [vmem:[%s9] sm:$0x1]
        %v7601 = vlaneseq
        %v7602 = vshrl.u32 %v7601, 7
        %v7603 = vsub.s32 0, %v7602
        %v7604 = vrot.slane %v7599, %v7603
        %7613 = vrot.lane.b32.xlu0 %v7591, 80
        %v7614 = vpop.permute.xlu0 %7613
        %7615 = vrot.lane.b32.xlu0 %v7592, 80
        %v7616 = vpop.permute.xlu0 %7615
        %7617 = vrot.lane.b32.xlu0 %v7593, 80
        %v7618 = vpop.permute.xlu0 %7617
        %7619 = vrot.lane.b32.xlu0 %v7594, 80
        %v7620 = vpop.permute.xlu0 %7619
        %7621 = vrot.lane.b32.xlu0 %v7595, 80
        %v7622 = vpop.permute.xlu0 %7621
        %7623 = vrot.lane.b32.xlu0 %v7596, 80
        %v7624 = vpop.permute.xlu0 %7623
        %7625 = vrot.lane.b32.xlu0 %v7597, 80
        %v7626 = vpop.permute.xlu0 %7625
        %7627 = vrot.lane.b32.xlu0 %v7598, 80
        %v7628 = vpop.permute.xlu0 %7627
        %7637 = vrot.lane.b32.xlu0 %v7604, 80
        %v7638 = vpop.permute.xlu0 %7637
        %7640 = vmatprep.subr.mxu0 0.0
        %7641 = vmatpush1.msra.mxu0 %v7614
        %7642 = vmatprep.subr.mxu0 0.0
        %7643 = vmatpush1.msra.mxu0 %v7616
        %7644 = vmatprep.subr.mxu0 0.0
        %7645 = vmatpush1.msra.mxu0 %v7618
        %7646 = vmatprep.subr.mxu0 0.0
        %7647 = vmatpush1.msra.mxu0 %v7620
        %7648 = vmatprep.subr.mxu0 0.0
        %7649 = vmatpush1.msra.mxu0 %v7622
        %7650 = vmatprep.subr.mxu0 0.0
        %7651 = vmatpush1.msra.mxu0 %v7624
        %7652 = vmatprep.subr.mxu0 0.0
        %7653 = vmatpush1.msra.mxu0 %v7626
        %7654 = vmatprep.subr.mxu0 0.0
        %7655 = vmatpush1.msra.mxu0 %v7628
        %7656 = vmatprep.subr.mxu0 0.0
        %7657 = vmatpush1.msra.mxu0 0.0
        %7658 = vmatprep.subr.mxu0 0.0
        %7659 = vmatpush1.msra.mxu0 0.0
        %7660 = vmatprep.subr.mxu0 0.0
        %7661 = vmatpush1.msra.mxu0 0.0
        %7662 = vmatprep.subr.mxu0 0.0
        %7663 = vmatpush1.msra.mxu0 0.0
        %7664 = vmatprep.subr.mxu0 0.0
        %7665 = vmatpush1.msra.mxu0 0.0
        %7666 = vmatprep.subr.mxu0 0.0
        %7667 = vmatpush1.msra.mxu0 0.0
        %7668 = vmatprep.subr.mxu0 0.0
        %7669 = vmatpush1.msra.mxu0 0.0
        %7670 = vmatprep.subr.mxu0 0.0
        %7671 = vmatpush1.msra.mxu0 0.0
        %7672 = vmatprep.subr.mxu0 0.0
        %7673 = vmatpush1.msra.mxu0 0.0
        %7674 = vmatprep.subr.mxu0 0.0
        %7675 = vmatpush1.msra.mxu0 0.0
        %7676 = vmatprep.subr.mxu0 0.0
        %7677 = vmatpush1.msra.mxu0 0.0
        %7678 = vmatprep.subr.mxu0 0.0
        %7679 = vmatpush1.msra.mxu0 0.0
        %7680 = vmatprep.subr.mxu0 0.0
        %7681 = vmatpush1.msra.mxu0 0.0
        %7682 = vmatprep.subr.mxu0 0.0
        %7683 = vmatpush1.msra.mxu0 0.0
        %7684 = vmatprep.subr.mxu0 0.0
        %7685 = vmatpush1.msra.mxu0 0.0
        %7686 = vmatprep.subr.mxu0 0.0
        %7687 = vmatpush1.msra.mxu0 0.0
        %7688 = vmatprep.subr.mxu0 0.0
        %7689 = vmatpush1.msra.mxu0 0.0
        %7690 = vmatprep.subr.mxu0 0.0
        %7691 = vmatpush1.msra.mxu0 0.0
        %7692 = vmatprep.subr.mxu0 0.0
        %7693 = vmatpush1.msra.mxu0 0.0
        %7694 = vmatprep.subr.mxu0 0.0
        %7695 = vmatpush1.msra.mxu0 0.0
        %7696 = vmatprep.subr.mxu0 0.0
        %7697 = vmatpush1.msra.mxu0 0.0
        %7698 = vmatprep.subr.mxu0 0.0
        %7699 = vmatpush1.msra.mxu0 0.0
        %7700 = vmatprep.subr.mxu0 0.0
        %7701 = vmatpush1.msra.mxu0 0.0
        %7702 = vmatprep.subr.mxu0 0.0
        %7703 = vmatpush1.msra.mxu0 0.0
        %7704 = vmatprep.mubr.f32.mxu0 0.0
        %7705 = vmatmul.mubr.f32.gmra.mrb[0].mxu0 %v918
        %v7706 = vpop.f32.mrb[0].mxu0
        %v7707 = vadd.f32 %v7638, %v7706
        %v7708 = vpop.f32.mrb[0].mxu0
        %7709 = vmatprep.mubr.f32.mxu0 0.0
        %7710 = vmatmul.mubr.f32.gmra.mrb[0].mxu0 %v921
        %v7711 = vpop.f32.mrb[0].mxu0
        %v7712 = vadd.f32 %v7638, %v7711
        %v7713 = vpop.f32.mrb[0].mxu0
        %7714 = vmatprep.mubr.f32.mxu0 0.0
        %7715 = vmatmul.mubr.f32.gmra.mrb[0].mxu0 %v924
        %v7716 = vpop.f32.mrb[0].mxu0
        %v7717 = vadd.f32 %v7638, %v7716
        %v7718 = vpop.f32.mrb[0].mxu0
        %7719 = vmatprep.mubr.f32.mxu0 0.0
        %7720 = vmatmul.mubr.f32.gmra.mrb[0].mxu0 %v927
        %v7721 = vpop.f32.mrb[0].mxu0
        %v7722 = vadd.f32 %v7638, %v7721
        %v7723 = vpop.f32.mrb[0].mxu0
        %7724 = vmatprep.mubr.f32.mxu0 0.0
        %7725 = vmatmul.mubr.f32.gmra.mrb[0].mxu0 %v930
        %v7726 = vpop.f32.mrb[0].mxu0
        %v7727 = vadd.f32 %v7638, %v7726
        %v7728 = vpop.f32.mrb[0].mxu0
        %7729 = vmatprep.mubr.f32.mxu0 0.0
        %7730 = vmatmul.mubr.f32.gmra.mrb[0].mxu0 %v933
        %v7731 = vpop.f32.mrb[0].mxu0
        %v7732 = vadd.f32 %v7638, %v7731
        %v7733 = vpop.f32.mrb[0].mxu0
        %7734 = vmatprep.mubr.f32.mxu0 0.0
        %7735 = vmatmul.mubr.f32.gmra.mrb[0].mxu0 %v936
        %v7736 = vpop.f32.mrb[0].mxu0
        %v7737 = vadd.f32 %v7638, %v7736
        %v7738 = vpop.f32.mrb[0].mxu0
        %7739 = vmatprep.mubr.f32.mxu0 0.0
        %7740 = vmatmul.mubr.f32.gmra.mrb[0].mxu0 %v939
        %v7741 = vpop.f32.mrb[0].mxu0
        %v7742 = vadd.f32 %v7638, %v7741
        %v7743 = vpop.f32.mrb[0].mxu0
        %7744 = vmatprep.mubr.f32.mxu0 0.0
        %7745 = vmatmul.mubr.f32.gmra.mrb[0].mxu0 %v942
        %v7746 = vpop.f32.mrb[0].mxu0
        %v7747 = vadd.f32 %v7638, %v7746
        %v7748 = vpop.f32.mrb[0].mxu0
        %7749 = vmatprep.mubr.f32.mxu0 0.0
        %7750 = vmatmul.mubr.f32.gmra.mrb[0].mxu0 %v945
        %v7751 = vpop.f32.mrb[0].mxu0
        %v7752 = vadd.f32 %v7638, %v7751
        %v7753 = vpop.f32.mrb[0].mxu0
        %7754 = vmatprep.mubr.f32.mxu0 0.0
        %7755 = vmatmul.mubr.f32.gmra.mrb[0].mxu0 %v948
        %v7756 = vpop.f32.mrb[0].mxu0
        %v7757 = vadd.f32 %v7638, %v7756
        %v7758 = vpop.f32.mrb[0].mxu0
        %7759 = vmatprep.mubr.f32.mxu0 0.0
        %7760 = vmatmul.mubr.f32.gmra.mrb[0].mxu0 %v951
        %v7761 = vpop.f32.mrb[0].mxu0
        %v7762 = vadd.f32 %v7638, %v7761
        %v7763 = vpop.f32.mrb[0].mxu0
        %7764 = vmatprep.mubr.f32.mxu0 0.0
        %7765 = vmatmul.mubr.f32.gmra.mrb[0].mxu0 %v954
        %v7766 = vpop.f32.mrb[0].mxu0
        %v7767 = vadd.f32 %v7638, %v7766
        %v7768 = vpop.f32.mrb[0].mxu0
        %7769 = vmatprep.mubr.f32.mxu0 0.0
        %7770 = vmatmul.mubr.f32.gmra.mrb[0].mxu0 %v957
        %v7771 = vpop.f32.mrb[0].mxu0
        %v7772 = vadd.f32 %v7638, %v7771
        %v7773 = vpop.f32.mrb[0].mxu0
        %7774 = vmatprep.mubr.f32.mxu0 0.0
        %7775 = vmatmul.mubr.f32.gmra.mrb[0].mxu0 %v960
        %v7776 = vpop.f32.mrb[0].mxu0
        %v7777 = vadd.f32 %v7638, %v7776
        %v7778 = vpop.f32.mrb[0].mxu0
        %7779 = vmatprep.mubr.f32.mxu0 0.0
        %7780 = vmatmul.mubr.f32.gmra.mrb[0].mxu0 %v963
        %v7781 = vpop.f32.mrb[0].mxu0
        %v7782 = vadd.f32 %v7638, %v7781
        %v7783 = vpop.f32.mrb[0].mxu0
        %7784 = vdwg.mxu0
        %v7785 = vmul.f32 %v7319, 0.25
        %v7786 = vmul.f32 %v7324, 0.25
        %v7787 = vmul.f32 %v7329, 0.25
        %v7788 = vmul.f32 %v7334, 0.25
        %v7789 = vmul.f32 %v7339, 0.25
        %v7790 = vmul.f32 %v7344, 0.25
        %v7791 = vmul.f32 %v7349, 0.25
        %v7792 = vmul.f32 %v7354, 0.25
        %v7793 = vmul.f32 %v7359, 0.25
        %v7794 = vmul.f32 %v7364, 0.25
        %v7795 = vmul.f32 %v7369, 0.25
        %v7796 = vmul.f32 %v7374, 0.25
        %v7797 = vmul.f32 %v7379, 0.25
        %v7798 = vmul.f32 %v7384, 0.25
        %v7799 = vmul.f32 %v7389, 0.25
        %v7800 = vmul.f32 %v7394, 0.25
        %v7802 = vsel %vm1446, %v7785, 0
        %v7805 = vsel %vm1446, %v7786, 0
        %v7808 = vsel %vm1446, %v7513, 0
        %v7811 = vsel %vm1446, %v7518, 0
        %7813 = vmatprep.subr.mxu0 0.0
        %7814 = vmatpush1.xpose.msra.mxu0 %v7808
        %7815 = vmatprep.subr.mxu0 0.0
        %7816 = vmatpush1.xpose.msra.mxu0 %v7811
        %7817 = vmatprep.subr.mxu0 0.0
        %7818 = vmatpush1.xpose.msra.mxu0 0.0
        %7819 = vmatprep.subr.mxu0 0.0
        %7820 = vmatpush1.xpose.msra.mxu0 0.0
        %7821 = vmatprep.subr.mxu0 0.0
        %7822 = vmatpush1.xpose.msra.mxu0 0.0
        %7823 = vmatprep.subr.mxu0 0.0
        %7824 = vmatpush1.xpose.msra.mxu0 0.0
        %7825 = vmatprep.subr.mxu0 0.0
        %7826 = vmatpush1.xpose.msra.mxu0 0.0
        %7827 = vmatprep.subr.mxu0 0.0
        %7828 = vmatpush1.xpose.msra.mxu0 0.0
        %7829 = vmatprep.subr.mxu0 0.0
        %7830 = vmatpush1.xpose.msra.mxu0 0.0
        %7831 = vmatprep.subr.mxu0 0.0
        %7832 = vmatpush1.xpose.msra.mxu0 0.0
        %7833 = vmatprep.subr.mxu0 0.0
        %7834 = vmatpush1.xpose.msra.mxu0 0.0
        %7835 = vmatprep.subr.mxu0 0.0
        %7836 = vmatpush1.xpose.msra.mxu0 0.0
        %7837 = vmatprep.subr.mxu0 0.0
        %7838 = vmatpush1.xpose.msra.mxu0 0.0
        %7839 = vmatprep.subr.mxu0 0.0
        %7840 = vmatpush1.xpose.msra.mxu0 0.0
        %7841 = vmatprep.subr.mxu0 0.0
        %7842 = vmatpush1.xpose.msra.mxu0 0.0
        %7843 = vmatprep.subr.mxu0 0.0
        %7844 = vmatpush1.xpose.msra.mxu0 0.0
        %7845 = vmatprep.subr.mxu0 0.0
        %7846 = vmatpush1.xpose.msra.mxu0 0.0
        %7847 = vmatprep.subr.mxu0 0.0
        %7848 = vmatpush1.xpose.msra.mxu0 0.0
        %7849 = vmatprep.subr.mxu0 0.0
        %7850 = vmatpush1.xpose.msra.mxu0 0.0
        %7851 = vmatprep.subr.mxu0 0.0
        %7852 = vmatpush1.xpose.msra.mxu0 0.0
        %7853 = vmatprep.subr.mxu0 0.0
        %7854 = vmatpush1.xpose.msra.mxu0 0.0
        %7855 = vmatprep.subr.mxu0 0.0
        %7856 = vmatpush1.xpose.msra.mxu0 0.0
        %7857 = vmatprep.subr.mxu0 0.0
        %7858 = vmatpush1.xpose.msra.mxu0 0.0
        %7859 = vmatprep.subr.mxu0 0.0
        %7860 = vmatpush1.xpose.msra.mxu0 0.0
        %7861 = vmatprep.subr.mxu0 0.0
        %7862 = vmatpush1.xpose.msra.mxu0 0.0
        %7863 = vmatprep.subr.mxu0 0.0
        %7864 = vmatpush1.xpose.msra.mxu0 0.0
        %7865 = vmatprep.subr.mxu0 0.0
        %7866 = vmatpush1.xpose.msra.mxu0 0.0
        %7867 = vmatprep.subr.mxu0 0.0
        %7868 = vmatpush1.xpose.msra.mxu0 0.0
        %7869 = vmatprep.subr.mxu0 0.0
        %7870 = vmatpush1.xpose.msra.mxu0 0.0
        %7871 = vmatprep.subr.mxu0 0.0
        %7872 = vmatpush1.xpose.msra.mxu0 0.0
        %7873 = vmatprep.subr.mxu0 0.0
        %7874 = vmatpush1.xpose.msra.mxu0 0.0
        %7875 = vmatprep.subr.mxu0 0.0
        %7876 = vmatpush1.xpose.msra.mxu0 0.0
        %7877 = vmatprep.mubr.f32.mxu0 0.0
        %7878 = vmatmul.mubr.f32.gmra.mrb[0].mxu0 %v7802
        %v7879 = vpop.f32.mrb[0].mxu0
        %v7880 = vadd.f32 0.0, %v7879
        %v7881 = vpop.f32.mrb[0].mxu0
        %7882 = vmatprep.mubr.f32.mxu0 0.0
        %7883 = vmatmul.mubr.f32.gmra.mrb[0].mxu0 %v7805
        %v7884 = vpop.f32.mrb[0].mxu0
        %v7885 = vadd.f32 0.0, %v7884
        %v7886 = vpop.f32.mrb[0].mxu0
        %7887 = vdwg.mxu0
        %v7889 = vsel %vm1446, %v7787, 0
        %v7892 = vsel %vm1446, %v7788, 0
        %v7895 = vsel %vm1446, %v7523, 0
        %v7898 = vsel %vm1446, %v7528, 0
        %7900 = vmatprep.subr.mxu0 0.0
        %7901 = vmatpush1.xpose.msra.mxu0 %v7895
        %7902 = vmatprep.subr.mxu0 0.0
        %7903 = vmatpush1.xpose.msra.mxu0 %v7898
        %7904 = vmatprep.subr.mxu0 0.0
        %7905 = vmatpush1.xpose.msra.mxu0 0.0
        %7906 = vmatprep.subr.mxu0 0.0
        %7907 = vmatpush1.xpose.msra.mxu0 0.0
        %7908 = vmatprep.subr.mxu0 0.0
        %7909 = vmatpush1.xpose.msra.mxu0 0.0
        %7910 = vmatprep.subr.mxu0 0.0
        %7911 = vmatpush1.xpose.msra.mxu0 0.0
        %7912 = vmatprep.subr.mxu0 0.0
        %7913 = vmatpush1.xpose.msra.mxu0 0.0
        %7914 = vmatprep.subr.mxu0 0.0
        %7915 = vmatpush1.xpose.msra.mxu0 0.0
        %7916 = vmatprep.subr.mxu0 0.0
        %7917 = vmatpush1.xpose.msra.mxu0 0.0
        %7918 = vmatprep.subr.mxu0 0.0
        %7919 = vmatpush1.xpose.msra.mxu0 0.0
        %7920 = vmatprep.subr.mxu0 0.0
        %7921 = vmatpush1.xpose.msra.mxu0 0.0
        %7922 = vmatprep.subr.mxu0 0.0
        %7923 = vmatpush1.xpose.msra.mxu0 0.0
        %7924 = vmatprep.subr.mxu0 0.0
        %7925 = vmatpush1.xpose.msra.mxu0 0.0
        %7926 = vmatprep.subr.mxu0 0.0
        %7927 = vmatpush1.xpose.msra.mxu0 0.0
        %7928 = vmatprep.subr.mxu0 0.0
        %7929 = vmatpush1.xpose.msra.mxu0 0.0
        %7930 = vmatprep.subr.mxu0 0.0
        %7931 = vmatpush1.xpose.msra.mxu0 0.0
        %7932 = vmatprep.subr.mxu0 0.0
        %7933 = vmatpush1.xpose.msra.mxu0 0.0
        %7934 = vmatprep.subr.mxu0 0.0
        %7935 = vmatpush1.xpose.msra.mxu0 0.0
        %7936 = vmatprep.subr.mxu0 0.0
        %7937 = vmatpush1.xpose.msra.mxu0 0.0
        %7938 = vmatprep.subr.mxu0 0.0
        %7939 = vmatpush1.xpose.msra.mxu0 0.0
        %7940 = vmatprep.subr.mxu0 0.0
        %7941 = vmatpush1.xpose.msra.mxu0 0.0
        %7942 = vmatprep.subr.mxu0 0.0
        %7943 = vmatpush1.xpose.msra.mxu0 0.0
        %7944 = vmatprep.subr.mxu0 0.0
        %7945 = vmatpush1.xpose.msra.mxu0 0.0
        %7946 = vmatprep.subr.mxu0 0.0
        %7947 = vmatpush1.xpose.msra.mxu0 0.0
        %7948 = vmatprep.subr.mxu0 0.0
        %7949 = vmatpush1.xpose.msra.mxu0 0.0
        %7950 = vmatprep.subr.mxu0 0.0
        %7951 = vmatpush1.xpose.msra.mxu0 0.0
        %7952 = vmatprep.subr.mxu0 0.0
        %7953 = vmatpush1.xpose.msra.mxu0 0.0
        %7954 = vmatprep.subr.mxu0 0.0
        %7955 = vmatpush1.xpose.msra.mxu0 0.0
        %7956 = vmatprep.subr.mxu0 0.0
        %7957 = vmatpush1.xpose.msra.mxu0 0.0
        %7958 = vmatprep.subr.mxu0 0.0
        %7959 = vmatpush1.xpose.msra.mxu0 0.0
        %7960 = vmatprep.subr.mxu0 0.0
        %7961 = vmatpush1.xpose.msra.mxu0 0.0
        %7962 = vmatprep.subr.mxu0 0.0
        %7963 = vmatpush1.xpose.msra.mxu0 0.0
        %7964 = vmatprep.mubr.f32.mxu0 0.0
        %7965 = vmatmul.mubr.f32.gmra.mrb[0].mxu0 %v7889
        %v7966 = vpop.f32.mrb[0].mxu0
        %v7967 = vadd.f32 0.0, %v7966
        %v7968 = vpop.f32.mrb[0].mxu0
        %7969 = vmatprep.mubr.f32.mxu0 0.0
        %7970 = vmatmul.mubr.f32.gmra.mrb[0].mxu0 %v7892
        %v7971 = vpop.f32.mrb[0].mxu0
        %v7972 = vadd.f32 0.0, %v7971
        %v7973 = vpop.f32.mrb[0].mxu0
        %7974 = vdwg.mxu0
        %v7976 = vsel %vm1446, %v7789, 0
        %v7979 = vsel %vm1446, %v7790, 0
        %v7982 = vsel %vm1446, %v7533, 0
        %v7985 = vsel %vm1446, %v7538, 0
        %7987 = vmatprep.subr.mxu0 0.0
        %7988 = vmatpush1.xpose.msra.mxu0 %v7982
        %7989 = vmatprep.subr.mxu0 0.0
        %7990 = vmatpush1.xpose.msra.mxu0 %v7985
        %7991 = vmatprep.subr.mxu0 0.0
        %7992 = vmatpush1.xpose.msra.mxu0 0.0
        %7993 = vmatprep.subr.mxu0 0.0
        %7994 = vmatpush1.xpose.msra.mxu0 0.0
        %7995 = vmatprep.subr.mxu0 0.0
        %7996 = vmatpush1.xpose.msra.mxu0 0.0
        %7997 = vmatprep.subr.mxu0 0.0
        %7998 = vmatpush1.xpose.msra.mxu0 0.0
        %7999 = vmatprep.subr.mxu0 0.0
        %8000 = vmatpush1.xpose.msra.mxu0 0.0
        %8001 = vmatprep.subr.mxu0 0.0
        %8002 = vmatpush1.xpose.msra.mxu0 0.0
        %8003 = vmatprep.subr.mxu0 0.0
        %8004 = vmatpush1.xpose.msra.mxu0 0.0
        %8005 = vmatprep.subr.mxu0 0.0
        %8006 = vmatpush1.xpose.msra.mxu0 0.0
        %8007 = vmatprep.subr.mxu0 0.0
        %8008 = vmatpush1.xpose.msra.mxu0 0.0
        %8009 = vmatprep.subr.mxu0 0.0
        %8010 = vmatpush1.xpose.msra.mxu0 0.0
        %8011 = vmatprep.subr.mxu0 0.0
        %8012 = vmatpush1.xpose.msra.mxu0 0.0
        %8013 = vmatprep.subr.mxu0 0.0
        %8014 = vmatpush1.xpose.msra.mxu0 0.0
        %8015 = vmatprep.subr.mxu0 0.0
        %8016 = vmatpush1.xpose.msra.mxu0 0.0
        %8017 = vmatprep.subr.mxu0 0.0
        %8018 = vmatpush1.xpose.msra.mxu0 0.0
        %8019 = vmatprep.subr.mxu0 0.0
        %8020 = vmatpush1.xpose.msra.mxu0 0.0
        %8021 = vmatprep.subr.mxu0 0.0
        %8022 = vmatpush1.xpose.msra.mxu0 0.0
        %8023 = vmatprep.subr.mxu0 0.0
        %8024 = vmatpush1.xpose.msra.mxu0 0.0
        %8025 = vmatprep.subr.mxu0 0.0
        %8026 = vmatpush1.xpose.msra.mxu0 0.0
        %8027 = vmatprep.subr.mxu0 0.0
        %8028 = vmatpush1.xpose.msra.mxu0 0.0
        %8029 = vmatprep.subr.mxu0 0.0
        %8030 = vmatpush1.xpose.msra.mxu0 0.0
        %8031 = vmatprep.subr.mxu0 0.0
        %8032 = vmatpush1.xpose.msra.mxu0 0.0
        %8033 = vmatprep.subr.mxu0 0.0
        %8034 = vmatpush1.xpose.msra.mxu0 0.0
        %8035 = vmatprep.subr.mxu0 0.0
        %8036 = vmatpush1.xpose.msra.mxu0 0.0
        %8037 = vmatprep.subr.mxu0 0.0
        %8038 = vmatpush1.xpose.msra.mxu0 0.0
        %8039 = vmatprep.subr.mxu0 0.0
        %8040 = vmatpush1.xpose.msra.mxu0 0.0
        %8041 = vmatprep.subr.mxu0 0.0
        %8042 = vmatpush1.xpose.msra.mxu0 0.0
        %8043 = vmatprep.subr.mxu0 0.0
        %8044 = vmatpush1.xpose.msra.mxu0 0.0
        %8045 = vmatprep.subr.mxu0 0.0
        %8046 = vmatpush1.xpose.msra.mxu0 0.0
        %8047 = vmatprep.subr.mxu0 0.0
        %8048 = vmatpush1.xpose.msra.mxu0 0.0
        %8049 = vmatprep.subr.mxu0 0.0
        %8050 = vmatpush1.xpose.msra.mxu0 0.0
        %8051 = vmatprep.mubr.f32.mxu0 0.0
        %8052 = vmatmul.mubr.f32.gmra.mrb[0].mxu0 %v7976
        %v8053 = vpop.f32.mrb[0].mxu0
        %v8054 = vadd.f32 0.0, %v8053
        %v8055 = vpop.f32.mrb[0].mxu0
        %8056 = vmatprep.mubr.f32.mxu0 0.0
        %8057 = vmatmul.mubr.f32.gmra.mrb[0].mxu0 %v7979
        %v8058 = vpop.f32.mrb[0].mxu0
        %v8059 = vadd.f32 0.0, %v8058
        %v8060 = vpop.f32.mrb[0].mxu0
        %8061 = vdwg.mxu0
        %v8063 = vsel %vm1446, %v7791, 0
        %v8066 = vsel %vm1446, %v7792, 0
        %v8069 = vsel %vm1446, %v7543, 0
        %v8072 = vsel %vm1446, %v7548, 0
        %8074 = vmatprep.subr.mxu0 0.0
        %8075 = vmatpush1.xpose.msra.mxu0 %v8069
        %8076 = vmatprep.subr.mxu0 0.0
        %8077 = vmatpush1.xpose.msra.mxu0 %v8072
        %8078 = vmatprep.subr.mxu0 0.0
        %8079 = vmatpush1.xpose.msra.mxu0 0.0
        %8080 = vmatprep.subr.mxu0 0.0
        %8081 = vmatpush1.xpose.msra.mxu0 0.0
        %8082 = vmatprep.subr.mxu0 0.0
        %8083 = vmatpush1.xpose.msra.mxu0 0.0
        %8084 = vmatprep.subr.mxu0 0.0
        %8085 = vmatpush1.xpose.msra.mxu0 0.0
        %8086 = vmatprep.subr.mxu0 0.0
        %8087 = vmatpush1.xpose.msra.mxu0 0.0
        %8088 = vmatprep.subr.mxu0 0.0
        %8089 = vmatpush1.xpose.msra.mxu0 0.0
        %8090 = vmatprep.subr.mxu0 0.0
        %8091 = vmatpush1.xpose.msra.mxu0 0.0
        %8092 = vmatprep.subr.mxu0 0.0
        %8093 = vmatpush1.xpose.msra.mxu0 0.0
        %8094 = vmatprep.subr.mxu0 0.0
        %8095 = vmatpush1.xpose.msra.mxu0 0.0
        %8096 = vmatprep.subr.mxu0 0.0
        %8097 = vmatpush1.xpose.msra.mxu0 0.0
        %8098 = vmatprep.subr.mxu0 0.0
        %8099 = vmatpush1.xpose.msra.mxu0 0.0
        %8100 = vmatprep.subr.mxu0 0.0
        %8101 = vmatpush1.xpose.msra.mxu0 0.0
        %8102 = vmatprep.subr.mxu0 0.0
        %8103 = vmatpush1.xpose.msra.mxu0 0.0
        %8104 = vmatprep.subr.mxu0 0.0
        %8105 = vmatpush1.xpose.msra.mxu0 0.0
        %8106 = vmatprep.subr.mxu0 0.0
        %8107 = vmatpush1.xpose.msra.mxu0 0.0
        %8108 = vmatprep.subr.mxu0 0.0
        %8109 = vmatpush1.xpose.msra.mxu0 0.0
        %8110 = vmatprep.subr.mxu0 0.0
        %8111 = vmatpush1.xpose.msra.mxu0 0.0
        %8112 = vmatprep.subr.mxu0 0.0
        %8113 = vmatpush1.xpose.msra.mxu0 0.0
        %8114 = vmatprep.subr.mxu0 0.0
        %8115 = vmatpush1.xpose.msra.mxu0 0.0
        %8116 = vmatprep.subr.mxu0 0.0
        %8117 = vmatpush1.xpose.msra.mxu0 0.0
        %8118 = vmatprep.subr.mxu0 0.0
        %8119 = vmatpush1.xpose.msra.mxu0 0.0
        %8120 = vmatprep.subr.mxu0 0.0
        %8121 = vmatpush1.xpose.msra.mxu0 0.0
        %8122 = vmatprep.subr.mxu0 0.0
        %8123 = vmatpush1.xpose.msra.mxu0 0.0
        %8124 = vmatprep.subr.mxu0 0.0
        %8125 = vmatpush1.xpose.msra.mxu0 0.0
        %8126 = vmatprep.subr.mxu0 0.0
        %8127 = vmatpush1.xpose.msra.mxu0 0.0
        %8128 = vmatprep.subr.mxu0 0.0
        %8129 = vmatpush1.xpose.msra.mxu0 0.0
        %8130 = vmatprep.subr.mxu0 0.0
        %8131 = vmatpush1.xpose.msra.mxu0 0.0
        %8132 = vmatprep.subr.mxu0 0.0
        %8133 = vmatpush1.xpose.msra.mxu0 0.0
        %8134 = vmatprep.subr.mxu0 0.0
        %8135 = vmatpush1.xpose.msra.mxu0 0.0
        %8136 = vmatprep.subr.mxu0 0.0
        %8137 = vmatpush1.xpose.msra.mxu0 0.0
        %8138 = vmatprep.mubr.f32.mxu0 0.0
        %8139 = vmatmul.mubr.f32.gmra.mrb[0].mxu0 %v8063
        %v8140 = vpop.f32.mrb[0].mxu0
        %v8141 = vadd.f32 0.0, %v8140
        %v8142 = vpop.f32.mrb[0].mxu0
        %8143 = vmatprep.mubr.f32.mxu0 0.0
        %8144 = vmatmul.mubr.f32.gmra.mrb[0].mxu0 %v8066
        %v8145 = vpop.f32.mrb[0].mxu0
        %v8146 = vadd.f32 0.0, %v8145
        %v8147 = vpop.f32.mrb[0].mxu0
        %8148 = vdwg.mxu0
        %v8150 = vsel %vm1446, %v7793, 0
        %v8153 = vsel %vm1446, %v7794, 0
        %v8156 = vsel %vm1446, %v7553, 0
        %v8159 = vsel %vm1446, %v7558, 0
        %8161 = vmatprep.subr.mxu0 0.0
        %8162 = vmatpush1.xpose.msra.mxu0 %v8156
        %8163 = vmatprep.subr.mxu0 0.0
        %8164 = vmatpush1.xpose.msra.mxu0 %v8159
        %8165 = vmatprep.subr.mxu0 0.0
        %8166 = vmatpush1.xpose.msra.mxu0 0.0
        %8167 = vmatprep.subr.mxu0 0.0
        %8168 = vmatpush1.xpose.msra.mxu0 0.0
        %8169 = vmatprep.subr.mxu0 0.0
        %8170 = vmatpush1.xpose.msra.mxu0 0.0
        %8171 = vmatprep.subr.mxu0 0.0
        %8172 = vmatpush1.xpose.msra.mxu0 0.0
        %8173 = vmatprep.subr.mxu0 0.0
        %8174 = vmatpush1.xpose.msra.mxu0 0.0
        %8175 = vmatprep.subr.mxu0 0.0
        %8176 = vmatpush1.xpose.msra.mxu0 0.0
        %8177 = vmatprep.subr.mxu0 0.0
        %8178 = vmatpush1.xpose.msra.mxu0 0.0
        %8179 = vmatprep.subr.mxu0 0.0
        %8180 = vmatpush1.xpose.msra.mxu0 0.0
        %8181 = vmatprep.subr.mxu0 0.0
        %8182 = vmatpush1.xpose.msra.mxu0 0.0
        %8183 = vmatprep.subr.mxu0 0.0
        %8184 = vmatpush1.xpose.msra.mxu0 0.0
        %8185 = vmatprep.subr.mxu0 0.0
        %8186 = vmatpush1.xpose.msra.mxu0 0.0
        %8187 = vmatprep.subr.mxu0 0.0
        %8188 = vmatpush1.xpose.msra.mxu0 0.0
        %8189 = vmatprep.subr.mxu0 0.0
        %8190 = vmatpush1.xpose.msra.mxu0 0.0
        %8191 = vmatprep.subr.mxu0 0.0
        %8192 = vmatpush1.xpose.msra.mxu0 0.0
        %8193 = vmatprep.subr.mxu0 0.0
        %8194 = vmatpush1.xpose.msra.mxu0 0.0
        %8195 = vmatprep.subr.mxu0 0.0
        %8196 = vmatpush1.xpose.msra.mxu0 0.0
        %8197 = vmatprep.subr.mxu0 0.0
        %8198 = vmatpush1.xpose.msra.mxu0 0.0
        %8199 = vmatprep.subr.mxu0 0.0
        %8200 = vmatpush1.xpose.msra.mxu0 0.0
        %8201 = vmatprep.subr.mxu0 0.0
        %8202 = vmatpush1.xpose.msra.mxu0 0.0
        %8203 = vmatprep.subr.mxu0 0.0
        %8204 = vmatpush1.xpose.msra.mxu0 0.0
        %8205 = vmatprep.subr.mxu0 0.0
        %8206 = vmatpush1.xpose.msra.mxu0 0.0
        %8207 = vmatprep.subr.mxu0 0.0
        %8208 = vmatpush1.xpose.msra.mxu0 0.0
        %8209 = vmatprep.subr.mxu0 0.0
        %8210 = vmatpush1.xpose.msra.mxu0 0.0
        %8211 = vmatprep.subr.mxu0 0.0
        %8212 = vmatpush1.xpose.msra.mxu0 0.0
        %8213 = vmatprep.subr.mxu0 0.0
        %8214 = vmatpush1.xpose.msra.mxu0 0.0
        %8215 = vmatprep.subr.mxu0 0.0
        %8216 = vmatpush1.xpose.msra.mxu0 0.0
        %8217 = vmatprep.subr.mxu0 0.0
        %8218 = vmatpush1.xpose.msra.mxu0 0.0
        %8219 = vmatprep.subr.mxu0 0.0
        %8220 = vmatpush1.xpose.msra.mxu0 0.0
        %8221 = vmatprep.subr.mxu0 0.0
        %8222 = vmatpush1.xpose.msra.mxu0 0.0
        %8223 = vmatprep.subr.mxu0 0.0
        %8224 = vmatpush1.xpose.msra.mxu0 0.0
        %8225 = vmatprep.mubr.f32.mxu0 0.0
        %8226 = vmatmul.mubr.f32.gmra.mrb[0].mxu0 %v8150
        %v8227 = vpop.f32.mrb[0].mxu0
        %v8228 = vadd.f32 0.0, %v8227
        %v8229 = vpop.f32.mrb[0].mxu0
        %8230 = vmatprep.mubr.f32.mxu0 0.0
        %8231 = vmatmul.mubr.f32.gmra.mrb[0].mxu0 %v8153
        %v8232 = vpop.f32.mrb[0].mxu0
        %v8233 = vadd.f32 0.0, %v8232
        %v8234 = vpop.f32.mrb[0].mxu0
        %8235 = vdwg.mxu0
        %v8237 = vsel %vm1446, %v7795, 0
        %v8240 = vsel %vm1446, %v7796, 0
        %v8243 = vsel %vm1446, %v7563, 0
        %v8246 = vsel %vm1446, %v7568, 0
        %8248 = vmatprep.subr.mxu0 0.0
        %8249 = vmatpush1.xpose.msra.mxu0 %v8243
        %8250 = vmatprep.subr.mxu0 0.0
        %8251 = vmatpush1.xpose.msra.mxu0 %v8246
        %8252 = vmatprep.subr.mxu0 0.0
        %8253 = vmatpush1.xpose.msra.mxu0 0.0
        %8254 = vmatprep.subr.mxu0 0.0
        %8255 = vmatpush1.xpose.msra.mxu0 0.0
        %8256 = vmatprep.subr.mxu0 0.0
        %8257 = vmatpush1.xpose.msra.mxu0 0.0
        %8258 = vmatprep.subr.mxu0 0.0
        %8259 = vmatpush1.xpose.msra.mxu0 0.0
        %8260 = vmatprep.subr.mxu0 0.0
        %8261 = vmatpush1.xpose.msra.mxu0 0.0
        %8262 = vmatprep.subr.mxu0 0.0
        %8263 = vmatpush1.xpose.msra.mxu0 0.0
        %8264 = vmatprep.subr.mxu0 0.0
        %8265 = vmatpush1.xpose.msra.mxu0 0.0
        %8266 = vmatprep.subr.mxu0 0.0
        %8267 = vmatpush1.xpose.msra.mxu0 0.0
        %8268 = vmatprep.subr.mxu0 0.0
        %8269 = vmatpush1.xpose.msra.mxu0 0.0
        %8270 = vmatprep.subr.mxu0 0.0
        %8271 = vmatpush1.xpose.msra.mxu0 0.0
        %8272 = vmatprep.subr.mxu0 0.0
        %8273 = vmatpush1.xpose.msra.mxu0 0.0
        %8274 = vmatprep.subr.mxu0 0.0
        %8275 = vmatpush1.xpose.msra.mxu0 0.0
        %8276 = vmatprep.subr.mxu0 0.0
        %8277 = vmatpush1.xpose.msra.mxu0 0.0
        %8278 = vmatprep.subr.mxu0 0.0
        %8279 = vmatpush1.xpose.msra.mxu0 0.0
        %8280 = vmatprep.subr.mxu0 0.0
        %8281 = vmatpush1.xpose.msra.mxu0 0.0
        %8282 = vmatprep.subr.mxu0 0.0
        %8283 = vmatpush1.xpose.msra.mxu0 0.0
        %8284 = vmatprep.subr.mxu0 0.0
        %8285 = vmatpush1.xpose.msra.mxu0 0.0
        %8286 = vmatprep.subr.mxu0 0.0
        %8287 = vmatpush1.xpose.msra.mxu0 0.0
        %8288 = vmatprep.subr.mxu0 0.0
        %8289 = vmatpush1.xpose.msra.mxu0 0.0
        %8290 = vmatprep.subr.mxu0 0.0
        %8291 = vmatpush1.xpose.msra.mxu0 0.0
        %8292 = vmatprep.subr.mxu0 0.0
        %8293 = vmatpush1.xpose.msra.mxu0 0.0
        %8294 = vmatprep.subr.mxu0 0.0
        %8295 = vmatpush1.xpose.msra.mxu0 0.0
        %8296 = vmatprep.subr.mxu0 0.0
        %8297 = vmatpush1.xpose.msra.mxu0 0.0
        %8298 = vmatprep.subr.mxu0 0.0
        %8299 = vmatpush1.xpose.msra.mxu0 0.0
        %8300 = vmatprep.subr.mxu0 0.0
        %8301 = vmatpush1.xpose.msra.mxu0 0.0
        %8302 = vmatprep.subr.mxu0 0.0
        %8303 = vmatpush1.xpose.msra.mxu0 0.0
        %8304 = vmatprep.subr.mxu0 0.0
        %8305 = vmatpush1.xpose.msra.mxu0 0.0
        %8306 = vmatprep.subr.mxu0 0.0
        %8307 = vmatpush1.xpose.msra.mxu0 0.0
        %8308 = vmatprep.subr.mxu0 0.0
        %8309 = vmatpush1.xpose.msra.mxu0 0.0
        %8310 = vmatprep.subr.mxu0 0.0
        %8311 = vmatpush1.xpose.msra.mxu0 0.0
        %8312 = vmatprep.mubr.f32.mxu0 0.0
        %8313 = vmatmul.mubr.f32.gmra.mrb[0].mxu0 %v8237
        %v8314 = vpop.f32.mrb[0].mxu0
        %v8315 = vadd.f32 0.0, %v8314
        %v8316 = vpop.f32.mrb[0].mxu0
        %8317 = vmatprep.mubr.f32.mxu0 0.0
        %8318 = vmatmul.mubr.f32.gmra.mrb[0].mxu0 %v8240
        %v8319 = vpop.f32.mrb[0].mxu0
        %v8320 = vadd.f32 0.0, %v8319
        %v8321 = vpop.f32.mrb[0].mxu0
        %8322 = vdwg.mxu0
        %v8324 = vsel %vm1446, %v7797, 0
        %v8327 = vsel %vm1446, %v7798, 0
        %v8330 = vsel %vm1446, %v7573, 0
        %v8333 = vsel %vm1446, %v7578, 0
        %8335 = vmatprep.subr.mxu0 0.0
        %8336 = vmatpush1.xpose.msra.mxu0 %v8330
        %8337 = vmatprep.subr.mxu0 0.0
        %8338 = vmatpush1.xpose.msra.mxu0 %v8333
        %8339 = vmatprep.subr.mxu0 0.0
        %8340 = vmatpush1.xpose.msra.mxu0 0.0
        %8341 = vmatprep.subr.mxu0 0.0
        %8342 = vmatpush1.xpose.msra.mxu0 0.0
        %8343 = vmatprep.subr.mxu0 0.0
        %8344 = vmatpush1.xpose.msra.mxu0 0.0
        %8345 = vmatprep.subr.mxu0 0.0
        %8346 = vmatpush1.xpose.msra.mxu0 0.0
        %8347 = vmatprep.subr.mxu0 0.0
        %8348 = vmatpush1.xpose.msra.mxu0 0.0
        %8349 = vmatprep.subr.mxu0 0.0
        %8350 = vmatpush1.xpose.msra.mxu0 0.0
        %8351 = vmatprep.subr.mxu0 0.0
        %8352 = vmatpush1.xpose.msra.mxu0 0.0
        %8353 = vmatprep.subr.mxu0 0.0
        %8354 = vmatpush1.xpose.msra.mxu0 0.0
        %8355 = vmatprep.subr.mxu0 0.0
        %8356 = vmatpush1.xpose.msra.mxu0 0.0
        %8357 = vmatprep.subr.mxu0 0.0
        %8358 = vmatpush1.xpose.msra.mxu0 0.0
        %8359 = vmatprep.subr.mxu0 0.0
        %8360 = vmatpush1.xpose.msra.mxu0 0.0
        %8361 = vmatprep.subr.mxu0 0.0
        %8362 = vmatpush1.xpose.msra.mxu0 0.0
        %8363 = vmatprep.subr.mxu0 0.0
        %8364 = vmatpush1.xpose.msra.mxu0 0.0
        %8365 = vmatprep.subr.mxu0 0.0
        %8366 = vmatpush1.xpose.msra.mxu0 0.0
        %8367 = vmatprep.subr.mxu0 0.0
        %8368 = vmatpush1.xpose.msra.mxu0 0.0
        %8369 = vmatprep.subr.mxu0 0.0
        %8370 = vmatpush1.xpose.msra.mxu0 0.0
        %8371 = vmatprep.subr.mxu0 0.0
        %8372 = vmatpush1.xpose.msra.mxu0 0.0
        %8373 = vmatprep.subr.mxu0 0.0
        %8374 = vmatpush1.xpose.msra.mxu0 0.0
        %8375 = vmatprep.subr.mxu0 0.0
        %8376 = vmatpush1.xpose.msra.mxu0 0.0
        %8377 = vmatprep.subr.mxu0 0.0
        %8378 = vmatpush1.xpose.msra.mxu0 0.0
        %8379 = vmatprep.subr.mxu0 0.0
        %8380 = vmatpush1.xpose.msra.mxu0 0.0
        %8381 = vmatprep.subr.mxu0 0.0
        %8382 = vmatpush1.xpose.msra.mxu0 0.0
        %8383 = vmatprep.subr.mxu0 0.0
        %8384 = vmatpush1.xpose.msra.mxu0 0.0
        %8385 = vmatprep.subr.mxu0 0.0
        %8386 = vmatpush1.xpose.msra.mxu0 0.0
        %8387 = vmatprep.subr.mxu0 0.0
        %8388 = vmatpush1.xpose.msra.mxu0 0.0
        %8389 = vmatprep.subr.mxu0 0.0
        %8390 = vmatpush1.xpose.msra.mxu0 0.0
        %8391 = vmatprep.subr.mxu0 0.0
        %8392 = vmatpush1.xpose.msra.mxu0 0.0
        %8393 = vmatprep.subr.mxu0 0.0
        %8394 = vmatpush1.xpose.msra.mxu0 0.0
        %8395 = vmatprep.subr.mxu0 0.0
        %8396 = vmatpush1.xpose.msra.mxu0 0.0
        %8397 = vmatprep.subr.mxu0 0.0
        %8398 = vmatpush1.xpose.msra.mxu0 0.0
        %8399 = vmatprep.mubr.f32.mxu0 0.0
        %8400 = vmatmul.mubr.f32.gmra.mrb[0].mxu0 %v8324
        %v8401 = vpop.f32.mrb[0].mxu0
        %v8402 = vadd.f32 0.0, %v8401
        %v8403 = vpop.f32.mrb[0].mxu0
        %8404 = vmatprep.mubr.f32.mxu0 0.0
        %8405 = vmatmul.mubr.f32.gmra.mrb[0].mxu0 %v8327
        %v8406 = vpop.f32.mrb[0].mxu0
        %v8407 = vadd.f32 0.0, %v8406
        %v8408 = vpop.f32.mrb[0].mxu0
        %8409 = vdwg.mxu0
        %v8411 = vsel %vm1446, %v7799, 0
        %v8414 = vsel %vm1446, %v7800, 0
        %v8417 = vsel %vm1446, %v7583, 0
        %v8420 = vsel %vm1446, %v7588, 0
        %8422 = vmatprep.subr.mxu0 0.0
        %8423 = vmatpush1.xpose.msra.mxu0 %v8417
        %8424 = vmatprep.subr.mxu0 0.0
        %8425 = vmatpush1.xpose.msra.mxu0 %v8420
        %8426 = vmatprep.subr.mxu0 0.0
        %8427 = vmatpush1.xpose.msra.mxu0 0.0
        %8428 = vmatprep.subr.mxu0 0.0
        %8429 = vmatpush1.xpose.msra.mxu0 0.0
        %8430 = vmatprep.subr.mxu0 0.0
        %8431 = vmatpush1.xpose.msra.mxu0 0.0
        %8432 = vmatprep.subr.mxu0 0.0
        %8433 = vmatpush1.xpose.msra.mxu0 0.0
        %8434 = vmatprep.subr.mxu0 0.0
        %8435 = vmatpush1.xpose.msra.mxu0 0.0
        %8436 = vmatprep.subr.mxu0 0.0
        %8437 = vmatpush1.xpose.msra.mxu0 0.0
        %8438 = vmatprep.subr.mxu0 0.0
        %8439 = vmatpush1.xpose.msra.mxu0 0.0
        %8440 = vmatprep.subr.mxu0 0.0
        %8441 = vmatpush1.xpose.msra.mxu0 0.0
        %8442 = vmatprep.subr.mxu0 0.0
        %8443 = vmatpush1.xpose.msra.mxu0 0.0
        %8444 = vmatprep.subr.mxu0 0.0
        %8445 = vmatpush1.xpose.msra.mxu0 0.0
        %8446 = vmatprep.subr.mxu0 0.0
        %8447 = vmatpush1.xpose.msra.mxu0 0.0
        %8448 = vmatprep.subr.mxu0 0.0
        %8449 = vmatpush1.xpose.msra.mxu0 0.0
        %8450 = vmatprep.subr.mxu0 0.0
        %8451 = vmatpush1.xpose.msra.mxu0 0.0
        %8452 = vmatprep.subr.mxu0 0.0
        %8453 = vmatpush1.xpose.msra.mxu0 0.0
        %8454 = vmatprep.subr.mxu0 0.0
        %8455 = vmatpush1.xpose.msra.mxu0 0.0
        %8456 = vmatprep.subr.mxu0 0.0
        %8457 = vmatpush1.xpose.msra.mxu0 0.0
        %8458 = vmatprep.subr.mxu0 0.0
        %8459 = vmatpush1.xpose.msra.mxu0 0.0
        %8460 = vmatprep.subr.mxu0 0.0
        %8461 = vmatpush1.xpose.msra.mxu0 0.0
        %8462 = vmatprep.subr.mxu0 0.0
        %8463 = vmatpush1.xpose.msra.mxu0 0.0
        %8464 = vmatprep.subr.mxu0 0.0
        %8465 = vmatpush1.xpose.msra.mxu0 0.0
        %8466 = vmatprep.subr.mxu0 0.0
        %8467 = vmatpush1.xpose.msra.mxu0 0.0
        %8468 = vmatprep.subr.mxu0 0.0
        %8469 = vmatpush1.xpose.msra.mxu0 0.0
        %8470 = vmatprep.subr.mxu0 0.0
        %8471 = vmatpush1.xpose.msra.mxu0 0.0
        %8472 = vmatprep.subr.mxu0 0.0
        %8473 = vmatpush1.xpose.msra.mxu0 0.0
        %8474 = vmatprep.subr.mxu0 0.0
        %8475 = vmatpush1.xpose.msra.mxu0 0.0
        %8476 = vmatprep.subr.mxu0 0.0
        %8477 = vmatpush1.xpose.msra.mxu0 0.0
        %8478 = vmatprep.subr.mxu0 0.0
        %8479 = vmatpush1.xpose.msra.mxu0 0.0
        %8480 = vmatprep.subr.mxu0 0.0
        %8481 = vmatpush1.xpose.msra.mxu0 0.0
        %8482 = vmatprep.subr.mxu0 0.0
        %8483 = vmatpush1.xpose.msra.mxu0 0.0
        %8484 = vmatprep.subr.mxu0 0.0
        %8485 = vmatpush1.xpose.msra.mxu0 0.0
        %8486 = vmatprep.mubr.f32.mxu0 0.0
        %8487 = vmatmul.mubr.f32.gmra.mrb[0].mxu0 %v8411
        %v8488 = vpop.f32.mrb[0].mxu0
        %v8489 = vadd.f32 0.0, %v8488
        %v8490 = vpop.f32.mrb[0].mxu0
        %8491 = vmatprep.mubr.f32.mxu0 0.0
        %8492 = vmatmul.mubr.f32.gmra.mrb[0].mxu0 %v8414
        %v8493 = vpop.f32.mrb[0].mxu0
        %v8494 = vadd.f32 0.0, %v8493
        %v8495 = vpop.f32.mrb[0].mxu0
        %8496 = vdwg.mxu0
        %v8497 = vsel %vm1446, %v7880, -inf
        %8498 = vmax.xlane.f32.xlu0 %v8497
        %v8499 = vpop.xlane.xlu0 %8498
        %v8500 = vsel %vm1446, %v7885, -inf
        %8501 = vmax.xlane.f32.xlu0 %v8500
        %v8502 = vpop.xlane.xlu0 %8501
        %v8503 = vsel %vm1446, %v7967, -inf
        %8504 = vmax.xlane.f32.xlu0 %v8503
        %v8505 = vpop.xlane.xlu0 %8504
        %v8506 = vsel %vm1446, %v7972, -inf
        %8507 = vmax.xlane.f32.xlu0 %v8506
        %v8508 = vpop.xlane.xlu0 %8507
        %v8509 = vsel %vm1446, %v8054, -inf
        %8510 = vmax.xlane.f32.xlu0 %v8509
        %v8511 = vpop.xlane.xlu0 %8510
        %v8512 = vsel %vm1446, %v8059, -inf
        %8513 = vmax.xlane.f32.xlu0 %v8512
        %v8514 = vpop.xlane.xlu0 %8513
        %v8515 = vsel %vm1446, %v8141, -inf
        %8516 = vmax.xlane.f32.xlu0 %v8515
        %v8517 = vpop.xlane.xlu0 %8516
        %v8518 = vsel %vm1446, %v8146, -inf
        %8519 = vmax.xlane.f32.xlu0 %v8518
        %v8520 = vpop.xlane.xlu0 %8519
        %v8521 = vsel %vm1446, %v8228, -inf
        %8522 = vmax.xlane.f32.xlu0 %v8521
        %v8523 = vpop.xlane.xlu0 %8522
        %v8524 = vsel %vm1446, %v8233, -inf
        %8525 = vmax.xlane.f32.xlu0 %v8524
        %v8526 = vpop.xlane.xlu0 %8525
        %v8527 = vsel %vm1446, %v8315, -inf
        %8528 = vmax.xlane.f32.xlu0 %v8527
        %v8529 = vpop.xlane.xlu0 %8528
        %v8530 = vsel %vm1446, %v8320, -inf
        %8531 = vmax.xlane.f32.xlu0 %v8530
        %v8532 = vpop.xlane.xlu0 %8531
        %v8533 = vsel %vm1446, %v8402, -inf
        %8534 = vmax.xlane.f32.xlu0 %v8533
        %v8535 = vpop.xlane.xlu0 %8534
        %v8536 = vsel %vm1446, %v8407, -inf
        %8537 = vmax.xlane.f32.xlu0 %v8536
        %v8538 = vpop.xlane.xlu0 %8537
        %v8539 = vsel %vm1446, %v8489, -inf
        %8540 = vmax.xlane.f32.xlu0 %v8539
        %v8541 = vpop.xlane.xlu0 %8540
        %v8542 = vsel %vm1446, %v8494, -inf
        %8543 = vmax.xlane.f32.xlu0 %v8542
        %v8544 = vpop.xlane.xlu0 %8543
        %v8545 = vsub.f32 %v7880, %v8499
        %v8546 = vsub.f32 %v7885, %v8502
        %v8547 = vsub.f32 %v7967, %v8505
        %v8548 = vsub.f32 %v7972, %v8508
        %v8549 = vsub.f32 %v8054, %v8511
        %v8550 = vsub.f32 %v8059, %v8514
        %v8551 = vsub.f32 %v8141, %v8517
        %v8552 = vsub.f32 %v8146, %v8520
        %v8553 = vsub.f32 %v8228, %v8523
        %v8554 = vsub.f32 %v8233, %v8526
        %v8555 = vsub.f32 %v8315, %v8529
        %v8556 = vsub.f32 %v8320, %v8532
        %v8557 = vsub.f32 %v8402, %v8535
        %v8558 = vsub.f32 %v8407, %v8538
        %v8559 = vsub.f32 %v8489, %v8541
        %v8560 = vsub.f32 %v8494, %v8544
        %v8561 = vmul.f32 %v8545, 1.442695
        %v8562 = vpow.pop %v8561
        %v8563 = vmul.f32 %v8546, 1.442695
        %v8564 = vpow.pop %v8563
        %v8565 = vmul.f32 %v8547, 1.442695
        %v8566 = vpow.pop %v8565
        %v8567 = vmul.f32 %v8548, 1.442695
        %v8568 = vpow.pop %v8567
        %v8569 = vmul.f32 %v8549, 1.442695
        %v8570 = vpow.pop %v8569
        %v8571 = vmul.f32 %v8550, 1.442695
        %v8572 = vpow.pop %v8571
        %v8573 = vmul.f32 %v8551, 1.442695
        %v8574 = vpow.pop %v8573
        %v8575 = vmul.f32 %v8552, 1.442695
        %v8576 = vpow.pop %v8575
        %v8577 = vmul.f32 %v8553, 1.442695
        %v8578 = vpow.pop %v8577
        %v8579 = vmul.f32 %v8554, 1.442695
        %v8580 = vpow.pop %v8579
        %v8581 = vmul.f32 %v8555, 1.442695
        %v8582 = vpow.pop %v8581
        %v8583 = vmul.f32 %v8556, 1.442695
        %v8584 = vpow.pop %v8583
        %v8585 = vmul.f32 %v8557, 1.442695
        %v8586 = vpow.pop %v8585
        %v8587 = vmul.f32 %v8558, 1.442695
        %v8588 = vpow.pop %v8587
        %v8589 = vmul.f32 %v8559, 1.442695
        %v8590 = vpow.pop %v8589
        %v8591 = vmul.f32 %v8560, 1.442695
        %v8592 = vpow.pop %v8591
        %v8593 = vsel %vm1446, %v8562, 0.0
        %8594 = vadd.xlane.f32.xlu0 %v8593
        %v8595 = vpop.xlane.xlu0 %8594
        %v8596 = vsel %vm1446, %v8564, 0.0
        %8597 = vadd.xlane.f32.xlu0 %v8596
        %v8598 = vpop.xlane.xlu0 %8597
        %v8599 = vsel %vm1446, %v8566, 0.0
        %8600 = vadd.xlane.f32.xlu0 %v8599
        %v8601 = vpop.xlane.xlu0 %8600
        %v8602 = vsel %vm1446, %v8568, 0.0
        %8603 = vadd.xlane.f32.xlu0 %v8602
        %v8604 = vpop.xlane.xlu0 %8603
        %v8605 = vsel %vm1446, %v8570, 0.0
        %8606 = vadd.xlane.f32.xlu0 %v8605
        %v8607 = vpop.xlane.xlu0 %8606
        %v8608 = vsel %vm1446, %v8572, 0.0
        %8609 = vadd.xlane.f32.xlu0 %v8608
        %v8610 = vpop.xlane.xlu0 %8609
        %v8611 = vsel %vm1446, %v8574, 0.0
        %8612 = vadd.xlane.f32.xlu0 %v8611
        %v8613 = vpop.xlane.xlu0 %8612
        %v8614 = vsel %vm1446, %v8576, 0.0
        %8615 = vadd.xlane.f32.xlu0 %v8614
        %v8616 = vpop.xlane.xlu0 %8615
        %v8617 = vsel %vm1446, %v8578, 0.0
        %8618 = vadd.xlane.f32.xlu0 %v8617
        %v8619 = vpop.xlane.xlu0 %8618
        %v8620 = vsel %vm1446, %v8580, 0.0
        %8621 = vadd.xlane.f32.xlu0 %v8620
        %v8622 = vpop.xlane.xlu0 %8621
        %v8623 = vsel %vm1446, %v8582, 0.0
        %8624 = vadd.xlane.f32.xlu0 %v8623
        %v8625 = vpop.xlane.xlu0 %8624
        %v8626 = vsel %vm1446, %v8584, 0.0
        %8627 = vadd.xlane.f32.xlu0 %v8626
        %v8628 = vpop.xlane.xlu0 %8627
        %v8629 = vsel %vm1446, %v8586, 0.0
        %8630 = vadd.xlane.f32.xlu0 %v8629
        %v8631 = vpop.xlane.xlu0 %8630
        %v8632 = vsel %vm1446, %v8588, 0.0
        %8633 = vadd.xlane.f32.xlu0 %v8632
        %v8634 = vpop.xlane.xlu0 %8633
        %v8635 = vsel %vm1446, %v8590, 0.0
        %8636 = vadd.xlane.f32.xlu0 %v8635
        %v8637 = vpop.xlane.xlu0 %8636
        %v8638 = vsel %vm1446, %v8592, 0.0
        %8639 = vadd.xlane.f32.xlu0 %v8638
        %v8640 = vpop.xlane.xlu0 %8639
        %v8641 = vrcp.pop %v8595
        %v8642 = vrcp.pop %v8598
        %v8643 = vrcp.pop %v8601
        %v8644 = vrcp.pop %v8604
        %v8645 = vrcp.pop %v8607
        %v8646 = vrcp.pop %v8610
        %v8647 = vrcp.pop %v8613
        %v8648 = vrcp.pop %v8616
        %v8649 = vrcp.pop %v8619
        %v8650 = vrcp.pop %v8622
        %v8651 = vrcp.pop %v8625
        %v8652 = vrcp.pop %v8628
        %v8653 = vrcp.pop %v8631
        %v8654 = vrcp.pop %v8634
        %v8655 = vrcp.pop %v8637
        %v8656 = vrcp.pop %v8640
        %v8657 = vmul.f32 %v8562, %v8641
        %v8658 = vmul.f32 %v8564, %v8642
        %v8659 = vmul.f32 %v8566, %v8643
        %v8660 = vmul.f32 %v8568, %v8644
        %v8661 = vmul.f32 %v8570, %v8645
        %v8662 = vmul.f32 %v8572, %v8646
        %v8663 = vmul.f32 %v8574, %v8647
        %v8664 = vmul.f32 %v8576, %v8648
        %v8665 = vmul.f32 %v8578, %v8649
        %v8666 = vmul.f32 %v8580, %v8650
        %v8667 = vmul.f32 %v8582, %v8651
        %v8668 = vmul.f32 %v8584, %v8652
        %v8669 = vmul.f32 %v8586, %v8653
        %v8670 = vmul.f32 %v8588, %v8654
        %v8671 = vmul.f32 %v8590, %v8655
        %v8672 = vmul.f32 %v8592, %v8656
        %v8674 = vsel %vm1446, %v8657, 0
        %v8677 = vsel %vm1446, %v8658, 0
        %8679 = vmatprep.subr.mxu0 0.0
        %8680 = vmatpush1.msra.mxu0 %v7707
        %8681 = vmatprep.subr.mxu0 0.0
        %8682 = vmatpush1.msra.mxu0 %v7712
        %8683 = vmatprep.subr.mxu0 0.0
        %8684 = vmatpush1.msra.mxu0 0.0
        %8685 = vmatprep.subr.mxu0 0.0
        %8686 = vmatpush1.msra.mxu0 0.0
        %8687 = vmatprep.subr.mxu0 0.0
        %8688 = vmatpush1.msra.mxu0 0.0
        %8689 = vmatprep.subr.mxu0 0.0
        %8690 = vmatpush1.msra.mxu0 0.0
        %8691 = vmatprep.subr.mxu0 0.0
        %8692 = vmatpush1.msra.mxu0 0.0
        %8693 = vmatprep.subr.mxu0 0.0
        %8694 = vmatpush1.msra.mxu0 0.0
        %8695 = vmatprep.subr.mxu0 0.0
        %8696 = vmatpush1.msra.mxu0 0.0
        %8697 = vmatprep.subr.mxu0 0.0
        %8698 = vmatpush1.msra.mxu0 0.0
        %8699 = vmatprep.subr.mxu0 0.0
        %8700 = vmatpush1.msra.mxu0 0.0
        %8701 = vmatprep.subr.mxu0 0.0
        %8702 = vmatpush1.msra.mxu0 0.0
        %8703 = vmatprep.subr.mxu0 0.0
        %8704 = vmatpush1.msra.mxu0 0.0
        %8705 = vmatprep.subr.mxu0 0.0
        %8706 = vmatpush1.msra.mxu0 0.0
        %8707 = vmatprep.subr.mxu0 0.0
        %8708 = vmatpush1.msra.mxu0 0.0
        %8709 = vmatprep.subr.mxu0 0.0
        %8710 = vmatpush1.msra.mxu0 0.0
        %8711 = vmatprep.subr.mxu0 0.0
        %8712 = vmatpush1.msra.mxu0 0.0
        %8713 = vmatprep.subr.mxu0 0.0
        %8714 = vmatpush1.msra.mxu0 0.0
        %8715 = vmatprep.subr.mxu0 0.0
        %8716 = vmatpush1.msra.mxu0 0.0
        %8717 = vmatprep.subr.mxu0 0.0
        %8718 = vmatpush1.msra.mxu0 0.0
        %8719 = vmatprep.subr.mxu0 0.0
        %8720 = vmatpush1.msra.mxu0 0.0
        %8721 = vmatprep.subr.mxu0 0.0
        %8722 = vmatpush1.msra.mxu0 0.0
        %8723 = vmatprep.subr.mxu0 0.0
        %8724 = vmatpush1.msra.mxu0 0.0
        %8725 = vmatprep.subr.mxu0 0.0
        %8726 = vmatpush1.msra.mxu0 0.0
        %8727 = vmatprep.subr.mxu0 0.0
        %8728 = vmatpush1.msra.mxu0 0.0
        %8729 = vmatprep.subr.mxu0 0.0
        %8730 = vmatpush1.msra.mxu0 0.0
        %8731 = vmatprep.subr.mxu0 0.0
        %8732 = vmatpush1.msra.mxu0 0.0
        %8733 = vmatprep.subr.mxu0 0.0
        %8734 = vmatpush1.msra.mxu0 0.0
        %8735 = vmatprep.subr.mxu0 0.0
        %8736 = vmatpush1.msra.mxu0 0.0
        %8737 = vmatprep.subr.mxu0 0.0
        %8738 = vmatpush1.msra.mxu0 0.0
        %8739 = vmatprep.subr.mxu0 0.0
        %8740 = vmatpush1.msra.mxu0 0.0
        %8741 = vmatprep.subr.mxu0 0.0
        %8742 = vmatpush1.msra.mxu0 0.0
        %8743 = vmatprep.mubr.f32.mxu0 0.0
        %8744 = vmatmul.mubr.f32.gmra.mrb[0].mxu0 %v8674
        %v8745 = vpop.f32.mrb[0].mxu0
        %v8746 = vadd.f32 0.0, %v8745
        %v8747 = vpop.f32.mrb[0].mxu0
        %8748 = vmatprep.mubr.f32.mxu0 0.0
        %8749 = vmatmul.mubr.f32.gmra.mrb[0].mxu0 %v8677
        %v8750 = vpop.f32.mrb[0].mxu0
        %v8751 = vadd.f32 0.0, %v8750
        %v8752 = vpop.f32.mrb[0].mxu0
        %8753 = vdwg.mxu0
        %v8755 = vsel %vm1446, %v8659, 0
        %v8758 = vsel %vm1446, %v8660, 0
        %8760 = vmatprep.subr.mxu0 0.0
        %8761 = vmatpush1.msra.mxu0 %v7717
        %8762 = vmatprep.subr.mxu0 0.0
        %8763 = vmatpush1.msra.mxu0 %v7722
        %8764 = vmatprep.subr.mxu0 0.0
        %8765 = vmatpush1.msra.mxu0 0.0
        %8766 = vmatprep.subr.mxu0 0.0
        %8767 = vmatpush1.msra.mxu0 0.0
        %8768 = vmatprep.subr.mxu0 0.0
        %8769 = vmatpush1.msra.mxu0 0.0
        %8770 = vmatprep.subr.mxu0 0.0
        %8771 = vmatpush1.msra.mxu0 0.0
        %8772 = vmatprep.subr.mxu0 0.0
        %8773 = vmatpush1.msra.mxu0 0.0
        %8774 = vmatprep.subr.mxu0 0.0
        %8775 = vmatpush1.msra.mxu0 0.0
        %8776 = vmatprep.subr.mxu0 0.0
        %8777 = vmatpush1.msra.mxu0 0.0
        %8778 = vmatprep.subr.mxu0 0.0
        %8779 = vmatpush1.msra.mxu0 0.0
        %8780 = vmatprep.subr.mxu0 0.0
        %8781 = vmatpush1.msra.mxu0 0.0
        %8782 = vmatprep.subr.mxu0 0.0
        %8783 = vmatpush1.msra.mxu0 0.0
        %8784 = vmatprep.subr.mxu0 0.0
        %8785 = vmatpush1.msra.mxu0 0.0
        %8786 = vmatprep.subr.mxu0 0.0
        %8787 = vmatpush1.msra.mxu0 0.0
        %8788 = vmatprep.subr.mxu0 0.0
        %8789 = vmatpush1.msra.mxu0 0.0
        %8790 = vmatprep.subr.mxu0 0.0
        %8791 = vmatpush1.msra.mxu0 0.0
        %8792 = vmatprep.subr.mxu0 0.0
        %8793 = vmatpush1.msra.mxu0 0.0
        %8794 = vmatprep.subr.mxu0 0.0
        %8795 = vmatpush1.msra.mxu0 0.0
        %8796 = vmatprep.subr.mxu0 0.0
        %8797 = vmatpush1.msra.mxu0 0.0
        %8798 = vmatprep.subr.mxu0 0.0
        %8799 = vmatpush1.msra.mxu0 0.0
        %8800 = vmatprep.subr.mxu0 0.0
        %8801 = vmatpush1.msra.mxu0 0.0
        %8802 = vmatprep.subr.mxu0 0.0
        %8803 = vmatpush1.msra.mxu0 0.0
        %8804 = vmatprep.subr.mxu0 0.0
        %8805 = vmatpush1.msra.mxu0 0.0
        %8806 = vmatprep.subr.mxu0 0.0
        %8807 = vmatpush1.msra.mxu0 0.0
        %8808 = vmatprep.subr.mxu0 0.0
        %8809 = vmatpush1.msra.mxu0 0.0
        %8810 = vmatprep.subr.mxu0 0.0
        %8811 = vmatpush1.msra.mxu0 0.0
        %8812 = vmatprep.subr.mxu0 0.0
        %8813 = vmatpush1.msra.mxu0 0.0
        %8814 = vmatprep.subr.mxu0 0.0
        %8815 = vmatpush1.msra.mxu0 0.0
        %8816 = vmatprep.subr.mxu0 0.0
        %8817 = vmatpush1.msra.mxu0 0.0
        %8818 = vmatprep.subr.mxu0 0.0
        %8819 = vmatpush1.msra.mxu0 0.0
        %8820 = vmatprep.subr.mxu0 0.0
        %8821 = vmatpush1.msra.mxu0 0.0
        %8822 = vmatprep.subr.mxu0 0.0
        %8823 = vmatpush1.msra.mxu0 0.0
        %8824 = vmatprep.mubr.f32.mxu0 0.0
        %8825 = vmatmul.mubr.f32.gmra.mrb[0].mxu0 %v8755
        %v8826 = vpop.f32.mrb[0].mxu0
        %v8827 = vadd.f32 0.0, %v8826
        %v8828 = vpop.f32.mrb[0].mxu0
        %8829 = vmatprep.mubr.f32.mxu0 0.0
        %8830 = vmatmul.mubr.f32.gmra.mrb[0].mxu0 %v8758
        %v8831 = vpop.f32.mrb[0].mxu0
        %v8832 = vadd.f32 0.0, %v8831
        %v8833 = vpop.f32.mrb[0].mxu0
        %8834 = vdwg.mxu0
        %v8836 = vsel %vm1446, %v8661, 0
        %v8839 = vsel %vm1446, %v8662, 0
        %8841 = vmatprep.subr.mxu0 0.0
        %8842 = vmatpush1.msra.mxu0 %v7727
        %8843 = vmatprep.subr.mxu0 0.0
        %8844 = vmatpush1.msra.mxu0 %v7732
        %8845 = vmatprep.subr.mxu0 0.0
        %8846 = vmatpush1.msra.mxu0 0.0
        %8847 = vmatprep.subr.mxu0 0.0
        %8848 = vmatpush1.msra.mxu0 0.0
        %8849 = vmatprep.subr.mxu0 0.0
        %8850 = vmatpush1.msra.mxu0 0.0
        %8851 = vmatprep.subr.mxu0 0.0
        %8852 = vmatpush1.msra.mxu0 0.0
        %8853 = vmatprep.subr.mxu0 0.0
        %8854 = vmatpush1.msra.mxu0 0.0
        %8855 = vmatprep.subr.mxu0 0.0
        %8856 = vmatpush1.msra.mxu0 0.0
        %8857 = vmatprep.subr.mxu0 0.0
        %8858 = vmatpush1.msra.mxu0 0.0
        %8859 = vmatprep.subr.mxu0 0.0
        %8860 = vmatpush1.msra.mxu0 0.0
        %8861 = vmatprep.subr.mxu0 0.0
        %8862 = vmatpush1.msra.mxu0 0.0
        %8863 = vmatprep.subr.mxu0 0.0
        %8864 = vmatpush1.msra.mxu0 0.0
        %8865 = vmatprep.subr.mxu0 0.0
        %8866 = vmatpush1.msra.mxu0 0.0
        %8867 = vmatprep.subr.mxu0 0.0
        %8868 = vmatpush1.msra.mxu0 0.0
        %8869 = vmatprep.subr.mxu0 0.0
        %8870 = vmatpush1.msra.mxu0 0.0
        %8871 = vmatprep.subr.mxu0 0.0
        %8872 = vmatpush1.msra.mxu0 0.0
        %8873 = vmatprep.subr.mxu0 0.0
        %8874 = vmatpush1.msra.mxu0 0.0
        %8875 = vmatprep.subr.mxu0 0.0
        %8876 = vmatpush1.msra.mxu0 0.0
        %8877 = vmatprep.subr.mxu0 0.0
        %8878 = vmatpush1.msra.mxu0 0.0
        %8879 = vmatprep.subr.mxu0 0.0
        %8880 = vmatpush1.msra.mxu0 0.0
        %8881 = vmatprep.subr.mxu0 0.0
        %8882 = vmatpush1.msra.mxu0 0.0
        %8883 = vmatprep.subr.mxu0 0.0
        %8884 = vmatpush1.msra.mxu0 0.0
        %8885 = vmatprep.subr.mxu0 0.0
        %8886 = vmatpush1.msra.mxu0 0.0
        %8887 = vmatprep.subr.mxu0 0.0
        %8888 = vmatpush1.msra.mxu0 0.0
        %8889 = vmatprep.subr.mxu0 0.0
        %8890 = vmatpush1.msra.mxu0 0.0
        %8891 = vmatprep.subr.mxu0 0.0
        %8892 = vmatpush1.msra.mxu0 0.0
        %8893 = vmatprep.subr.mxu0 0.0
        %8894 = vmatpush1.msra.mxu0 0.0
        %8895 = vmatprep.subr.mxu0 0.0
        %8896 = vmatpush1.msra.mxu0 0.0
        %8897 = vmatprep.subr.mxu0 0.0
        %8898 = vmatpush1.msra.mxu0 0.0
        %8899 = vmatprep.subr.mxu0 0.0
        %8900 = vmatpush1.msra.mxu0 0.0
        %8901 = vmatprep.subr.mxu0 0.0
        %8902 = vmatpush1.msra.mxu0 0.0
        %8903 = vmatprep.subr.mxu0 0.0
        %8904 = vmatpush1.msra.mxu0 0.0
        %8905 = vmatprep.mubr.f32.mxu0 0.0
        %8906 = vmatmul.mubr.f32.gmra.mrb[0].mxu0 %v8836
        %v8907 = vpop.f32.mrb[0].mxu0
        %v8908 = vadd.f32 0.0, %v8907
        %v8909 = vpop.f32.mrb[0].mxu0
        %8910 = vmatprep.mubr.f32.mxu0 0.0
        %8911 = vmatmul.mubr.f32.gmra.mrb[0].mxu0 %v8839
        %v8912 = vpop.f32.mrb[0].mxu0
        %v8913 = vadd.f32 0.0, %v8912
        %v8914 = vpop.f32.mrb[0].mxu0
        %8915 = vdwg.mxu0
        %v8917 = vsel %vm1446, %v8663, 0
        %v8920 = vsel %vm1446, %v8664, 0
        %8922 = vmatprep.subr.mxu0 0.0
        %8923 = vmatpush1.msra.mxu0 %v7737
        %8924 = vmatprep.subr.mxu0 0.0
        %8925 = vmatpush1.msra.mxu0 %v7742
        %8926 = vmatprep.subr.mxu0 0.0
        %8927 = vmatpush1.msra.mxu0 0.0
        %8928 = vmatprep.subr.mxu0 0.0
        %8929 = vmatpush1.msra.mxu0 0.0
        %8930 = vmatprep.subr.mxu0 0.0
        %8931 = vmatpush1.msra.mxu0 0.0
        %8932 = vmatprep.subr.mxu0 0.0
        %8933 = vmatpush1.msra.mxu0 0.0
        %8934 = vmatprep.subr.mxu0 0.0
        %8935 = vmatpush1.msra.mxu0 0.0
        %8936 = vmatprep.subr.mxu0 0.0
        %8937 = vmatpush1.msra.mxu0 0.0
        %8938 = vmatprep.subr.mxu0 0.0
        %8939 = vmatpush1.msra.mxu0 0.0
        %8940 = vmatprep.subr.mxu0 0.0
        %8941 = vmatpush1.msra.mxu0 0.0
        %8942 = vmatprep.subr.mxu0 0.0
        %8943 = vmatpush1.msra.mxu0 0.0
        %8944 = vmatprep.subr.mxu0 0.0
        %8945 = vmatpush1.msra.mxu0 0.0
        %8946 = vmatprep.subr.mxu0 0.0
        %8947 = vmatpush1.msra.mxu0 0.0
        %8948 = vmatprep.subr.mxu0 0.0
        %8949 = vmatpush1.msra.mxu0 0.0
        %8950 = vmatprep.subr.mxu0 0.0
        %8951 = vmatpush1.msra.mxu0 0.0
        %8952 = vmatprep.subr.mxu0 0.0
        %8953 = vmatpush1.msra.mxu0 0.0
        %8954 = vmatprep.subr.mxu0 0.0
        %8955 = vmatpush1.msra.mxu0 0.0
        %8956 = vmatprep.subr.mxu0 0.0
        %8957 = vmatpush1.msra.mxu0 0.0
        %8958 = vmatprep.subr.mxu0 0.0
        %8959 = vmatpush1.msra.mxu0 0.0
        %8960 = vmatprep.subr.mxu0 0.0
        %8961 = vmatpush1.msra.mxu0 0.0
        %8962 = vmatprep.subr.mxu0 0.0
        %8963 = vmatpush1.msra.mxu0 0.0
        %8964 = vmatprep.subr.mxu0 0.0
        %8965 = vmatpush1.msra.mxu0 0.0
        %8966 = vmatprep.subr.mxu0 0.0
        %8967 = vmatpush1.msra.mxu0 0.0
        %8968 = vmatprep.subr.mxu0 0.0
        %8969 = vmatpush1.msra.mxu0 0.0
        %8970 = vmatprep.subr.mxu0 0.0
        %8971 = vmatpush1.msra.mxu0 0.0
        %8972 = vmatprep.subr.mxu0 0.0
        %8973 = vmatpush1.msra.mxu0 0.0
        %8974 = vmatprep.subr.mxu0 0.0
        %8975 = vmatpush1.msra.mxu0 0.0
        %8976 = vmatprep.subr.mxu0 0.0
        %8977 = vmatpush1.msra.mxu0 0.0
        %8978 = vmatprep.subr.mxu0 0.0
        %8979 = vmatpush1.msra.mxu0 0.0
        %8980 = vmatprep.subr.mxu0 0.0
        %8981 = vmatpush1.msra.mxu0 0.0
        %8982 = vmatprep.subr.mxu0 0.0
        %8983 = vmatpush1.msra.mxu0 0.0
        %8984 = vmatprep.subr.mxu0 0.0
        %8985 = vmatpush1.msra.mxu0 0.0
        %8986 = vmatprep.mubr.f32.mxu0 0.0
        %8987 = vmatmul.mubr.f32.gmra.mrb[0].mxu0 %v8917
        %v8988 = vpop.f32.mrb[0].mxu0
        %v8989 = vadd.f32 0.0, %v8988
        %v8990 = vpop.f32.mrb[0].mxu0
        %8991 = vmatprep.mubr.f32.mxu0 0.0
        %8992 = vmatmul.mubr.f32.gmra.mrb[0].mxu0 %v8920
        %v8993 = vpop.f32.mrb[0].mxu0
        %v8994 = vadd.f32 0.0, %v8993
        %v8995 = vpop.f32.mrb[0].mxu0
        %8996 = vdwg.mxu0
        %v8998 = vsel %vm1446, %v8665, 0
        %v9001 = vsel %vm1446, %v8666, 0
        %9003 = vmatprep.subr.mxu0 0.0
        %9004 = vmatpush1.msra.mxu0 %v7747
        %9005 = vmatprep.subr.mxu0 0.0
        %9006 = vmatpush1.msra.mxu0 %v7752
        %9007 = vmatprep.subr.mxu0 0.0
        %9008 = vmatpush1.msra.mxu0 0.0
        %9009 = vmatprep.subr.mxu0 0.0
        %9010 = vmatpush1.msra.mxu0 0.0
        %9011 = vmatprep.subr.mxu0 0.0
        %9012 = vmatpush1.msra.mxu0 0.0
        %9013 = vmatprep.subr.mxu0 0.0
        %9014 = vmatpush1.msra.mxu0 0.0
        %9015 = vmatprep.subr.mxu0 0.0
        %9016 = vmatpush1.msra.mxu0 0.0
        %9017 = vmatprep.subr.mxu0 0.0
        %9018 = vmatpush1.msra.mxu0 0.0
        %9019 = vmatprep.subr.mxu0 0.0
        %9020 = vmatpush1.msra.mxu0 0.0
        %9021 = vmatprep.subr.mxu0 0.0
        %9022 = vmatpush1.msra.mxu0 0.0
        %9023 = vmatprep.subr.mxu0 0.0
        %9024 = vmatpush1.msra.mxu0 0.0
        %9025 = vmatprep.subr.mxu0 0.0
        %9026 = vmatpush1.msra.mxu0 0.0
        %9027 = vmatprep.subr.mxu0 0.0
        %9028 = vmatpush1.msra.mxu0 0.0
        %9029 = vmatprep.subr.mxu0 0.0
        %9030 = vmatpush1.msra.mxu0 0.0
        %9031 = vmatprep.subr.mxu0 0.0
        %9032 = vmatpush1.msra.mxu0 0.0
        %9033 = vmatprep.subr.mxu0 0.0
        %9034 = vmatpush1.msra.mxu0 0.0
        %9035 = vmatprep.subr.mxu0 0.0
        %9036 = vmatpush1.msra.mxu0 0.0
        %9037 = vmatprep.subr.mxu0 0.0
        %9038 = vmatpush1.msra.mxu0 0.0
        %9039 = vmatprep.subr.mxu0 0.0
        %9040 = vmatpush1.msra.mxu0 0.0
        %9041 = vmatprep.subr.mxu0 0.0
        %9042 = vmatpush1.msra.mxu0 0.0
        %9043 = vmatprep.subr.mxu0 0.0
        %9044 = vmatpush1.msra.mxu0 0.0
        %9045 = vmatprep.subr.mxu0 0.0
        %9046 = vmatpush1.msra.mxu0 0.0
        %9047 = vmatprep.subr.mxu0 0.0
        %9048 = vmatpush1.msra.mxu0 0.0
        %9049 = vmatprep.subr.mxu0 0.0
        %9050 = vmatpush1.msra.mxu0 0.0
        %9051 = vmatprep.subr.mxu0 0.0
        %9052 = vmatpush1.msra.mxu0 0.0
        %9053 = vmatprep.subr.mxu0 0.0
        %9054 = vmatpush1.msra.mxu0 0.0
        %9055 = vmatprep.subr.mxu0 0.0
        %9056 = vmatpush1.msra.mxu0 0.0
        %9057 = vmatprep.subr.mxu0 0.0
        %9058 = vmatpush1.msra.mxu0 0.0
        %9059 = vmatprep.subr.mxu0 0.0
        %9060 = vmatpush1.msra.mxu0 0.0
        %9061 = vmatprep.subr.mxu0 0.0
        %9062 = vmatpush1.msra.mxu0 0.0
        %9063 = vmatprep.subr.mxu0 0.0
        %9064 = vmatpush1.msra.mxu0 0.0
        %9065 = vmatprep.subr.mxu0 0.0
        %9066 = vmatpush1.msra.mxu0 0.0
        %9067 = vmatprep.mubr.f32.mxu0 0.0
        %9068 = vmatmul.mubr.f32.gmra.mrb[0].mxu0 %v8998
        %v9069 = vpop.f32.mrb[0].mxu0
        %v9070 = vadd.f32 0.0, %v9069
        %v9071 = vpop.f32.mrb[0].mxu0
        %9072 = vmatprep.mubr.f32.mxu0 0.0
        %9073 = vmatmul.mubr.f32.gmra.mrb[0].mxu0 %v9001
        %v9074 = vpop.f32.mrb[0].mxu0
        %v9075 = vadd.f32 0.0, %v9074
        %v9076 = vpop.f32.mrb[0].mxu0
        %9077 = vdwg.mxu0
        %v9079 = vsel %vm1446, %v8667, 0
        %v9082 = vsel %vm1446, %v8668, 0
        %9084 = vmatprep.subr.mxu0 0.0
        %9085 = vmatpush1.msra.mxu0 %v7757
        %9086 = vmatprep.subr.mxu0 0.0
        %9087 = vmatpush1.msra.mxu0 %v7762
        %9088 = vmatprep.subr.mxu0 0.0
        %9089 = vmatpush1.msra.mxu0 0.0
        %9090 = vmatprep.subr.mxu0 0.0
        %9091 = vmatpush1.msra.mxu0 0.0
        %9092 = vmatprep.subr.mxu0 0.0
        %9093 = vmatpush1.msra.mxu0 0.0
        %9094 = vmatprep.subr.mxu0 0.0
        %9095 = vmatpush1.msra.mxu0 0.0
        %9096 = vmatprep.subr.mxu0 0.0
        %9097 = vmatpush1.msra.mxu0 0.0
        %9098 = vmatprep.subr.mxu0 0.0
        %9099 = vmatpush1.msra.mxu0 0.0
        %9100 = vmatprep.subr.mxu0 0.0
        %9101 = vmatpush1.msra.mxu0 0.0
        %9102 = vmatprep.subr.mxu0 0.0
        %9103 = vmatpush1.msra.mxu0 0.0
        %9104 = vmatprep.subr.mxu0 0.0
        %9105 = vmatpush1.msra.mxu0 0.0
        %9106 = vmatprep.subr.mxu0 0.0
        %9107 = vmatpush1.msra.mxu0 0.0
        %9108 = vmatprep.subr.mxu0 0.0
        %9109 = vmatpush1.msra.mxu0 0.0
        %9110 = vmatprep.subr.mxu0 0.0
        %9111 = vmatpush1.msra.mxu0 0.0
        %9112 = vmatprep.subr.mxu0 0.0
        %9113 = vmatpush1.msra.mxu0 0.0
        %9114 = vmatprep.subr.mxu0 0.0
        %9115 = vmatpush1.msra.mxu0 0.0
        %9116 = vmatprep.subr.mxu0 0.0
        %9117 = vmatpush1.msra.mxu0 0.0
        %9118 = vmatprep.subr.mxu0 0.0
        %9119 = vmatpush1.msra.mxu0 0.0
        %9120 = vmatprep.subr.mxu0 0.0
        %9121 = vmatpush1.msra.mxu0 0.0
        %9122 = vmatprep.subr.mxu0 0.0
        %9123 = vmatpush1.msra.mxu0 0.0
        %9124 = vmatprep.subr.mxu0 0.0
        %9125 = vmatpush1.msra.mxu0 0.0
        %9126 = vmatprep.subr.mxu0 0.0
        %9127 = vmatpush1.msra.mxu0 0.0
        %9128 = vmatprep.subr.mxu0 0.0
        %9129 = vmatpush1.msra.mxu0 0.0
        %9130 = vmatprep.subr.mxu0 0.0
        %9131 = vmatpush1.msra.mxu0 0.0
        %9132 = vmatprep.subr.mxu0 0.0
        %9133 = vmatpush1.msra.mxu0 0.0
        %9134 = vmatprep.subr.mxu0 0.0
        %9135 = vmatpush1.msra.mxu0 0.0
        %9136 = vmatprep.subr.mxu0 0.0
        %9137 = vmatpush1.msra.mxu0 0.0
        %9138 = vmatprep.subr.mxu0 0.0
        %9139 = vmatpush1.msra.mxu0 0.0
        %9140 = vmatprep.subr.mxu0 0.0
        %9141 = vmatpush1.msra.mxu0 0.0
        %9142 = vmatprep.subr.mxu0 0.0
        %9143 = vmatpush1.msra.mxu0 0.0
        %9144 = vmatprep.subr.mxu0 0.0
        %9145 = vmatpush1.msra.mxu0 0.0
        %9146 = vmatprep.subr.mxu0 0.0
        %9147 = vmatpush1.msra.mxu0 0.0
        %9148 = vmatprep.mubr.f32.mxu0 0.0
        %9149 = vmatmul.mubr.f32.gmra.mrb[0].mxu0 %v9079
        %v9150 = vpop.f32.mrb[0].mxu0
        %v9151 = vadd.f32 0.0, %v9150
        %v9152 = vpop.f32.mrb[0].mxu0
        %9153 = vmatprep.mubr.f32.mxu0 0.0
        %9154 = vmatmul.mubr.f32.gmra.mrb[0].mxu0 %v9082
        %v9155 = vpop.f32.mrb[0].mxu0
        %v9156 = vadd.f32 0.0, %v9155
        %v9157 = vpop.f32.mrb[0].mxu0
        %9158 = vdwg.mxu0
        %v9160 = vsel %vm1446, %v8669, 0
        %v9163 = vsel %vm1446, %v8670, 0
        %9165 = vmatprep.subr.mxu0 0.0
        %9166 = vmatpush1.msra.mxu0 %v7767
        %9167 = vmatprep.subr.mxu0 0.0
        %9168 = vmatpush1.msra.mxu0 %v7772
        %9169 = vmatprep.subr.mxu0 0.0
        %9170 = vmatpush1.msra.mxu0 0.0
        %9171 = vmatprep.subr.mxu0 0.0
        %9172 = vmatpush1.msra.mxu0 0.0
        %9173 = vmatprep.subr.mxu0 0.0
        %9174 = vmatpush1.msra.mxu0 0.0
        %9175 = vmatprep.subr.mxu0 0.0
        %9176 = vmatpush1.msra.mxu0 0.0
        %9177 = vmatprep.subr.mxu0 0.0
        %9178 = vmatpush1.msra.mxu0 0.0
        %9179 = vmatprep.subr.mxu0 0.0
        %9180 = vmatpush1.msra.mxu0 0.0
        %9181 = vmatprep.subr.mxu0 0.0
        %9182 = vmatpush1.msra.mxu0 0.0
        %9183 = vmatprep.subr.mxu0 0.0
        %9184 = vmatpush1.msra.mxu0 0.0
        %9185 = vmatprep.subr.mxu0 0.0
        %9186 = vmatpush1.msra.mxu0 0.0
        %9187 = vmatprep.subr.mxu0 0.0
        %9188 = vmatpush1.msra.mxu0 0.0
        %9189 = vmatprep.subr.mxu0 0.0
        %9190 = vmatpush1.msra.mxu0 0.0
        %9191 = vmatprep.subr.mxu0 0.0
        %9192 = vmatpush1.msra.mxu0 0.0
        %9193 = vmatprep.subr.mxu0 0.0
        %9194 = vmatpush1.msra.mxu0 0.0
        %9195 = vmatprep.subr.mxu0 0.0
        %9196 = vmatpush1.msra.mxu0 0.0
        %9197 = vmatprep.subr.mxu0 0.0
        %9198 = vmatpush1.msra.mxu0 0.0
        %9199 = vmatprep.subr.mxu0 0.0
        %9200 = vmatpush1.msra.mxu0 0.0
        %9201 = vmatprep.subr.mxu0 0.0
        %9202 = vmatpush1.msra.mxu0 0.0
        %9203 = vmatprep.subr.mxu0 0.0
        %9204 = vmatpush1.msra.mxu0 0.0
        %9205 = vmatprep.subr.mxu0 0.0
        %9206 = vmatpush1.msra.mxu0 0.0
        %9207 = vmatprep.subr.mxu0 0.0
        %9208 = vmatpush1.msra.mxu0 0.0
        %9209 = vmatprep.subr.mxu0 0.0
        %9210 = vmatpush1.msra.mxu0 0.0
        %9211 = vmatprep.subr.mxu0 0.0
        %9212 = vmatpush1.msra.mxu0 0.0
        %9213 = vmatprep.subr.mxu0 0.0
        %9214 = vmatpush1.msra.mxu0 0.0
        %9215 = vmatprep.subr.mxu0 0.0
        %9216 = vmatpush1.msra.mxu0 0.0
        %9217 = vmatprep.subr.mxu0 0.0
        %9218 = vmatpush1.msra.mxu0 0.0
        %9219 = vmatprep.subr.mxu0 0.0
        %9220 = vmatpush1.msra.mxu0 0.0
        %9221 = vmatprep.subr.mxu0 0.0
        %9222 = vmatpush1.msra.mxu0 0.0
        %9223 = vmatprep.subr.mxu0 0.0
        %9224 = vmatpush1.msra.mxu0 0.0
        %9225 = vmatprep.subr.mxu0 0.0
        %9226 = vmatpush1.msra.mxu0 0.0
        %9227 = vmatprep.subr.mxu0 0.0
        %9228 = vmatpush1.msra.mxu0 0.0
        %9229 = vmatprep.mubr.f32.mxu0 0.0
        %9230 = vmatmul.mubr.f32.gmra.mrb[0].mxu0 %v9160
        %v9231 = vpop.f32.mrb[0].mxu0
        %v9232 = vadd.f32 0.0, %v9231
        %v9233 = vpop.f32.mrb[0].mxu0
        %9234 = vmatprep.mubr.f32.mxu0 0.0
        %9235 = vmatmul.mubr.f32.gmra.mrb[0].mxu0 %v9163
        %v9236 = vpop.f32.mrb[0].mxu0
        %v9237 = vadd.f32 0.0, %v9236
        %v9238 = vpop.f32.mrb[0].mxu0
        %9239 = vdwg.mxu0
        %v9241 = vsel %vm1446, %v8671, 0
        %v9244 = vsel %vm1446, %v8672, 0
        %9246 = vmatprep.subr.mxu0 0.0
        %9247 = vmatpush1.msra.mxu0 %v7777
        %9248 = vmatprep.subr.mxu0 0.0
        %9249 = vmatpush1.msra.mxu0 %v7782
        %9250 = vmatprep.subr.mxu0 0.0
        %9251 = vmatpush1.msra.mxu0 0.0
        %9252 = vmatprep.subr.mxu0 0.0
        %9253 = vmatpush1.msra.mxu0 0.0
        %9254 = vmatprep.subr.mxu0 0.0
        %9255 = vmatpush1.msra.mxu0 0.0
        %9256 = vmatprep.subr.mxu0 0.0
        %9257 = vmatpush1.msra.mxu0 0.0
        %9258 = vmatprep.subr.mxu0 0.0
        %9259 = vmatpush1.msra.mxu0 0.0
        %9260 = vmatprep.subr.mxu0 0.0
        %9261 = vmatpush1.msra.mxu0 0.0
        %9262 = vmatprep.subr.mxu0 0.0
        %9263 = vmatpush1.msra.mxu0 0.0
        %9264 = vmatprep.subr.mxu0 0.0
        %9265 = vmatpush1.msra.mxu0 0.0
        %9266 = vmatprep.subr.mxu0 0.0
        %9267 = vmatpush1.msra.mxu0 0.0
        %9268 = vmatprep.subr.mxu0 0.0
        %9269 = vmatpush1.msra.mxu0 0.0
        %9270 = vmatprep.subr.mxu0 0.0
        %9271 = vmatpush1.msra.mxu0 0.0
        %9272 = vmatprep.subr.mxu0 0.0
        %9273 = vmatpush1.msra.mxu0 0.0
        %9274 = vmatprep.subr.mxu0 0.0
        %9275 = vmatpush1.msra.mxu0 0.0
        %9276 = vmatprep.subr.mxu0 0.0
        %9277 = vmatpush1.msra.mxu0 0.0
        %9278 = vmatprep.subr.mxu0 0.0
        %9279 = vmatpush1.msra.mxu0 0.0
        %9280 = vmatprep.subr.mxu0 0.0
        %9281 = vmatpush1.msra.mxu0 0.0
        %9282 = vmatprep.subr.mxu0 0.0
        %9283 = vmatpush1.msra.mxu0 0.0
        %9284 = vmatprep.subr.mxu0 0.0
        %9285 = vmatpush1.msra.mxu0 0.0
        %9286 = vmatprep.subr.mxu0 0.0
        %9287 = vmatpush1.msra.mxu0 0.0
        %9288 = vmatprep.subr.mxu0 0.0
        %9289 = vmatpush1.msra.mxu0 0.0
        %9290 = vmatprep.subr.mxu0 0.0
        %9291 = vmatpush1.msra.mxu0 0.0
        %9292 = vmatprep.subr.mxu0 0.0
        %9293 = vmatpush1.msra.mxu0 0.0
        %9294 = vmatprep.subr.mxu0 0.0
        %9295 = vmatpush1.msra.mxu0 0.0
        %9296 = vmatprep.subr.mxu0 0.0
        %9297 = vmatpush1.msra.mxu0 0.0
        %9298 = vmatprep.subr.mxu0 0.0
        %9299 = vmatpush1.msra.mxu0 0.0
        %9300 = vmatprep.subr.mxu0 0.0
        %9301 = vmatpush1.msra.mxu0 0.0
        %9302 = vmatprep.subr.mxu0 0.0
        %9303 = vmatpush1.msra.mxu0 0.0
        %9304 = vmatprep.subr.mxu0 0.0
        %9305 = vmatpush1.msra.mxu0 0.0
        %9306 = vmatprep.subr.mxu0 0.0
        %9307 = vmatpush1.msra.mxu0 0.0
        %9308 = vmatprep.subr.mxu0 0.0
        %9309 = vmatpush1.msra.mxu0 0.0
        %9310 = vmatprep.mubr.f32.mxu0 0.0
        %9311 = vmatmul.mubr.f32.gmra.mrb[0].mxu0 %v9241
        %v9312 = vpop.f32.mrb[0].mxu0
        %v9313 = vadd.f32 0.0, %v9312
        %v9314 = vpop.f32.mrb[0].mxu0
        %9315 = vmatprep.mubr.f32.mxu0 0.0
        %9316 = vmatmul.mubr.f32.gmra.mrb[0].mxu0 %v9244
        %v9317 = vpop.f32.mrb[0].mxu0
        %v9318 = vadd.f32 0.0, %v9317
        %v9319 = vpop.f32.mrb[0].mxu0
        %9320 = vdwg.mxu0
        %9337 = vrot.lane.b32.xlu0 %v4510, 16
        %v9338 = vpop.permute.xlu0 %9337
        %9339 = vrot.lane.b32.xlu0 %v4515, 16
        %v9340 = vpop.permute.xlu0 %9339
        %9341 = vrot.lane.b32.xlu0 %v4591, 16
        %v9342 = vpop.permute.xlu0 %9341
        %9343 = vrot.lane.b32.xlu0 %v4596, 16
        %v9344 = vpop.permute.xlu0 %9343
        %9345 = vrot.lane.b32.xlu0 %v4672, 16
        %v9346 = vpop.permute.xlu0 %9345
        %9347 = vrot.lane.b32.xlu0 %v4677, 16
        %v9348 = vpop.permute.xlu0 %9347
        %9349 = vrot.lane.b32.xlu0 %v4753, 16
        %v9350 = vpop.permute.xlu0 %9349
        %9351 = vrot.lane.b32.xlu0 %v4758, 16
        %v9352 = vpop.permute.xlu0 %9351
        %9353 = vrot.lane.b32.xlu0 %v4834, 16
        %v9354 = vpop.permute.xlu0 %9353
        %9355 = vrot.lane.b32.xlu0 %v4839, 16
        %v9356 = vpop.permute.xlu0 %9355
        %9357 = vrot.lane.b32.xlu0 %v4915, 16
        %v9358 = vpop.permute.xlu0 %9357
        %9359 = vrot.lane.b32.xlu0 %v4920, 16
        %v9360 = vpop.permute.xlu0 %9359
        %9361 = vrot.lane.b32.xlu0 %v4996, 16
        %v9362 = vpop.permute.xlu0 %9361
        %9363 = vrot.lane.b32.xlu0 %v5001, 16
        %v9364 = vpop.permute.xlu0 %9363
        %9365 = vrot.lane.b32.xlu0 %v5077, 16
        %v9366 = vpop.permute.xlu0 %9365
        %9367 = vrot.lane.b32.xlu0 %v5082, 16
        %v9368 = vpop.permute.xlu0 %9367
        %9401 = vrot.lane.b32.xlu0 %v6628, 32
        %v9402 = vpop.permute.xlu0 %9401
        %9403 = vrot.lane.b32.xlu0 %v6633, 32
        %v9404 = vpop.permute.xlu0 %9403
        %9405 = vrot.lane.b32.xlu0 %v6709, 32
        %v9406 = vpop.permute.xlu0 %9405
        %9407 = vrot.lane.b32.xlu0 %v6714, 32
        %v9408 = vpop.permute.xlu0 %9407
        %9409 = vrot.lane.b32.xlu0 %v6790, 32
        %v9410 = vpop.permute.xlu0 %9409
        %9411 = vrot.lane.b32.xlu0 %v6795, 32
        %v9412 = vpop.permute.xlu0 %9411
        %9413 = vrot.lane.b32.xlu0 %v6871, 32
        %v9414 = vpop.permute.xlu0 %9413
        %9415 = vrot.lane.b32.xlu0 %v6876, 32
        %v9416 = vpop.permute.xlu0 %9415
        %9417 = vrot.lane.b32.xlu0 %v6952, 32
        %v9418 = vpop.permute.xlu0 %9417
        %9419 = vrot.lane.b32.xlu0 %v6957, 32
        %v9420 = vpop.permute.xlu0 %9419
        %9421 = vrot.lane.b32.xlu0 %v7033, 32
        %v9422 = vpop.permute.xlu0 %9421
        %9423 = vrot.lane.b32.xlu0 %v7038, 32
        %v9424 = vpop.permute.xlu0 %9423
        %9425 = vrot.lane.b32.xlu0 %v7114, 32
        %v9426 = vpop.permute.xlu0 %9425
        %9427 = vrot.lane.b32.xlu0 %v7119, 32
        %v9428 = vpop.permute.xlu0 %9427
        %9429 = vrot.lane.b32.xlu0 %v7195, 32
        %v9430 = vpop.permute.xlu0 %9429
        %9431 = vrot.lane.b32.xlu0 %v7200, 32
        %v9432 = vpop.permute.xlu0 %9431
        %9465 = vrot.lane.b32.xlu0 %v8746, 48
        %v9466 = vpop.permute.xlu0 %9465
        %9467 = vrot.lane.b32.xlu0 %v8751, 48
        %v9468 = vpop.permute.xlu0 %9467
        %9469 = vrot.lane.b32.xlu0 %v8827, 48
        %v9470 = vpop.permute.xlu0 %9469
        %9471 = vrot.lane.b32.xlu0 %v8832, 48
        %v9472 = vpop.permute.xlu0 %9471
        %9473 = vrot.lane.b32.xlu0 %v8908, 48
        %v9474 = vpop.permute.xlu0 %9473
        %9475 = vrot.lane.b32.xlu0 %v8913, 48
        %v9476 = vpop.permute.xlu0 %9475
        %9477 = vrot.lane.b32.xlu0 %v8989, 48
        %v9478 = vpop.permute.xlu0 %9477
        %9479 = vrot.lane.b32.xlu0 %v8994, 48
        %v9480 = vpop.permute.xlu0 %9479
        %9481 = vrot.lane.b32.xlu0 %v9070, 48
        %v9482 = vpop.permute.xlu0 %9481
        %9483 = vrot.lane.b32.xlu0 %v9075, 48
        %v9484 = vpop.permute.xlu0 %9483
        %9485 = vrot.lane.b32.xlu0 %v9151, 48
        %v9486 = vpop.permute.xlu0 %9485
        %9487 = vrot.lane.b32.xlu0 %v9156, 48
        %v9488 = vpop.permute.xlu0 %9487
        %9489 = vrot.lane.b32.xlu0 %v9232, 48
        %v9490 = vpop.permute.xlu0 %9489
        %9491 = vrot.lane.b32.xlu0 %v9237, 48
        %v9492 = vpop.permute.xlu0 %9491
        %9493 = vrot.lane.b32.xlu0 %v9313, 48
        %v9494 = vpop.permute.xlu0 %9493
        %9495 = vrot.lane.b32.xlu0 %v9318, 48
        %v9496 = vpop.permute.xlu0 %9495
        %v9513 = vsel %vm1446, %v2392, %v9338
        %v9514 = vsel %vm1446, %v2397, %v9340
        %v9515 = vsel %vm1446, %v2473, %v9342
        %v9516 = vsel %vm1446, %v2478, %v9344
        %v9517 = vsel %vm1446, %v2554, %v9346
        %v9518 = vsel %vm1446, %v2559, %v9348
        %v9519 = vsel %vm1446, %v2635, %v9350
        %v9520 = vsel %vm1446, %v2640, %v9352
        %v9521 = vsel %vm1446, %v2716, %v9354
        %v9522 = vsel %vm1446, %v2721, %v9356
        %v9523 = vsel %vm1446, %v2797, %v9358
        %v9524 = vsel %vm1446, %v2802, %v9360
        %v9525 = vsel %vm1446, %v2878, %v9362
        %v9526 = vsel %vm1446, %v2883, %v9364
        %v9527 = vsel %vm1446, %v2959, %v9366
        %v9528 = vsel %vm1446, %v2964, %v9368
        %vm9529 = vcmask 261120
        %v9530 = vsel %vm9529, %v9513, %v9402
        %v9531 = vsel %vm9529, %v9514, %v9404
        %v9532 = vsel %vm9529, %v9515, %v9406
        %v9533 = vsel %vm9529, %v9516, %v9408
        %v9534 = vsel %vm9529, %v9517, %v9410
        %v9535 = vsel %vm9529, %v9518, %v9412
        %v9536 = vsel %vm9529, %v9519, %v9414
        %v9537 = vsel %vm9529, %v9520, %v9416
        %v9538 = vsel %vm9529, %v9521, %v9418
        %v9539 = vsel %vm9529, %v9522, %v9420
        %v9540 = vsel %vm9529, %v9523, %v9422
        %v9541 = vsel %vm9529, %v9524, %v9424
        %v9542 = vsel %vm9529, %v9525, %v9426
        %v9543 = vsel %vm9529, %v9526, %v9428
        %v9544 = vsel %vm9529, %v9527, %v9430
        %v9545 = vsel %vm9529, %v9528, %v9432
        %vm9546 = vcmask 392192
        %v9547 = vsel %vm9546, %v9530, %v9466
        %v9548 = vsel %vm9546, %v9531, %v9468
        %v9549 = vsel %vm9546, %v9532, %v9470
        %v9550 = vsel %vm9546, %v9533, %v9472
        %v9551 = vsel %vm9546, %v9534, %v9474
        %v9552 = vsel %vm9546, %v9535, %v9476
        %v9553 = vsel %vm9546, %v9536, %v9478
        %v9554 = vsel %vm9546, %v9537, %v9480
        %v9555 = vsel %vm9546, %v9538, %v9482
        %v9556 = vsel %vm9546, %v9539, %v9484
        %v9557 = vsel %vm9546, %v9540, %v9486
        %v9558 = vsel %vm9546, %v9541, %v9488
        %v9559 = vsel %vm9546, %v9542, %v9490
        %v9560 = vsel %vm9546, %v9543, %v9492
        %v9561 = vsel %vm9546, %v9544, %v9494
        %v9562 = vsel %vm9546, %v9545, %v9496
        %v9563 = vld [vmem:[%s10] sm:$0xff]
        %v9564 = vld [vmem:[%s10 + $0x8] sm:$0xff]
        %v9565 = vld [vmem:[%s10 + $0x10] sm:$0xff]
        %v9566 = vld [vmem:[%s10 + $0x18] sm:$0xff]
        %v9567 = vld [vmem:[%s10 + $0x20] sm:$0xff]
        %v9568 = vld [vmem:[%s10 + $0x28] sm:$0xff]
        %v9569 = vld [vmem:[%s10 + $0x30] sm:$0xff]
        %v9570 = vld [vmem:[%s10 + $0x38] sm:$0xff]
        %v9571 = vld [vmem:[%s11] sm:$0x1]
        %v9573 = vlaneseq
        %v9574 = vshrl.u32 %v9573, 7
        %v9575 = vsub.s32 0, %v9574
        %v9576 = vrot.slane %v9571, %v9575
        %v9579 = vsel %vm648, %v9547, 0
        %v9582 = vsel %vm648, %v9548, 0
        %v9585 = vsel %vm648, %v9549, 0
        %v9588 = vsel %vm648, %v9550, 0
        %v9591 = vsel %vm648, %v9551, 0
        %v9594 = vsel %vm648, %v9552, 0
        %v9597 = vsel %vm648, %v9553, 0
        %v9600 = vsel %vm648, %v9554, 0
        %v9603 = vsel %vm648, %v9555, 0
        %v9606 = vsel %vm648, %v9556, 0
        %v9609 = vsel %vm648, %v9557, 0
        %v9612 = vsel %vm648, %v9558, 0
        %v9615 = vsel %vm648, %v9559, 0
        %v9618 = vsel %vm648, %v9560, 0
        %v9621 = vsel %vm648, %v9561, 0
        %v9624 = vsel %vm648, %v9562, 0
        %9626 = vmatprep.subr.mxu0 0.0
        %9627 = vmatpush1.msra.mxu0 %v9563
        %9628 = vmatprep.subr.mxu0 0.0
        %9629 = vmatpush1.msra.mxu0 %v9564
        %9630 = vmatprep.subr.mxu0 0.0
        %9631 = vmatpush1.msra.mxu0 %v9565
        %9632 = vmatprep.subr.mxu0 0.0
        %9633 = vmatpush1.msra.mxu0 %v9566
        %9634 = vmatprep.subr.mxu0 0.0
        %9635 = vmatpush1.msra.mxu0 %v9567
        %9636 = vmatprep.subr.mxu0 0.0
        %9637 = vmatpush1.msra.mxu0 %v9568
        %9638 = vmatprep.subr.mxu0 0.0
        %9639 = vmatpush1.msra.mxu0 %v9569
        %9640 = vmatprep.subr.mxu0 0.0
        %9641 = vmatpush1.msra.mxu0 %v9570
        %9642 = vmatprep.subr.mxu0 0.0
        %9643 = vmatpush1.msra.mxu0 0.0
        %9644 = vmatprep.subr.mxu0 0.0
        %9645 = vmatpush1.msra.mxu0 0.0
        %9646 = vmatprep.subr.mxu0 0.0
        %9647 = vmatpush1.msra.mxu0 0.0
        %9648 = vmatprep.subr.mxu0 0.0
        %9649 = vmatpush1.msra.mxu0 0.0
        %9650 = vmatprep.subr.mxu0 0.0
        %9651 = vmatpush1.msra.mxu0 0.0
        %9652 = vmatprep.subr.mxu0 0.0
        %9653 = vmatpush1.msra.mxu0 0.0
        %9654 = vmatprep.subr.mxu0 0.0
        %9655 = vmatpush1.msra.mxu0 0.0
        %9656 = vmatprep.subr.mxu0 0.0
        %9657 = vmatpush1.msra.mxu0 0.0
        %9658 = vmatprep.subr.mxu0 0.0
        %9659 = vmatpush1.msra.mxu0 0.0
        %9660 = vmatprep.subr.mxu0 0.0
        %9661 = vmatpush1.msra.mxu0 0.0
        %9662 = vmatprep.subr.mxu0 0.0
        %9663 = vmatpush1.msra.mxu0 0.0
        %9664 = vmatprep.subr.mxu0 0.0
        %9665 = vmatpush1.msra.mxu0 0.0
        %9666 = vmatprep.subr.mxu0 0.0
        %9667 = vmatpush1.msra.mxu0 0.0
        %9668 = vmatprep.subr.mxu0 0.0
        %9669 = vmatpush1.msra.mxu0 0.0
        %9670 = vmatprep.subr.mxu0 0.0
        %9671 = vmatpush1.msra.mxu0 0.0
        %9672 = vmatprep.subr.mxu0 0.0
        %9673 = vmatpush1.msra.mxu0 0.0
        %9674 = vmatprep.subr.mxu0 0.0
        %9675 = vmatpush1.msra.mxu0 0.0
        %9676 = vmatprep.subr.mxu0 0.0
        %9677 = vmatpush1.msra.mxu0 0.0
        %9678 = vmatprep.subr.mxu0 0.0
        %9679 = vmatpush1.msra.mxu0 0.0
        %9680 = vmatprep.subr.mxu0 0.0
        %9681 = vmatpush1.msra.mxu0 0.0
        %9682 = vmatprep.subr.mxu0 0.0
        %9683 = vmatpush1.msra.mxu0 0.0
        %9684 = vmatprep.subr.mxu0 0.0
        %9685 = vmatpush1.msra.mxu0 0.0
        %9686 = vmatprep.subr.mxu0 0.0
        %9687 = vmatpush1.msra.mxu0 0.0
        %9688 = vmatprep.subr.mxu0 0.0
        %9689 = vmatpush1.msra.mxu0 0.0
        %9690 = vmatprep.mubr.f32.mxu0 0.0
        %9691 = vmatmul.mubr.f32.gmra.mrb[0].mxu0 %v9579
        %v9692 = vpop.f32.mrb[0].mxu0
        %v9693 = vadd.f32 %v9576, %v9692
        %v9694 = vpop.f32.mrb[0].mxu0
        %9695 = vmatprep.mubr.f32.mxu0 0.0
        %9696 = vmatmul.mubr.f32.gmra.mrb[0].mxu0 %v9582
        %v9697 = vpop.f32.mrb[0].mxu0
        %v9698 = vadd.f32 %v9576, %v9697
        %v9699 = vpop.f32.mrb[0].mxu0
        %9700 = vmatprep.mubr.f32.mxu0 0.0
        %9701 = vmatmul.mubr.f32.gmra.mrb[0].mxu0 %v9585
        %v9702 = vpop.f32.mrb[0].mxu0
        %v9703 = vadd.f32 %v9576, %v9702
        %v9704 = vpop.f32.mrb[0].mxu0
        %9705 = vmatprep.mubr.f32.mxu0 0.0
        %9706 = vmatmul.mubr.f32.gmra.mrb[0].mxu0 %v9588
        %v9707 = vpop.f32.mrb[0].mxu0
        %v9708 = vadd.f32 %v9576, %v9707
        %v9709 = vpop.f32.mrb[0].mxu0
        %9710 = vmatprep.mubr.f32.mxu0 0.0
        %9711 = vmatmul.mubr.f32.gmra.mrb[0].mxu0 %v9591
        %v9712 = vpop.f32.mrb[0].mxu0
        %v9713 = vadd.f32 %v9576, %v9712
        %v9714 = vpop.f32.mrb[0].mxu0
        %9715 = vmatprep.mubr.f32.mxu0 0.0
        %9716 = vmatmul.mubr.f32.gmra.mrb[0].mxu0 %v9594
        %v9717 = vpop.f32.mrb[0].mxu0
        %v9718 = vadd.f32 %v9576, %v9717
        %v9719 = vpop.f32.mrb[0].mxu0
        %9720 = vmatprep.mubr.f32.mxu0 0.0
        %9721 = vmatmul.mubr.f32.gmra.mrb[0].mxu0 %v9597
        %v9722 = vpop.f32.mrb[0].mxu0
        %v9723 = vadd.f32 %v9576, %v9722
        %v9724 = vpop.f32.mrb[0].mxu0
        %9725 = vmatprep.mubr.f32.mxu0 0.0
        %9726 = vmatmul.mubr.f32.gmra.mrb[0].mxu0 %v9600
        %v9727 = vpop.f32.mrb[0].mxu0
        %v9728 = vadd.f32 %v9576, %v9727
        %v9729 = vpop.f32.mrb[0].mxu0
        %9730 = vmatprep.mubr.f32.mxu0 0.0
        %9731 = vmatmul.mubr.f32.gmra.mrb[0].mxu0 %v9603
        %v9732 = vpop.f32.mrb[0].mxu0
        %v9733 = vadd.f32 %v9576, %v9732
        %v9734 = vpop.f32.mrb[0].mxu0
        %9735 = vmatprep.mubr.f32.mxu0 0.0
        %9736 = vmatmul.mubr.f32.gmra.mrb[0].mxu0 %v9606
        %v9737 = vpop.f32.mrb[0].mxu0
        %v9738 = vadd.f32 %v9576, %v9737
        %v9739 = vpop.f32.mrb[0].mxu0
        %9740 = vmatprep.mubr.f32.mxu0 0.0
        %9741 = vmatmul.mubr.f32.gmra.mrb[0].mxu0 %v9609
        %v9742 = vpop.f32.mrb[0].mxu0
        %v9743 = vadd.f32 %v9576, %v9742
        %v9744 = vpop.f32.mrb[0].mxu0
        %9745 = vmatprep.mubr.f32.mxu0 0.0
        %9746 = vmatmul.mubr.f32.gmra.mrb[0].mxu0 %v9612
        %v9747 = vpop.f32.mrb[0].mxu0
        %v9748 = vadd.f32 %v9576, %v9747
        %v9749 = vpop.f32.mrb[0].mxu0
        %9750 = vmatprep.mubr.f32.mxu0 0.0
        %9751 = vmatmul.mubr.f32.gmra.mrb[0].mxu0 %v9615
        %v9752 = vpop.f32.mrb[0].mxu0
        %v9753 = vadd.f32 %v9576, %v9752
        %v9754 = vpop.f32.mrb[0].mxu0
        %9755 = vmatprep.mubr.f32.mxu0 0.0
        %9756 = vmatmul.mubr.f32.gmra.mrb[0].mxu0 %v9618
        %v9757 = vpop.f32.mrb[0].mxu0
        %v9758 = vadd.f32 %v9576, %v9757
        %v9759 = vpop.f32.mrb[0].mxu0
        %9760 = vmatprep.mubr.f32.mxu0 0.0
        %9761 = vmatmul.mubr.f32.gmra.mrb[0].mxu0 %v9621
        %v9762 = vpop.f32.mrb[0].mxu0
        %v9763 = vadd.f32 %v9576, %v9762
        %v9764 = vpop.f32.mrb[0].mxu0
        %9765 = vmatprep.mubr.f32.mxu0 0.0
        %9766 = vmatmul.mubr.f32.gmra.mrb[0].mxu0 %v9624
        %v9767 = vpop.f32.mrb[0].mxu0
        %v9768 = vadd.f32 %v9576, %v9767
        %v9769 = vpop.f32.mrb[0].mxu0
        %9770 = vdwg.mxu0
        %v9771 = vadd.f32 %v9693, %v630
        %v9772 = vadd.f32 %v9698, %v631
        %v9773 = vadd.f32 %v9703, %v632
        %v9774 = vadd.f32 %v9708, %v633
        %v9775 = vadd.f32 %v9713, %v634
        %v9776 = vadd.f32 %v9718, %v635
        %v9777 = vadd.f32 %v9723, %v636
        %v9778 = vadd.f32 %v9728, %v637
        %v9779 = vadd.f32 %v9733, %v638
        %v9780 = vadd.f32 %v9738, %v639
        %v9781 = vadd.f32 %v9743, %v640
        %v9782 = vadd.f32 %v9748, %v641
        %v9783 = vadd.f32 %v9753, %v642
        %v9784 = vadd.f32 %v9758, %v643
        %v9785 = vadd.f32 %v9763, %v644
        %v9786 = vadd.f32 %v9768, %v645
        %v9787 = vld [vmem:[%s12] sm:$0x1]
        %v9788 = vld [vmem:[%s13] sm:$0x1]
        %v9789 = vsel %vm648, %v9771, 0.0
        %9790 = vadd.xlane.f32.xlu0 %v9789
        %v9791 = vpop.xlane.xlu0 %9790
        %v9792 = vsel %vm648, %v9772, 0.0
        %9793 = vadd.xlane.f32.xlu0 %v9792
        %v9794 = vpop.xlane.xlu0 %9793
        %v9795 = vsel %vm648, %v9773, 0.0
        %9796 = vadd.xlane.f32.xlu0 %v9795
        %v9797 = vpop.xlane.xlu0 %9796
        %v9798 = vsel %vm648, %v9774, 0.0
        %9799 = vadd.xlane.f32.xlu0 %v9798
        %v9800 = vpop.xlane.xlu0 %9799
        %v9801 = vsel %vm648, %v9775, 0.0
        %9802 = vadd.xlane.f32.xlu0 %v9801
        %v9803 = vpop.xlane.xlu0 %9802
        %v9804 = vsel %vm648, %v9776, 0.0
        %9805 = vadd.xlane.f32.xlu0 %v9804
        %v9806 = vpop.xlane.xlu0 %9805
        %v9807 = vsel %vm648, %v9777, 0.0
        %9808 = vadd.xlane.f32.xlu0 %v9807
        %v9809 = vpop.xlane.xlu0 %9808
        %v9810 = vsel %vm648, %v9778, 0.0
        %9811 = vadd.xlane.f32.xlu0 %v9810
        %v9812 = vpop.xlane.xlu0 %9811
        %v9813 = vsel %vm648, %v9779, 0.0
        %9814 = vadd.xlane.f32.xlu0 %v9813
        %v9815 = vpop.xlane.xlu0 %9814
        %v9816 = vsel %vm648, %v9780, 0.0
        %9817 = vadd.xlane.f32.xlu0 %v9816
        %v9818 = vpop.xlane.xlu0 %9817
        %v9819 = vsel %vm648, %v9781, 0.0
        %9820 = vadd.xlane.f32.xlu0 %v9819
        %v9821 = vpop.xlane.xlu0 %9820
        %v9822 = vsel %vm648, %v9782, 0.0
        %9823 = vadd.xlane.f32.xlu0 %v9822
        %v9824 = vpop.xlane.xlu0 %9823
        %v9825 = vsel %vm648, %v9783, 0.0
        %9826 = vadd.xlane.f32.xlu0 %v9825
        %v9827 = vpop.xlane.xlu0 %9826
        %v9828 = vsel %vm648, %v9784, 0.0
        %9829 = vadd.xlane.f32.xlu0 %v9828
        %v9830 = vpop.xlane.xlu0 %9829
        %v9831 = vsel %vm648, %v9785, 0.0
        %9832 = vadd.xlane.f32.xlu0 %v9831
        %v9833 = vpop.xlane.xlu0 %9832
        %v9834 = vsel %vm648, %v9786, 0.0
        %9835 = vadd.xlane.f32.xlu0 %v9834
        %v9836 = vpop.xlane.xlu0 %9835
        %v9837 = vmul.f32 %v9791, %v697
        %v9838 = vmul.f32 %v9794, %v697
        %v9839 = vmul.f32 %v9797, %v697
        %v9840 = vmul.f32 %v9800, %v697
        %v9841 = vmul.f32 %v9803, %v697
        %v9842 = vmul.f32 %v9806, %v697
        %v9843 = vmul.f32 %v9809, %v697
        %v9844 = vmul.f32 %v9812, %v697
        %v9845 = vmul.f32 %v9815, %v697
        %v9846 = vmul.f32 %v9818, %v697
        %v9847 = vmul.f32 %v9821, %v697
        %v9848 = vmul.f32 %v9824, %v697
        %v9849 = vmul.f32 %v9827, %v697
        %v9850 = vmul.f32 %v9830, %v697
        %v9851 = vmul.f32 %v9833, %v697
        %v9852 = vmul.f32 %v9836, %v697
        %v9853 = vsub.f32 %v9771, %v9837
        %v9854 = vsub.f32 %v9772, %v9838
        %v9855 = vsub.f32 %v9773, %v9839
        %v9856 = vsub.f32 %v9774, %v9840
        %v9857 = vsub.f32 %v9775, %v9841
        %v9858 = vsub.f32 %v9776, %v9842
        %v9859 = vsub.f32 %v9777, %v9843
        %v9860 = vsub.f32 %v9778, %v9844
        %v9861 = vsub.f32 %v9779, %v9845
        %v9862 = vsub.f32 %v9780, %v9846
        %v9863 = vsub.f32 %v9781, %v9847
        %v9864 = vsub.f32 %v9782, %v9848
        %v9865 = vsub.f32 %v9783, %v9849
        %v9866 = vsub.f32 %v9784, %v9850
        %v9867 = vsub.f32 %v9785, %v9851
        %v9868 = vsub.f32 %v9786, %v9852
        %v9869 = vmul.f32 %v9853, %v9853
        %v9870 = vmul.f32 %v9854, %v9854
        %v9871 = vmul.f32 %v9855, %v9855
        %v9872 = vmul.f32 %v9856, %v9856
        %v9873 = vmul.f32 %v9857, %v9857
        %v9874 = vmul.f32 %v9858, %v9858
        %v9875 = vmul.f32 %v9859, %v9859
        %v9876 = vmul.f32 %v9860, %v9860
        %v9877 = vmul.f32 %v9861, %v9861
        %v9878 = vmul.f32 %v9862, %v9862
        %v9879 = vmul.f32 %v9863, %v9863
        %v9880 = vmul.f32 %v9864, %v9864
        %v9881 = vmul.f32 %v9865, %v9865
        %v9882 = vmul.f32 %v9866, %v9866
        %v9883 = vmul.f32 %v9867, %v9867
        %v9884 = vmul.f32 %v9868, %v9868
        %v9885 = vsel %vm648, %v9869, 0.0
        %9886 = vadd.xlane.f32.xlu0 %v9885
        %v9887 = vpop.xlane.xlu0 %9886
        %v9888 = vsel %vm648, %v9870, 0.0
        %9889 = vadd.xlane.f32.xlu0 %v9888
        %v9890 = vpop.xlane.xlu0 %9889
        %v9891 = vsel %vm648, %v9871, 0.0
        %9892 = vadd.xlane.f32.xlu0 %v9891
        %v9893 = vpop.xlane.xlu0 %9892
        %v9894 = vsel %vm648, %v9872, 0.0
        %9895 = vadd.xlane.f32.xlu0 %v9894
        %v9896 = vpop.xlane.xlu0 %9895
        %v9897 = vsel %vm648, %v9873, 0.0
        %9898 = vadd.xlane.f32.xlu0 %v9897
        %v9899 = vpop.xlane.xlu0 %9898
        %v9900 = vsel %vm648, %v9874, 0.0
        %9901 = vadd.xlane.f32.xlu0 %v9900
        %v9902 = vpop.xlane.xlu0 %9901
        %v9903 = vsel %vm648, %v9875, 0.0
        %9904 = vadd.xlane.f32.xlu0 %v9903
        %v9905 = vpop.xlane.xlu0 %9904
        %v9906 = vsel %vm648, %v9876, 0.0
        %9907 = vadd.xlane.f32.xlu0 %v9906
        %v9908 = vpop.xlane.xlu0 %9907
        %v9909 = vsel %vm648, %v9877, 0.0
        %9910 = vadd.xlane.f32.xlu0 %v9909
        %v9911 = vpop.xlane.xlu0 %9910
        %v9912 = vsel %vm648, %v9878, 0.0
        %9913 = vadd.xlane.f32.xlu0 %v9912
        %v9914 = vpop.xlane.xlu0 %9913
        %v9915 = vsel %vm648, %v9879, 0.0
        %9916 = vadd.xlane.f32.xlu0 %v9915
        %v9917 = vpop.xlane.xlu0 %9916
        %v9918 = vsel %vm648, %v9880, 0.0
        %9919 = vadd.xlane.f32.xlu0 %v9918
        %v9920 = vpop.xlane.xlu0 %9919
        %v9921 = vsel %vm648, %v9881, 0.0
        %9922 = vadd.xlane.f32.xlu0 %v9921
        %v9923 = vpop.xlane.xlu0 %9922
        %v9924 = vsel %vm648, %v9882, 0.0
        %9925 = vadd.xlane.f32.xlu0 %v9924
        %v9926 = vpop.xlane.xlu0 %9925
        %v9927 = vsel %vm648, %v9883, 0.0
        %9928 = vadd.xlane.f32.xlu0 %v9927
        %v9929 = vpop.xlane.xlu0 %9928
        %v9930 = vsel %vm648, %v9884, 0.0
        %9931 = vadd.xlane.f32.xlu0 %v9930
        %v9932 = vpop.xlane.xlu0 %9931
        %v9933 = vmul.f32 %v9887, %v697
        %v9934 = vmul.f32 %v9890, %v697
        %v9935 = vmul.f32 %v9893, %v697
        %v9936 = vmul.f32 %v9896, %v697
        %v9937 = vmul.f32 %v9899, %v697
        %v9938 = vmul.f32 %v9902, %v697
        %v9939 = vmul.f32 %v9905, %v697
        %v9940 = vmul.f32 %v9908, %v697
        %v9941 = vmul.f32 %v9911, %v697
        %v9942 = vmul.f32 %v9914, %v697
        %v9943 = vmul.f32 %v9917, %v697
        %v9944 = vmul.f32 %v9920, %v697
        %v9945 = vmul.f32 %v9923, %v697
        %v9946 = vmul.f32 %v9926, %v697
        %v9947 = vmul.f32 %v9929, %v697
        %v9948 = vmul.f32 %v9932, %v697
        %v9949 = vadd.f32 %v9933, 1e-05
        %v9950 = vadd.f32 %v9934, 1e-05
        %v9951 = vadd.f32 %v9935, 1e-05
        %v9952 = vadd.f32 %v9936, 1e-05
        %v9953 = vadd.f32 %v9937, 1e-05
        %v9954 = vadd.f32 %v9938, 1e-05
        %v9955 = vadd.f32 %v9939, 1e-05
        %v9956 = vadd.f32 %v9940, 1e-05
        %v9957 = vadd.f32 %v9941, 1e-05
        %v9958 = vadd.f32 %v9942, 1e-05
        %v9959 = vadd.f32 %v9943, 1e-05
        %v9960 = vadd.f32 %v9944, 1e-05
        %v9961 = vadd.f32 %v9945, 1e-05
        %v9962 = vadd.f32 %v9946, 1e-05
        %v9963 = vadd.f32 %v9947, 1e-05
        %v9964 = vadd.f32 %v9948, 1e-05
        %v9965 = vrsqrt.pop %v9949
        %v9966 = vrsqrt.pop %v9950
        %v9967 = vrsqrt.pop %v9951
        %v9968 = vrsqrt.pop %v9952
        %v9969 = vrsqrt.pop %v9953
        %v9970 = vrsqrt.pop %v9954
        %v9971 = vrsqrt.pop %v9955
        %v9972 = vrsqrt.pop %v9956
        %v9973 = vrsqrt.pop %v9957
        %v9974 = vrsqrt.pop %v9958
        %v9975 = vrsqrt.pop %v9959
        %v9976 = vrsqrt.pop %v9960
        %v9977 = vrsqrt.pop %v9961
        %v9978 = vrsqrt.pop %v9962
        %v9979 = vrsqrt.pop %v9963
        %v9980 = vrsqrt.pop %v9964
        %v9981 = vmul.f32 %v9853, %v9965
        %v9982 = vmul.f32 %v9854, %v9966
        %v9983 = vmul.f32 %v9855, %v9967
        %v9984 = vmul.f32 %v9856, %v9968
        %v9985 = vmul.f32 %v9857, %v9969
        %v9986 = vmul.f32 %v9858, %v9970
        %v9987 = vmul.f32 %v9859, %v9971
        %v9988 = vmul.f32 %v9860, %v9972
        %v9989 = vmul.f32 %v9861, %v9973
        %v9990 = vmul.f32 %v9862, %v9974
        %v9991 = vmul.f32 %v9863, %v9975
        %v9992 = vmul.f32 %v9864, %v9976
        %v9993 = vmul.f32 %v9865, %v9977
        %v9994 = vmul.f32 %v9866, %v9978
        %v9995 = vmul.f32 %v9867, %v9979
        %v9996 = vmul.f32 %v9868, %v9980
        %v9998 = vlaneseq
        %v9999 = vshrl.u32 %v9998, 7
        %v10000 = vsub.s32 0, %v9999
        %v10001 = vrot.slane %v9787, %v10000
        %v10003 = vmul.f32 %v9981, %v10001
        %v10004 = vmul.f32 %v9982, %v10001
        %v10005 = vmul.f32 %v9983, %v10001
        %v10006 = vmul.f32 %v9984, %v10001
        %v10007 = vmul.f32 %v9985, %v10001
        %v10008 = vmul.f32 %v9986, %v10001
        %v10009 = vmul.f32 %v9987, %v10001
        %v10010 = vmul.f32 %v9988, %v10001
        %v10011 = vmul.f32 %v9989, %v10001
        %v10012 = vmul.f32 %v9990, %v10001
        %v10013 = vmul.f32 %v9991, %v10001
        %v10014 = vmul.f32 %v9992, %v10001
        %v10015 = vmul.f32 %v9993, %v10001
        %v10016 = vmul.f32 %v9994, %v10001
        %v10017 = vmul.f32 %v9995, %v10001
        %v10018 = vmul.f32 %v9996, %v10001
        %v10020 = vlaneseq
        %v10021 = vshrl.u32 %v10020, 7
        %v10022 = vsub.s32 0, %v10021
        %v10023 = vrot.slane %v9788, %v10022
        %v10025 = vadd.f32 %v10003, %v10023
        %v10026 = vadd.f32 %v10004, %v10023
        %v10027 = vadd.f32 %v10005, %v10023
        %v10028 = vadd.f32 %v10006, %v10023
        %v10029 = vadd.f32 %v10007, %v10023
        %v10030 = vadd.f32 %v10008, %v10023
        %v10031 = vadd.f32 %v10009, %v10023
        %v10032 = vadd.f32 %v10010, %v10023
        %v10033 = vadd.f32 %v10011, %v10023
        %v10034 = vadd.f32 %v10012, %v10023
        %v10035 = vadd.f32 %v10013, %v10023
        %v10036 = vadd.f32 %v10014, %v10023
        %v10037 = vadd.f32 %v10015, %v10023
        %v10038 = vadd.f32 %v10016, %v10023
        %v10039 = vadd.f32 %v10017, %v10023
        %v10040 = vadd.f32 %v10018, %v10023
        %v10041 = vld [vmem:[%s14] sm:$0xff]
        %v10042 = vld [vmem:[%s14 + $0x8] sm:$0xff]
        %v10043 = vld [vmem:[%s14 + $0x10] sm:$0xff]
        %v10044 = vld [vmem:[%s14 + $0x18] sm:$0xff]
        %v10045 = vld [vmem:[%s14 + $0x20] sm:$0xff]
        %v10046 = vld [vmem:[%s14 + $0x28] sm:$0xff]
        %v10047 = vld [vmem:[%s14 + $0x30] sm:$0xff]
        %v10048 = vld [vmem:[%s14 + $0x38] sm:$0xff]
        %v10049 = vld [vmem:[%s14 + $0x40] sm:$0xff]
        %v10050 = vld [vmem:[%s14 + $0x48] sm:$0xff]
        %v10051 = vld [vmem:[%s14 + $0x50] sm:$0xff]
        %v10052 = vld [vmem:[%s14 + $0x58] sm:$0xff]
        %v10053 = vld [vmem:[%s14 + $0x60] sm:$0xff]
        %v10054 = vld [vmem:[%s14 + $0x68] sm:$0xff]
        %v10055 = vld [vmem:[%s14 + $0x70] sm:$0xff]
        %v10056 = vld [vmem:[%s14 + $0x78] sm:$0xff]
        %v10057 = vld [vmem:[%s15] sm:$0x3]
        %v10059 = vlaneseq
        %v10060 = vshrl.u32 %v10059, 7
        %v10061 = vsub.s32 0, %v10060
        %v10062 = vrot.slane %v10057, %v10061
        %v10063 = vlaneseq
        %v10064 = vshrl.u32 %v10063, 7
        %v10065 = vsub.s32 1, %v10064
        %v10066 = vrot.slane %v10057, %v10065
        %v10070 = vsel %vm648, %v10025, 0
        %v10073 = vsel %vm648, %v10026, 0
        %v10076 = vsel %vm648, %v10027, 0
        %v10079 = vsel %vm648, %v10028, 0
        %v10082 = vsel %vm648, %v10029, 0
        %v10085 = vsel %vm648, %v10030, 0
        %v10088 = vsel %vm648, %v10031, 0
        %v10091 = vsel %vm648, %v10032, 0
        %v10094 = vsel %vm648, %v10033, 0
        %v10097 = vsel %vm648, %v10034, 0
        %v10100 = vsel %vm648, %v10035, 0
        %v10103 = vsel %vm648, %v10036, 0
        %v10106 = vsel %vm648, %v10037, 0
        %v10109 = vsel %vm648, %v10038, 0
        %v10112 = vsel %vm648, %v10039, 0
        %v10115 = vsel %vm648, %v10040, 0
        %10117 = vmatprep.subr.mxu0 %v10042
        %10118 = vmatpush1.msra.mxu0 %v10041
        %10119 = vmatprep.subr.mxu0 %v10044
        %10120 = vmatpush1.msra.mxu0 %v10043
        %10121 = vmatprep.subr.mxu0 %v10046
        %10122 = vmatpush1.msra.mxu0 %v10045
        %10123 = vmatprep.subr.mxu0 %v10048
        %10124 = vmatpush1.msra.mxu0 %v10047
        %10125 = vmatprep.subr.mxu0 %v10050
        %10126 = vmatpush1.msra.mxu0 %v10049
        %10127 = vmatprep.subr.mxu0 %v10052
        %10128 = vmatpush1.msra.mxu0 %v10051
        %10129 = vmatprep.subr.mxu0 %v10054
        %10130 = vmatpush1.msra.mxu0 %v10053
        %10131 = vmatprep.subr.mxu0 %v10056
        %10132 = vmatpush1.msra.mxu0 %v10055
        %10133 = vmatprep.subr.mxu0 0.0
        %10134 = vmatpush1.msra.mxu0 0.0
        %10135 = vmatprep.subr.mxu0 0.0
        %10136 = vmatpush1.msra.mxu0 0.0
        %10137 = vmatprep.subr.mxu0 0.0
        %10138 = vmatpush1.msra.mxu0 0.0
        %10139 = vmatprep.subr.mxu0 0.0
        %10140 = vmatpush1.msra.mxu0 0.0
        %10141 = vmatprep.subr.mxu0 0.0
        %10142 = vmatpush1.msra.mxu0 0.0
        %10143 = vmatprep.subr.mxu0 0.0
        %10144 = vmatpush1.msra.mxu0 0.0
        %10145 = vmatprep.subr.mxu0 0.0
        %10146 = vmatpush1.msra.mxu0 0.0
        %10147 = vmatprep.subr.mxu0 0.0
        %10148 = vmatpush1.msra.mxu0 0.0
        %10149 = vmatprep.subr.mxu0 0.0
        %10150 = vmatpush1.msra.mxu0 0.0
        %10151 = vmatprep.subr.mxu0 0.0
        %10152 = vmatpush1.msra.mxu0 0.0
        %10153 = vmatprep.subr.mxu0 0.0
        %10154 = vmatpush1.msra.mxu0 0.0
        %10155 = vmatprep.subr.mxu0 0.0
        %10156 = vmatpush1.msra.mxu0 0.0
        %10157 = vmatprep.subr.mxu0 0.0
        %10158 = vmatpush1.msra.mxu0 0.0
        %10159 = vmatprep.subr.mxu0 0.0
        %10160 = vmatpush1.msra.mxu0 0.0
        %10161 = vmatprep.subr.mxu0 0.0
        %10162 = vmatpush1.msra.mxu0 0.0
        %10163 = vmatprep.subr.mxu0 0.0
        %10164 = vmatpush1.msra.mxu0 0.0
        %10165 = vmatprep.subr.mxu0 0.0
        %10166 = vmatpush1.msra.mxu0 0.0
        %10167 = vmatprep.subr.mxu0 0.0
        %10168 = vmatpush1.msra.mxu0 0.0
        %10169 = vmatprep.subr.mxu0 0.0
        %10170 = vmatpush1.msra.mxu0 0.0
        %10171 = vmatprep.subr.mxu0 0.0
        %10172 = vmatpush1.msra.mxu0 0.0
        %10173 = vmatprep.subr.mxu0 0.0
        %10174 = vmatpush1.msra.mxu0 0.0
        %10175 = vmatprep.subr.mxu0 0.0
        %10176 = vmatpush1.msra.mxu0 0.0
        %10177 = vmatprep.subr.mxu0 0.0
        %10178 = vmatpush1.msra.mxu0 0.0
        %10179 = vmatprep.subr.mxu0 0.0
        %10180 = vmatpush1.msra.mxu0 0.0
        %10181 = vmatprep.mubr.f32.mxu0 0.0
        %10182 = vmatmul.mubr.f32.gmra.mrb[0].mxu0 %v10070
        %v10183 = vpop.f32.mrb[0].mxu0
        %v10184 = vadd.f32 %v10062, %v10183
        %v10185 = vpop.f32.mrb[0].mxu0
        %v10186 = vadd.f32 %v10066, %v10185
        %10187 = vmatprep.mubr.f32.mxu0 0.0
        %10188 = vmatmul.mubr.f32.gmra.mrb[0].mxu0 %v10073
        %v10189 = vpop.f32.mrb[0].mxu0
        %v10190 = vadd.f32 %v10062, %v10189
        %v10191 = vpop.f32.mrb[0].mxu0
        %v10192 = vadd.f32 %v10066, %v10191
        %10193 = vmatprep.mubr.f32.mxu0 0.0
        %10194 = vmatmul.mubr.f32.gmra.mrb[0].mxu0 %v10076
        %v10195 = vpop.f32.mrb[0].mxu0
        %v10196 = vadd.f32 %v10062, %v10195
        %v10197 = vpop.f32.mrb[0].mxu0
        %v10198 = vadd.f32 %v10066, %v10197
        %10199 = vmatprep.mubr.f32.mxu0 0.0
        %10200 = vmatmul.mubr.f32.gmra.mrb[0].mxu0 %v10079
        %v10201 = vpop.f32.mrb[0].mxu0
        %v10202 = vadd.f32 %v10062, %v10201
        %v10203 = vpop.f32.mrb[0].mxu0
        %v10204 = vadd.f32 %v10066, %v10203
        %10205 = vmatprep.mubr.f32.mxu0 0.0
        %10206 = vmatmul.mubr.f32.gmra.mrb[0].mxu0 %v10082
        %v10207 = vpop.f32.mrb[0].mxu0
        %v10208 = vadd.f32 %v10062, %v10207
        %v10209 = vpop.f32.mrb[0].mxu0
        %v10210 = vadd.f32 %v10066, %v10209
        %10211 = vmatprep.mubr.f32.mxu0 0.0
        %10212 = vmatmul.mubr.f32.gmra.mrb[0].mxu0 %v10085
        %v10213 = vpop.f32.mrb[0].mxu0
        %v10214 = vadd.f32 %v10062, %v10213
        %v10215 = vpop.f32.mrb[0].mxu0
        %v10216 = vadd.f32 %v10066, %v10215
        %10217 = vmatprep.mubr.f32.mxu0 0.0
        %10218 = vmatmul.mubr.f32.gmra.mrb[0].mxu0 %v10088
        %v10219 = vpop.f32.mrb[0].mxu0
        %v10220 = vadd.f32 %v10062, %v10219
        %v10221 = vpop.f32.mrb[0].mxu0
        %v10222 = vadd.f32 %v10066, %v10221
        %10223 = vmatprep.mubr.f32.mxu0 0.0
        %10224 = vmatmul.mubr.f32.gmra.mrb[0].mxu0 %v10091
        %v10225 = vpop.f32.mrb[0].mxu0
        %v10226 = vadd.f32 %v10062, %v10225
        %v10227 = vpop.f32.mrb[0].mxu0
        %v10228 = vadd.f32 %v10066, %v10227
        %10229 = vmatprep.mubr.f32.mxu0 0.0
        %10230 = vmatmul.mubr.f32.gmra.mrb[0].mxu0 %v10094
        %v10231 = vpop.f32.mrb[0].mxu0
        %v10232 = vadd.f32 %v10062, %v10231
        %v10233 = vpop.f32.mrb[0].mxu0
        %v10234 = vadd.f32 %v10066, %v10233
        %10235 = vmatprep.mubr.f32.mxu0 0.0
        %10236 = vmatmul.mubr.f32.gmra.mrb[0].mxu0 %v10097
        %v10237 = vpop.f32.mrb[0].mxu0
        %v10238 = vadd.f32 %v10062, %v10237
        %v10239 = vpop.f32.mrb[0].mxu0
        %v10240 = vadd.f32 %v10066, %v10239
        %10241 = vmatprep.mubr.f32.mxu0 0.0
        %10242 = vmatmul.mubr.f32.gmra.mrb[0].mxu0 %v10100
        %v10243 = vpop.f32.mrb[0].mxu0
        %v10244 = vadd.f32 %v10062, %v10243
        %v10245 = vpop.f32.mrb[0].mxu0
        %v10246 = vadd.f32 %v10066, %v10245
        %10247 = vmatprep.mubr.f32.mxu0 0.0
        %10248 = vmatmul.mubr.f32.gmra.mrb[0].mxu0 %v10103
        %v10249 = vpop.f32.mrb[0].mxu0
        %v10250 = vadd.f32 %v10062, %v10249
        %v10251 = vpop.f32.mrb[0].mxu0
        %v10252 = vadd.f32 %v10066, %v10251
        %10253 = vmatprep.mubr.f32.mxu0 0.0
        %10254 = vmatmul.mubr.f32.gmra.mrb[0].mxu0 %v10106
        %v10255 = vpop.f32.mrb[0].mxu0
        %v10256 = vadd.f32 %v10062, %v10255
        %v10257 = vpop.f32.mrb[0].mxu0
        %v10258 = vadd.f32 %v10066, %v10257
        %10259 = vmatprep.mubr.f32.mxu0 0.0
        %10260 = vmatmul.mubr.f32.gmra.mrb[0].mxu0 %v10109
        %v10261 = vpop.f32.mrb[0].mxu0
        %v10262 = vadd.f32 %v10062, %v10261
        %v10263 = vpop.f32.mrb[0].mxu0
        %v10264 = vadd.f32 %v10066, %v10263
        %10265 = vmatprep.mubr.f32.mxu0 0.0
        %10266 = vmatmul.mubr.f32.gmra.mrb[0].mxu0 %v10112
        %v10267 = vpop.f32.mrb[0].mxu0
        %v10268 = vadd.f32 %v10062, %v10267
        %v10269 = vpop.f32.mrb[0].mxu0
        %v10270 = vadd.f32 %v10066, %v10269
        %10271 = vmatprep.mubr.f32.mxu0 0.0
        %10272 = vmatmul.mubr.f32.gmra.mrb[0].mxu0 %v10115
        %v10273 = vpop.f32.mrb[0].mxu0
        %v10274 = vadd.f32 %v10062, %v10273
        %v10275 = vpop.f32.mrb[0].mxu0
        %v10276 = vadd.f32 %v10066, %v10275
        %10277 = vdwg.mxu0
        %v10278 = vmul.f32 %v10184, 0.5
        %v10279 = vmul.f32 %v10186, 0.5
        %v10280 = vmul.f32 %v10190, 0.5
        %v10281 = vmul.f32 %v10192, 0.5
        %v10282 = vmul.f32 %v10196, 0.5
        %v10283 = vmul.f32 %v10198, 0.5
        %v10284 = vmul.f32 %v10202, 0.5
        %v10285 = vmul.f32 %v10204, 0.5
        %v10286 = vmul.f32 %v10208, 0.5
        %v10287 = vmul.f32 %v10210, 0.5
        %v10288 = vmul.f32 %v10214, 0.5
        %v10289 = vmul.f32 %v10216, 0.5
        %v10290 = vmul.f32 %v10220, 0.5
        %v10291 = vmul.f32 %v10222, 0.5
        %v10292 = vmul.f32 %v10226, 0.5
        %v10293 = vmul.f32 %v10228, 0.5
        %v10294 = vmul.f32 %v10232, 0.5
        %v10295 = vmul.f32 %v10234, 0.5
        %v10296 = vmul.f32 %v10238, 0.5
        %v10297 = vmul.f32 %v10240, 0.5
        %v10298 = vmul.f32 %v10244, 0.5
        %v10299 = vmul.f32 %v10246, 0.5
        %v10300 = vmul.f32 %v10250, 0.5
        %v10301 = vmul.f32 %v10252, 0.5
        %v10302 = vmul.f32 %v10256, 0.5
        %v10303 = vmul.f32 %v10258, 0.5
        %v10304 = vmul.f32 %v10262, 0.5
        %v10305 = vmul.f32 %v10264, 0.5
        %v10306 = vmul.f32 %v10268, 0.5
        %v10307 = vmul.f32 %v10270, 0.5
        %v10308 = vmul.f32 %v10274, 0.5
        %v10309 = vmul.f32 %v10276, 0.5
        %v10310 = vmul.f32 %v10184, 0.044715
        %v10311 = vmul.f32 %v10186, 0.044715
        %v10312 = vmul.f32 %v10190, 0.044715
        %v10313 = vmul.f32 %v10192, 0.044715
        %v10314 = vmul.f32 %v10196, 0.044715
        %v10315 = vmul.f32 %v10198, 0.044715
        %v10316 = vmul.f32 %v10202, 0.044715
        %v10317 = vmul.f32 %v10204, 0.044715
        %v10318 = vmul.f32 %v10208, 0.044715
        %v10319 = vmul.f32 %v10210, 0.044715
        %v10320 = vmul.f32 %v10214, 0.044715
        %v10321 = vmul.f32 %v10216, 0.044715
        %v10322 = vmul.f32 %v10220, 0.044715
        %v10323 = vmul.f32 %v10222, 0.044715
        %v10324 = vmul.f32 %v10226, 0.044715
        %v10325 = vmul.f32 %v10228, 0.044715
        %v10326 = vmul.f32 %v10232, 0.044715
        %v10327 = vmul.f32 %v10234, 0.044715
        %v10328 = vmul.f32 %v10238, 0.044715
        %v10329 = vmul.f32 %v10240, 0.044715
        %v10330 = vmul.f32 %v10244, 0.044715
        %v10331 = vmul.f32 %v10246, 0.044715
        %v10332 = vmul.f32 %v10250, 0.044715
        %v10333 = vmul.f32 %v10252, 0.044715
        %v10334 = vmul.f32 %v10256, 0.044715
        %v10335 = vmul.f32 %v10258, 0.044715
        %v10336 = vmul.f32 %v10262, 0.044715
        %v10337 = vmul.f32 %v10264, 0.044715
        %v10338 = vmul.f32 %v10268, 0.044715
        %v10339 = vmul.f32 %v10270, 0.044715
        %v10340 = vmul.f32 %v10274, 0.044715
        %v10341 = vmul.f32 %v10276, 0.044715
        %v10342 = vmul.f32 %v10310, %v10184
        %v10343 = vmul.f32 %v10311, %v10186
        %v10344 = vmul.f32 %v10312, %v10190
        %v10345 = vmul.f32 %v10313, %v10192
        %v10346 = vmul.f32 %v10314, %v10196
        %v10347 = vmul.f32 %v10315, %v10198
        %v10348 = vmul.f32 %v10316, %v10202
        %v10349 = vmul.f32 %v10317, %v10204
        %v10350 = vmul.f32 %v10318, %v10208
        %v10351 = vmul.f32 %v10319, %v10210
        %v10352 = vmul.f32 %v10320, %v10214
        %v10353 = vmul.f32 %v10321, %v10216
        %v10354 = vmul.f32 %v10322, %v10220
        %v10355 = vmul.f32 %v10323, %v10222
        %v10356 = vmul.f32 %v10324, %v10226
        %v10357 = vmul.f32 %v10325, %v10228
        %v10358 = vmul.f32 %v10326, %v10232
        %v10359 = vmul.f32 %v10327, %v10234
        %v10360 = vmul.f32 %v10328, %v10238
        %v10361 = vmul.f32 %v10329, %v10240
        %v10362 = vmul.f32 %v10330, %v10244
        %v10363 = vmul.f32 %v10331, %v10246
        %v10364 = vmul.f32 %v10332, %v10250
        %v10365 = vmul.f32 %v10333, %v10252
        %v10366 = vmul.f32 %v10334, %v10256
        %v10367 = vmul.f32 %v10335, %v10258
        %v10368 = vmul.f32 %v10336, %v10262
        %v10369 = vmul.f32 %v10337, %v10264
        %v10370 = vmul.f32 %v10338, %v10268
        %v10371 = vmul.f32 %v10339, %v10270
        %v10372 = vmul.f32 %v10340, %v10274
        %v10373 = vmul.f32 %v10341, %v10276
        %v10374 = vmul.f32 %v10342, %v10184
        %v10375 = vmul.f32 %v10343, %v10186
        %v10376 = vmul.f32 %v10344, %v10190
        %v10377 = vmul.f32 %v10345, %v10192
        %v10378 = vmul.f32 %v10346, %v10196
        %v10379 = vmul.f32 %v10347, %v10198
        %v10380 = vmul.f32 %v10348, %v10202
        %v10381 = vmul.f32 %v10349, %v10204
        %v10382 = vmul.f32 %v10350, %v10208
        %v10383 = vmul.f32 %v10351, %v10210
        %v10384 = vmul.f32 %v10352, %v10214
        %v10385 = vmul.f32 %v10353, %v10216
        %v10386 = vmul.f32 %v10354, %v10220
        %v10387 = vmul.f32 %v10355, %v10222
        %v10388 = vmul.f32 %v10356, %v10226
        %v10389 = vmul.f32 %v10357, %v10228
        %v10390 = vmul.f32 %v10358, %v10232
        %v10391 = vmul.f32 %v10359, %v10234
        %v10392 = vmul.f32 %v10360, %v10238
        %v10393 = vmul.f32 %v10361, %v10240
        %v10394 = vmul.f32 %v10362, %v10244
        %v10395 = vmul.f32 %v10363, %v10246
        %v10396 = vmul.f32 %v10364, %v10250
        %v10397 = vmul.f32 %v10365, %v10252
        %v10398 = vmul.f32 %v10366, %v10256
        %v10399 = vmul.f32 %v10367, %v10258
        %v10400 = vmul.f32 %v10368, %v10262
        %v10401 = vmul.f32 %v10369, %v10264
        %v10402 = vmul.f32 %v10370, %v10268
        %v10403 = vmul.f32 %v10371, %v10270
        %v10404 = vmul.f32 %v10372, %v10274
        %v10405 = vmul.f32 %v10373, %v10276
        %v10406 = vadd.f32 %v10184, %v10374
        %v10407 = vadd.f32 %v10186, %v10375
        %v10408 = vadd.f32 %v10190, %v10376
        %v10409 = vadd.f32 %v10192, %v10377
        %v10410 = vadd.f32 %v10196, %v10378
        %v10411 = vadd.f32 %v10198, %v10379
        %v10412 = vadd.f32 %v10202, %v10380
        %v10413 = vadd.f32 %v10204, %v10381
        %v10414 = vadd.f32 %v10208, %v10382
        %v10415 = vadd.f32 %v10210, %v10383
        %v10416 = vadd.f32 %v10214, %v10384
        %v10417 = vadd.f32 %v10216, %v10385
        %v10418 = vadd.f32 %v10220, %v10386
        %v10419 = vadd.f32 %v10222, %v10387
        %v10420 = vadd.f32 %v10226, %v10388
        %v10421 = vadd.f32 %v10228, %v10389
        %v10422 = vadd.f32 %v10232, %v10390
        %v10423 = vadd.f32 %v10234, %v10391
        %v10424 = vadd.f32 %v10238, %v10392
        %v10425 = vadd.f32 %v10240, %v10393
        %v10426 = vadd.f32 %v10244, %v10394
        %v10427 = vadd.f32 %v10246, %v10395
        %v10428 = vadd.f32 %v10250, %v10396
        %v10429 = vadd.f32 %v10252, %v10397
        %v10430 = vadd.f32 %v10256, %v10398
        %v10431 = vadd.f32 %v10258, %v10399
        %v10432 = vadd.f32 %v10262, %v10400
        %v10433 = vadd.f32 %v10264, %v10401
        %v10434 = vadd.f32 %v10268, %v10402
        %v10435 = vadd.f32 %v10270, %v10403
        %v10436 = vadd.f32 %v10274, %v10404
        %v10437 = vadd.f32 %v10276, %v10405
        %v10438 = vmul.f32 %v10406, 0.7978846
        %v10439 = vmul.f32 %v10407, 0.7978846
        %v10440 = vmul.f32 %v10408, 0.7978846
        %v10441 = vmul.f32 %v10409, 0.7978846
        %v10442 = vmul.f32 %v10410, 0.7978846
        %v10443 = vmul.f32 %v10411, 0.7978846
        %v10444 = vmul.f32 %v10412, 0.7978846
        %v10445 = vmul.f32 %v10413, 0.7978846
        %v10446 = vmul.f32 %v10414, 0.7978846
        %v10447 = vmul.f32 %v10415, 0.7978846
        %v10448 = vmul.f32 %v10416, 0.7978846
        %v10449 = vmul.f32 %v10417, 0.7978846
        %v10450 = vmul.f32 %v10418, 0.7978846
        %v10451 = vmul.f32 %v10419, 0.7978846
        %v10452 = vmul.f32 %v10420, 0.7978846
        %v10453 = vmul.f32 %v10421, 0.7978846
        %v10454 = vmul.f32 %v10422, 0.7978846
        %v10455 = vmul.f32 %v10423, 0.7978846
        %v10456 = vmul.f32 %v10424, 0.7978846
        %v10457 = vmul.f32 %v10425, 0.7978846
        %v10458 = vmul.f32 %v10426, 0.7978846
        %v10459 = vmul.f32 %v10427, 0.7978846
        %v10460 = vmul.f32 %v10428, 0.7978846
        %v10461 = vmul.f32 %v10429, 0.7978846
        %v10462 = vmul.f32 %v10430, 0.7978846
        %v10463 = vmul.f32 %v10431, 0.7978846
        %v10464 = vmul.f32 %v10432, 0.7978846
        %v10465 = vmul.f32 %v10433, 0.7978846
        %v10466 = vmul.f32 %v10434, 0.7978846
        %v10467 = vmul.f32 %v10435, 0.7978846
        %v10468 = vmul.f32 %v10436, 0.7978846
        %v10469 = vmul.f32 %v10437, 0.7978846
        %v10470 = vtanh.pop %v10438
        %v10471 = vtanh.pop %v10439
        %v10472 = vtanh.pop %v10440
        %v10473 = vtanh.pop %v10441
        %v10474 = vtanh.pop %v10442
        %v10475 = vtanh.pop %v10443
        %v10476 = vtanh.pop %v10444
        %v10477 = vtanh.pop %v10445
        %v10478 = vtanh.pop %v10446
        %v10479 = vtanh.pop %v10447
        %v10480 = vtanh.pop %v10448
        %v10481 = vtanh.pop %v10449
        %v10482 = vtanh.pop %v10450
        %v10483 = vtanh.pop %v10451
        %v10484 = vtanh.pop %v10452
        %v10485 = vtanh.pop %v10453
        %v10486 = vtanh.pop %v10454
        %v10487 = vtanh.pop %v10455
        %v10488 = vtanh.pop %v10456
        %v10489 = vtanh.pop %v10457
        %v10490 = vtanh.pop %v10458
        %v10491 = vtanh.pop %v10459
        %v10492 = vtanh.pop %v10460
        %v10493 = vtanh.pop %v10461
        %v10494 = vtanh.pop %v10462
        %v10495 = vtanh.pop %v10463
        %v10496 = vtanh.pop %v10464
        %v10497 = vtanh.pop %v10465
        %v10498 = vtanh.pop %v10466
        %v10499 = vtanh.pop %v10467
        %v10500 = vtanh.pop %v10468
        %v10501 = vtanh.pop %v10469
        %v10502 = vadd.f32 %v10470, 1.0
        %v10503 = vadd.f32 %v10471, 1.0
        %v10504 = vadd.f32 %v10472, 1.0
        %v10505 = vadd.f32 %v10473, 1.0
        %v10506 = vadd.f32 %v10474, 1.0
        %v10507 = vadd.f32 %v10475, 1.0
        %v10508 = vadd.f32 %v10476, 1.0
        %v10509 = vadd.f32 %v10477, 1.0
        %v10510 = vadd.f32 %v10478, 1.0
        %v10511 = vadd.f32 %v10479, 1.0
        %v10512 = vadd.f32 %v10480, 1.0
        %v10513 = vadd.f32 %v10481, 1.0
        %v10514 = vadd.f32 %v10482, 1.0
        %v10515 = vadd.f32 %v10483, 1.0
        %v10516 = vadd.f32 %v10484, 1.0
        %v10517 = vadd.f32 %v10485, 1.0
        %v10518 = vadd.f32 %v10486, 1.0
        %v10519 = vadd.f32 %v10487, 1.0
        %v10520 = vadd.f32 %v10488, 1.0
        %v10521 = vadd.f32 %v10489, 1.0
        %v10522 = vadd.f32 %v10490, 1.0
        %v10523 = vadd.f32 %v10491, 1.0
        %v10524 = vadd.f32 %v10492, 1.0
        %v10525 = vadd.f32 %v10493, 1.0
        %v10526 = vadd.f32 %v10494, 1.0
        %v10527 = vadd.f32 %v10495, 1.0
        %v10528 = vadd.f32 %v10496, 1.0
        %v10529 = vadd.f32 %v10497, 1.0
        %v10530 = vadd.f32 %v10498, 1.0
        %v10531 = vadd.f32 %v10499, 1.0
        %v10532 = vadd.f32 %v10500, 1.0
        %v10533 = vadd.f32 %v10501, 1.0
        %v10534 = vmul.f32 %v10278, %v10502
        %v10535 = vmul.f32 %v10279, %v10503
        %v10536 = vmul.f32 %v10280, %v10504
        %v10537 = vmul.f32 %v10281, %v10505
        %v10538 = vmul.f32 %v10282, %v10506
        %v10539 = vmul.f32 %v10283, %v10507
        %v10540 = vmul.f32 %v10284, %v10508
        %v10541 = vmul.f32 %v10285, %v10509
        %v10542 = vmul.f32 %v10286, %v10510
        %v10543 = vmul.f32 %v10287, %v10511
        %v10544 = vmul.f32 %v10288, %v10512
        %v10545 = vmul.f32 %v10289, %v10513
        %v10546 = vmul.f32 %v10290, %v10514
        %v10547 = vmul.f32 %v10291, %v10515
        %v10548 = vmul.f32 %v10292, %v10516
        %v10549 = vmul.f32 %v10293, %v10517
        %v10550 = vmul.f32 %v10294, %v10518
        %v10551 = vmul.f32 %v10295, %v10519
        %v10552 = vmul.f32 %v10296, %v10520
        %v10553 = vmul.f32 %v10297, %v10521
        %v10554 = vmul.f32 %v10298, %v10522
        %v10555 = vmul.f32 %v10299, %v10523
        %v10556 = vmul.f32 %v10300, %v10524
        %v10557 = vmul.f32 %v10301, %v10525
        %v10558 = vmul.f32 %v10302, %v10526
        %v10559 = vmul.f32 %v10303, %v10527
        %v10560 = vmul.f32 %v10304, %v10528
        %v10561 = vmul.f32 %v10305, %v10529
        %v10562 = vmul.f32 %v10306, %v10530
        %v10563 = vmul.f32 %v10307, %v10531
        %v10564 = vmul.f32 %v10308, %v10532
        %v10565 = vmul.f32 %v10309, %v10533
        %v10566 = vld [vmem:[%s16] sm:$0xff]
        %v10567 = vld [vmem:[%s16 + $0x8] sm:$0xff]
        %v10568 = vld [vmem:[%s16 + $0x10] sm:$0xff]
        %v10569 = vld [vmem:[%s16 + $0x18] sm:$0xff]
        %v10570 = vld [vmem:[%s16 + $0x20] sm:$0xff]
        %v10571 = vld [vmem:[%s16 + $0x28] sm:$0xff]
        %v10572 = vld [vmem:[%s16 + $0x30] sm:$0xff]
        %v10573 = vld [vmem:[%s16 + $0x38] sm:$0xff]
        %v10574 = vld [vmem:[%s16 + $0x40] sm:$0xff]
        %v10575 = vld [vmem:[%s16 + $0x48] sm:$0xff]
        %v10576 = vld [vmem:[%s16 + $0x50] sm:$0xff]
        %v10577 = vld [vmem:[%s16 + $0x58] sm:$0xff]
        %v10578 = vld [vmem:[%s16 + $0x60] sm:$0xff]
        %v10579 = vld [vmem:[%s16 + $0x68] sm:$0xff]
        %v10580 = vld [vmem:[%s16 + $0x70] sm:$0xff]
        %v10581 = vld [vmem:[%s16 + $0x78] sm:$0xff]
        %v10582 = vld [vmem:[%s16 + $0x80] sm:$0xff]
        %v10583 = vld [vmem:[%s16 + $0x88] sm:$0xff]
        %v10584 = vld [vmem:[%s16 + $0x90] sm:$0xff]
        %v10585 = vld [vmem:[%s16 + $0x98] sm:$0xff]
        %v10586 = vld [vmem:[%s16 + $0xa0] sm:$0xff]
        %v10587 = vld [vmem:[%s16 + $0xa8] sm:$0xff]
        %v10588 = vld [vmem:[%s16 + $0xb0] sm:$0xff]
        %v10589 = vld [vmem:[%s16 + $0xb8] sm:$0xff]
        %v10590 = vld [vmem:[%s16 + $0xc0] sm:$0xff]
        %v10591 = vld [vmem:[%s16 + $0xc8] sm:$0xff]
        %v10592 = vld [vmem:[%s16 + $0xd0] sm:$0xff]
        %v10593 = vld [vmem:[%s16 + $0xd8] sm:$0xff]
        %v10594 = vld [vmem:[%s16 + $0xe0] sm:$0xff]
        %v10595 = vld [vmem:[%s16 + $0xe8] sm:$0xff]
        %v10596 = vld [vmem:[%s16 + $0xf0] sm:$0xff]
        %v10597 = vld [vmem:[%s16 + $0xf8] sm:$0xff]
        %v10598 = vld [vmem:[%s17] sm:$0x1]
        %v10600 = vlaneseq
        %v10601 = vshrl.u32 %v10600, 7
        %v10602 = vsub.s32 0, %v10601
        %v10603 = vrot.slane %v10598, %v10602
        %10605 = vmatprep.subr.mxu0 0.0
        %10606 = vmatpush1.msra.mxu0 %v10566
        %10607 = vmatprep.subr.mxu0 0.0
        %10608 = vmatpush1.msra.mxu0 %v10567
        %10609 = vmatprep.subr.mxu0 0.0
        %10610 = vmatpush1.msra.mxu0 %v10568
        %10611 = vmatprep.subr.mxu0 0.0
        %10612 = vmatpush1.msra.mxu0 %v10569
        %10613 = vmatprep.subr.mxu0 0.0
        %10614 = vmatpush1.msra.mxu0 %v10570
        %10615 = vmatprep.subr.mxu0 0.0
        %10616 = vmatpush1.msra.mxu0 %v10571
        %10617 = vmatprep.subr.mxu0 0.0
        %10618 = vmatpush1.msra.mxu0 %v10572
        %10619 = vmatprep.subr.mxu0 0.0
        %10620 = vmatpush1.msra.mxu0 %v10573
        %10621 = vmatprep.subr.mxu0 0.0
        %10622 = vmatpush1.msra.mxu0 %v10574
        %10623 = vmatprep.subr.mxu0 0.0
        %10624 = vmatpush1.msra.mxu0 %v10575
        %10625 = vmatprep.subr.mxu0 0.0
        %10626 = vmatpush1.msra.mxu0 %v10576
        %10627 = vmatprep.subr.mxu0 0.0
        %10628 = vmatpush1.msra.mxu0 %v10577
        %10629 = vmatprep.subr.mxu0 0.0
        %10630 = vmatpush1.msra.mxu0 %v10578
        %10631 = vmatprep.subr.mxu0 0.0
        %10632 = vmatpush1.msra.mxu0 %v10579
        %10633 = vmatprep.subr.mxu0 0.0
        %10634 = vmatpush1.msra.mxu0 %v10580
        %10635 = vmatprep.subr.mxu0 0.0
        %10636 = vmatpush1.msra.mxu0 %v10581
        %10637 = vmatprep.subr.mxu0 0.0
        %10638 = vmatpush1.msra.mxu0 %v10582
        %10639 = vmatprep.subr.mxu0 0.0
        %10640 = vmatpush1.msra.mxu0 %v10583
        %10641 = vmatprep.subr.mxu0 0.0
        %10642 = vmatpush1.msra.mxu0 %v10584
        %10643 = vmatprep.subr.mxu0 0.0
        %10644 = vmatpush1.msra.mxu0 %v10585
        %10645 = vmatprep.subr.mxu0 0.0
        %10646 = vmatpush1.msra.mxu0 %v10586
        %10647 = vmatprep.subr.mxu0 0.0
        %10648 = vmatpush1.msra.mxu0 %v10587
        %10649 = vmatprep.subr.mxu0 0.0
        %10650 = vmatpush1.msra.mxu0 %v10588
        %10651 = vmatprep.subr.mxu0 0.0
        %10652 = vmatpush1.msra.mxu0 %v10589
        %10653 = vmatprep.subr.mxu0 0.0
        %10654 = vmatpush1.msra.mxu0 %v10590
        %10655 = vmatprep.subr.mxu0 0.0
        %10656 = vmatpush1.msra.mxu0 %v10591
        %10657 = vmatprep.subr.mxu0 0.0
        %10658 = vmatpush1.msra.mxu0 %v10592
        %10659 = vmatprep.subr.mxu0 0.0
        %10660 = vmatpush1.msra.mxu0 %v10593
        %10661 = vmatprep.subr.mxu0 0.0
        %10662 = vmatpush1.msra.mxu0 %v10594
        %10663 = vmatprep.subr.mxu0 0.0
        %10664 = vmatpush1.msra.mxu0 %v10595
        %10665 = vmatprep.subr.mxu0 0.0
        %10666 = vmatpush1.msra.mxu0 %v10596
        %10667 = vmatprep.subr.mxu0 0.0
        %10668 = vmatpush1.msra.mxu0 %v10597
        %10669 = vmatprep.mubr.f32.mxu0 %v10535
        %10670 = vmatmul.mubr.f32.gmra.mrb[0].mxu0 %v10534
        %v10671 = vpop.f32.mrb[0].mxu0
        %v10672 = vadd.f32 %v10603, %v10671
        %v10673 = vpop.f32.mrb[0].mxu0
        %10674 = vmatprep.mubr.f32.mxu0 %v10537
        %10675 = vmatmul.mubr.f32.gmra.mrb[0].mxu0 %v10536
        %v10676 = vpop.f32.mrb[0].mxu0
        %v10677 = vadd.f32 %v10603, %v10676
        %v10678 = vpop.f32.mrb[0].mxu0
        %10679 = vmatprep.mubr.f32.mxu0 %v10539
        %10680 = vmatmul.mubr.f32.gmra.mrb[0].mxu0 %v10538
        %v10681 = vpop.f32.mrb[0].mxu0
        %v10682 = vadd.f32 %v10603, %v10681
        %v10683 = vpop.f32.mrb[0].mxu0
        %10684 = vmatprep.mubr.f32.mxu0 %v10541
        %10685 = vmatmul.mubr.f32.gmra.mrb[0].mxu0 %v10540
        %v10686 = vpop.f32.mrb[0].mxu0
        %v10687 = vadd.f32 %v10603, %v10686
        %v10688 = vpop.f32.mrb[0].mxu0
        %10689 = vmatprep.mubr.f32.mxu0 %v10543
        %10690 = vmatmul.mubr.f32.gmra.mrb[0].mxu0 %v10542
        %v10691 = vpop.f32.mrb[0].mxu0
        %v10692 = vadd.f32 %v10603, %v10691
        %v10693 = vpop.f32.mrb[0].mxu0
        %10694 = vmatprep.mubr.f32.mxu0 %v10545
        %10695 = vmatmul.mubr.f32.gmra.mrb[0].mxu0 %v10544
        %v10696 = vpop.f32.mrb[0].mxu0
        %v10697 = vadd.f32 %v10603, %v10696
        %v10698 = vpop.f32.mrb[0].mxu0
        %10699 = vmatprep.mubr.f32.mxu0 %v10547
        %10700 = vmatmul.mubr.f32.gmra.mrb[0].mxu0 %v10546
        %v10701 = vpop.f32.mrb[0].mxu0
        %v10702 = vadd.f32 %v10603, %v10701
        %v10703 = vpop.f32.mrb[0].mxu0
        %10704 = vmatprep.mubr.f32.mxu0 %v10549
        %10705 = vmatmul.mubr.f32.gmra.mrb[0].mxu0 %v10548
        %v10706 = vpop.f32.mrb[0].mxu0
        %v10707 = vadd.f32 %v10603, %v10706
        %v10708 = vpop.f32.mrb[0].mxu0
        %10709 = vmatprep.mubr.f32.mxu0 %v10551
        %10710 = vmatmul.mubr.f32.gmra.mrb[0].mxu0 %v10550
        %v10711 = vpop.f32.mrb[0].mxu0
        %v10712 = vadd.f32 %v10603, %v10711
        %v10713 = vpop.f32.mrb[0].mxu0
        %10714 = vmatprep.mubr.f32.mxu0 %v10553
        %10715 = vmatmul.mubr.f32.gmra.mrb[0].mxu0 %v10552
        %v10716 = vpop.f32.mrb[0].mxu0
        %v10717 = vadd.f32 %v10603, %v10716
        %v10718 = vpop.f32.mrb[0].mxu0
        %10719 = vmatprep.mubr.f32.mxu0 %v10555
        %10720 = vmatmul.mubr.f32.gmra.mrb[0].mxu0 %v10554
        %v10721 = vpop.f32.mrb[0].mxu0
        %v10722 = vadd.f32 %v10603, %v10721
        %v10723 = vpop.f32.mrb[0].mxu0
        %10724 = vmatprep.mubr.f32.mxu0 %v10557
        %10725 = vmatmul.mubr.f32.gmra.mrb[0].mxu0 %v10556
        %v10726 = vpop.f32.mrb[0].mxu0
        %v10727 = vadd.f32 %v10603, %v10726
        %v10728 = vpop.f32.mrb[0].mxu0
        %10729 = vmatprep.mubr.f32.mxu0 %v10559
        %10730 = vmatmul.mubr.f32.gmra.mrb[0].mxu0 %v10558
        %v10731 = vpop.f32.mrb[0].mxu0
        %v10732 = vadd.f32 %v10603, %v10731
        %v10733 = vpop.f32.mrb[0].mxu0
        %10734 = vmatprep.mubr.f32.mxu0 %v10561
        %10735 = vmatmul.mubr.f32.gmra.mrb[0].mxu0 %v10560
        %v10736 = vpop.f32.mrb[0].mxu0
        %v10737 = vadd.f32 %v10603, %v10736
        %v10738 = vpop.f32.mrb[0].mxu0
        %10739 = vmatprep.mubr.f32.mxu0 %v10563
        %10740 = vmatmul.mubr.f32.gmra.mrb[0].mxu0 %v10562
        %v10741 = vpop.f32.mrb[0].mxu0
        %v10742 = vadd.f32 %v10603, %v10741
        %v10743 = vpop.f32.mrb[0].mxu0
        %10744 = vmatprep.mubr.f32.mxu0 %v10565
        %10745 = vmatmul.mubr.f32.gmra.mrb[0].mxu0 %v10564
        %v10746 = vpop.f32.mrb[0].mxu0
        %v10747 = vadd.f32 %v10603, %v10746
        %v10748 = vpop.f32.mrb[0].mxu0
        %10749 = vdwg.mxu0
        %v10750 = vmul.f32 %v10672, 0.5
        %v10751 = vmul.f32 %v10677, 0.5
        %v10752 = vmul.f32 %v10682, 0.5
        %v10753 = vmul.f32 %v10687, 0.5
        %v10754 = vmul.f32 %v10692, 0.5
        %v10755 = vmul.f32 %v10697, 0.5
        %v10756 = vmul.f32 %v10702, 0.5
        %v10757 = vmul.f32 %v10707, 0.5
        %v10758 = vmul.f32 %v10712, 0.5
        %v10759 = vmul.f32 %v10717, 0.5
        %v10760 = vmul.f32 %v10722, 0.5
        %v10761 = vmul.f32 %v10727, 0.5
        %v10762 = vmul.f32 %v10732, 0.5
        %v10763 = vmul.f32 %v10737, 0.5
        %v10764 = vmul.f32 %v10742, 0.5
        %v10765 = vmul.f32 %v10747, 0.5
        %v10766 = vmul.f32 %v10672, 0.044715
        %v10767 = vmul.f32 %v10677, 0.044715
        %v10768 = vmul.f32 %v10682, 0.044715
        %v10769 = vmul.f32 %v10687, 0.044715
        %v10770 = vmul.f32 %v10692, 0.044715
        %v10771 = vmul.f32 %v10697, 0.044715
        %v10772 = vmul.f32 %v10702, 0.044715
        %v10773 = vmul.f32 %v10707, 0.044715
        %v10774 = vmul.f32 %v10712, 0.044715
        %v10775 = vmul.f32 %v10717, 0.044715
        %v10776 = vmul.f32 %v10722, 0.044715
        %v10777 = vmul.f32 %v10727, 0.044715
        %v10778 = vmul.f32 %v10732, 0.044715
        %v10779 = vmul.f32 %v10737, 0.044715
        %v10780 = vmul.f32 %v10742, 0.044715
        %v10781 = vmul.f32 %v10747, 0.044715
        %v10782 = vmul.f32 %v10766, %v10672
        %v10783 = vmul.f32 %v10767, %v10677
        %v10784 = vmul.f32 %v10768, %v10682
        %v10785 = vmul.f32 %v10769, %v10687
        %v10786 = vmul.f32 %v10770, %v10692
        %v10787 = vmul.f32 %v10771, %v10697
        %v10788 = vmul.f32 %v10772, %v10702
        %v10789 = vmul.f32 %v10773, %v10707
        %v10790 = vmul.f32 %v10774, %v10712
        %v10791 = vmul.f32 %v10775, %v10717
        %v10792 = vmul.f32 %v10776, %v10722
        %v10793 = vmul.f32 %v10777, %v10727
        %v10794 = vmul.f32 %v10778, %v10732
        %v10795 = vmul.f32 %v10779, %v10737
        %v10796 = vmul.f32 %v10780, %v10742
        %v10797 = vmul.f32 %v10781, %v10747
        %v10798 = vmul.f32 %v10782, %v10672
        %v10799 = vmul.f32 %v10783, %v10677
        %v10800 = vmul.f32 %v10784, %v10682
        %v10801 = vmul.f32 %v10785, %v10687
        %v10802 = vmul.f32 %v10786, %v10692
        %v10803 = vmul.f32 %v10787, %v10697
        %v10804 = vmul.f32 %v10788, %v10702
        %v10805 = vmul.f32 %v10789, %v10707
        %v10806 = vmul.f32 %v10790, %v10712
        %v10807 = vmul.f32 %v10791, %v10717
        %v10808 = vmul.f32 %v10792, %v10722
        %v10809 = vmul.f32 %v10793, %v10727
        %v10810 = vmul.f32 %v10794, %v10732
        %v10811 = vmul.f32 %v10795, %v10737
        %v10812 = vmul.f32 %v10796, %v10742
        %v10813 = vmul.f32 %v10797, %v10747
        %v10814 = vadd.f32 %v10672, %v10798
        %v10815 = vadd.f32 %v10677, %v10799
        %v10816 = vadd.f32 %v10682, %v10800
        %v10817 = vadd.f32 %v10687, %v10801
        %v10818 = vadd.f32 %v10692, %v10802
        %v10819 = vadd.f32 %v10697, %v10803
        %v10820 = vadd.f32 %v10702, %v10804
        %v10821 = vadd.f32 %v10707, %v10805
        %v10822 = vadd.f32 %v10712, %v10806
        %v10823 = vadd.f32 %v10717, %v10807
        %v10824 = vadd.f32 %v10722, %v10808
        %v10825 = vadd.f32 %v10727, %v10809
        %v10826 = vadd.f32 %v10732, %v10810
        %v10827 = vadd.f32 %v10737, %v10811
        %v10828 = vadd.f32 %v10742, %v10812
        %v10829 = vadd.f32 %v10747, %v10813
        %v10830 = vmul.f32 %v10814, 0.7978846
        %v10831 = vmul.f32 %v10815, 0.7978846
        %v10832 = vmul.f32 %v10816, 0.7978846
        %v10833 = vmul.f32 %v10817, 0.7978846
        %v10834 = vmul.f32 %v10818, 0.7978846
        %v10835 = vmul.f32 %v10819, 0.7978846
        %v10836 = vmul.f32 %v10820, 0.7978846
        %v10837 = vmul.f32 %v10821, 0.7978846
        %v10838 = vmul.f32 %v10822, 0.7978846
        %v10839 = vmul.f32 %v10823, 0.7978846
        %v10840 = vmul.f32 %v10824, 0.7978846
        %v10841 = vmul.f32 %v10825, 0.7978846
        %v10842 = vmul.f32 %v10826, 0.7978846
        %v10843 = vmul.f32 %v10827, 0.7978846
        %v10844 = vmul.f32 %v10828, 0.7978846
        %v10845 = vmul.f32 %v10829, 0.7978846
        %v10846 = vtanh.pop %v10830
        %v10847 = vtanh.pop %v10831
        %v10848 = vtanh.pop %v10832
        %v10849 = vtanh.pop %v10833
        %v10850 = vtanh.pop %v10834
        %v10851 = vtanh.pop %v10835
        %v10852 = vtanh.pop %v10836
        %v10853 = vtanh.pop %v10837
        %v10854 = vtanh.pop %v10838
        %v10855 = vtanh.pop %v10839
        %v10856 = vtanh.pop %v10840
        %v10857 = vtanh.pop %v10841
        %v10858 = vtanh.pop %v10842
        %v10859 = vtanh.pop %v10843
        %v10860 = vtanh.pop %v10844
        %v10861 = vtanh.pop %v10845
        %v10862 = vadd.f32 %v10846, 1.0
        %v10863 = vadd.f32 %v10847, 1.0
        %v10864 = vadd.f32 %v10848, 1.0
        %v10865 = vadd.f32 %v10849, 1.0
        %v10866 = vadd.f32 %v10850, 1.0
        %v10867 = vadd.f32 %v10851, 1.0
        %v10868 = vadd.f32 %v10852, 1.0
        %v10869 = vadd.f32 %v10853, 1.0
        %v10870 = vadd.f32 %v10854, 1.0
        %v10871 = vadd.f32 %v10855, 1.0
        %v10872 = vadd.f32 %v10856, 1.0
        %v10873 = vadd.f32 %v10857, 1.0
        %v10874 = vadd.f32 %v10858, 1.0
        %v10875 = vadd.f32 %v10859, 1.0
        %v10876 = vadd.f32 %v10860, 1.0
        %v10877 = vadd.f32 %v10861, 1.0
        %v10878 = vmul.f32 %v10750, %v10862
        %v10879 = vmul.f32 %v10751, %v10863
        %v10880 = vmul.f32 %v10752, %v10864
        %v10881 = vmul.f32 %v10753, %v10865
        %v10882 = vmul.f32 %v10754, %v10866
        %v10883 = vmul.f32 %v10755, %v10867
        %v10884 = vmul.f32 %v10756, %v10868
        %v10885 = vmul.f32 %v10757, %v10869
        %v10886 = vmul.f32 %v10758, %v10870
        %v10887 = vmul.f32 %v10759, %v10871
        %v10888 = vmul.f32 %v10760, %v10872
        %v10889 = vmul.f32 %v10761, %v10873
        %v10890 = vmul.f32 %v10762, %v10874
        %v10891 = vmul.f32 %v10763, %v10875
        %v10892 = vmul.f32 %v10764, %v10876
        %v10893 = vmul.f32 %v10765, %v10877
        %v10894 = vadd.f32 %v9771, %v10878
        %v10895 = vadd.f32 %v9772, %v10879
        %v10896 = vadd.f32 %v9773, %v10880
        %v10897 = vadd.f32 %v9774, %v10881
        %v10898 = vadd.f32 %v9775, %v10882
        %v10899 = vadd.f32 %v9776, %v10883
        %v10900 = vadd.f32 %v9777, %v10884
        %v10901 = vadd.f32 %v9778, %v10885
        %v10902 = vadd.f32 %v9779, %v10886
        %v10903 = vadd.f32 %v9780, %v10887
        %v10904 = vadd.f32 %v9781, %v10888
        %v10905 = vadd.f32 %v9782, %v10889
        %v10906 = vadd.f32 %v9783, %v10890
        %v10907 = vadd.f32 %v9784, %v10891
        %v10908 = vadd.f32 %v9785, %v10892
        %v10909 = vadd.f32 %v9786, %v10893
        %10910 = vst.msk [vmem:[%s609] sm:$0xff] %vm648, %v10894
        %10911 = vst.msk [vmem:[%s609 + $0x8] sm:$0xff] %vm648, %v10895
        %10912 = vst.msk [vmem:[%s609 + $0x10] sm:$0xff] %vm648, %v10896
        %10913 = vst.msk [vmem:[%s609 + $0x18] sm:$0xff] %vm648, %v10897
        %10914 = vst.msk [vmem:[%s609 + $0x20] sm:$0xff] %vm648, %v10898
        %10915 = vst.msk [vmem:[%s609 + $0x28] sm:$0xff] %vm648, %v10899
        %10916 = vst.msk [vmem:[%s609 + $0x30] sm:$0xff] %vm648, %v10900
        %10917 = vst.msk [vmem:[%s609 + $0x38] sm:$0xff] %vm648, %v10901
        %10918 = vst.msk [vmem:[%s609 + $0x40] sm:$0xff] %vm648, %v10902
        %10919 = vst.msk [vmem:[%s609 + $0x48] sm:$0xff] %vm648, %v10903
        %10920 = vst.msk [vmem:[%s609 + $0x50] sm:$0xff] %vm648, %v10904
        %10921 = vst.msk [vmem:[%s609 + $0x58] sm:$0xff] %vm648, %v10905
        %10922 = vst.msk [vmem:[%s609 + $0x60] sm:$0xff] %vm648, %v10906
        %10923 = vst.msk [vmem:[%s609 + $0x68] sm:$0xff] %vm648, %v10907
        %10924 = vst.msk [vmem:[%s609 + $0x70] sm:$0xff] %vm648, %v10908
        %10925 = vst.msk [vmem:[%s609 + $0x78] sm:$0xff] %vm648, %v10909
        %s10926 = sand.u32 %s427, 1
        %s10927 = scalar_lea.sflag [#allocation4], %s10926
        %s10928 = sand.u32 %s427, 1
        %s10929 = smul.addr %s10928, 128
        %s10930 = scalar_lea.vmem [#allocation7], %s10929
        // Predicated region
        $region101: #{tpu_custom_call.1} parent=91 // pred_check
          %p10931 = pneg %p437
        $region102: #{tpu_custom_call.1} parent=91 // pred_check_branch
          %10933 = sbr.rel (%p10931) target = $region104
        $region103: #{tpu_custom_call.1} parent=91 // pred_region
          %s10934 = smul.u32 8, %s36
          %s10936 = ssub.s32 2048, 2048
          %10937 = vsyncadd %s10927, %s10936
          %s10938 = smul.addr %s10934, 2
          %s10939 = smul.addr %s10938, 128
          %s10940 = scalar_lea.hbm %s18, %s10939
          %s10941 = sshll.u32 %s10930, 4
          %s10942 = int_to_ptr.vmem [resolvable:$true] %s10941
          %10947 = dma.vmem_to_hbm [thread:$0]  %s10942, 2048, %s10940, %s10927, 128, 128, 8
        $region104: #{tpu_custom_call.1} parent=91 // pred_fallthru
          _
      $region92: #{tpu_custom_call.1} parent=5 // pred_fallthru
        _
      %p10948 = scmp.le.s32.totalorder 2, %s31
      // Predicated region
      $region105: #{tpu_custom_call.1} parent=5 // pred_check
        %p10949 = pneg %p10948
      $region106: #{tpu_custom_call.1} parent=5 // pred_check_branch
        %10951 = sbr.rel (%p10949) target = $region108
      $region107: #{tpu_custom_call.1} parent=5 // pred_region
        %s10952 = ssub.s32 %s31, 2
        // Predicated region
        $region109: #{tpu_custom_call.1} parent=107 // pred_check
          %p10953 = pneg %p443
        $region110: #{tpu_custom_call.1} parent=107 // pred_check_branch
          %10955 = sbr.rel (%p10953) target = $region112
        $region111: #{tpu_custom_call.1} parent=107 // pred_region
          %s10956 = sand.u32 %s428, 1
          %s10957 = scalar_lea.sflag [#allocation4], %s10956
          %s10958 = sand.u32 %s428, 1
          %s10959 = smul.addr %s10958, 128
          %s10960 = scalar_lea.vmem [#allocation7], %s10959
          %10961 = dma.done %s10957, 2048
        $region112: #{tpu_custom_call.1} parent=107 // pred_fallthru
          _
      $region108: #{tpu_custom_call.1} parent=5 // pred_fallthru
        _
    $region6: #{tpu_custom_call.1} parent=1 // loop_footer
      %s35 = sadd.s32 1, %s31
    $region7: #{tpu_custom_call.1} parent=1 // loop_footer_branch
      %30 = sbr.rel target = $region3
    $region8: #{tpu_custom_call.1} parent=1 // loop_exit
      _
    %10962 = vsyncpa [#allocation3], 1
    %s10963 = scalar_lea.sflag [#allocation3], 1
    %10964 = vsyncpa %s10963, 1
    %10965 = vsyncpa [#allocation6], 1
    %10966 = vsyncpa [#allocation4], 1
    %s10967 = scalar_lea.sflag [#allocation4], 1
    %10968 = vsyncpa %s10967, 1

</llo_original>
